<compile_context>
chip_gen: v6e
topology: v6e:2x2x1
jax: 0.10.0
libtpu: 0.0.40
codegen_flags: <defaults>
</compile_context>

<pallas_src>
import math
import numpy as np
import jax
import jax.numpy as jnp
from jax.experimental import pallas as pl
from jax.experimental.pallas import tpu as pltpu

# ----------------------- configuration (consistent with the module) -----------
D_IN = 3                  # xyz input
MULTIRES = 4              # positional encoding frequencies
FEATURE_SIZE = 8          # feature_vector_size
D_OUT = 1                 # sdf value
HIDDEN = [32, 32, 32]     # hidden dims
SKIP_IN = (2,)            # skip connection into layer 2
BIAS_INIT = 1.0
BETA = 100.0              # Softplus beta (PyTorch default threshold=20)
INV_BETA = 1.0 / BETA
SP_THRESHOLD = 20.0

INPUT_CH = D_IN + 2 * D_IN * MULTIRES                  # 3 + 2*3*4 = 27
DIMS = [INPUT_CH] + HIDDEN + [D_OUT + FEATURE_SIZE]    # [27, 32, 32, 32, 9]
NUM_LAYERS = len(DIMS)                                 # 5 -> 4 linear layers
OUT_DIM = D_OUT + FEATURE_SIZE                         # 9
FREQS = tuple(float(2.0 ** i) for i in range(MULTIRES))  # log_sampling=True

N = 1500                  # number of points (NOT a multiple of 128 -> exercises padding)
TM_MAX = 2048             # max points per grid tile (lane axis)


# ------------- column permutation: PyTorch interleaved PE -> grouped PE -------
# PyTorch order : [x, sin(f0 x), cos(f0 x), sin(f1 x), cos(f1 x), ...]   (27 cols)
# Grouped order : [x, sin(f0 x), sin(f1 x), ..., cos(f0 x), cos(f1 x), ...]
def _grouped_perm():
    perm = list(range(D_IN))                                  # raw xyz
    for i in range(MULTIRES):                                 # all sin blocks
        base = D_IN + 2 * D_IN * i
        perm += [base + j for j in range(D_IN)]
    for i in range(MULTIRES):                                 # all cos blocks
        base = D_IN + 2 * D_IN * i + D_IN
        perm += [base + j for j in range(D_IN)]
    return np.asarray(perm, dtype=np.int32)

_EMB_PERM = _grouped_perm()


# ----------------------------- parameter initialization (geometric_init) ------
def init_params(key):
    """Replicates geometric init of ImplicitNetwork.__init__ (weight_norm at init
    is identity on the forward pass since g = ||v||).  Weights stored (out, in)
    in PyTorch interleaved-PE column order, biases (out, 1)."""
    params = {}
    for l in range(NUM_LAYERS - 1):
        in_dim = DIMS[l]
        if l + 1 in SKIP_IN:
            out_dim = DIMS[l + 1] - DIMS[0]
        else:
            out_dim = DIMS[l + 1]

        key, k_w = jax.random.split(key)
        if l == NUM_LAYERS - 2:  # last linear layer
            w = jax.random.normal(k_w, (out_dim, in_dim), jnp.float32) * 1e-4 \
                + (-math.sqrt(math.pi) / math.sqrt(DIMS[l]))
            b = jnp.full((out_dim,), BIAS_INIT, jnp.float32)
        elif l == 0:  # first layer: only raw xyz columns get random weights
            std = math.sqrt(2.0) / math.sqrt(out_dim)
            w_xyz = jax.random.normal(k_w, (out_dim, 3), jnp.float32) * std
            w = jnp.concatenate(
                [w_xyz, jnp.zeros((out_dim, in_dim - 3), jnp.float32)], axis=1)
            b = jnp.zeros((out_dim,), jnp.float32)
        elif l in SKIP_IN:  # skip layer: zero the columns hit by the PE part of input
            std = math.sqrt(2.0) / math.sqrt(out_dim)
            w = jax.random.normal(k_w, (out_dim, in_dim), jnp.float32) * std
            w = w.at[:, -(DIMS[0] - 3):].set(0.0)
            b = jnp.zeros((out_dim,), jnp.float32)
        else:
            std = math.sqrt(2.0) / math.sqrt(out_dim)
            w = jax.random.normal(k_w, (out_dim, in_dim), jnp.float32) * std
            b = jnp.zeros((out_dim,), jnp.float32)

        params[f"w{l}"] = w                      # (out, in)
        params[f"b{l}"] = b.reshape(-1, 1)       # (out, 1)
    return params


# ----------------------------- softplus(beta=100, threshold=20) ---------------
def _softplus100(v):
    t = v * BETA
    safe = jnp.log1p(jnp.exp(jnp.minimum(t, SP_THRESHOLD))) * INV_BETA
    return jnp.where(t > SP_THRESHOLD, v, safe)


# ----------------------------- Pallas kernel ----------------------------------
def mlp_kernel(x_ref, w0, b0, w1, b1, w2a, w2b, b2, w3, b3, out_ref):
    # x_ref: [3, TM] raw xyz, points on the lane axis (lane-dense everywhere).
    xyz = x_ref[...]

    # Grouped positional embedding: one sin and one cos over a [12, TM] slab.
    xs = jnp.concatenate([xyz * jnp.float32(f) for f in FREQS], axis=0)   # [12, TM]
    e = jnp.concatenate([xyz, jnp.sin(xs), jnp.cos(xs)], axis=0)          # [27, TM]

    f32 = jnp.float32
    # layer 0: [32,27] @ [27,TM]   (w0 columns permuted to grouped PE order)
    h = _softplus100(jnp.dot(w0[...], e, preferred_element_type=f32) + b0[...])
    # layer 1: [5,32] @ [32,TM]    (out dim reduced for the upcoming skip)
    h = _softplus100(jnp.dot(w1[...], h, preferred_element_type=f32) + b1[...])
    # layer 2 (skip): W2 @ (cat([h, e], 0) / sqrt(2)) + b2
    #              == (W2[:, :5] @ h + W2[:, 5:] @ e) / sqrt(2) + b2
    inv_sqrt2 = jnp.float32(1.0 / math.sqrt(2.0))
    s = (jnp.dot(w2a[...], h, preferred_element_type=f32)
         + jnp.dot(w2b[...], e, preferred_element_type=f32)) * inv_sqrt2
    h = _softplus100(s + b2[...])
    # layer 3 (last, no activation; output_activation=None)
    out_ref[...] = jnp.dot(w3[...], h, preferred_element_type=f32) + b3[...]


def implicit_network_forward(x, params, tm_max=TM_MAX):
    """x: [N, 3] float32 -> [N, D_OUT + FEATURE_SIZE]."""
    n = x.shape[0]
    tm = min(tm_max, 128 * pl.cdiv(n, 128))     # adaptive tile (multiple of 128)
    n_pad = tm * pl.cdiv(n, tm)

    xt = x.T                                               # [3, N] points on lanes
    if n_pad != n:
        xt = jnp.pad(xt, ((0, 0), (0, n_pad - n)))

    # Weights: permute the PE columns of layer 0 and the skip's embedding part
    # into the grouped order produced inside the kernel (semantics unchanged).
    w0 = params["w0"][:, _EMB_PERM]                        # (32,27)
    b0 = params["b0"]                                      # (32,1)
    w1, b1 = params["w1"], params["b1"]                    # (5,32),  (5,1)
    w2, b2 = params["w2"], params["b2"]                    # (32,32), (32,1)
    w3, b3 = params["w3"], params["b3"]                    # (9,32),  (9,1)
    h1_dim = w1.shape[0]
    w2a = w2[:, :h1_dim]                                   # (32,5)
    w2b = w2[:, h1_dim:][:, _EMB_PERM]                     # (32,27), grouped order

    weights = (w0, b0, w1, b1, w2a, w2b, b2, w3, b3)
    full = lambda a: pl.BlockSpec(a.shape, lambda i: (0,) * a.ndim)

    out_t = pl.pallas_call(
        mlp_kernel,
        out_shape=jax.ShapeDtypeStruct((OUT_DIM, n_pad), jnp.float32),
        grid_spec=pltpu.PrefetchScalarGridSpec(
            num_scalar_prefetch=0,
            grid=(n_pad // tm,),
            in_specs=[pl.BlockSpec((D_IN, tm), lambda i: (0, i))]
                     + [full(w) for w in weights],
            out_specs=pl.BlockSpec((OUT_DIM, tm), lambda i: (0, i)),
        ),
        compiler_params=pltpu.CompilerParams(dimension_semantics=("parallel",)),
    )(xt, *weights)

    return out_t[:, :n].T                                  # [N, 9]


# ----------------------------- plain-JAX reference (for verification) ---------
def positional_embed(x):
    # PyTorch interleaved order: x, sin(f0 x), cos(f0 x), sin(f1 x), ...
    parts = [x]
    for f in FREQS:
        parts.append(jnp.sin(x * f))
        parts.append(jnp.cos(x * f))
    return jnp.concatenate(parts, axis=-1)


def reference_forward(x, params):
    emb = positional_embed(x)
    h = _softplus100(emb @ params["w0"].T + params["b0"].T)
    h = _softplus100(h @ params["w1"].T + params["b1"].T)
    h = _softplus100(
        (jnp.concatenate([h, emb], axis=-1) / math.sqrt(2.0)) @ params["w2"].T
        + params["b2"].T)
    return h @ params["w3"].T + params["b3"].T


# ----------------------------- main --------------------------------------------
if __name__ == "__main__":
    key = jax.random.PRNGKey(0)
    key, k_x, k_p = jax.random.split(key, 3)

    x = jax.random.uniform(k_x, (N, D_IN), jnp.float32, minval=-1.0, maxval=1.0)
    params = init_params(k_p)

    out = jax.block_until_ready(implicit_network_forward(x, params))
    ref = reference_forward(x, params)

    assert out.shape == (N, OUT_DIM), out.shape
    np.testing.assert_allclose(np.asarray(out), np.asarray(ref), atol=1e-4, rtol=1e-4)

    # TODO(synk): gradient()/get_outputs() autograd paths are not implemented
    # (forward pass only); bounding-sphere SDF clamping lives outside this module's forward.
    print("KERNEL_OK")
</pallas_src>

<mosaic_0001>
module attributes {stable_mosaic.version = 11 : i64} {
  func.func @mlp_kernel(%arg0: i32, %arg1: memref<3x1536xf32, #tpu.memory_space<vmem>>, %arg2: memref<32x27xf32, #tpu.memory_space<vmem>>, %arg3: memref<32x1xf32, #tpu.memory_space<vmem>>, %arg4: memref<5x32xf32, #tpu.memory_space<vmem>>, %arg5: memref<5x1xf32, #tpu.memory_space<vmem>>, %arg6: memref<32x5xf32, #tpu.memory_space<vmem>>, %arg7: memref<32x27xf32, #tpu.memory_space<vmem>>, %arg8: memref<32x1xf32, #tpu.memory_space<vmem>>, %arg9: memref<9x32xf32, #tpu.memory_space<vmem>>, %arg10: memref<9x1xf32, #tpu.memory_space<vmem>>, %arg11: memref<9x1536xf32, #tpu.memory_space<vmem>>) attributes {dimension_semantics = [#tpu.dimension_semantics<parallel>], iteration_bounds = array<i64: 1>, scalar_prefetch = 0 : i64, scratch_operands = 0 : i64, tpu.core_type = #tpu.core_type<tc>, window_params = [{transform_indices = @transform_0, window_bounds = array<i64: 3, 1536>}, {pipeline_mode = #tpu.pipeline_mode<synchronous>, transform_indices = @transform_1, window_bounds = array<i64: 32, 27>}, {pipeline_mode = #tpu.pipeline_mode<synchronous>, transform_indices = @transform_2, window_bounds = array<i64: 32, 1>}, {pipeline_mode = #tpu.pipeline_mode<synchronous>, transform_indices = @transform_3, window_bounds = array<i64: 5, 32>}, {pipeline_mode = #tpu.pipeline_mode<synchronous>, transform_indices = @transform_4, window_bounds = array<i64: 5, 1>}, {pipeline_mode = #tpu.pipeline_mode<synchronous>, transform_indices = @transform_5, window_bounds = array<i64: 32, 5>}, {pipeline_mode = #tpu.pipeline_mode<synchronous>, transform_indices = @transform_6, window_bounds = array<i64: 32, 27>}, {pipeline_mode = #tpu.pipeline_mode<synchronous>, transform_indices = @transform_7, window_bounds = array<i64: 32, 1>}, {pipeline_mode = #tpu.pipeline_mode<synchronous>, transform_indices = @transform_8, window_bounds = array<i64: 9, 32>}, {pipeline_mode = #tpu.pipeline_mode<synchronous>, transform_indices = @transform_9, window_bounds = array<i64: 9, 1>}, {transform_indices = @transform_10, window_bounds = array<i64: 9, 1536>}]} {
    %c0 = arith.constant 0 : index
    %c0_0 = arith.constant 0 : index
    %0 = vector.load %arg1[%c0, %c0_0] : memref<3x1536xf32, #tpu.memory_space<vmem>>, vector<3x1536xf32>
    %cst = arith.constant 1.000000e+00 : f32
    %1 = vector.broadcast %cst : f32 to vector<3x1536xf32>
    %2 = arith.mulf %0, %1 : vector<3x1536xf32>
    %cst_1 = arith.constant 2.000000e+00 : f32
    %3 = vector.broadcast %cst_1 : f32 to vector<3x1536xf32>
    %4 = arith.mulf %0, %3 : vector<3x1536xf32>
    %cst_2 = arith.constant 4.000000e+00 : f32
    %5 = vector.broadcast %cst_2 : f32 to vector<3x1536xf32>
    %6 = arith.mulf %0, %5 : vector<3x1536xf32>
    %cst_3 = arith.constant 8.000000e+00 : f32
    %7 = vector.broadcast %cst_3 : f32 to vector<3x1536xf32>
    %8 = arith.mulf %0, %7 : vector<3x1536xf32>
    %9 = tpu.concatenate %2, %4, %6, %8 in 0 : vector<3x1536xf32>, vector<3x1536xf32>, vector<3x1536xf32>, vector<3x1536xf32> -> vector<12x1536xf32>
    %10 = math.sin %9 : vector<12x1536xf32>
    %11 = math.cos %9 : vector<12x1536xf32>
    %12 = tpu.concatenate %0, %10, %11 in 0 : vector<3x1536xf32>, vector<12x1536xf32>, vector<12x1536xf32> -> vector<27x1536xf32>
    %c0_4 = arith.constant 0 : index
    %c0_5 = arith.constant 0 : index
    %13 = vector.load %arg2[%c0_4, %c0_5] : memref<32x27xf32, #tpu.memory_space<vmem>>, vector<32x27xf32>
    %cst_6 = arith.constant dense<0.000000e+00> : vector<32x1536xf32>
    %14 = tpu.matmul %13, %12, %cst_6 {dimension_numbers = #tpu.dot_dimension_numbers<[1], [0], [0], [1], [0, 0, 1, 1], [], []>} : vector<32x27xf32>, vector<27x1536xf32>, vector<32x1536xf32> -> vector<32x1536xf32>
    %c0_7 = arith.constant 0 : index
    %c0_8 = arith.constant 0 : index
    %15 = vector.load %arg3[%c0_7, %c0_8] : memref<32x1xf32, #tpu.memory_space<vmem>>, vector<32x1xf32>
    %16 = vector.broadcast %15 : vector<32x1xf32> to vector<32x1536xf32>
    %17 = arith.addf %14, %16 : vector<32x1536xf32>
    %cst_9 = arith.constant 1.000000e+02 : f32
    %18 = vector.broadcast %cst_9 : f32 to vector<32x1536xf32>
    %19 = arith.mulf %17, %18 : vector<32x1536xf32>
    %cst_10 = arith.constant 2.000000e+01 : f32
    %20 = vector.broadcast %cst_10 : f32 to vector<32x1536xf32>
    %21 = arith.minimumf %19, %20 : vector<32x1536xf32>
    %22 = math.exp %21 : vector<32x1536xf32>
    %23 = math.log1p %22 : vector<32x1536xf32>
    %cst_11 = arith.constant 0.00999999977 : f32
    %24 = vector.broadcast %cst_11 : f32 to vector<32x1536xf32>
    %25 = arith.mulf %23, %24 : vector<32x1536xf32>
    %cst_12 = arith.constant 2.000000e+01 : f32
    %26 = vector.broadcast %cst_12 : f32 to vector<32x1536xf32>
    %27 = arith.cmpf ogt, %19, %26 : vector<32x1536xf32>
    %28 = arith.select %27, %17, %25 : vector<32x1536xi1>, vector<32x1536xf32>
    %c0_13 = arith.constant 0 : index
    %c0_14 = arith.constant 0 : index
    %29 = vector.load %arg4[%c0_13, %c0_14] : memref<5x32xf32, #tpu.memory_space<vmem>>, vector<5x32xf32>
    %cst_15 = arith.constant dense<0.000000e+00> : vector<5x1536xf32>
    %30 = tpu.matmul %29, %28, %cst_15 {dimension_numbers = #tpu.dot_dimension_numbers<[1], [0], [0], [1], [0, 0, 1, 1], [], []>} : vector<5x32xf32>, vector<32x1536xf32>, vector<5x1536xf32> -> vector<5x1536xf32>
    %c0_16 = arith.constant 0 : index
    %c0_17 = arith.constant 0 : index
    %31 = vector.load %arg5[%c0_16, %c0_17] : memref<5x1xf32, #tpu.memory_space<vmem>>, vector<5x1xf32>
    %32 = vector.broadcast %31 : vector<5x1xf32> to vector<5x1536xf32>
    %33 = arith.addf %30, %32 : vector<5x1536xf32>
    %cst_18 = arith.constant 1.000000e+02 : f32
    %34 = vector.broadcast %cst_18 : f32 to vector<5x1536xf32>
    %35 = arith.mulf %33, %34 : vector<5x1536xf32>
    %cst_19 = arith.constant 2.000000e+01 : f32
    %36 = vector.broadcast %cst_19 : f32 to vector<5x1536xf32>
    %37 = arith.minimumf %35, %36 : vector<5x1536xf32>
    %38 = math.exp %37 : vector<5x1536xf32>
    %39 = math.log1p %38 : vector<5x1536xf32>
    %cst_20 = arith.constant 0.00999999977 : f32
    %40 = vector.broadcast %cst_20 : f32 to vector<5x1536xf32>
    %41 = arith.mulf %39, %40 : vector<5x1536xf32>
    %cst_21 = arith.constant 2.000000e+01 : f32
    %42 = vector.broadcast %cst_21 : f32 to vector<5x1536xf32>
    %43 = arith.cmpf ogt, %35, %42 : vector<5x1536xf32>
    %44 = arith.select %43, %33, %41 : vector<5x1536xi1>, vector<5x1536xf32>
    %c0_22 = arith.constant 0 : index
    %c0_23 = arith.constant 0 : index
    %45 = vector.load %arg6[%c0_22, %c0_23] : memref<32x5xf32, #tpu.memory_space<vmem>>, vector<32x5xf32>
    %cst_24 = arith.constant dense<0.000000e+00> : vector<32x1536xf32>
    %46 = tpu.matmul %45, %44, %cst_24 {dimension_numbers = #tpu.dot_dimension_numbers<[1], [0], [0], [1], [0, 0, 1, 1], [], []>} : vector<32x5xf32>, vector<5x1536xf32>, vector<32x1536xf32> -> vector<32x1536xf32>
    %c0_25 = arith.constant 0 : index
    %c0_26 = arith.constant 0 : index
    %47 = vector.load %arg7[%c0_25, %c0_26] : memref<32x27xf32, #tpu.memory_space<vmem>>, vector<32x27xf32>
    %cst_27 = arith.constant dense<0.000000e+00> : vector<32x1536xf32>
    %48 = tpu.matmul %47, %12, %cst_27 {dimension_numbers = #tpu.dot_dimension_numbers<[1], [0], [0], [1], [0, 0, 1, 1], [], []>} : vector<32x27xf32>, vector<27x1536xf32>, vector<32x1536xf32> -> vector<32x1536xf32>
    %49 = arith.addf %46, %48 : vector<32x1536xf32>
    %cst_28 = arith.constant 0.707106769 : f32
    %50 = vector.broadcast %cst_28 : f32 to vector<32x1536xf32>
    %51 = arith.mulf %49, %50 : vector<32x1536xf32>
    %c0_29 = arith.constant 0 : index
    %c0_30 = arith.constant 0 : index
    %52 = vector.load %arg8[%c0_29, %c0_30] : memref<32x1xf32, #tpu.memory_space<vmem>>, vector<32x1xf32>
    %53 = vector.broadcast %52 : vector<32x1xf32> to vector<32x1536xf32>
    %54 = arith.addf %51, %53 : vector<32x1536xf32>
    %cst_31 = arith.constant 1.000000e+02 : f32
    %55 = vector.broadcast %cst_31 : f32 to vector<32x1536xf32>
    %56 = arith.mulf %54, %55 : vector<32x1536xf32>
    %cst_32 = arith.constant 2.000000e+01 : f32
    %57 = vector.broadcast %cst_32 : f32 to vector<32x1536xf32>
    %58 = arith.minimumf %56, %57 : vector<32x1536xf32>
    %59 = math.exp %58 : vector<32x1536xf32>
    %60 = math.log1p %59 : vector<32x1536xf32>
    %cst_33 = arith.constant 0.00999999977 : f32
    %61 = vector.broadcast %cst_33 : f32 to vector<32x1536xf32>
    %62 = arith.mulf %60, %61 : vector<32x1536xf32>
    %cst_34 = arith.constant 2.000000e+01 : f32
    %63 = vector.broadcast %cst_34 : f32 to vector<32x1536xf32>
    %64 = arith.cmpf ogt, %56, %63 : vector<32x1536xf32>
    %65 = arith.select %64, %54, %62 : vector<32x1536xi1>, vector<32x1536xf32>
    %c0_35 = arith.constant 0 : index
    %c0_36 = arith.constant 0 : index
    %66 = vector.load %arg9[%c0_35, %c0_36] : memref<9x32xf32, #tpu.memory_space<vmem>>, vector<9x32xf32>
    %cst_37 = arith.constant dense<0.000000e+00> : vector<9x1536xf32>
    %67 = tpu.matmul %66, %65, %cst_37 {dimension_numbers = #tpu.dot_dimension_numbers<[1], [0], [0], [1], [0, 0, 1, 1], [], []>} : vector<9x32xf32>, vector<32x1536xf32>, vector<9x1536xf32> -> vector<9x1536xf32>
    %c0_38 = arith.constant 0 : index
    %c0_39 = arith.constant 0 : index
    %68 = vector.load %arg10[%c0_38, %c0_39] : memref<9x1xf32, #tpu.memory_space<vmem>>, vector<9x1xf32>
    %69 = vector.broadcast %68 : vector<9x1xf32> to vector<9x1536xf32>
    %70 = arith.addf %67, %69 : vector<9x1536xf32>
    %c0_40 = arith.constant 0 : index
    %c0_41 = arith.constant 0 : index
    %71 = vector.load %arg11[%c0_40, %c0_41] : memref<9x1536xf32, #tpu.memory_space<vmem>>, vector<9x1536xf32>
    tpu.vector_store %arg11[%c0_40, %c0_41], %70 {strides = array<i32>} : memref<9x1536xf32, #tpu.memory_space<vmem>>, vector<9x1536xf32>,
    return
  }
  func.func @transform_0(%arg0: i32) -> (i32, i32) {
    %c0_i32 = arith.constant 0 : i32
    %c0_i32_0 = arith.constant 0 : i32
    return %c0_i32, %arg0 : i32, i32
  }
  func.func @transform_1(%arg0: i32) -> (i32, i32) {
    %c0_i32 = arith.constant 0 : i32
    %c0_i32_0 = arith.constant 0 : i32
    %c0_i32_1 = arith.constant 0 : i32
    return %c0_i32, %c0_i32_0 : i32, i32
  }
  func.func @transform_2(%arg0: i32) -> (i32, i32) {
    %c0_i32 = arith.constant 0 : i32
    %c0_i32_0 = arith.constant 0 : i32
    %c0_i32_1 = arith.constant 0 : i32
    return %c0_i32, %c0_i32_0 : i32, i32
  }
  func.func @transform_3(%arg0: i32) -> (i32, i32) {
    %c0_i32 = arith.constant 0 : i32
    %c0_i32_0 = arith.constant 0 : i32
    %c0_i32_1 = arith.constant 0 : i32
    return %c0_i32, %c0_i32_0 : i32, i32
  }
  func.func @transform_4(%arg0: i32) -> (i32, i32) {
    %c0_i32 = arith.constant 0 : i32
    %c0_i32_0 = arith.constant 0 : i32
    %c0_i32_1 = arith.constant 0 : i32
    return %c0_i32, %c0_i32_0 : i32, i32
  }
  func.func @transform_5(%arg0: i32) -> (i32, i32) {
    %c0_i32 = arith.constant 0 : i32
    %c0_i32_0 = arith.constant 0 : i32
    %c0_i32_1 = arith.constant 0 : i32
    return %c0_i32, %c0_i32_0 : i32, i32
  }
  func.func @transform_6(%arg0: i32) -> (i32, i32) {
    %c0_i32 = arith.constant 0 : i32
    %c0_i32_0 = arith.constant 0 : i32
    %c0_i32_1 = arith.constant 0 : i32
    return %c0_i32, %c0_i32_0 : i32, i32
  }
  func.func @transform_7(%arg0: i32) -> (i32, i32) {
    %c0_i32 = arith.constant 0 : i32
    %c0_i32_0 = arith.constant 0 : i32
    %c0_i32_1 = arith.constant 0 : i32
    return %c0_i32, %c0_i32_0 : i32, i32
  }
  func.func @transform_8(%arg0: i32) -> (i32, i32) {
    %c0_i32 = arith.constant 0 : i32
    %c0_i32_0 = arith.constant 0 : i32
    %c0_i32_1 = arith.constant 0 : i32
    return %c0_i32, %c0_i32_0 : i32, i32
  }
  func.func @transform_9(%arg0: i32) -> (i32, i32) {
    %c0_i32 = arith.constant 0 : i32
    %c0_i32_0 = arith.constant 0 : i32
    %c0_i32_1 = arith.constant 0 : i32
    return %c0_i32, %c0_i32_0 : i32, i32
  }
  func.func @transform_10(%arg0: i32) -> (i32, i32) {
    %c0_i32 = arith.constant 0 : i32
    %c0_i32_0 = arith.constant 0 : i32
    return %c0_i32, %arg0 : i32, i32
  }
}

</mosaic_0001>

<llo_original>
// kernel: tpu_custom_call.1
$region0: #{tpu_custom_call.1}
  #allocation0 [shape = 'u32[]', space=smem, size = 0x4, offset = 0x4, fixed_abs, tag = 'smem constant byte address 0x4 - core index']
  #allocation1 [shape = 'u32[144,128]{1,0:T(1,128)}', space=vmem, size = 0x12000, scoped, tag = 'internal scratch']
  %s0 = inlined_call_operand.vmem [shape: f32[3,1536], index: 0, kind: input, shape index: {}]
  %s1 = inlined_call_operand.vmem [shape: f32[32,27], index: 1, kind: input, shape index: {}]
  %s2 = inlined_call_operand.vmem [shape: f32[32,1], index: 2, kind: input, shape index: {}]
  %s3 = inlined_call_operand.hbm [shape: f32[5,32], index: 3, kind: input, shape index: {}]
  %s4 = inlined_call_operand.vmem [shape: f32[5,1], index: 4, kind: input, shape index: {}]
  %s5 = inlined_call_operand.vmem [shape: f32[32,5], index: 5, kind: input, shape index: {}]
  %s6 = inlined_call_operand.vmem [shape: f32[32,27], index: 6, kind: input, shape index: {}]
  %s7 = inlined_call_operand.vmem [shape: f32[32,1], index: 7, kind: input, shape index: {}]
  %s8 = inlined_call_operand.vmem [shape: f32[9,32], index: 8, kind: input, shape index: {}]
  %s9 = inlined_call_operand.vmem [shape: f32[9,1], index: 9, kind: input, shape index: {}]
  %s10 = inlined_call_operand.hbm [shape: f32[9,1536], index: 10, kind: output, shape index: {}]
  %s11 = sld [smem:[#allocation0]]
  $region54: #{tpu_custom_call.1} parent=0
    _
  %s13 = ssub.s32 1, %s11
  %s14 = scalar_select 0, %s13, %s11
  $region1: #{tpu_custom_call.1} parent=0
    #allocation2 [shape = 'u8[4096]{0}', space=vmem, size = 0x1000, scoped, tag = 'input window, operand 3, single buffered']
    #allocation3 [shape = 's32[1]{0}', space=sflag, size = 0x4, scoped, tag = 'scoped memory for tpu_custom_call.1']
    #allocation4 [shape = 's32[1]{0}', space=sflag, size = 0x4, scoped, tag = 'scoped memory for tpu_custom_call.1']
    #allocation5 [shape = 'u8[98304]{0}', space=vmem, size = 0x18000, scoped, tag = 'output window, operand 0, single buffered']
    %15 = vsyncpa [#allocation3], 0
    %16 = vsyncpa [#allocation4], 0
    // Predicated region
    $region2: #{tpu_custom_call.1} parent=1 // pred_check
      _
    $region3: #{tpu_custom_call.1} parent=1 // pred_check_branch
      %18 = sbr.rel (0) target = $region5
    $region4: #{tpu_custom_call.1} parent=1 // pred_region
      _
    $region5: #{tpu_custom_call.1} parent=1 // pred_fallthru
      _
    // Predicated region
    $region6: #{tpu_custom_call.1} parent=1 // pred_check
      _
    $region7: #{tpu_custom_call.1} parent=1 // pred_check_branch
      %20 = sbr.rel (0) target = $region9
    $region8: #{tpu_custom_call.1} parent=1 // pred_region
      _
    $region9: #{tpu_custom_call.1} parent=1 // pred_fallthru
      _
    // Predicated region
    $region10: #{tpu_custom_call.1} parent=1 // pred_check
      _
    $region11: #{tpu_custom_call.1} parent=1 // pred_check_branch
      %22 = sbr.rel (0) target = $region13
    $region12: #{tpu_custom_call.1} parent=1 // pred_region
      _
    $region13: #{tpu_custom_call.1} parent=1 // pred_fallthru
      _
    // Predicated region
    $region14: #{tpu_custom_call.1} parent=1 // pred_check
      _
    $region15: #{tpu_custom_call.1} parent=1 // pred_check_branch
      %24 = sbr.rel (0) target = $region17
    $region16: #{tpu_custom_call.1} parent=1 // pred_region
      %s26 = ssub.s32 128, 128
      %27 = vsyncadd [#allocation3], %s26
      %s29 = sshll.u32 [#allocation2], 4
      %s30 = int_to_ptr.vmem [resolvable:$true] %s29
      %32 = dma.hbm_to_vmem [thread:$0]  %s3, 128, %s30, [#allocation3]
    $region17: #{tpu_custom_call.1} parent=1 // pred_fallthru
      _
    // Predicated region
    $region18: #{tpu_custom_call.1} parent=1 // pred_check
      _
    $region19: #{tpu_custom_call.1} parent=1 // pred_check_branch
      %34 = sbr.rel (0) target = $region21
    $region20: #{tpu_custom_call.1} parent=1 // pred_region
      _
    $region21: #{tpu_custom_call.1} parent=1 // pred_fallthru
      _
    // Predicated region
    $region22: #{tpu_custom_call.1} parent=1 // pred_check
      _
    $region23: #{tpu_custom_call.1} parent=1 // pred_check_branch
      %36 = sbr.rel (0) target = $region25
    $region24: #{tpu_custom_call.1} parent=1 // pred_region
      _
    $region25: #{tpu_custom_call.1} parent=1 // pred_fallthru
      _
    // Predicated region
    $region26: #{tpu_custom_call.1} parent=1 // pred_check
      _
    $region27: #{tpu_custom_call.1} parent=1 // pred_check_branch
      %38 = sbr.rel (0) target = $region29
    $region28: #{tpu_custom_call.1} parent=1 // pred_region
      _
    $region29: #{tpu_custom_call.1} parent=1 // pred_fallthru
      _
    // Predicated region
    $region30: #{tpu_custom_call.1} parent=1 // pred_check
      _
    $region31: #{tpu_custom_call.1} parent=1 // pred_check_branch
      %40 = sbr.rel (0) target = $region33
    $region32: #{tpu_custom_call.1} parent=1 // pred_region
      _
    $region33: #{tpu_custom_call.1} parent=1 // pred_fallthru
      _
    // Predicated region
    $region34: #{tpu_custom_call.1} parent=1 // pred_check
      _
    $region35: #{tpu_custom_call.1} parent=1 // pred_check_branch
      %42 = sbr.rel (0) target = $region37
    $region36: #{tpu_custom_call.1} parent=1 // pred_region
      _
    $region37: #{tpu_custom_call.1} parent=1 // pred_fallthru
      _
    // Predicated region
    $region38: #{tpu_custom_call.1} parent=1 // pred_check
      _
    $region39: #{tpu_custom_call.1} parent=1 // pred_check_branch
      %44 = sbr.rel (0) target = $region41
    $region40: #{tpu_custom_call.1} parent=1 // pred_region
      _
    $region41: #{tpu_custom_call.1} parent=1 // pred_fallthru
      _
    // Predicated region
    $region42: #{tpu_custom_call.1} parent=1 // pred_check
      _
    $region43: #{tpu_custom_call.1} parent=1 // pred_check_branch
      %46 = sbr.rel (0) target = $region45
    $region44: #{tpu_custom_call.1} parent=1 // pred_region
      %47 = dma.done [#allocation3], 128
    $region45: #{tpu_custom_call.1} parent=1 // pred_fallthru
      _
    %v48 = vld [vmem:[%s0] sm:$0x77]
    %v49 = vld [vmem:[%s0 + $0x8] sm:$0x77]
    %v50 = vld [vmem:[%s0 + $0x10] sm:$0x77]
    %v51 = vld [vmem:[%s0 + $0x18] sm:$0x77]
    %v52 = vld [vmem:[%s0 + $0x20] sm:$0x77]
    %v53 = vld [vmem:[%s0 + $0x28] sm:$0x77]
    %v54 = vmul.f32 %v48, 2.0
    %v55 = vmul.f32 %v49, 2.0
    %v56 = vmul.f32 %v50, 2.0
    %v57 = vmul.f32 %v51, 2.0
    %v58 = vmul.f32 %v52, 2.0
    %v59 = vmul.f32 %v53, 2.0
    %v60 = vmul.f32 %v48, 4.0
    %v61 = vmul.f32 %v49, 4.0
    %v62 = vmul.f32 %v50, 4.0
    %v63 = vmul.f32 %v51, 4.0
    %v64 = vmul.f32 %v52, 4.0
    %v65 = vmul.f32 %v53, 4.0
    %v66 = vmul.f32 %v48, 8.0
    %v67 = vmul.f32 %v49, 8.0
    %v68 = vmul.f32 %v50, 8.0
    %v69 = vmul.f32 %v51, 8.0
    %v70 = vmul.f32 %v52, 8.0
    %v71 = vmul.f32 %v53, 8.0
    %v78 = vcombine.high %v48, %v48
    %v79 = vcombine.high %v49, %v49
    %v80 = vcombine.high %v50, %v50
    %v81 = vcombine.high %v51, %v51
    %v82 = vcombine.high %v52, %v52
    %v83 = vcombine.high %v53, %v53
    %v96 = vcombine.high %v54, %v54
    %v97 = vcombine.high %v55, %v55
    %v98 = vcombine.high %v56, %v56
    %v99 = vcombine.high %v57, %v57
    %v100 = vcombine.high %v58, %v58
    %v101 = vcombine.high %v59, %v59
    %v102 = vrot.slane %v54, 5
    %v103 = vrot.slane %v96, 5
    %v104 = vrot.slane %v55, 5
    %v105 = vrot.slane %v97, 5
    %v106 = vrot.slane %v56, 5
    %v107 = vrot.slane %v98, 5
    %v108 = vrot.slane %v57, 5
    %v109 = vrot.slane %v99, 5
    %v110 = vrot.slane %v58, 5
    %v111 = vrot.slane %v100, 5
    %v112 = vrot.slane %v59, 5
    %v113 = vrot.slane %v101, 5
    %v132 = vcombine.high %v60, %v60
    %v133 = vcombine.high %v61, %v61
    %v134 = vcombine.high %v62, %v62
    %v135 = vcombine.high %v63, %v63
    %v136 = vcombine.high %v64, %v64
    %v137 = vcombine.high %v65, %v65
    %v138 = vrot.slane %v60, 2
    %v139 = vrot.slane %v132, 2
    %v140 = vrot.slane %v61, 2
    %v141 = vrot.slane %v133, 2
    %v142 = vrot.slane %v62, 2
    %v143 = vrot.slane %v134, 2
    %v144 = vrot.slane %v63, 2
    %v145 = vrot.slane %v135, 2
    %v146 = vrot.slane %v64, 2
    %v147 = vrot.slane %v136, 2
    %v148 = vrot.slane %v65, 2
    %v149 = vrot.slane %v137, 2
    %v168 = vcombine.high %v66, %v66
    %v169 = vcombine.high %v67, %v67
    %v170 = vcombine.high %v68, %v68
    %v171 = vcombine.high %v69, %v69
    %v172 = vcombine.high %v70, %v70
    %v173 = vcombine.high %v71, %v71
    %v174 = vrot.slane %v66, 7
    %v175 = vrot.slane %v168, 7
    %v176 = vrot.slane %v67, 7
    %v177 = vrot.slane %v169, 7
    %v178 = vrot.slane %v68, 7
    %v179 = vrot.slane %v170, 7
    %v180 = vrot.slane %v69, 7
    %v181 = vrot.slane %v171, 7
    %v182 = vrot.slane %v70, 7
    %v183 = vrot.slane %v172, 7
    %v184 = vrot.slane %v71, 7
    %v185 = vrot.slane %v173, 7
    %vm198 = vcmask 1042432
    %v199 = vsel %vm198, %v48, %v102
    %v200 = vsel %vm198, %v78, %v103
    %v201 = vsel %vm198, %v49, %v104
    %v202 = vsel %vm198, %v79, %v105
    %v203 = vsel %vm198, %v50, %v106
    %v204 = vsel %vm198, %v80, %v107
    %v205 = vsel %vm198, %v51, %v108
    %v206 = vsel %vm198, %v81, %v109
    %v207 = vsel %vm198, %v52, %v110
    %v208 = vsel %vm198, %v82, %v111
    %v209 = vsel %vm198, %v53, %v112
    %v210 = vsel %vm198, %v83, %v113
    %vm211 = vcmask 1045504
    %v212 = vsel %vm211, %v199, %v138
    %v213 = vsel %vm211, %v200, %v139
    %v214 = vsel %vm211, %v201, %v140
    %v215 = vsel %vm211, %v202, %v141
    %v216 = vsel %vm211, %v203, %v142
    %v217 = vsel %vm211, %v204, %v143
    %v218 = vsel %vm211, %v205, %v144
    %v219 = vsel %vm211, %v206, %v145
    %v220 = vsel %vm211, %v207, %v146
    %v221 = vsel %vm211, %v208, %v147
    %v222 = vsel %vm211, %v209, %v148
    %v223 = vsel %vm211, %v210, %v149
    %vm224 = vcmask 1040384
    %v225 = vsel %vm224, %v138, %v174
    %v226 = vsel %vm224, %v139, %v175
    %v227 = vsel %vm224, %v140, %v176
    %v228 = vsel %vm224, %v141, %v177
    %v229 = vsel %vm224, %v142, %v178
    %v230 = vsel %vm224, %v143, %v179
    %v231 = vsel %vm224, %v144, %v180
    %v232 = vsel %vm224, %v145, %v181
    %v233 = vsel %vm224, %v146, %v182
    %v234 = vsel %vm224, %v147, %v183
    %v235 = vsel %vm224, %v148, %v184
    %v236 = vsel %vm224, %v149, %v185
    %v237 = vand.u32 2147483647, %v212
    %vm238 = vcmp.le.f32.partialorder %v237, 0.7853982
    %vm239 = vcmp.lt.s32.totalorder %v212, 0
    %v240 = vand.u32 %v212, 2139095040
    %v241 = vshrl.u32 %v240, 23
    %v242 = vsub.s32 %v241, 127
    %v243 = vand.u32 2147483647, %v212
    %v244 = vand.u32 %v243, 8388607
    %v245 = vor.u32 %v244, 8388608
    %v246 = vsub.s32 0, %v245
    %v247 = vadd.s32 %v242, 1
    %vm248 = vcmp.gt.s32.totalorder %v247, 0
    %v249 = vsel %vm248, %v247, 0
    %v250 = vshrl.u32 %v249, 5
    %v251 = vand.u32 %v249, 31
    %v252 = vsub.s32 32, %v251
    %v253 = vshrl.u32 683565275, %v252
    %v254 = vshll.u32 683565275, %v251
    %v255 = vshrl.u32 2475754826, %v252
    %v256 = vor.u32 %v254, %v255
    %v257 = vshll.u32 2475754826, %v251
    %v258 = vshrl.u32 2131351028, %v252
    %v259 = vor.u32 %v257, %v258
    %v260 = vshll.u32 2131351028, %v251
    %v261 = vshrl.u32 2102212464, %v252
    %v262 = vor.u32 %v260, %v261
    %v263 = vshll.u32 2102212464, %v251
    %v264 = vshrl.u32 920167782, %v252
    %v265 = vor.u32 %v263, %v264
    %v266 = vshll.u32 920167782, %v251
    %v267 = vshrl.u32 1326507024, %v252
    %v268 = vor.u32 %v266, %v267
    %vm269 = vcmp.lt.s32.totalorder %v250, 1
    %vm270 = vcmp.lt.s32.totalorder %v250, 2
    %vm271 = vcmp.lt.s32.totalorder %v250, 3
    %vm272 = vcmp.lt.s32.totalorder %v250, 4
    %v273 = vsel %vm269, %v253, %v256
    %v274 = vsel %vm272, %v262, 2102212464
    %v275 = vsel %vm271, %v259, %v274
    %v276 = vsel %vm270, %v273, %v275
    %v277 = vsel %vm269, %v256, %v259
    %v278 = vsel %vm272, %v265, 920167782
    %v279 = vsel %vm271, %v262, %v278
    %v280 = vsel %vm270, %v277, %v279
    %v281 = vsel %vm269, %v259, %v262
    %v282 = vsel %vm272, %v268, 1326507024
    %v283 = vsel %vm271, %v265, %v282
    %v284 = vsel %vm270, %v281, %v283
    %v285 = vshll.u32 %v245, 8
    %v286 = vmul.u32.u64.compose %v285, %v284
    %v287 = vextract.low.u32 %v286
    %v288 = vextract.high.u32 %v286
    %v289 = vmul.u32.u64.compose %v285, %v280
    %v290 = vextract.low.u32 %v289
    %v291 = vextract.high.u32 %v289
    %v292 = vmul.u32 %v285, %v276
    %v293 = vadd.s32 %v288, %v290
    %vm294 = vc.u32 %v288, %v290
    %v295 = vadd.s32 %v291, 1
    %v296 = vsel %vm294, %v295, %v291
    %v297 = vadd.s32 %v292, %v296
    %v298 = vadd.s32 %v297, 536870912
    %v299 = vshrl.u32 %v298, 30
    %v300 = vshll.u32 %v299, 30
    %v301 = vsub.s32 %v297, %v300
    %vm302 = vcmp.lt.s32.totalorder %v301, 0
    %v303 = vsub.s32 0, %v301
    %v304 = vsel %vm302, %v303, %v301
    %v305 = vclz %v304
    %v306 = vsub.s32 %v305, 2
    %vm307 = vcmp.gt.s32.totalorder 0, %v306
    %v308 = vsel %vm307, 0, %v306
    %v309 = vsub.s32 32, %v308
    %v310 = vshll.u32 %v301, %v308
    %v311 = vshrl.u32 %v293, %v309
    %v312 = vor.u32 %v310, %v311
    %v313 = vsub.s32 4294967266, %v308
    %v314 = vadd.s32 %v313, 127
    %v315 = vshll.u32 %v314, 23
    %v316 = vor.u32 4788187, %v315
    %v317 = vand.u32 2147483647, %v316
    %v319 = vcvt.s32.f32 %v312
    %v320 = vmul.f32 %v319, %v317
    %v321 = vxor.u32 %v320, 2147483648
    %v322 = vsel %vm239, %v321, %v320
    %v323 = vsub.s32 4, %v299
    %v324 = vsel %vm239, %v323, %v299
    %v325 = vsel %vm238, %v212, %v322
    %v326 = vsel %vm238, 0, %v324
    %v327 = vcosq.f32.pop %v325
    %v328 = vsinq.f32.pop %v325
    %vm329 = vweird.f32 %v212
    %v330 = vadd.s32 %v326, 3
    %v331 = vand.u32 %v330, 3
    %vm332 = vcmp.lt.s32.totalorder %v331, 2
    %vm333 = vcmp.eq.s32.totalorder %v331, 0
    %v334 = vxor.u32 %v328, 2147483648
    %v335 = vsel %vm333, %v327, %v334
    %vm336 = vcmp.eq.s32.totalorder %v331, 2
    %v337 = vxor.u32 %v327, 2147483648
    %v338 = vsel %vm336, %v337, %v328
    %v339 = vsel %vm332, %v335, %v338
    %v340 = vsel %vm329, nan, %v339
    %v341 = vand.u32 2147483647, %v213
    %vm342 = vcmp.le.f32.partialorder %v341, 0.7853982
    %vm343 = vcmp.lt.s32.totalorder %v213, 0
    %v344 = vand.u32 %v213, 2139095040
    %v345 = vshrl.u32 %v344, 23
    %v346 = vsub.s32 %v345, 127
    %v347 = vand.u32 2147483647, %v213
    %v348 = vand.u32 %v347, 8388607
    %v349 = vor.u32 %v348, 8388608
    %v350 = vsub.s32 0, %v349
    %v351 = vadd.s32 %v346, 1
    %vm352 = vcmp.gt.s32.totalorder %v351, 0
    %v353 = vsel %vm352, %v351, 0
    %v354 = vshrl.u32 %v353, 5
    %v355 = vand.u32 %v353, 31
    %v356 = vsub.s32 32, %v355
    %v357 = vshrl.u32 683565275, %v356
    %v358 = vshll.u32 683565275, %v355
    %v359 = vshrl.u32 2475754826, %v356
    %v360 = vor.u32 %v358, %v359
    %v361 = vshll.u32 2475754826, %v355
    %v362 = vshrl.u32 2131351028, %v356
    %v363 = vor.u32 %v361, %v362
    %v364 = vshll.u32 2131351028, %v355
    %v365 = vshrl.u32 2102212464, %v356
    %v366 = vor.u32 %v364, %v365
    %v367 = vshll.u32 2102212464, %v355
    %v368 = vshrl.u32 920167782, %v356
    %v369 = vor.u32 %v367, %v368
    %v370 = vshll.u32 920167782, %v355
    %v371 = vshrl.u32 1326507024, %v356
    %v372 = vor.u32 %v370, %v371
    %vm373 = vcmp.lt.s32.totalorder %v354, 1
    %vm374 = vcmp.lt.s32.totalorder %v354, 2
    %vm375 = vcmp.lt.s32.totalorder %v354, 3
    %vm376 = vcmp.lt.s32.totalorder %v354, 4
    %v377 = vsel %vm373, %v357, %v360
    %v378 = vsel %vm376, %v366, 2102212464
    %v379 = vsel %vm375, %v363, %v378
    %v380 = vsel %vm374, %v377, %v379
    %v381 = vsel %vm373, %v360, %v363
    %v382 = vsel %vm376, %v369, 920167782
    %v383 = vsel %vm375, %v366, %v382
    %v384 = vsel %vm374, %v381, %v383
    %v385 = vsel %vm373, %v363, %v366
    %v386 = vsel %vm376, %v372, 1326507024
    %v387 = vsel %vm375, %v369, %v386
    %v388 = vsel %vm374, %v385, %v387
    %v389 = vshll.u32 %v349, 8
    %v390 = vmul.u32.u64.compose %v389, %v388
    %v391 = vextract.low.u32 %v390
    %v392 = vextract.high.u32 %v390
    %v393 = vmul.u32.u64.compose %v389, %v384
    %v394 = vextract.low.u32 %v393
    %v395 = vextract.high.u32 %v393
    %v396 = vmul.u32 %v389, %v380
    %v397 = vadd.s32 %v392, %v394
    %vm398 = vc.u32 %v392, %v394
    %v399 = vadd.s32 %v395, 1
    %v400 = vsel %vm398, %v399, %v395
    %v401 = vadd.s32 %v396, %v400
    %v402 = vadd.s32 %v401, 536870912
    %v403 = vshrl.u32 %v402, 30
    %v404 = vshll.u32 %v403, 30
    %v405 = vsub.s32 %v401, %v404
    %vm406 = vcmp.lt.s32.totalorder %v405, 0
    %v407 = vsub.s32 0, %v405
    %v408 = vsel %vm406, %v407, %v405
    %v409 = vclz %v408
    %v410 = vsub.s32 %v409, 2
    %vm411 = vcmp.gt.s32.totalorder 0, %v410
    %v412 = vsel %vm411, 0, %v410
    %v413 = vsub.s32 32, %v412
    %v414 = vshll.u32 %v405, %v412
    %v415 = vshrl.u32 %v397, %v413
    %v416 = vor.u32 %v414, %v415
    %v417 = vsub.s32 4294967266, %v412
    %v418 = vadd.s32 %v417, 127
    %v419 = vshll.u32 %v418, 23
    %v420 = vor.u32 4788187, %v419
    %v421 = vand.u32 2147483647, %v420
    %v423 = vcvt.s32.f32 %v416
    %v424 = vmul.f32 %v423, %v421
    %v425 = vxor.u32 %v424, 2147483648
    %v426 = vsel %vm343, %v425, %v424
    %v427 = vsub.s32 4, %v403
    %v428 = vsel %vm343, %v427, %v403
    %v429 = vsel %vm342, %v213, %v426
    %v430 = vsel %vm342, 0, %v428
    %v431 = vcosq.f32.pop %v429
    %v432 = vsinq.f32.pop %v429
    %vm433 = vweird.f32 %v213
    %v434 = vadd.s32 %v430, 3
    %v435 = vand.u32 %v434, 3
    %vm436 = vcmp.lt.s32.totalorder %v435, 2
    %vm437 = vcmp.eq.s32.totalorder %v435, 0
    %v438 = vxor.u32 %v432, 2147483648
    %v439 = vsel %vm437, %v431, %v438
    %vm440 = vcmp.eq.s32.totalorder %v435, 2
    %v441 = vxor.u32 %v431, 2147483648
    %v442 = vsel %vm440, %v441, %v432
    %v443 = vsel %vm436, %v439, %v442
    %v444 = vsel %vm433, nan, %v443
    %v445 = vand.u32 2147483647, %v214
    %vm446 = vcmp.le.f32.partialorder %v445, 0.7853982
    %vm447 = vcmp.lt.s32.totalorder %v214, 0
    %v448 = vand.u32 %v214, 2139095040
    %v449 = vshrl.u32 %v448, 23
    %v450 = vsub.s32 %v449, 127
    %v451 = vand.u32 2147483647, %v214
    %v452 = vand.u32 %v451, 8388607
    %v453 = vor.u32 %v452, 8388608
    %v454 = vsub.s32 0, %v453
    %v455 = vadd.s32 %v450, 1
    %vm456 = vcmp.gt.s32.totalorder %v455, 0
    %v457 = vsel %vm456, %v455, 0
    %v458 = vshrl.u32 %v457, 5
    %v459 = vand.u32 %v457, 31
    %v460 = vsub.s32 32, %v459
    %v461 = vshrl.u32 683565275, %v460
    %v462 = vshll.u32 683565275, %v459
    %v463 = vshrl.u32 2475754826, %v460
    %v464 = vor.u32 %v462, %v463
    %v465 = vshll.u32 2475754826, %v459
    %v466 = vshrl.u32 2131351028, %v460
    %v467 = vor.u32 %v465, %v466
    %v468 = vshll.u32 2131351028, %v459
    %v469 = vshrl.u32 2102212464, %v460
    %v470 = vor.u32 %v468, %v469
    %v471 = vshll.u32 2102212464, %v459
    %v472 = vshrl.u32 920167782, %v460
    %v473 = vor.u32 %v471, %v472
    %v474 = vshll.u32 920167782, %v459
    %v475 = vshrl.u32 1326507024, %v460
    %v476 = vor.u32 %v474, %v475
    %vm477 = vcmp.lt.s32.totalorder %v458, 1
    %vm478 = vcmp.lt.s32.totalorder %v458, 2
    %vm479 = vcmp.lt.s32.totalorder %v458, 3
    %vm480 = vcmp.lt.s32.totalorder %v458, 4
    %v481 = vsel %vm477, %v461, %v464
    %v482 = vsel %vm480, %v470, 2102212464
    %v483 = vsel %vm479, %v467, %v482
    %v484 = vsel %vm478, %v481, %v483
    %v485 = vsel %vm477, %v464, %v467
    %v486 = vsel %vm480, %v473, 920167782
    %v487 = vsel %vm479, %v470, %v486
    %v488 = vsel %vm478, %v485, %v487
    %v489 = vsel %vm477, %v467, %v470
    %v490 = vsel %vm480, %v476, 1326507024
    %v491 = vsel %vm479, %v473, %v490
    %v492 = vsel %vm478, %v489, %v491
    %v493 = vshll.u32 %v453, 8
    %v494 = vmul.u32.u64.compose %v493, %v492
    %v495 = vextract.low.u32 %v494
    %v496 = vextract.high.u32 %v494
    %v497 = vmul.u32.u64.compose %v493, %v488
    %v498 = vextract.low.u32 %v497
    %v499 = vextract.high.u32 %v497
    %v500 = vmul.u32 %v493, %v484
    %v501 = vadd.s32 %v496, %v498
    %vm502 = vc.u32 %v496, %v498
    %v503 = vadd.s32 %v499, 1
    %v504 = vsel %vm502, %v503, %v499
    %v505 = vadd.s32 %v500, %v504
    %v506 = vadd.s32 %v505, 536870912
    %v507 = vshrl.u32 %v506, 30
    %v508 = vshll.u32 %v507, 30
    %v509 = vsub.s32 %v505, %v508
    %vm510 = vcmp.lt.s32.totalorder %v509, 0
    %v511 = vsub.s32 0, %v509
    %v512 = vsel %vm510, %v511, %v509
    %v513 = vclz %v512
    %v514 = vsub.s32 %v513, 2
    %vm515 = vcmp.gt.s32.totalorder 0, %v514
    %v516 = vsel %vm515, 0, %v514
    %v517 = vsub.s32 32, %v516
    %v518 = vshll.u32 %v509, %v516
    %v519 = vshrl.u32 %v501, %v517
    %v520 = vor.u32 %v518, %v519
    %v521 = vsub.s32 4294967266, %v516
    %v522 = vadd.s32 %v521, 127
    %v523 = vshll.u32 %v522, 23
    %v524 = vor.u32 4788187, %v523
    %v525 = vand.u32 2147483647, %v524
    %v527 = vcvt.s32.f32 %v520
    %v528 = vmul.f32 %v527, %v525
    %v529 = vxor.u32 %v528, 2147483648
    %v530 = vsel %vm447, %v529, %v528
    %v531 = vsub.s32 4, %v507
    %v532 = vsel %vm447, %v531, %v507
    %v533 = vsel %vm446, %v214, %v530
    %v534 = vsel %vm446, 0, %v532
    %v535 = vcosq.f32.pop %v533
    %v536 = vsinq.f32.pop %v533
    %vm537 = vweird.f32 %v214
    %v538 = vadd.s32 %v534, 3
    %v539 = vand.u32 %v538, 3
    %vm540 = vcmp.lt.s32.totalorder %v539, 2
    %vm541 = vcmp.eq.s32.totalorder %v539, 0
    %v542 = vxor.u32 %v536, 2147483648
    %v543 = vsel %vm541, %v535, %v542
    %vm544 = vcmp.eq.s32.totalorder %v539, 2
    %v545 = vxor.u32 %v535, 2147483648
    %v546 = vsel %vm544, %v545, %v536
    %v547 = vsel %vm540, %v543, %v546
    %v548 = vsel %vm537, nan, %v547
    %v549 = vand.u32 2147483647, %v215
    %vm550 = vcmp.le.f32.partialorder %v549, 0.7853982
    %vm551 = vcmp.lt.s32.totalorder %v215, 0
    %v552 = vand.u32 %v215, 2139095040
    %v553 = vshrl.u32 %v552, 23
    %v554 = vsub.s32 %v553, 127
    %v555 = vand.u32 2147483647, %v215
    %v556 = vand.u32 %v555, 8388607
    %v557 = vor.u32 %v556, 8388608
    %v558 = vsub.s32 0, %v557
    %v559 = vadd.s32 %v554, 1
    %vm560 = vcmp.gt.s32.totalorder %v559, 0
    %v561 = vsel %vm560, %v559, 0
    %v562 = vshrl.u32 %v561, 5
    %v563 = vand.u32 %v561, 31
    %v564 = vsub.s32 32, %v563
    %v565 = vshrl.u32 683565275, %v564
    %v566 = vshll.u32 683565275, %v563
    %v567 = vshrl.u32 2475754826, %v564
    %v568 = vor.u32 %v566, %v567
    %v569 = vshll.u32 2475754826, %v563
    %v570 = vshrl.u32 2131351028, %v564
    %v571 = vor.u32 %v569, %v570
    %v572 = vshll.u32 2131351028, %v563
    %v573 = vshrl.u32 2102212464, %v564
    %v574 = vor.u32 %v572, %v573
    %v575 = vshll.u32 2102212464, %v563
    %v576 = vshrl.u32 920167782, %v564
    %v577 = vor.u32 %v575, %v576
    %v578 = vshll.u32 920167782, %v563
    %v579 = vshrl.u32 1326507024, %v564
    %v580 = vor.u32 %v578, %v579
    %vm581 = vcmp.lt.s32.totalorder %v562, 1
    %vm582 = vcmp.lt.s32.totalorder %v562, 2
    %vm583 = vcmp.lt.s32.totalorder %v562, 3
    %vm584 = vcmp.lt.s32.totalorder %v562, 4
    %v585 = vsel %vm581, %v565, %v568
    %v586 = vsel %vm584, %v574, 2102212464
    %v587 = vsel %vm583, %v571, %v586
    %v588 = vsel %vm582, %v585, %v587
    %v589 = vsel %vm581, %v568, %v571
    %v590 = vsel %vm584, %v577, 920167782
    %v591 = vsel %vm583, %v574, %v590
    %v592 = vsel %vm582, %v589, %v591
    %v593 = vsel %vm581, %v571, %v574
    %v594 = vsel %vm584, %v580, 1326507024
    %v595 = vsel %vm583, %v577, %v594
    %v596 = vsel %vm582, %v593, %v595
    %v597 = vshll.u32 %v557, 8
    %v598 = vmul.u32.u64.compose %v597, %v596
    %v599 = vextract.low.u32 %v598
    %v600 = vextract.high.u32 %v598
    %v601 = vmul.u32.u64.compose %v597, %v592
    %v602 = vextract.low.u32 %v601
    %v603 = vextract.high.u32 %v601
    %v604 = vmul.u32 %v597, %v588
    %v605 = vadd.s32 %v600, %v602
    %vm606 = vc.u32 %v600, %v602
    %v607 = vadd.s32 %v603, 1
    %v608 = vsel %vm606, %v607, %v603
    %v609 = vadd.s32 %v604, %v608
    %v610 = vadd.s32 %v609, 536870912
    %v611 = vshrl.u32 %v610, 30
    %v612 = vshll.u32 %v611, 30
    %v613 = vsub.s32 %v609, %v612
    %vm614 = vcmp.lt.s32.totalorder %v613, 0
    %v615 = vsub.s32 0, %v613
    %v616 = vsel %vm614, %v615, %v613
    %v617 = vclz %v616
    %v618 = vsub.s32 %v617, 2
    %vm619 = vcmp.gt.s32.totalorder 0, %v618
    %v620 = vsel %vm619, 0, %v618
    %v621 = vsub.s32 32, %v620
    %v622 = vshll.u32 %v613, %v620
    %v623 = vshrl.u32 %v605, %v621
    %v624 = vor.u32 %v622, %v623
    %v625 = vsub.s32 4294967266, %v620
    %v626 = vadd.s32 %v625, 127
    %v627 = vshll.u32 %v626, 23
    %v628 = vor.u32 4788187, %v627
    %v629 = vand.u32 2147483647, %v628
    %v631 = vcvt.s32.f32 %v624
    %v632 = vmul.f32 %v631, %v629
    %v633 = vxor.u32 %v632, 2147483648
    %v634 = vsel %vm551, %v633, %v632
    %v635 = vsub.s32 4, %v611
    %v636 = vsel %vm551, %v635, %v611
    %v637 = vsel %vm550, %v215, %v634
    %v638 = vsel %vm550, 0, %v636
    %v639 = vcosq.f32.pop %v637
    %v640 = vsinq.f32.pop %v637
    %vm641 = vweird.f32 %v215
    %v642 = vadd.s32 %v638, 3
    %v643 = vand.u32 %v642, 3
    %vm644 = vcmp.lt.s32.totalorder %v643, 2
    %vm645 = vcmp.eq.s32.totalorder %v643, 0
    %v646 = vxor.u32 %v640, 2147483648
    %v647 = vsel %vm645, %v639, %v646
    %vm648 = vcmp.eq.s32.totalorder %v643, 2
    %v649 = vxor.u32 %v639, 2147483648
    %v650 = vsel %vm648, %v649, %v640
    %v651 = vsel %vm644, %v647, %v650
    %v652 = vsel %vm641, nan, %v651
    %v653 = vand.u32 2147483647, %v216
    %vm654 = vcmp.le.f32.partialorder %v653, 0.7853982
    %vm655 = vcmp.lt.s32.totalorder %v216, 0
    %v656 = vand.u32 %v216, 2139095040
    %v657 = vshrl.u32 %v656, 23
    %v658 = vsub.s32 %v657, 127
    %v659 = vand.u32 2147483647, %v216
    %v660 = vand.u32 %v659, 8388607
    %v661 = vor.u32 %v660, 8388608
    %v662 = vsub.s32 0, %v661
    %v663 = vadd.s32 %v658, 1
    %vm664 = vcmp.gt.s32.totalorder %v663, 0
    %v665 = vsel %vm664, %v663, 0
    %v666 = vshrl.u32 %v665, 5
    %v667 = vand.u32 %v665, 31
    %v668 = vsub.s32 32, %v667
    %v669 = vshrl.u32 683565275, %v668
    %v670 = vshll.u32 683565275, %v667
    %v671 = vshrl.u32 2475754826, %v668
    %v672 = vor.u32 %v670, %v671
    %v673 = vshll.u32 2475754826, %v667
    %v674 = vshrl.u32 2131351028, %v668
    %v675 = vor.u32 %v673, %v674
    %v676 = vshll.u32 2131351028, %v667
    %v677 = vshrl.u32 2102212464, %v668
    %v678 = vor.u32 %v676, %v677
    %v679 = vshll.u32 2102212464, %v667
    %v680 = vshrl.u32 920167782, %v668
    %v681 = vor.u32 %v679, %v680
    %v682 = vshll.u32 920167782, %v667
    %v683 = vshrl.u32 1326507024, %v668
    %v684 = vor.u32 %v682, %v683
    %vm685 = vcmp.lt.s32.totalorder %v666, 1
    %vm686 = vcmp.lt.s32.totalorder %v666, 2
    %vm687 = vcmp.lt.s32.totalorder %v666, 3
    %vm688 = vcmp.lt.s32.totalorder %v666, 4
    %v689 = vsel %vm685, %v669, %v672
    %v690 = vsel %vm688, %v678, 2102212464
    %v691 = vsel %vm687, %v675, %v690
    %v692 = vsel %vm686, %v689, %v691
    %v693 = vsel %vm685, %v672, %v675
    %v694 = vsel %vm688, %v681, 920167782
    %v695 = vsel %vm687, %v678, %v694
    %v696 = vsel %vm686, %v693, %v695
    %v697 = vsel %vm685, %v675, %v678
    %v698 = vsel %vm688, %v684, 1326507024
    %v699 = vsel %vm687, %v681, %v698
    %v700 = vsel %vm686, %v697, %v699
    %v701 = vshll.u32 %v661, 8
    %v702 = vmul.u32.u64.compose %v701, %v700
    %v703 = vextract.low.u32 %v702
    %v704 = vextract.high.u32 %v702
    %v705 = vmul.u32.u64.compose %v701, %v696
    %v706 = vextract.low.u32 %v705
    %v707 = vextract.high.u32 %v705
    %v708 = vmul.u32 %v701, %v692
    %v709 = vadd.s32 %v704, %v706
    %vm710 = vc.u32 %v704, %v706
    %v711 = vadd.s32 %v707, 1
    %v712 = vsel %vm710, %v711, %v707
    %v713 = vadd.s32 %v708, %v712
    %v714 = vadd.s32 %v713, 536870912
    %v715 = vshrl.u32 %v714, 30
    %v716 = vshll.u32 %v715, 30
    %v717 = vsub.s32 %v713, %v716
    %vm718 = vcmp.lt.s32.totalorder %v717, 0
    %v719 = vsub.s32 0, %v717
    %v720 = vsel %vm718, %v719, %v717
    %v721 = vclz %v720
    %v722 = vsub.s32 %v721, 2
    %vm723 = vcmp.gt.s32.totalorder 0, %v722
    %v724 = vsel %vm723, 0, %v722
    %v725 = vsub.s32 32, %v724
    %v726 = vshll.u32 %v717, %v724
    %v727 = vshrl.u32 %v709, %v725
    %v728 = vor.u32 %v726, %v727
    %v729 = vsub.s32 4294967266, %v724
    %v730 = vadd.s32 %v729, 127
    %v731 = vshll.u32 %v730, 23
    %v732 = vor.u32 4788187, %v731
    %v733 = vand.u32 2147483647, %v732
    %v735 = vcvt.s32.f32 %v728
    %v736 = vmul.f32 %v735, %v733
    %v737 = vxor.u32 %v736, 2147483648
    %v738 = vsel %vm655, %v737, %v736
    %v739 = vsub.s32 4, %v715
    %v740 = vsel %vm655, %v739, %v715
    %v741 = vsel %vm654, %v216, %v738
    %v742 = vsel %vm654, 0, %v740
    %v743 = vcosq.f32.pop %v741
    %v744 = vsinq.f32.pop %v741
    %vm745 = vweird.f32 %v216
    %v746 = vadd.s32 %v742, 3
    %v747 = vand.u32 %v746, 3
    %vm748 = vcmp.lt.s32.totalorder %v747, 2
    %vm749 = vcmp.eq.s32.totalorder %v747, 0
    %v750 = vxor.u32 %v744, 2147483648
    %v751 = vsel %vm749, %v743, %v750
    %vm752 = vcmp.eq.s32.totalorder %v747, 2
    %v753 = vxor.u32 %v743, 2147483648
    %v754 = vsel %vm752, %v753, %v744
    %v755 = vsel %vm748, %v751, %v754
    %v756 = vsel %vm745, nan, %v755
    %v757 = vand.u32 2147483647, %v217
    %vm758 = vcmp.le.f32.partialorder %v757, 0.7853982
    %vm759 = vcmp.lt.s32.totalorder %v217, 0
    %v760 = vand.u32 %v217, 2139095040
    %v761 = vshrl.u32 %v760, 23
    %v762 = vsub.s32 %v761, 127
    %v763 = vand.u32 2147483647, %v217
    %v764 = vand.u32 %v763, 8388607
    %v765 = vor.u32 %v764, 8388608
    %v766 = vsub.s32 0, %v765
    %v767 = vadd.s32 %v762, 1
    %vm768 = vcmp.gt.s32.totalorder %v767, 0
    %v769 = vsel %vm768, %v767, 0
    %v770 = vshrl.u32 %v769, 5
    %v771 = vand.u32 %v769, 31
    %v772 = vsub.s32 32, %v771
    %v773 = vshrl.u32 683565275, %v772
    %v774 = vshll.u32 683565275, %v771
    %v775 = vshrl.u32 2475754826, %v772
    %v776 = vor.u32 %v774, %v775
    %v777 = vshll.u32 2475754826, %v771
    %v778 = vshrl.u32 2131351028, %v772
    %v779 = vor.u32 %v777, %v778
    %v780 = vshll.u32 2131351028, %v771
    %v781 = vshrl.u32 2102212464, %v772
    %v782 = vor.u32 %v780, %v781
    %v783 = vshll.u32 2102212464, %v771
    %v784 = vshrl.u32 920167782, %v772
    %v785 = vor.u32 %v783, %v784
    %v786 = vshll.u32 920167782, %v771
    %v787 = vshrl.u32 1326507024, %v772
    %v788 = vor.u32 %v786, %v787
    %vm789 = vcmp.lt.s32.totalorder %v770, 1
    %vm790 = vcmp.lt.s32.totalorder %v770, 2
    %vm791 = vcmp.lt.s32.totalorder %v770, 3
    %vm792 = vcmp.lt.s32.totalorder %v770, 4
    %v793 = vsel %vm789, %v773, %v776
    %v794 = vsel %vm792, %v782, 2102212464
    %v795 = vsel %vm791, %v779, %v794
    %v796 = vsel %vm790, %v793, %v795
    %v797 = vsel %vm789, %v776, %v779
    %v798 = vsel %vm792, %v785, 920167782
    %v799 = vsel %vm791, %v782, %v798
    %v800 = vsel %vm790, %v797, %v799
    %v801 = vsel %vm789, %v779, %v782
    %v802 = vsel %vm792, %v788, 1326507024
    %v803 = vsel %vm791, %v785, %v802
    %v804 = vsel %vm790, %v801, %v803
    %v805 = vshll.u32 %v765, 8
    %v806 = vmul.u32.u64.compose %v805, %v804
    %v807 = vextract.low.u32 %v806
    %v808 = vextract.high.u32 %v806
    %v809 = vmul.u32.u64.compose %v805, %v800
    %v810 = vextract.low.u32 %v809
    %v811 = vextract.high.u32 %v809
    %v812 = vmul.u32 %v805, %v796
    %v813 = vadd.s32 %v808, %v810
    %vm814 = vc.u32 %v808, %v810
    %v815 = vadd.s32 %v811, 1
    %v816 = vsel %vm814, %v815, %v811
    %v817 = vadd.s32 %v812, %v816
    %v818 = vadd.s32 %v817, 536870912
    %v819 = vshrl.u32 %v818, 30
    %v820 = vshll.u32 %v819, 30
    %v821 = vsub.s32 %v817, %v820
    %vm822 = vcmp.lt.s32.totalorder %v821, 0
    %v823 = vsub.s32 0, %v821
    %v824 = vsel %vm822, %v823, %v821
    %v825 = vclz %v824
    %v826 = vsub.s32 %v825, 2
    %vm827 = vcmp.gt.s32.totalorder 0, %v826
    %v828 = vsel %vm827, 0, %v826
    %v829 = vsub.s32 32, %v828
    %v830 = vshll.u32 %v821, %v828
    %v831 = vshrl.u32 %v813, %v829
    %v832 = vor.u32 %v830, %v831
    %v833 = vsub.s32 4294967266, %v828
    %v834 = vadd.s32 %v833, 127
    %v835 = vshll.u32 %v834, 23
    %v836 = vor.u32 4788187, %v835
    %v837 = vand.u32 2147483647, %v836
    %v839 = vcvt.s32.f32 %v832
    %v840 = vmul.f32 %v839, %v837
    %v841 = vxor.u32 %v840, 2147483648
    %v842 = vsel %vm759, %v841, %v840
    %v843 = vsub.s32 4, %v819
    %v844 = vsel %vm759, %v843, %v819
    %v845 = vsel %vm758, %v217, %v842
    %v846 = vsel %vm758, 0, %v844
    %v847 = vcosq.f32.pop %v845
    %v848 = vsinq.f32.pop %v845
    %vm849 = vweird.f32 %v217
    %v850 = vadd.s32 %v846, 3
    %v851 = vand.u32 %v850, 3
    %vm852 = vcmp.lt.s32.totalorder %v851, 2
    %vm853 = vcmp.eq.s32.totalorder %v851, 0
    %v854 = vxor.u32 %v848, 2147483648
    %v855 = vsel %vm853, %v847, %v854
    %vm856 = vcmp.eq.s32.totalorder %v851, 2
    %v857 = vxor.u32 %v847, 2147483648
    %v858 = vsel %vm856, %v857, %v848
    %v859 = vsel %vm852, %v855, %v858
    %v860 = vsel %vm849, nan, %v859
    %v861 = vand.u32 2147483647, %v218
    %vm862 = vcmp.le.f32.partialorder %v861, 0.7853982
    %vm863 = vcmp.lt.s32.totalorder %v218, 0
    %v864 = vand.u32 %v218, 2139095040
    %v865 = vshrl.u32 %v864, 23
    %v866 = vsub.s32 %v865, 127
    %v867 = vand.u32 2147483647, %v218
    %v868 = vand.u32 %v867, 8388607
    %v869 = vor.u32 %v868, 8388608
    %v870 = vsub.s32 0, %v869
    %v871 = vadd.s32 %v866, 1
    %vm872 = vcmp.gt.s32.totalorder %v871, 0
    %v873 = vsel %vm872, %v871, 0
    %v874 = vshrl.u32 %v873, 5
    %v875 = vand.u32 %v873, 31
    %v876 = vsub.s32 32, %v875
    %v877 = vshrl.u32 683565275, %v876
    %v878 = vshll.u32 683565275, %v875
    %v879 = vshrl.u32 2475754826, %v876
    %v880 = vor.u32 %v878, %v879
    %v881 = vshll.u32 2475754826, %v875
    %v882 = vshrl.u32 2131351028, %v876
    %v883 = vor.u32 %v881, %v882
    %v884 = vshll.u32 2131351028, %v875
    %v885 = vshrl.u32 2102212464, %v876
    %v886 = vor.u32 %v884, %v885
    %v887 = vshll.u32 2102212464, %v875
    %v888 = vshrl.u32 920167782, %v876
    %v889 = vor.u32 %v887, %v888
    %v890 = vshll.u32 920167782, %v875
    %v891 = vshrl.u32 1326507024, %v876
    %v892 = vor.u32 %v890, %v891
    %vm893 = vcmp.lt.s32.totalorder %v874, 1
    %vm894 = vcmp.lt.s32.totalorder %v874, 2
    %vm895 = vcmp.lt.s32.totalorder %v874, 3
    %vm896 = vcmp.lt.s32.totalorder %v874, 4
    %v897 = vsel %vm893, %v877, %v880
    %v898 = vsel %vm896, %v886, 2102212464
    %v899 = vsel %vm895, %v883, %v898
    %v900 = vsel %vm894, %v897, %v899
    %v901 = vsel %vm893, %v880, %v883
    %v902 = vsel %vm896, %v889, 920167782
    %v903 = vsel %vm895, %v886, %v902
    %v904 = vsel %vm894, %v901, %v903
    %v905 = vsel %vm893, %v883, %v886
    %v906 = vsel %vm896, %v892, 1326507024
    %v907 = vsel %vm895, %v889, %v906
    %v908 = vsel %vm894, %v905, %v907
    %v909 = vshll.u32 %v869, 8
    %v910 = vmul.u32.u64.compose %v909, %v908
    %v911 = vextract.low.u32 %v910
    %v912 = vextract.high.u32 %v910
    %v913 = vmul.u32.u64.compose %v909, %v904
    %v914 = vextract.low.u32 %v913
    %v915 = vextract.high.u32 %v913
    %v916 = vmul.u32 %v909, %v900
    %v917 = vadd.s32 %v912, %v914
    %vm918 = vc.u32 %v912, %v914
    %v919 = vadd.s32 %v915, 1
    %v920 = vsel %vm918, %v919, %v915
    %v921 = vadd.s32 %v916, %v920
    %v922 = vadd.s32 %v921, 536870912
    %v923 = vshrl.u32 %v922, 30
    %v924 = vshll.u32 %v923, 30
    %v925 = vsub.s32 %v921, %v924
    %vm926 = vcmp.lt.s32.totalorder %v925, 0
    %v927 = vsub.s32 0, %v925
    %v928 = vsel %vm926, %v927, %v925
    %v929 = vclz %v928
    %v930 = vsub.s32 %v929, 2
    %vm931 = vcmp.gt.s32.totalorder 0, %v930
    %v932 = vsel %vm931, 0, %v930
    %v933 = vsub.s32 32, %v932
    %v934 = vshll.u32 %v925, %v932
    %v935 = vshrl.u32 %v917, %v933
    %v936 = vor.u32 %v934, %v935
    %v937 = vsub.s32 4294967266, %v932
    %v938 = vadd.s32 %v937, 127
    %v939 = vshll.u32 %v938, 23
    %v940 = vor.u32 4788187, %v939
    %v941 = vand.u32 2147483647, %v940
    %v943 = vcvt.s32.f32 %v936
    %v944 = vmul.f32 %v943, %v941
    %v945 = vxor.u32 %v944, 2147483648
    %v946 = vsel %vm863, %v945, %v944
    %v947 = vsub.s32 4, %v923
    %v948 = vsel %vm863, %v947, %v923
    %v949 = vsel %vm862, %v218, %v946
    %v950 = vsel %vm862, 0, %v948
    %v951 = vcosq.f32.pop %v949
    %v952 = vsinq.f32.pop %v949
    %vm953 = vweird.f32 %v218
    %v954 = vadd.s32 %v950, 3
    %v955 = vand.u32 %v954, 3
    %vm956 = vcmp.lt.s32.totalorder %v955, 2
    %vm957 = vcmp.eq.s32.totalorder %v955, 0
    %v958 = vxor.u32 %v952, 2147483648
    %v959 = vsel %vm957, %v951, %v958
    %vm960 = vcmp.eq.s32.totalorder %v955, 2
    %v961 = vxor.u32 %v951, 2147483648
    %v962 = vsel %vm960, %v961, %v952
    %v963 = vsel %vm956, %v959, %v962
    %v964 = vsel %vm953, nan, %v963
    %v965 = vand.u32 2147483647, %v219
    %vm966 = vcmp.le.f32.partialorder %v965, 0.7853982
    %vm967 = vcmp.lt.s32.totalorder %v219, 0
    %v968 = vand.u32 %v219, 2139095040
    %v969 = vshrl.u32 %v968, 23
    %v970 = vsub.s32 %v969, 127
    %v971 = vand.u32 2147483647, %v219
    %v972 = vand.u32 %v971, 8388607
    %v973 = vor.u32 %v972, 8388608
    %v974 = vsub.s32 0, %v973
    %v975 = vadd.s32 %v970, 1
    %vm976 = vcmp.gt.s32.totalorder %v975, 0
    %v977 = vsel %vm976, %v975, 0
    %v978 = vshrl.u32 %v977, 5
    %v979 = vand.u32 %v977, 31
    %v980 = vsub.s32 32, %v979
    %v981 = vshrl.u32 683565275, %v980
    %v982 = vshll.u32 683565275, %v979
    %v983 = vshrl.u32 2475754826, %v980
    %v984 = vor.u32 %v982, %v983
    %v985 = vshll.u32 2475754826, %v979
    %v986 = vshrl.u32 2131351028, %v980
    %v987 = vor.u32 %v985, %v986
    %v988 = vshll.u32 2131351028, %v979
    %v989 = vshrl.u32 2102212464, %v980
    %v990 = vor.u32 %v988, %v989
    %v991 = vshll.u32 2102212464, %v979
    %v992 = vshrl.u32 920167782, %v980
    %v993 = vor.u32 %v991, %v992
    %v994 = vshll.u32 920167782, %v979
    %v995 = vshrl.u32 1326507024, %v980
    %v996 = vor.u32 %v994, %v995
    %vm997 = vcmp.lt.s32.totalorder %v978, 1
    %vm998 = vcmp.lt.s32.totalorder %v978, 2
    %vm999 = vcmp.lt.s32.totalorder %v978, 3
    %vm1000 = vcmp.lt.s32.totalorder %v978, 4
    %v1001 = vsel %vm997, %v981, %v984
    %v1002 = vsel %vm1000, %v990, 2102212464
    %v1003 = vsel %vm999, %v987, %v1002
    %v1004 = vsel %vm998, %v1001, %v1003
    %v1005 = vsel %vm997, %v984, %v987
    %v1006 = vsel %vm1000, %v993, 920167782
    %v1007 = vsel %vm999, %v990, %v1006
    %v1008 = vsel %vm998, %v1005, %v1007
    %v1009 = vsel %vm997, %v987, %v990
    %v1010 = vsel %vm1000, %v996, 1326507024
    %v1011 = vsel %vm999, %v993, %v1010
    %v1012 = vsel %vm998, %v1009, %v1011
    %v1013 = vshll.u32 %v973, 8
    %v1014 = vmul.u32.u64.compose %v1013, %v1012
    %v1015 = vextract.low.u32 %v1014
    %v1016 = vextract.high.u32 %v1014
    %v1017 = vmul.u32.u64.compose %v1013, %v1008
    %v1018 = vextract.low.u32 %v1017
    %v1019 = vextract.high.u32 %v1017
    %v1020 = vmul.u32 %v1013, %v1004
    %v1021 = vadd.s32 %v1016, %v1018
    %vm1022 = vc.u32 %v1016, %v1018
    %v1023 = vadd.s32 %v1019, 1
    %v1024 = vsel %vm1022, %v1023, %v1019
    %v1025 = vadd.s32 %v1020, %v1024
    %v1026 = vadd.s32 %v1025, 536870912
    %v1027 = vshrl.u32 %v1026, 30
    %v1028 = vshll.u32 %v1027, 30
    %v1029 = vsub.s32 %v1025, %v1028
    %vm1030 = vcmp.lt.s32.totalorder %v1029, 0
    %v1031 = vsub.s32 0, %v1029
    %v1032 = vsel %vm1030, %v1031, %v1029
    %v1033 = vclz %v1032
    %v1034 = vsub.s32 %v1033, 2
    %vm1035 = vcmp.gt.s32.totalorder 0, %v1034
    %v1036 = vsel %vm1035, 0, %v1034
    %v1037 = vsub.s32 32, %v1036
    %v1038 = vshll.u32 %v1029, %v1036
    %v1039 = vshrl.u32 %v1021, %v1037
    %v1040 = vor.u32 %v1038, %v1039
    %v1041 = vsub.s32 4294967266, %v1036
    %v1042 = vadd.s32 %v1041, 127
    %v1043 = vshll.u32 %v1042, 23
    %v1044 = vor.u32 4788187, %v1043
    %v1045 = vand.u32 2147483647, %v1044
    %v1047 = vcvt.s32.f32 %v1040
    %v1048 = vmul.f32 %v1047, %v1045
    %v1049 = vxor.u32 %v1048, 2147483648
    %v1050 = vsel %vm967, %v1049, %v1048
    %v1051 = vsub.s32 4, %v1027
    %v1052 = vsel %vm967, %v1051, %v1027
    %v1053 = vsel %vm966, %v219, %v1050
    %v1054 = vsel %vm966, 0, %v1052
    %v1055 = vcosq.f32.pop %v1053
    %v1056 = vsinq.f32.pop %v1053
    %vm1057 = vweird.f32 %v219
    %v1058 = vadd.s32 %v1054, 3
    %v1059 = vand.u32 %v1058, 3
    %vm1060 = vcmp.lt.s32.totalorder %v1059, 2
    %vm1061 = vcmp.eq.s32.totalorder %v1059, 0
    %v1062 = vxor.u32 %v1056, 2147483648
    %v1063 = vsel %vm1061, %v1055, %v1062
    %vm1064 = vcmp.eq.s32.totalorder %v1059, 2
    %v1065 = vxor.u32 %v1055, 2147483648
    %v1066 = vsel %vm1064, %v1065, %v1056
    %v1067 = vsel %vm1060, %v1063, %v1066
    %v1068 = vsel %vm1057, nan, %v1067
    %v1069 = vand.u32 2147483647, %v220
    %vm1070 = vcmp.le.f32.partialorder %v1069, 0.7853982
    %vm1071 = vcmp.lt.s32.totalorder %v220, 0
    %v1072 = vand.u32 %v220, 2139095040
    %v1073 = vshrl.u32 %v1072, 23
    %v1074 = vsub.s32 %v1073, 127
    %v1075 = vand.u32 2147483647, %v220
    %v1076 = vand.u32 %v1075, 8388607
    %v1077 = vor.u32 %v1076, 8388608
    %v1078 = vsub.s32 0, %v1077
    %v1079 = vadd.s32 %v1074, 1
    %vm1080 = vcmp.gt.s32.totalorder %v1079, 0
    %v1081 = vsel %vm1080, %v1079, 0
    %v1082 = vshrl.u32 %v1081, 5
    %v1083 = vand.u32 %v1081, 31
    %v1084 = vsub.s32 32, %v1083
    %v1085 = vshrl.u32 683565275, %v1084
    %v1086 = vshll.u32 683565275, %v1083
    %v1087 = vshrl.u32 2475754826, %v1084
    %v1088 = vor.u32 %v1086, %v1087
    %v1089 = vshll.u32 2475754826, %v1083
    %v1090 = vshrl.u32 2131351028, %v1084
    %v1091 = vor.u32 %v1089, %v1090
    %v1092 = vshll.u32 2131351028, %v1083
    %v1093 = vshrl.u32 2102212464, %v1084
    %v1094 = vor.u32 %v1092, %v1093
    %v1095 = vshll.u32 2102212464, %v1083
    %v1096 = vshrl.u32 920167782, %v1084
    %v1097 = vor.u32 %v1095, %v1096
    %v1098 = vshll.u32 920167782, %v1083
    %v1099 = vshrl.u32 1326507024, %v1084
    %v1100 = vor.u32 %v1098, %v1099
    %vm1101 = vcmp.lt.s32.totalorder %v1082, 1
    %vm1102 = vcmp.lt.s32.totalorder %v1082, 2
    %vm1103 = vcmp.lt.s32.totalorder %v1082, 3
    %vm1104 = vcmp.lt.s32.totalorder %v1082, 4
    %v1105 = vsel %vm1101, %v1085, %v1088
    %v1106 = vsel %vm1104, %v1094, 2102212464
    %v1107 = vsel %vm1103, %v1091, %v1106
    %v1108 = vsel %vm1102, %v1105, %v1107
    %v1109 = vsel %vm1101, %v1088, %v1091
    %v1110 = vsel %vm1104, %v1097, 920167782
    %v1111 = vsel %vm1103, %v1094, %v1110
    %v1112 = vsel %vm1102, %v1109, %v1111
    %v1113 = vsel %vm1101, %v1091, %v1094
    %v1114 = vsel %vm1104, %v1100, 1326507024
    %v1115 = vsel %vm1103, %v1097, %v1114
    %v1116 = vsel %vm1102, %v1113, %v1115
    %v1117 = vshll.u32 %v1077, 8
    %v1118 = vmul.u32.u64.compose %v1117, %v1116
    %v1119 = vextract.low.u32 %v1118
    %v1120 = vextract.high.u32 %v1118
    %v1121 = vmul.u32.u64.compose %v1117, %v1112
    %v1122 = vextract.low.u32 %v1121
    %v1123 = vextract.high.u32 %v1121
    %v1124 = vmul.u32 %v1117, %v1108
    %v1125 = vadd.s32 %v1120, %v1122
    %vm1126 = vc.u32 %v1120, %v1122
    %v1127 = vadd.s32 %v1123, 1
    %v1128 = vsel %vm1126, %v1127, %v1123
    %v1129 = vadd.s32 %v1124, %v1128
    %v1130 = vadd.s32 %v1129, 536870912
    %v1131 = vshrl.u32 %v1130, 30
    %v1132 = vshll.u32 %v1131, 30
    %v1133 = vsub.s32 %v1129, %v1132
    %vm1134 = vcmp.lt.s32.totalorder %v1133, 0
    %v1135 = vsub.s32 0, %v1133
    %v1136 = vsel %vm1134, %v1135, %v1133
    %v1137 = vclz %v1136
    %v1138 = vsub.s32 %v1137, 2
    %vm1139 = vcmp.gt.s32.totalorder 0, %v1138
    %v1140 = vsel %vm1139, 0, %v1138
    %v1141 = vsub.s32 32, %v1140
    %v1142 = vshll.u32 %v1133, %v1140
    %v1143 = vshrl.u32 %v1125, %v1141
    %v1144 = vor.u32 %v1142, %v1143
    %v1145 = vsub.s32 4294967266, %v1140
    %v1146 = vadd.s32 %v1145, 127
    %v1147 = vshll.u32 %v1146, 23
    %v1148 = vor.u32 4788187, %v1147
    %v1149 = vand.u32 2147483647, %v1148
    %v1151 = vcvt.s32.f32 %v1144
    %v1152 = vmul.f32 %v1151, %v1149
    %v1153 = vxor.u32 %v1152, 2147483648
    %v1154 = vsel %vm1071, %v1153, %v1152
    %v1155 = vsub.s32 4, %v1131
    %v1156 = vsel %vm1071, %v1155, %v1131
    %v1157 = vsel %vm1070, %v220, %v1154
    %v1158 = vsel %vm1070, 0, %v1156
    %v1159 = vcosq.f32.pop %v1157
    %v1160 = vsinq.f32.pop %v1157
    %vm1161 = vweird.f32 %v220
    %v1162 = vadd.s32 %v1158, 3
    %v1163 = vand.u32 %v1162, 3
    %vm1164 = vcmp.lt.s32.totalorder %v1163, 2
    %vm1165 = vcmp.eq.s32.totalorder %v1163, 0
    %v1166 = vxor.u32 %v1160, 2147483648
    %v1167 = vsel %vm1165, %v1159, %v1166
    %vm1168 = vcmp.eq.s32.totalorder %v1163, 2
    %v1169 = vxor.u32 %v1159, 2147483648
    %v1170 = vsel %vm1168, %v1169, %v1160
    %v1171 = vsel %vm1164, %v1167, %v1170
    %v1172 = vsel %vm1161, nan, %v1171
    %v1173 = vand.u32 2147483647, %v221
    %vm1174 = vcmp.le.f32.partialorder %v1173, 0.7853982
    %vm1175 = vcmp.lt.s32.totalorder %v221, 0
    %v1176 = vand.u32 %v221, 2139095040
    %v1177 = vshrl.u32 %v1176, 23
    %v1178 = vsub.s32 %v1177, 127
    %v1179 = vand.u32 2147483647, %v221
    %v1180 = vand.u32 %v1179, 8388607
    %v1181 = vor.u32 %v1180, 8388608
    %v1182 = vsub.s32 0, %v1181
    %v1183 = vadd.s32 %v1178, 1
    %vm1184 = vcmp.gt.s32.totalorder %v1183, 0
    %v1185 = vsel %vm1184, %v1183, 0
    %v1186 = vshrl.u32 %v1185, 5
    %v1187 = vand.u32 %v1185, 31
    %v1188 = vsub.s32 32, %v1187
    %v1189 = vshrl.u32 683565275, %v1188
    %v1190 = vshll.u32 683565275, %v1187
    %v1191 = vshrl.u32 2475754826, %v1188
    %v1192 = vor.u32 %v1190, %v1191
    %v1193 = vshll.u32 2475754826, %v1187
    %v1194 = vshrl.u32 2131351028, %v1188
    %v1195 = vor.u32 %v1193, %v1194
    %v1196 = vshll.u32 2131351028, %v1187
    %v1197 = vshrl.u32 2102212464, %v1188
    %v1198 = vor.u32 %v1196, %v1197
    %v1199 = vshll.u32 2102212464, %v1187
    %v1200 = vshrl.u32 920167782, %v1188
    %v1201 = vor.u32 %v1199, %v1200
    %v1202 = vshll.u32 920167782, %v1187
    %v1203 = vshrl.u32 1326507024, %v1188
    %v1204 = vor.u32 %v1202, %v1203
    %vm1205 = vcmp.lt.s32.totalorder %v1186, 1
    %vm1206 = vcmp.lt.s32.totalorder %v1186, 2
    %vm1207 = vcmp.lt.s32.totalorder %v1186, 3
    %vm1208 = vcmp.lt.s32.totalorder %v1186, 4
    %v1209 = vsel %vm1205, %v1189, %v1192
    %v1210 = vsel %vm1208, %v1198, 2102212464
    %v1211 = vsel %vm1207, %v1195, %v1210
    %v1212 = vsel %vm1206, %v1209, %v1211
    %v1213 = vsel %vm1205, %v1192, %v1195
    %v1214 = vsel %vm1208, %v1201, 920167782
    %v1215 = vsel %vm1207, %v1198, %v1214
    %v1216 = vsel %vm1206, %v1213, %v1215
    %v1217 = vsel %vm1205, %v1195, %v1198
    %v1218 = vsel %vm1208, %v1204, 1326507024
    %v1219 = vsel %vm1207, %v1201, %v1218
    %v1220 = vsel %vm1206, %v1217, %v1219
    %v1221 = vshll.u32 %v1181, 8
    %v1222 = vmul.u32.u64.compose %v1221, %v1220
    %v1223 = vextract.low.u32 %v1222
    %v1224 = vextract.high.u32 %v1222
    %v1225 = vmul.u32.u64.compose %v1221, %v1216
    %v1226 = vextract.low.u32 %v1225
    %v1227 = vextract.high.u32 %v1225
    %v1228 = vmul.u32 %v1221, %v1212
    %v1229 = vadd.s32 %v1224, %v1226
    %vm1230 = vc.u32 %v1224, %v1226
    %v1231 = vadd.s32 %v1227, 1
    %v1232 = vsel %vm1230, %v1231, %v1227
    %v1233 = vadd.s32 %v1228, %v1232
    %v1234 = vadd.s32 %v1233, 536870912
    %v1235 = vshrl.u32 %v1234, 30
    %v1236 = vshll.u32 %v1235, 30
    %v1237 = vsub.s32 %v1233, %v1236
    %vm1238 = vcmp.lt.s32.totalorder %v1237, 0
    %v1239 = vsub.s32 0, %v1237
    %v1240 = vsel %vm1238, %v1239, %v1237
    %v1241 = vclz %v1240
    %v1242 = vsub.s32 %v1241, 2
    %vm1243 = vcmp.gt.s32.totalorder 0, %v1242
    %v1244 = vsel %vm1243, 0, %v1242
    %v1245 = vsub.s32 32, %v1244
    %v1246 = vshll.u32 %v1237, %v1244
    %v1247 = vshrl.u32 %v1229, %v1245
    %v1248 = vor.u32 %v1246, %v1247
    %v1249 = vsub.s32 4294967266, %v1244
    %v1250 = vadd.s32 %v1249, 127
    %v1251 = vshll.u32 %v1250, 23
    %v1252 = vor.u32 4788187, %v1251
    %v1253 = vand.u32 2147483647, %v1252
    %v1255 = vcvt.s32.f32 %v1248
    %v1256 = vmul.f32 %v1255, %v1253
    %v1257 = vxor.u32 %v1256, 2147483648
    %v1258 = vsel %vm1175, %v1257, %v1256
    %v1259 = vsub.s32 4, %v1235
    %v1260 = vsel %vm1175, %v1259, %v1235
    %v1261 = vsel %vm1174, %v221, %v1258
    %v1262 = vsel %vm1174, 0, %v1260
    %v1263 = vcosq.f32.pop %v1261
    %v1264 = vsinq.f32.pop %v1261
    %vm1265 = vweird.f32 %v221
    %v1266 = vadd.s32 %v1262, 3
    %v1267 = vand.u32 %v1266, 3
    %vm1268 = vcmp.lt.s32.totalorder %v1267, 2
    %vm1269 = vcmp.eq.s32.totalorder %v1267, 0
    %v1270 = vxor.u32 %v1264, 2147483648
    %v1271 = vsel %vm1269, %v1263, %v1270
    %vm1272 = vcmp.eq.s32.totalorder %v1267, 2
    %v1273 = vxor.u32 %v1263, 2147483648
    %v1274 = vsel %vm1272, %v1273, %v1264
    %v1275 = vsel %vm1268, %v1271, %v1274
    %v1276 = vsel %vm1265, nan, %v1275
    %v1277 = vand.u32 2147483647, %v222
    %vm1278 = vcmp.le.f32.partialorder %v1277, 0.7853982
    %vm1279 = vcmp.lt.s32.totalorder %v222, 0
    %v1280 = vand.u32 %v222, 2139095040
    %v1281 = vshrl.u32 %v1280, 23
    %v1282 = vsub.s32 %v1281, 127
    %v1283 = vand.u32 2147483647, %v222
    %v1284 = vand.u32 %v1283, 8388607
    %v1285 = vor.u32 %v1284, 8388608
    %v1286 = vsub.s32 0, %v1285
    %v1287 = vadd.s32 %v1282, 1
    %vm1288 = vcmp.gt.s32.totalorder %v1287, 0
    %v1289 = vsel %vm1288, %v1287, 0
    %v1290 = vshrl.u32 %v1289, 5
    %v1291 = vand.u32 %v1289, 31
    %v1292 = vsub.s32 32, %v1291
    %v1293 = vshrl.u32 683565275, %v1292
    %v1294 = vshll.u32 683565275, %v1291
    %v1295 = vshrl.u32 2475754826, %v1292
    %v1296 = vor.u32 %v1294, %v1295
    %v1297 = vshll.u32 2475754826, %v1291
    %v1298 = vshrl.u32 2131351028, %v1292
    %v1299 = vor.u32 %v1297, %v1298
    %v1300 = vshll.u32 2131351028, %v1291
    %v1301 = vshrl.u32 2102212464, %v1292
    %v1302 = vor.u32 %v1300, %v1301
    %v1303 = vshll.u32 2102212464, %v1291
    %v1304 = vshrl.u32 920167782, %v1292
    %v1305 = vor.u32 %v1303, %v1304
    %v1306 = vshll.u32 920167782, %v1291
    %v1307 = vshrl.u32 1326507024, %v1292
    %v1308 = vor.u32 %v1306, %v1307
    %vm1309 = vcmp.lt.s32.totalorder %v1290, 1
    %vm1310 = vcmp.lt.s32.totalorder %v1290, 2
    %vm1311 = vcmp.lt.s32.totalorder %v1290, 3
    %vm1312 = vcmp.lt.s32.totalorder %v1290, 4
    %v1313 = vsel %vm1309, %v1293, %v1296
    %v1314 = vsel %vm1312, %v1302, 2102212464
    %v1315 = vsel %vm1311, %v1299, %v1314
    %v1316 = vsel %vm1310, %v1313, %v1315
    %v1317 = vsel %vm1309, %v1296, %v1299
    %v1318 = vsel %vm1312, %v1305, 920167782
    %v1319 = vsel %vm1311, %v1302, %v1318
    %v1320 = vsel %vm1310, %v1317, %v1319
    %v1321 = vsel %vm1309, %v1299, %v1302
    %v1322 = vsel %vm1312, %v1308, 1326507024
    %v1323 = vsel %vm1311, %v1305, %v1322
    %v1324 = vsel %vm1310, %v1321, %v1323
    %v1325 = vshll.u32 %v1285, 8
    %v1326 = vmul.u32.u64.compose %v1325, %v1324
    %v1327 = vextract.low.u32 %v1326
    %v1328 = vextract.high.u32 %v1326
    %v1329 = vmul.u32.u64.compose %v1325, %v1320
    %v1330 = vextract.low.u32 %v1329
    %v1331 = vextract.high.u32 %v1329
    %v1332 = vmul.u32 %v1325, %v1316
    %v1333 = vadd.s32 %v1328, %v1330
    %vm1334 = vc.u32 %v1328, %v1330
    %v1335 = vadd.s32 %v1331, 1
    %v1336 = vsel %vm1334, %v1335, %v1331
    %v1337 = vadd.s32 %v1332, %v1336
    %v1338 = vadd.s32 %v1337, 536870912
    %v1339 = vshrl.u32 %v1338, 30
    %v1340 = vshll.u32 %v1339, 30
    %v1341 = vsub.s32 %v1337, %v1340
    %vm1342 = vcmp.lt.s32.totalorder %v1341, 0
    %v1343 = vsub.s32 0, %v1341
    %v1344 = vsel %vm1342, %v1343, %v1341
    %v1345 = vclz %v1344
    %v1346 = vsub.s32 %v1345, 2
    %vm1347 = vcmp.gt.s32.totalorder 0, %v1346
    %v1348 = vsel %vm1347, 0, %v1346
    %v1349 = vsub.s32 32, %v1348
    %v1350 = vshll.u32 %v1341, %v1348
    %v1351 = vshrl.u32 %v1333, %v1349
    %v1352 = vor.u32 %v1350, %v1351
    %v1353 = vsub.s32 4294967266, %v1348
    %v1354 = vadd.s32 %v1353, 127
    %v1355 = vshll.u32 %v1354, 23
    %v1356 = vor.u32 4788187, %v1355
    %v1357 = vand.u32 2147483647, %v1356
    %v1359 = vcvt.s32.f32 %v1352
    %v1360 = vmul.f32 %v1359, %v1357
    %v1361 = vxor.u32 %v1360, 2147483648
    %v1362 = vsel %vm1279, %v1361, %v1360
    %v1363 = vsub.s32 4, %v1339
    %v1364 = vsel %vm1279, %v1363, %v1339
    %v1365 = vsel %vm1278, %v222, %v1362
    %v1366 = vsel %vm1278, 0, %v1364
    %v1367 = vcosq.f32.pop %v1365
    %v1368 = vsinq.f32.pop %v1365
    %vm1369 = vweird.f32 %v222
    %v1370 = vadd.s32 %v1366, 3
    %v1371 = vand.u32 %v1370, 3
    %vm1372 = vcmp.lt.s32.totalorder %v1371, 2
    %vm1373 = vcmp.eq.s32.totalorder %v1371, 0
    %v1374 = vxor.u32 %v1368, 2147483648
    %v1375 = vsel %vm1373, %v1367, %v1374
    %vm1376 = vcmp.eq.s32.totalorder %v1371, 2
    %v1377 = vxor.u32 %v1367, 2147483648
    %v1378 = vsel %vm1376, %v1377, %v1368
    %v1379 = vsel %vm1372, %v1375, %v1378
    %v1380 = vsel %vm1369, nan, %v1379
    %v1381 = vand.u32 2147483647, %v223
    %vm1382 = vcmp.le.f32.partialorder %v1381, 0.7853982
    %vm1383 = vcmp.lt.s32.totalorder %v223, 0
    %v1384 = vand.u32 %v223, 2139095040
    %v1385 = vshrl.u32 %v1384, 23
    %v1386 = vsub.s32 %v1385, 127
    %v1387 = vand.u32 2147483647, %v223
    %v1388 = vand.u32 %v1387, 8388607
    %v1389 = vor.u32 %v1388, 8388608
    %v1390 = vsub.s32 0, %v1389
    %v1391 = vadd.s32 %v1386, 1
    %vm1392 = vcmp.gt.s32.totalorder %v1391, 0
    %v1393 = vsel %vm1392, %v1391, 0
    %v1394 = vshrl.u32 %v1393, 5
    %v1395 = vand.u32 %v1393, 31
    %v1396 = vsub.s32 32, %v1395
    %v1397 = vshrl.u32 683565275, %v1396
    %v1398 = vshll.u32 683565275, %v1395
    %v1399 = vshrl.u32 2475754826, %v1396
    %v1400 = vor.u32 %v1398, %v1399
    %v1401 = vshll.u32 2475754826, %v1395
    %v1402 = vshrl.u32 2131351028, %v1396
    %v1403 = vor.u32 %v1401, %v1402
    %v1404 = vshll.u32 2131351028, %v1395
    %v1405 = vshrl.u32 2102212464, %v1396
    %v1406 = vor.u32 %v1404, %v1405
    %v1407 = vshll.u32 2102212464, %v1395
    %v1408 = vshrl.u32 920167782, %v1396
    %v1409 = vor.u32 %v1407, %v1408
    %v1410 = vshll.u32 920167782, %v1395
    %v1411 = vshrl.u32 1326507024, %v1396
    %v1412 = vor.u32 %v1410, %v1411
    %vm1413 = vcmp.lt.s32.totalorder %v1394, 1
    %vm1414 = vcmp.lt.s32.totalorder %v1394, 2
    %vm1415 = vcmp.lt.s32.totalorder %v1394, 3
    %vm1416 = vcmp.lt.s32.totalorder %v1394, 4
    %v1417 = vsel %vm1413, %v1397, %v1400
    %v1418 = vsel %vm1416, %v1406, 2102212464
    %v1419 = vsel %vm1415, %v1403, %v1418
    %v1420 = vsel %vm1414, %v1417, %v1419
    %v1421 = vsel %vm1413, %v1400, %v1403
    %v1422 = vsel %vm1416, %v1409, 920167782
    %v1423 = vsel %vm1415, %v1406, %v1422
    %v1424 = vsel %vm1414, %v1421, %v1423
    %v1425 = vsel %vm1413, %v1403, %v1406
    %v1426 = vsel %vm1416, %v1412, 1326507024
    %v1427 = vsel %vm1415, %v1409, %v1426
    %v1428 = vsel %vm1414, %v1425, %v1427
    %v1429 = vshll.u32 %v1389, 8
    %v1430 = vmul.u32.u64.compose %v1429, %v1428
    %v1431 = vextract.low.u32 %v1430
    %v1432 = vextract.high.u32 %v1430
    %v1433 = vmul.u32.u64.compose %v1429, %v1424
    %v1434 = vextract.low.u32 %v1433
    %v1435 = vextract.high.u32 %v1433
    %v1436 = vmul.u32 %v1429, %v1420
    %v1437 = vadd.s32 %v1432, %v1434
    %vm1438 = vc.u32 %v1432, %v1434
    %v1439 = vadd.s32 %v1435, 1
    %v1440 = vsel %vm1438, %v1439, %v1435
    %v1441 = vadd.s32 %v1436, %v1440
    %v1442 = vadd.s32 %v1441, 536870912
    %v1443 = vshrl.u32 %v1442, 30
    %v1444 = vshll.u32 %v1443, 30
    %v1445 = vsub.s32 %v1441, %v1444
    %vm1446 = vcmp.lt.s32.totalorder %v1445, 0
    %v1447 = vsub.s32 0, %v1445
    %v1448 = vsel %vm1446, %v1447, %v1445
    %v1449 = vclz %v1448
    %v1450 = vsub.s32 %v1449, 2
    %vm1451 = vcmp.gt.s32.totalorder 0, %v1450
    %v1452 = vsel %vm1451, 0, %v1450
    %v1453 = vsub.s32 32, %v1452
    %v1454 = vshll.u32 %v1445, %v1452
    %v1455 = vshrl.u32 %v1437, %v1453
    %v1456 = vor.u32 %v1454, %v1455
    %v1457 = vsub.s32 4294967266, %v1452
    %v1458 = vadd.s32 %v1457, 127
    %v1459 = vshll.u32 %v1458, 23
    %v1460 = vor.u32 4788187, %v1459
    %v1461 = vand.u32 2147483647, %v1460
    %v1463 = vcvt.s32.f32 %v1456
    %v1464 = vmul.f32 %v1463, %v1461
    %v1465 = vxor.u32 %v1464, 2147483648
    %v1466 = vsel %vm1383, %v1465, %v1464
    %v1467 = vsub.s32 4, %v1443
    %v1468 = vsel %vm1383, %v1467, %v1443
    %v1469 = vsel %vm1382, %v223, %v1466
    %v1470 = vsel %vm1382, 0, %v1468
    %v1471 = vcosq.f32.pop %v1469
    %v1472 = vsinq.f32.pop %v1469
    %vm1473 = vweird.f32 %v223
    %v1474 = vadd.s32 %v1470, 3
    %v1475 = vand.u32 %v1474, 3
    %vm1476 = vcmp.lt.s32.totalorder %v1475, 2
    %vm1477 = vcmp.eq.s32.totalorder %v1475, 0
    %v1478 = vxor.u32 %v1472, 2147483648
    %v1479 = vsel %vm1477, %v1471, %v1478
    %vm1480 = vcmp.eq.s32.totalorder %v1475, 2
    %v1481 = vxor.u32 %v1471, 2147483648
    %v1482 = vsel %vm1480, %v1481, %v1472
    %v1483 = vsel %vm1476, %v1479, %v1482
    %v1484 = vsel %vm1473, nan, %v1483
    %v1485 = vand.u32 2147483647, %v225
    %vm1486 = vcmp.le.f32.partialorder %v1485, 0.7853982
    %vm1487 = vcmp.lt.s32.totalorder %v225, 0
    %v1488 = vand.u32 %v225, 2139095040
    %v1489 = vshrl.u32 %v1488, 23
    %v1490 = vsub.s32 %v1489, 127
    %v1491 = vand.u32 2147483647, %v225
    %v1492 = vand.u32 %v1491, 8388607
    %v1493 = vor.u32 %v1492, 8388608
    %v1494 = vsub.s32 0, %v1493
    %v1495 = vadd.s32 %v1490, 1
    %vm1496 = vcmp.gt.s32.totalorder %v1495, 0
    %v1497 = vsel %vm1496, %v1495, 0
    %v1498 = vshrl.u32 %v1497, 5
    %v1499 = vand.u32 %v1497, 31
    %v1500 = vsub.s32 32, %v1499
    %v1501 = vshrl.u32 683565275, %v1500
    %v1502 = vshll.u32 683565275, %v1499
    %v1503 = vshrl.u32 2475754826, %v1500
    %v1504 = vor.u32 %v1502, %v1503
    %v1505 = vshll.u32 2475754826, %v1499
    %v1506 = vshrl.u32 2131351028, %v1500
    %v1507 = vor.u32 %v1505, %v1506
    %v1508 = vshll.u32 2131351028, %v1499
    %v1509 = vshrl.u32 2102212464, %v1500
    %v1510 = vor.u32 %v1508, %v1509
    %v1511 = vshll.u32 2102212464, %v1499
    %v1512 = vshrl.u32 920167782, %v1500
    %v1513 = vor.u32 %v1511, %v1512
    %v1514 = vshll.u32 920167782, %v1499
    %v1515 = vshrl.u32 1326507024, %v1500
    %v1516 = vor.u32 %v1514, %v1515
    %vm1517 = vcmp.lt.s32.totalorder %v1498, 1
    %vm1518 = vcmp.lt.s32.totalorder %v1498, 2
    %vm1519 = vcmp.lt.s32.totalorder %v1498, 3
    %vm1520 = vcmp.lt.s32.totalorder %v1498, 4
    %v1521 = vsel %vm1517, %v1501, %v1504
    %v1522 = vsel %vm1520, %v1510, 2102212464
    %v1523 = vsel %vm1519, %v1507, %v1522
    %v1524 = vsel %vm1518, %v1521, %v1523
    %v1525 = vsel %vm1517, %v1504, %v1507
    %v1526 = vsel %vm1520, %v1513, 920167782
    %v1527 = vsel %vm1519, %v1510, %v1526
    %v1528 = vsel %vm1518, %v1525, %v1527
    %v1529 = vsel %vm1517, %v1507, %v1510
    %v1530 = vsel %vm1520, %v1516, 1326507024
    %v1531 = vsel %vm1519, %v1513, %v1530
    %v1532 = vsel %vm1518, %v1529, %v1531
    %v1533 = vshll.u32 %v1493, 8
    %v1534 = vmul.u32.u64.compose %v1533, %v1532
    %v1535 = vextract.low.u32 %v1534
    %v1536 = vextract.high.u32 %v1534
    %v1537 = vmul.u32.u64.compose %v1533, %v1528
    %v1538 = vextract.low.u32 %v1537
    %v1539 = vextract.high.u32 %v1537
    %v1540 = vmul.u32 %v1533, %v1524
    %v1541 = vadd.s32 %v1536, %v1538
    %vm1542 = vc.u32 %v1536, %v1538
    %v1543 = vadd.s32 %v1539, 1
    %v1544 = vsel %vm1542, %v1543, %v1539
    %v1545 = vadd.s32 %v1540, %v1544
    %v1546 = vadd.s32 %v1545, 536870912
    %v1547 = vshrl.u32 %v1546, 30
    %v1548 = vshll.u32 %v1547, 30
    %v1549 = vsub.s32 %v1545, %v1548
    %vm1550 = vcmp.lt.s32.totalorder %v1549, 0
    %v1551 = vsub.s32 0, %v1549
    %v1552 = vsel %vm1550, %v1551, %v1549
    %v1553 = vclz %v1552
    %v1554 = vsub.s32 %v1553, 2
    %vm1555 = vcmp.gt.s32.totalorder 0, %v1554
    %v1556 = vsel %vm1555, 0, %v1554
    %v1557 = vsub.s32 32, %v1556
    %v1558 = vshll.u32 %v1549, %v1556
    %v1559 = vshrl.u32 %v1541, %v1557
    %v1560 = vor.u32 %v1558, %v1559
    %v1561 = vsub.s32 4294967266, %v1556
    %v1562 = vadd.s32 %v1561, 127
    %v1563 = vshll.u32 %v1562, 23
    %v1564 = vor.u32 4788187, %v1563
    %v1565 = vand.u32 2147483647, %v1564
    %v1567 = vcvt.s32.f32 %v1560
    %v1568 = vmul.f32 %v1567, %v1565
    %v1569 = vxor.u32 %v1568, 2147483648
    %v1570 = vsel %vm1487, %v1569, %v1568
    %v1571 = vsub.s32 4, %v1547
    %v1572 = vsel %vm1487, %v1571, %v1547
    %v1573 = vsel %vm1486, %v225, %v1570
    %v1574 = vsel %vm1486, 0, %v1572
    %v1575 = vcosq.f32.pop %v1573
    %v1576 = vsinq.f32.pop %v1573
    %vm1577 = vweird.f32 %v225
    %v1578 = vadd.s32 %v1574, 3
    %v1579 = vand.u32 %v1578, 3
    %vm1580 = vcmp.lt.s32.totalorder %v1579, 2
    %vm1581 = vcmp.eq.s32.totalorder %v1579, 0
    %v1582 = vxor.u32 %v1576, 2147483648
    %v1583 = vsel %vm1581, %v1575, %v1582
    %vm1584 = vcmp.eq.s32.totalorder %v1579, 2
    %v1585 = vxor.u32 %v1575, 2147483648
    %v1586 = vsel %vm1584, %v1585, %v1576
    %v1587 = vsel %vm1580, %v1583, %v1586
    %v1588 = vsel %vm1577, nan, %v1587
    %v1589 = vand.u32 2147483647, %v226
    %vm1590 = vcmp.le.f32.partialorder %v1589, 0.7853982
    %vm1591 = vcmp.lt.s32.totalorder %v226, 0
    %v1592 = vand.u32 %v226, 2139095040
    %v1593 = vshrl.u32 %v1592, 23
    %v1594 = vsub.s32 %v1593, 127
    %v1595 = vand.u32 2147483647, %v226
    %v1596 = vand.u32 %v1595, 8388607
    %v1597 = vor.u32 %v1596, 8388608
    %v1598 = vsub.s32 0, %v1597
    %v1599 = vadd.s32 %v1594, 1
    %vm1600 = vcmp.gt.s32.totalorder %v1599, 0
    %v1601 = vsel %vm1600, %v1599, 0
    %v1602 = vshrl.u32 %v1601, 5
    %v1603 = vand.u32 %v1601, 31
    %v1604 = vsub.s32 32, %v1603
    %v1605 = vshrl.u32 683565275, %v1604
    %v1606 = vshll.u32 683565275, %v1603
    %v1607 = vshrl.u32 2475754826, %v1604
    %v1608 = vor.u32 %v1606, %v1607
    %v1609 = vshll.u32 2475754826, %v1603
    %v1610 = vshrl.u32 2131351028, %v1604
    %v1611 = vor.u32 %v1609, %v1610
    %v1612 = vshll.u32 2131351028, %v1603
    %v1613 = vshrl.u32 2102212464, %v1604
    %v1614 = vor.u32 %v1612, %v1613
    %v1615 = vshll.u32 2102212464, %v1603
    %v1616 = vshrl.u32 920167782, %v1604
    %v1617 = vor.u32 %v1615, %v1616
    %v1618 = vshll.u32 920167782, %v1603
    %v1619 = vshrl.u32 1326507024, %v1604
    %v1620 = vor.u32 %v1618, %v1619
    %vm1621 = vcmp.lt.s32.totalorder %v1602, 1
    %vm1622 = vcmp.lt.s32.totalorder %v1602, 2
    %vm1623 = vcmp.lt.s32.totalorder %v1602, 3
    %vm1624 = vcmp.lt.s32.totalorder %v1602, 4
    %v1625 = vsel %vm1621, %v1605, %v1608
    %v1626 = vsel %vm1624, %v1614, 2102212464
    %v1627 = vsel %vm1623, %v1611, %v1626
    %v1628 = vsel %vm1622, %v1625, %v1627
    %v1629 = vsel %vm1621, %v1608, %v1611
    %v1630 = vsel %vm1624, %v1617, 920167782
    %v1631 = vsel %vm1623, %v1614, %v1630
    %v1632 = vsel %vm1622, %v1629, %v1631
    %v1633 = vsel %vm1621, %v1611, %v1614
    %v1634 = vsel %vm1624, %v1620, 1326507024
    %v1635 = vsel %vm1623, %v1617, %v1634
    %v1636 = vsel %vm1622, %v1633, %v1635
    %v1637 = vshll.u32 %v1597, 8
    %v1638 = vmul.u32.u64.compose %v1637, %v1636
    %v1639 = vextract.low.u32 %v1638
    %v1640 = vextract.high.u32 %v1638
    %v1641 = vmul.u32.u64.compose %v1637, %v1632
    %v1642 = vextract.low.u32 %v1641
    %v1643 = vextract.high.u32 %v1641
    %v1644 = vmul.u32 %v1637, %v1628
    %v1645 = vadd.s32 %v1640, %v1642
    %vm1646 = vc.u32 %v1640, %v1642
    %v1647 = vadd.s32 %v1643, 1
    %v1648 = vsel %vm1646, %v1647, %v1643
    %v1649 = vadd.s32 %v1644, %v1648
    %v1650 = vadd.s32 %v1649, 536870912
    %v1651 = vshrl.u32 %v1650, 30
    %v1652 = vshll.u32 %v1651, 30
    %v1653 = vsub.s32 %v1649, %v1652
    %vm1654 = vcmp.lt.s32.totalorder %v1653, 0
    %v1655 = vsub.s32 0, %v1653
    %v1656 = vsel %vm1654, %v1655, %v1653
    %v1657 = vclz %v1656
    %v1658 = vsub.s32 %v1657, 2
    %vm1659 = vcmp.gt.s32.totalorder 0, %v1658
    %v1660 = vsel %vm1659, 0, %v1658
    %v1661 = vsub.s32 32, %v1660
    %v1662 = vshll.u32 %v1653, %v1660
    %v1663 = vshrl.u32 %v1645, %v1661
    %v1664 = vor.u32 %v1662, %v1663
    %v1665 = vsub.s32 4294967266, %v1660
    %v1666 = vadd.s32 %v1665, 127
    %v1667 = vshll.u32 %v1666, 23
    %v1668 = vor.u32 4788187, %v1667
    %v1669 = vand.u32 2147483647, %v1668
    %v1671 = vcvt.s32.f32 %v1664
    %v1672 = vmul.f32 %v1671, %v1669
    %v1673 = vxor.u32 %v1672, 2147483648
    %v1674 = vsel %vm1591, %v1673, %v1672
    %v1675 = vsub.s32 4, %v1651
    %v1676 = vsel %vm1591, %v1675, %v1651
    %v1677 = vsel %vm1590, %v226, %v1674
    %v1678 = vsel %vm1590, 0, %v1676
    %v1679 = vcosq.f32.pop %v1677
    %v1680 = vsinq.f32.pop %v1677
    %vm1681 = vweird.f32 %v226
    %v1682 = vadd.s32 %v1678, 3
    %v1683 = vand.u32 %v1682, 3
    %vm1684 = vcmp.lt.s32.totalorder %v1683, 2
    %vm1685 = vcmp.eq.s32.totalorder %v1683, 0
    %v1686 = vxor.u32 %v1680, 2147483648
    %v1687 = vsel %vm1685, %v1679, %v1686
    %vm1688 = vcmp.eq.s32.totalorder %v1683, 2
    %v1689 = vxor.u32 %v1679, 2147483648
    %v1690 = vsel %vm1688, %v1689, %v1680
    %v1691 = vsel %vm1684, %v1687, %v1690
    %v1692 = vsel %vm1681, nan, %v1691
    %v1693 = vand.u32 2147483647, %v227
    %vm1694 = vcmp.le.f32.partialorder %v1693, 0.7853982
    %vm1695 = vcmp.lt.s32.totalorder %v227, 0
    %v1696 = vand.u32 %v227, 2139095040
    %v1697 = vshrl.u32 %v1696, 23
    %v1698 = vsub.s32 %v1697, 127
    %v1699 = vand.u32 2147483647, %v227
    %v1700 = vand.u32 %v1699, 8388607
    %v1701 = vor.u32 %v1700, 8388608
    %v1702 = vsub.s32 0, %v1701
    %v1703 = vadd.s32 %v1698, 1
    %vm1704 = vcmp.gt.s32.totalorder %v1703, 0
    %v1705 = vsel %vm1704, %v1703, 0
    %v1706 = vshrl.u32 %v1705, 5
    %v1707 = vand.u32 %v1705, 31
    %v1708 = vsub.s32 32, %v1707
    %v1709 = vshrl.u32 683565275, %v1708
    %v1710 = vshll.u32 683565275, %v1707
    %v1711 = vshrl.u32 2475754826, %v1708
    %v1712 = vor.u32 %v1710, %v1711
    %v1713 = vshll.u32 2475754826, %v1707
    %v1714 = vshrl.u32 2131351028, %v1708
    %v1715 = vor.u32 %v1713, %v1714
    %v1716 = vshll.u32 2131351028, %v1707
    %v1717 = vshrl.u32 2102212464, %v1708
    %v1718 = vor.u32 %v1716, %v1717
    %v1719 = vshll.u32 2102212464, %v1707
    %v1720 = vshrl.u32 920167782, %v1708
    %v1721 = vor.u32 %v1719, %v1720
    %v1722 = vshll.u32 920167782, %v1707
    %v1723 = vshrl.u32 1326507024, %v1708
    %v1724 = vor.u32 %v1722, %v1723
    %vm1725 = vcmp.lt.s32.totalorder %v1706, 1
    %vm1726 = vcmp.lt.s32.totalorder %v1706, 2
    %vm1727 = vcmp.lt.s32.totalorder %v1706, 3
    %vm1728 = vcmp.lt.s32.totalorder %v1706, 4
    %v1729 = vsel %vm1725, %v1709, %v1712
    %v1730 = vsel %vm1728, %v1718, 2102212464
    %v1731 = vsel %vm1727, %v1715, %v1730
    %v1732 = vsel %vm1726, %v1729, %v1731
    %v1733 = vsel %vm1725, %v1712, %v1715
    %v1734 = vsel %vm1728, %v1721, 920167782
    %v1735 = vsel %vm1727, %v1718, %v1734
    %v1736 = vsel %vm1726, %v1733, %v1735
    %v1737 = vsel %vm1725, %v1715, %v1718
    %v1738 = vsel %vm1728, %v1724, 1326507024
    %v1739 = vsel %vm1727, %v1721, %v1738
    %v1740 = vsel %vm1726, %v1737, %v1739
    %v1741 = vshll.u32 %v1701, 8
    %v1742 = vmul.u32.u64.compose %v1741, %v1740
    %v1743 = vextract.low.u32 %v1742
    %v1744 = vextract.high.u32 %v1742
    %v1745 = vmul.u32.u64.compose %v1741, %v1736
    %v1746 = vextract.low.u32 %v1745
    %v1747 = vextract.high.u32 %v1745
    %v1748 = vmul.u32 %v1741, %v1732
    %v1749 = vadd.s32 %v1744, %v1746
    %vm1750 = vc.u32 %v1744, %v1746
    %v1751 = vadd.s32 %v1747, 1
    %v1752 = vsel %vm1750, %v1751, %v1747
    %v1753 = vadd.s32 %v1748, %v1752
    %v1754 = vadd.s32 %v1753, 536870912
    %v1755 = vshrl.u32 %v1754, 30
    %v1756 = vshll.u32 %v1755, 30
    %v1757 = vsub.s32 %v1753, %v1756
    %vm1758 = vcmp.lt.s32.totalorder %v1757, 0
    %v1759 = vsub.s32 0, %v1757
    %v1760 = vsel %vm1758, %v1759, %v1757
    %v1761 = vclz %v1760
    %v1762 = vsub.s32 %v1761, 2
    %vm1763 = vcmp.gt.s32.totalorder 0, %v1762
    %v1764 = vsel %vm1763, 0, %v1762
    %v1765 = vsub.s32 32, %v1764
    %v1766 = vshll.u32 %v1757, %v1764
    %v1767 = vshrl.u32 %v1749, %v1765
    %v1768 = vor.u32 %v1766, %v1767
    %v1769 = vsub.s32 4294967266, %v1764
    %v1770 = vadd.s32 %v1769, 127
    %v1771 = vshll.u32 %v1770, 23
    %v1772 = vor.u32 4788187, %v1771
    %v1773 = vand.u32 2147483647, %v1772
    %v1775 = vcvt.s32.f32 %v1768
    %v1776 = vmul.f32 %v1775, %v1773
    %v1777 = vxor.u32 %v1776, 2147483648
    %v1778 = vsel %vm1695, %v1777, %v1776
    %v1779 = vsub.s32 4, %v1755
    %v1780 = vsel %vm1695, %v1779, %v1755
    %v1781 = vsel %vm1694, %v227, %v1778
    %v1782 = vsel %vm1694, 0, %v1780
    %v1783 = vcosq.f32.pop %v1781
    %v1784 = vsinq.f32.pop %v1781
    %vm1785 = vweird.f32 %v227
    %v1786 = vadd.s32 %v1782, 3
    %v1787 = vand.u32 %v1786, 3
    %vm1788 = vcmp.lt.s32.totalorder %v1787, 2
    %vm1789 = vcmp.eq.s32.totalorder %v1787, 0
    %v1790 = vxor.u32 %v1784, 2147483648
    %v1791 = vsel %vm1789, %v1783, %v1790
    %vm1792 = vcmp.eq.s32.totalorder %v1787, 2
    %v1793 = vxor.u32 %v1783, 2147483648
    %v1794 = vsel %vm1792, %v1793, %v1784
    %v1795 = vsel %vm1788, %v1791, %v1794
    %v1796 = vsel %vm1785, nan, %v1795
    %v1797 = vand.u32 2147483647, %v228
    %vm1798 = vcmp.le.f32.partialorder %v1797, 0.7853982
    %vm1799 = vcmp.lt.s32.totalorder %v228, 0
    %v1800 = vand.u32 %v228, 2139095040
    %v1801 = vshrl.u32 %v1800, 23
    %v1802 = vsub.s32 %v1801, 127
    %v1803 = vand.u32 2147483647, %v228
    %v1804 = vand.u32 %v1803, 8388607
    %v1805 = vor.u32 %v1804, 8388608
    %v1806 = vsub.s32 0, %v1805
    %v1807 = vadd.s32 %v1802, 1
    %vm1808 = vcmp.gt.s32.totalorder %v1807, 0
    %v1809 = vsel %vm1808, %v1807, 0
    %v1810 = vshrl.u32 %v1809, 5
    %v1811 = vand.u32 %v1809, 31
    %v1812 = vsub.s32 32, %v1811
    %v1813 = vshrl.u32 683565275, %v1812
    %v1814 = vshll.u32 683565275, %v1811
    %v1815 = vshrl.u32 2475754826, %v1812
    %v1816 = vor.u32 %v1814, %v1815
    %v1817 = vshll.u32 2475754826, %v1811
    %v1818 = vshrl.u32 2131351028, %v1812
    %v1819 = vor.u32 %v1817, %v1818
    %v1820 = vshll.u32 2131351028, %v1811
    %v1821 = vshrl.u32 2102212464, %v1812
    %v1822 = vor.u32 %v1820, %v1821
    %v1823 = vshll.u32 2102212464, %v1811
    %v1824 = vshrl.u32 920167782, %v1812
    %v1825 = vor.u32 %v1823, %v1824
    %v1826 = vshll.u32 920167782, %v1811
    %v1827 = vshrl.u32 1326507024, %v1812
    %v1828 = vor.u32 %v1826, %v1827
    %vm1829 = vcmp.lt.s32.totalorder %v1810, 1
    %vm1830 = vcmp.lt.s32.totalorder %v1810, 2
    %vm1831 = vcmp.lt.s32.totalorder %v1810, 3
    %vm1832 = vcmp.lt.s32.totalorder %v1810, 4
    %v1833 = vsel %vm1829, %v1813, %v1816
    %v1834 = vsel %vm1832, %v1822, 2102212464
    %v1835 = vsel %vm1831, %v1819, %v1834
    %v1836 = vsel %vm1830, %v1833, %v1835
    %v1837 = vsel %vm1829, %v1816, %v1819
    %v1838 = vsel %vm1832, %v1825, 920167782
    %v1839 = vsel %vm1831, %v1822, %v1838
    %v1840 = vsel %vm1830, %v1837, %v1839
    %v1841 = vsel %vm1829, %v1819, %v1822
    %v1842 = vsel %vm1832, %v1828, 1326507024
    %v1843 = vsel %vm1831, %v1825, %v1842
    %v1844 = vsel %vm1830, %v1841, %v1843
    %v1845 = vshll.u32 %v1805, 8
    %v1846 = vmul.u32.u64.compose %v1845, %v1844
    %v1847 = vextract.low.u32 %v1846
    %v1848 = vextract.high.u32 %v1846
    %v1849 = vmul.u32.u64.compose %v1845, %v1840
    %v1850 = vextract.low.u32 %v1849
    %v1851 = vextract.high.u32 %v1849
    %v1852 = vmul.u32 %v1845, %v1836
    %v1853 = vadd.s32 %v1848, %v1850
    %vm1854 = vc.u32 %v1848, %v1850
    %v1855 = vadd.s32 %v1851, 1
    %v1856 = vsel %vm1854, %v1855, %v1851
    %v1857 = vadd.s32 %v1852, %v1856
    %v1858 = vadd.s32 %v1857, 536870912
    %v1859 = vshrl.u32 %v1858, 30
    %v1860 = vshll.u32 %v1859, 30
    %v1861 = vsub.s32 %v1857, %v1860
    %vm1862 = vcmp.lt.s32.totalorder %v1861, 0
    %v1863 = vsub.s32 0, %v1861
    %v1864 = vsel %vm1862, %v1863, %v1861
    %v1865 = vclz %v1864
    %v1866 = vsub.s32 %v1865, 2
    %vm1867 = vcmp.gt.s32.totalorder 0, %v1866
    %v1868 = vsel %vm1867, 0, %v1866
    %v1869 = vsub.s32 32, %v1868
    %v1870 = vshll.u32 %v1861, %v1868
    %v1871 = vshrl.u32 %v1853, %v1869
    %v1872 = vor.u32 %v1870, %v1871
    %v1873 = vsub.s32 4294967266, %v1868
    %v1874 = vadd.s32 %v1873, 127
    %v1875 = vshll.u32 %v1874, 23
    %v1876 = vor.u32 4788187, %v1875
    %v1877 = vand.u32 2147483647, %v1876
    %v1879 = vcvt.s32.f32 %v1872
    %v1880 = vmul.f32 %v1879, %v1877
    %v1881 = vxor.u32 %v1880, 2147483648
    %v1882 = vsel %vm1799, %v1881, %v1880
    %v1883 = vsub.s32 4, %v1859
    %v1884 = vsel %vm1799, %v1883, %v1859
    %v1885 = vsel %vm1798, %v228, %v1882
    %v1886 = vsel %vm1798, 0, %v1884
    %v1887 = vcosq.f32.pop %v1885
    %v1888 = vsinq.f32.pop %v1885
    %vm1889 = vweird.f32 %v228
    %v1890 = vadd.s32 %v1886, 3
    %v1891 = vand.u32 %v1890, 3
    %vm1892 = vcmp.lt.s32.totalorder %v1891, 2
    %vm1893 = vcmp.eq.s32.totalorder %v1891, 0
    %v1894 = vxor.u32 %v1888, 2147483648
    %v1895 = vsel %vm1893, %v1887, %v1894
    %vm1896 = vcmp.eq.s32.totalorder %v1891, 2
    %v1897 = vxor.u32 %v1887, 2147483648
    %v1898 = vsel %vm1896, %v1897, %v1888
    %v1899 = vsel %vm1892, %v1895, %v1898
    %v1900 = vsel %vm1889, nan, %v1899
    %v1901 = vand.u32 2147483647, %v229
    %vm1902 = vcmp.le.f32.partialorder %v1901, 0.7853982
    %vm1903 = vcmp.lt.s32.totalorder %v229, 0
    %v1904 = vand.u32 %v229, 2139095040
    %v1905 = vshrl.u32 %v1904, 23
    %v1906 = vsub.s32 %v1905, 127
    %v1907 = vand.u32 2147483647, %v229
    %v1908 = vand.u32 %v1907, 8388607
    %v1909 = vor.u32 %v1908, 8388608
    %v1910 = vsub.s32 0, %v1909
    %v1911 = vadd.s32 %v1906, 1
    %vm1912 = vcmp.gt.s32.totalorder %v1911, 0
    %v1913 = vsel %vm1912, %v1911, 0
    %v1914 = vshrl.u32 %v1913, 5
    %v1915 = vand.u32 %v1913, 31
    %v1916 = vsub.s32 32, %v1915
    %v1917 = vshrl.u32 683565275, %v1916
    %v1918 = vshll.u32 683565275, %v1915
    %v1919 = vshrl.u32 2475754826, %v1916
    %v1920 = vor.u32 %v1918, %v1919
    %v1921 = vshll.u32 2475754826, %v1915
    %v1922 = vshrl.u32 2131351028, %v1916
    %v1923 = vor.u32 %v1921, %v1922
    %v1924 = vshll.u32 2131351028, %v1915
    %v1925 = vshrl.u32 2102212464, %v1916
    %v1926 = vor.u32 %v1924, %v1925
    %v1927 = vshll.u32 2102212464, %v1915
    %v1928 = vshrl.u32 920167782, %v1916
    %v1929 = vor.u32 %v1927, %v1928
    %v1930 = vshll.u32 920167782, %v1915
    %v1931 = vshrl.u32 1326507024, %v1916
    %v1932 = vor.u32 %v1930, %v1931
    %vm1933 = vcmp.lt.s32.totalorder %v1914, 1
    %vm1934 = vcmp.lt.s32.totalorder %v1914, 2
    %vm1935 = vcmp.lt.s32.totalorder %v1914, 3
    %vm1936 = vcmp.lt.s32.totalorder %v1914, 4
    %v1937 = vsel %vm1933, %v1917, %v1920
    %v1938 = vsel %vm1936, %v1926, 2102212464
    %v1939 = vsel %vm1935, %v1923, %v1938
    %v1940 = vsel %vm1934, %v1937, %v1939
    %v1941 = vsel %vm1933, %v1920, %v1923
    %v1942 = vsel %vm1936, %v1929, 920167782
    %v1943 = vsel %vm1935, %v1926, %v1942
    %v1944 = vsel %vm1934, %v1941, %v1943
    %v1945 = vsel %vm1933, %v1923, %v1926
    %v1946 = vsel %vm1936, %v1932, 1326507024
    %v1947 = vsel %vm1935, %v1929, %v1946
    %v1948 = vsel %vm1934, %v1945, %v1947
    %v1949 = vshll.u32 %v1909, 8
    %v1950 = vmul.u32.u64.compose %v1949, %v1948
    %v1951 = vextract.low.u32 %v1950
    %v1952 = vextract.high.u32 %v1950
    %v1953 = vmul.u32.u64.compose %v1949, %v1944
    %v1954 = vextract.low.u32 %v1953
    %v1955 = vextract.high.u32 %v1953
    %v1956 = vmul.u32 %v1949, %v1940
    %v1957 = vadd.s32 %v1952, %v1954
    %vm1958 = vc.u32 %v1952, %v1954
    %v1959 = vadd.s32 %v1955, 1
    %v1960 = vsel %vm1958, %v1959, %v1955
    %v1961 = vadd.s32 %v1956, %v1960
    %v1962 = vadd.s32 %v1961, 536870912
    %v1963 = vshrl.u32 %v1962, 30
    %v1964 = vshll.u32 %v1963, 30
    %v1965 = vsub.s32 %v1961, %v1964
    %vm1966 = vcmp.lt.s32.totalorder %v1965, 0
    %v1967 = vsub.s32 0, %v1965
    %v1968 = vsel %vm1966, %v1967, %v1965
    %v1969 = vclz %v1968
    %v1970 = vsub.s32 %v1969, 2
    %vm1971 = vcmp.gt.s32.totalorder 0, %v1970
    %v1972 = vsel %vm1971, 0, %v1970
    %v1973 = vsub.s32 32, %v1972
    %v1974 = vshll.u32 %v1965, %v1972
    %v1975 = vshrl.u32 %v1957, %v1973
    %v1976 = vor.u32 %v1974, %v1975
    %v1977 = vsub.s32 4294967266, %v1972
    %v1978 = vadd.s32 %v1977, 127
    %v1979 = vshll.u32 %v1978, 23
    %v1980 = vor.u32 4788187, %v1979
    %v1981 = vand.u32 2147483647, %v1980
    %v1983 = vcvt.s32.f32 %v1976
    %v1984 = vmul.f32 %v1983, %v1981
    %v1985 = vxor.u32 %v1984, 2147483648
    %v1986 = vsel %vm1903, %v1985, %v1984
    %v1987 = vsub.s32 4, %v1963
    %v1988 = vsel %vm1903, %v1987, %v1963
    %v1989 = vsel %vm1902, %v229, %v1986
    %v1990 = vsel %vm1902, 0, %v1988
    %v1991 = vcosq.f32.pop %v1989
    %v1992 = vsinq.f32.pop %v1989
    %vm1993 = vweird.f32 %v229
    %v1994 = vadd.s32 %v1990, 3
    %v1995 = vand.u32 %v1994, 3
    %vm1996 = vcmp.lt.s32.totalorder %v1995, 2
    %vm1997 = vcmp.eq.s32.totalorder %v1995, 0
    %v1998 = vxor.u32 %v1992, 2147483648
    %v1999 = vsel %vm1997, %v1991, %v1998
    %vm2000 = vcmp.eq.s32.totalorder %v1995, 2
    %v2001 = vxor.u32 %v1991, 2147483648
    %v2002 = vsel %vm2000, %v2001, %v1992
    %v2003 = vsel %vm1996, %v1999, %v2002
    %v2004 = vsel %vm1993, nan, %v2003
    %v2005 = vand.u32 2147483647, %v230
    %vm2006 = vcmp.le.f32.partialorder %v2005, 0.7853982
    %vm2007 = vcmp.lt.s32.totalorder %v230, 0
    %v2008 = vand.u32 %v230, 2139095040
    %v2009 = vshrl.u32 %v2008, 23
    %v2010 = vsub.s32 %v2009, 127
    %v2011 = vand.u32 2147483647, %v230
    %v2012 = vand.u32 %v2011, 8388607
    %v2013 = vor.u32 %v2012, 8388608
    %v2014 = vsub.s32 0, %v2013
    %v2015 = vadd.s32 %v2010, 1
    %vm2016 = vcmp.gt.s32.totalorder %v2015, 0
    %v2017 = vsel %vm2016, %v2015, 0
    %v2018 = vshrl.u32 %v2017, 5
    %v2019 = vand.u32 %v2017, 31
    %v2020 = vsub.s32 32, %v2019
    %v2021 = vshrl.u32 683565275, %v2020
    %v2022 = vshll.u32 683565275, %v2019
    %v2023 = vshrl.u32 2475754826, %v2020
    %v2024 = vor.u32 %v2022, %v2023
    %v2025 = vshll.u32 2475754826, %v2019
    %v2026 = vshrl.u32 2131351028, %v2020
    %v2027 = vor.u32 %v2025, %v2026
    %v2028 = vshll.u32 2131351028, %v2019
    %v2029 = vshrl.u32 2102212464, %v2020
    %v2030 = vor.u32 %v2028, %v2029
    %v2031 = vshll.u32 2102212464, %v2019
    %v2032 = vshrl.u32 920167782, %v2020
    %v2033 = vor.u32 %v2031, %v2032
    %v2034 = vshll.u32 920167782, %v2019
    %v2035 = vshrl.u32 1326507024, %v2020
    %v2036 = vor.u32 %v2034, %v2035
    %vm2037 = vcmp.lt.s32.totalorder %v2018, 1
    %vm2038 = vcmp.lt.s32.totalorder %v2018, 2
    %vm2039 = vcmp.lt.s32.totalorder %v2018, 3
    %vm2040 = vcmp.lt.s32.totalorder %v2018, 4
    %v2041 = vsel %vm2037, %v2021, %v2024
    %v2042 = vsel %vm2040, %v2030, 2102212464
    %v2043 = vsel %vm2039, %v2027, %v2042
    %v2044 = vsel %vm2038, %v2041, %v2043
    %v2045 = vsel %vm2037, %v2024, %v2027
    %v2046 = vsel %vm2040, %v2033, 920167782
    %v2047 = vsel %vm2039, %v2030, %v2046
    %v2048 = vsel %vm2038, %v2045, %v2047
    %v2049 = vsel %vm2037, %v2027, %v2030
    %v2050 = vsel %vm2040, %v2036, 1326507024
    %v2051 = vsel %vm2039, %v2033, %v2050
    %v2052 = vsel %vm2038, %v2049, %v2051
    %v2053 = vshll.u32 %v2013, 8
    %v2054 = vmul.u32.u64.compose %v2053, %v2052
    %v2055 = vextract.low.u32 %v2054
    %v2056 = vextract.high.u32 %v2054
    %v2057 = vmul.u32.u64.compose %v2053, %v2048
    %v2058 = vextract.low.u32 %v2057
    %v2059 = vextract.high.u32 %v2057
    %v2060 = vmul.u32 %v2053, %v2044
    %v2061 = vadd.s32 %v2056, %v2058
    %vm2062 = vc.u32 %v2056, %v2058
    %v2063 = vadd.s32 %v2059, 1
    %v2064 = vsel %vm2062, %v2063, %v2059
    %v2065 = vadd.s32 %v2060, %v2064
    %v2066 = vadd.s32 %v2065, 536870912
    %v2067 = vshrl.u32 %v2066, 30
    %v2068 = vshll.u32 %v2067, 30
    %v2069 = vsub.s32 %v2065, %v2068
    %vm2070 = vcmp.lt.s32.totalorder %v2069, 0
    %v2071 = vsub.s32 0, %v2069
    %v2072 = vsel %vm2070, %v2071, %v2069
    %v2073 = vclz %v2072
    %v2074 = vsub.s32 %v2073, 2
    %vm2075 = vcmp.gt.s32.totalorder 0, %v2074
    %v2076 = vsel %vm2075, 0, %v2074
    %v2077 = vsub.s32 32, %v2076
    %v2078 = vshll.u32 %v2069, %v2076
    %v2079 = vshrl.u32 %v2061, %v2077
    %v2080 = vor.u32 %v2078, %v2079
    %v2081 = vsub.s32 4294967266, %v2076
    %v2082 = vadd.s32 %v2081, 127
    %v2083 = vshll.u32 %v2082, 23
    %v2084 = vor.u32 4788187, %v2083
    %v2085 = vand.u32 2147483647, %v2084
    %v2087 = vcvt.s32.f32 %v2080
    %v2088 = vmul.f32 %v2087, %v2085
    %v2089 = vxor.u32 %v2088, 2147483648
    %v2090 = vsel %vm2007, %v2089, %v2088
    %v2091 = vsub.s32 4, %v2067
    %v2092 = vsel %vm2007, %v2091, %v2067
    %v2093 = vsel %vm2006, %v230, %v2090
    %v2094 = vsel %vm2006, 0, %v2092
    %v2095 = vcosq.f32.pop %v2093
    %v2096 = vsinq.f32.pop %v2093
    %vm2097 = vweird.f32 %v230
    %v2098 = vadd.s32 %v2094, 3
    %v2099 = vand.u32 %v2098, 3
    %vm2100 = vcmp.lt.s32.totalorder %v2099, 2
    %vm2101 = vcmp.eq.s32.totalorder %v2099, 0
    %v2102 = vxor.u32 %v2096, 2147483648
    %v2103 = vsel %vm2101, %v2095, %v2102
    %vm2104 = vcmp.eq.s32.totalorder %v2099, 2
    %v2105 = vxor.u32 %v2095, 2147483648
    %v2106 = vsel %vm2104, %v2105, %v2096
    %v2107 = vsel %vm2100, %v2103, %v2106
    %v2108 = vsel %vm2097, nan, %v2107
    %v2109 = vand.u32 2147483647, %v231
    %vm2110 = vcmp.le.f32.partialorder %v2109, 0.7853982
    %vm2111 = vcmp.lt.s32.totalorder %v231, 0
    %v2112 = vand.u32 %v231, 2139095040
    %v2113 = vshrl.u32 %v2112, 23
    %v2114 = vsub.s32 %v2113, 127
    %v2115 = vand.u32 2147483647, %v231
    %v2116 = vand.u32 %v2115, 8388607
    %v2117 = vor.u32 %v2116, 8388608
    %v2118 = vsub.s32 0, %v2117
    %v2119 = vadd.s32 %v2114, 1
    %vm2120 = vcmp.gt.s32.totalorder %v2119, 0
    %v2121 = vsel %vm2120, %v2119, 0
    %v2122 = vshrl.u32 %v2121, 5
    %v2123 = vand.u32 %v2121, 31
    %v2124 = vsub.s32 32, %v2123
    %v2125 = vshrl.u32 683565275, %v2124
    %v2126 = vshll.u32 683565275, %v2123
    %v2127 = vshrl.u32 2475754826, %v2124
    %v2128 = vor.u32 %v2126, %v2127
    %v2129 = vshll.u32 2475754826, %v2123
    %v2130 = vshrl.u32 2131351028, %v2124
    %v2131 = vor.u32 %v2129, %v2130
    %v2132 = vshll.u32 2131351028, %v2123
    %v2133 = vshrl.u32 2102212464, %v2124
    %v2134 = vor.u32 %v2132, %v2133
    %v2135 = vshll.u32 2102212464, %v2123
    %v2136 = vshrl.u32 920167782, %v2124
    %v2137 = vor.u32 %v2135, %v2136
    %v2138 = vshll.u32 920167782, %v2123
    %v2139 = vshrl.u32 1326507024, %v2124
    %v2140 = vor.u32 %v2138, %v2139
    %vm2141 = vcmp.lt.s32.totalorder %v2122, 1
    %vm2142 = vcmp.lt.s32.totalorder %v2122, 2
    %vm2143 = vcmp.lt.s32.totalorder %v2122, 3
    %vm2144 = vcmp.lt.s32.totalorder %v2122, 4
    %v2145 = vsel %vm2141, %v2125, %v2128
    %v2146 = vsel %vm2144, %v2134, 2102212464
    %v2147 = vsel %vm2143, %v2131, %v2146
    %v2148 = vsel %vm2142, %v2145, %v2147
    %v2149 = vsel %vm2141, %v2128, %v2131
    %v2150 = vsel %vm2144, %v2137, 920167782
    %v2151 = vsel %vm2143, %v2134, %v2150
    %v2152 = vsel %vm2142, %v2149, %v2151
    %v2153 = vsel %vm2141, %v2131, %v2134
    %v2154 = vsel %vm2144, %v2140, 1326507024
    %v2155 = vsel %vm2143, %v2137, %v2154
    %v2156 = vsel %vm2142, %v2153, %v2155
    %v2157 = vshll.u32 %v2117, 8
    %v2158 = vmul.u32.u64.compose %v2157, %v2156
    %v2159 = vextract.low.u32 %v2158
    %v2160 = vextract.high.u32 %v2158
    %v2161 = vmul.u32.u64.compose %v2157, %v2152
    %v2162 = vextract.low.u32 %v2161
    %v2163 = vextract.high.u32 %v2161
    %v2164 = vmul.u32 %v2157, %v2148
    %v2165 = vadd.s32 %v2160, %v2162
    %vm2166 = vc.u32 %v2160, %v2162
    %v2167 = vadd.s32 %v2163, 1
    %v2168 = vsel %vm2166, %v2167, %v2163
    %v2169 = vadd.s32 %v2164, %v2168
    %v2170 = vadd.s32 %v2169, 536870912
    %v2171 = vshrl.u32 %v2170, 30
    %v2172 = vshll.u32 %v2171, 30
    %v2173 = vsub.s32 %v2169, %v2172
    %vm2174 = vcmp.lt.s32.totalorder %v2173, 0
    %v2175 = vsub.s32 0, %v2173
    %v2176 = vsel %vm2174, %v2175, %v2173
    %v2177 = vclz %v2176
    %v2178 = vsub.s32 %v2177, 2
    %vm2179 = vcmp.gt.s32.totalorder 0, %v2178
    %v2180 = vsel %vm2179, 0, %v2178
    %v2181 = vsub.s32 32, %v2180
    %v2182 = vshll.u32 %v2173, %v2180
    %v2183 = vshrl.u32 %v2165, %v2181
    %v2184 = vor.u32 %v2182, %v2183
    %v2185 = vsub.s32 4294967266, %v2180
    %v2186 = vadd.s32 %v2185, 127
    %v2187 = vshll.u32 %v2186, 23
    %v2188 = vor.u32 4788187, %v2187
    %v2189 = vand.u32 2147483647, %v2188
    %v2191 = vcvt.s32.f32 %v2184
    %v2192 = vmul.f32 %v2191, %v2189
    %v2193 = vxor.u32 %v2192, 2147483648
    %v2194 = vsel %vm2111, %v2193, %v2192
    %v2195 = vsub.s32 4, %v2171
    %v2196 = vsel %vm2111, %v2195, %v2171
    %v2197 = vsel %vm2110, %v231, %v2194
    %v2198 = vsel %vm2110, 0, %v2196
    %v2199 = vcosq.f32.pop %v2197
    %v2200 = vsinq.f32.pop %v2197
    %vm2201 = vweird.f32 %v231
    %v2202 = vadd.s32 %v2198, 3
    %v2203 = vand.u32 %v2202, 3
    %vm2204 = vcmp.lt.s32.totalorder %v2203, 2
    %vm2205 = vcmp.eq.s32.totalorder %v2203, 0
    %v2206 = vxor.u32 %v2200, 2147483648
    %v2207 = vsel %vm2205, %v2199, %v2206
    %vm2208 = vcmp.eq.s32.totalorder %v2203, 2
    %v2209 = vxor.u32 %v2199, 2147483648
    %v2210 = vsel %vm2208, %v2209, %v2200
    %v2211 = vsel %vm2204, %v2207, %v2210
    %v2212 = vsel %vm2201, nan, %v2211
    %v2213 = vand.u32 2147483647, %v232
    %vm2214 = vcmp.le.f32.partialorder %v2213, 0.7853982
    %vm2215 = vcmp.lt.s32.totalorder %v232, 0
    %v2216 = vand.u32 %v232, 2139095040
    %v2217 = vshrl.u32 %v2216, 23
    %v2218 = vsub.s32 %v2217, 127
    %v2219 = vand.u32 2147483647, %v232
    %v2220 = vand.u32 %v2219, 8388607
    %v2221 = vor.u32 %v2220, 8388608
    %v2222 = vsub.s32 0, %v2221
    %v2223 = vadd.s32 %v2218, 1
    %vm2224 = vcmp.gt.s32.totalorder %v2223, 0
    %v2225 = vsel %vm2224, %v2223, 0
    %v2226 = vshrl.u32 %v2225, 5
    %v2227 = vand.u32 %v2225, 31
    %v2228 = vsub.s32 32, %v2227
    %v2229 = vshrl.u32 683565275, %v2228
    %v2230 = vshll.u32 683565275, %v2227
    %v2231 = vshrl.u32 2475754826, %v2228
    %v2232 = vor.u32 %v2230, %v2231
    %v2233 = vshll.u32 2475754826, %v2227
    %v2234 = vshrl.u32 2131351028, %v2228
    %v2235 = vor.u32 %v2233, %v2234
    %v2236 = vshll.u32 2131351028, %v2227
    %v2237 = vshrl.u32 2102212464, %v2228
    %v2238 = vor.u32 %v2236, %v2237
    %v2239 = vshll.u32 2102212464, %v2227
    %v2240 = vshrl.u32 920167782, %v2228
    %v2241 = vor.u32 %v2239, %v2240
    %v2242 = vshll.u32 920167782, %v2227
    %v2243 = vshrl.u32 1326507024, %v2228
    %v2244 = vor.u32 %v2242, %v2243
    %vm2245 = vcmp.lt.s32.totalorder %v2226, 1
    %vm2246 = vcmp.lt.s32.totalorder %v2226, 2
    %vm2247 = vcmp.lt.s32.totalorder %v2226, 3
    %vm2248 = vcmp.lt.s32.totalorder %v2226, 4
    %v2249 = vsel %vm2245, %v2229, %v2232
    %v2250 = vsel %vm2248, %v2238, 2102212464
    %v2251 = vsel %vm2247, %v2235, %v2250
    %v2252 = vsel %vm2246, %v2249, %v2251
    %v2253 = vsel %vm2245, %v2232, %v2235
    %v2254 = vsel %vm2248, %v2241, 920167782
    %v2255 = vsel %vm2247, %v2238, %v2254
    %v2256 = vsel %vm2246, %v2253, %v2255
    %v2257 = vsel %vm2245, %v2235, %v2238
    %v2258 = vsel %vm2248, %v2244, 1326507024
    %v2259 = vsel %vm2247, %v2241, %v2258
    %v2260 = vsel %vm2246, %v2257, %v2259
    %v2261 = vshll.u32 %v2221, 8
    %v2262 = vmul.u32.u64.compose %v2261, %v2260
    %v2263 = vextract.low.u32 %v2262
    %v2264 = vextract.high.u32 %v2262
    %v2265 = vmul.u32.u64.compose %v2261, %v2256
    %v2266 = vextract.low.u32 %v2265
    %v2267 = vextract.high.u32 %v2265
    %v2268 = vmul.u32 %v2261, %v2252
    %v2269 = vadd.s32 %v2264, %v2266
    %vm2270 = vc.u32 %v2264, %v2266
    %v2271 = vadd.s32 %v2267, 1
    %v2272 = vsel %vm2270, %v2271, %v2267
    %v2273 = vadd.s32 %v2268, %v2272
    %v2274 = vadd.s32 %v2273, 536870912
    %v2275 = vshrl.u32 %v2274, 30
    %v2276 = vshll.u32 %v2275, 30
    %v2277 = vsub.s32 %v2273, %v2276
    %vm2278 = vcmp.lt.s32.totalorder %v2277, 0
    %v2279 = vsub.s32 0, %v2277
    %v2280 = vsel %vm2278, %v2279, %v2277
    %v2281 = vclz %v2280
    %v2282 = vsub.s32 %v2281, 2
    %vm2283 = vcmp.gt.s32.totalorder 0, %v2282
    %v2284 = vsel %vm2283, 0, %v2282
    %v2285 = vsub.s32 32, %v2284
    %v2286 = vshll.u32 %v2277, %v2284
    %v2287 = vshrl.u32 %v2269, %v2285
    %v2288 = vor.u32 %v2286, %v2287
    %v2289 = vsub.s32 4294967266, %v2284
    %v2290 = vadd.s32 %v2289, 127
    %v2291 = vshll.u32 %v2290, 23
    %v2292 = vor.u32 4788187, %v2291
    %v2293 = vand.u32 2147483647, %v2292
    %v2295 = vcvt.s32.f32 %v2288
    %v2296 = vmul.f32 %v2295, %v2293
    %v2297 = vxor.u32 %v2296, 2147483648
    %v2298 = vsel %vm2215, %v2297, %v2296
    %v2299 = vsub.s32 4, %v2275
    %v2300 = vsel %vm2215, %v2299, %v2275
    %v2301 = vsel %vm2214, %v232, %v2298
    %v2302 = vsel %vm2214, 0, %v2300
    %v2303 = vcosq.f32.pop %v2301
    %v2304 = vsinq.f32.pop %v2301
    %vm2305 = vweird.f32 %v232
    %v2306 = vadd.s32 %v2302, 3
    %v2307 = vand.u32 %v2306, 3
    %vm2308 = vcmp.lt.s32.totalorder %v2307, 2
    %vm2309 = vcmp.eq.s32.totalorder %v2307, 0
    %v2310 = vxor.u32 %v2304, 2147483648
    %v2311 = vsel %vm2309, %v2303, %v2310
    %vm2312 = vcmp.eq.s32.totalorder %v2307, 2
    %v2313 = vxor.u32 %v2303, 2147483648
    %v2314 = vsel %vm2312, %v2313, %v2304
    %v2315 = vsel %vm2308, %v2311, %v2314
    %v2316 = vsel %vm2305, nan, %v2315
    %v2317 = vand.u32 2147483647, %v233
    %vm2318 = vcmp.le.f32.partialorder %v2317, 0.7853982
    %vm2319 = vcmp.lt.s32.totalorder %v233, 0
    %v2320 = vand.u32 %v233, 2139095040
    %v2321 = vshrl.u32 %v2320, 23
    %v2322 = vsub.s32 %v2321, 127
    %v2323 = vand.u32 2147483647, %v233
    %v2324 = vand.u32 %v2323, 8388607
    %v2325 = vor.u32 %v2324, 8388608
    %v2326 = vsub.s32 0, %v2325
    %v2327 = vadd.s32 %v2322, 1
    %vm2328 = vcmp.gt.s32.totalorder %v2327, 0
    %v2329 = vsel %vm2328, %v2327, 0
    %v2330 = vshrl.u32 %v2329, 5
    %v2331 = vand.u32 %v2329, 31
    %v2332 = vsub.s32 32, %v2331
    %v2333 = vshrl.u32 683565275, %v2332
    %v2334 = vshll.u32 683565275, %v2331
    %v2335 = vshrl.u32 2475754826, %v2332
    %v2336 = vor.u32 %v2334, %v2335
    %v2337 = vshll.u32 2475754826, %v2331
    %v2338 = vshrl.u32 2131351028, %v2332
    %v2339 = vor.u32 %v2337, %v2338
    %v2340 = vshll.u32 2131351028, %v2331
    %v2341 = vshrl.u32 2102212464, %v2332
    %v2342 = vor.u32 %v2340, %v2341
    %v2343 = vshll.u32 2102212464, %v2331
    %v2344 = vshrl.u32 920167782, %v2332
    %v2345 = vor.u32 %v2343, %v2344
    %v2346 = vshll.u32 920167782, %v2331
    %v2347 = vshrl.u32 1326507024, %v2332
    %v2348 = vor.u32 %v2346, %v2347
    %vm2349 = vcmp.lt.s32.totalorder %v2330, 1
    %vm2350 = vcmp.lt.s32.totalorder %v2330, 2
    %vm2351 = vcmp.lt.s32.totalorder %v2330, 3
    %vm2352 = vcmp.lt.s32.totalorder %v2330, 4
    %v2353 = vsel %vm2349, %v2333, %v2336
    %v2354 = vsel %vm2352, %v2342, 2102212464
    %v2355 = vsel %vm2351, %v2339, %v2354
    %v2356 = vsel %vm2350, %v2353, %v2355
    %v2357 = vsel %vm2349, %v2336, %v2339
    %v2358 = vsel %vm2352, %v2345, 920167782
    %v2359 = vsel %vm2351, %v2342, %v2358
    %v2360 = vsel %vm2350, %v2357, %v2359
    %v2361 = vsel %vm2349, %v2339, %v2342
    %v2362 = vsel %vm2352, %v2348, 1326507024
    %v2363 = vsel %vm2351, %v2345, %v2362
    %v2364 = vsel %vm2350, %v2361, %v2363
    %v2365 = vshll.u32 %v2325, 8
    %v2366 = vmul.u32.u64.compose %v2365, %v2364
    %v2367 = vextract.low.u32 %v2366
    %v2368 = vextract.high.u32 %v2366
    %v2369 = vmul.u32.u64.compose %v2365, %v2360
    %v2370 = vextract.low.u32 %v2369
    %v2371 = vextract.high.u32 %v2369
    %v2372 = vmul.u32 %v2365, %v2356
    %v2373 = vadd.s32 %v2368, %v2370
    %vm2374 = vc.u32 %v2368, %v2370
    %v2375 = vadd.s32 %v2371, 1
    %v2376 = vsel %vm2374, %v2375, %v2371
    %v2377 = vadd.s32 %v2372, %v2376
    %v2378 = vadd.s32 %v2377, 536870912
    %v2379 = vshrl.u32 %v2378, 30
    %v2380 = vshll.u32 %v2379, 30
    %v2381 = vsub.s32 %v2377, %v2380
    %vm2382 = vcmp.lt.s32.totalorder %v2381, 0
    %v2383 = vsub.s32 0, %v2381
    %v2384 = vsel %vm2382, %v2383, %v2381
    %v2385 = vclz %v2384
    %v2386 = vsub.s32 %v2385, 2
    %vm2387 = vcmp.gt.s32.totalorder 0, %v2386
    %v2388 = vsel %vm2387, 0, %v2386
    %v2389 = vsub.s32 32, %v2388
    %v2390 = vshll.u32 %v2381, %v2388
    %v2391 = vshrl.u32 %v2373, %v2389
    %v2392 = vor.u32 %v2390, %v2391
    %v2393 = vsub.s32 4294967266, %v2388
    %v2394 = vadd.s32 %v2393, 127
    %v2395 = vshll.u32 %v2394, 23
    %v2396 = vor.u32 4788187, %v2395
    %v2397 = vand.u32 2147483647, %v2396
    %v2399 = vcvt.s32.f32 %v2392
    %v2400 = vmul.f32 %v2399, %v2397
    %v2401 = vxor.u32 %v2400, 2147483648
    %v2402 = vsel %vm2319, %v2401, %v2400
    %v2403 = vsub.s32 4, %v2379
    %v2404 = vsel %vm2319, %v2403, %v2379
    %v2405 = vsel %vm2318, %v233, %v2402
    %v2406 = vsel %vm2318, 0, %v2404
    %v2407 = vcosq.f32.pop %v2405
    %v2408 = vsinq.f32.pop %v2405
    %vm2409 = vweird.f32 %v233
    %v2410 = vadd.s32 %v2406, 3
    %v2411 = vand.u32 %v2410, 3
    %vm2412 = vcmp.lt.s32.totalorder %v2411, 2
    %vm2413 = vcmp.eq.s32.totalorder %v2411, 0
    %v2414 = vxor.u32 %v2408, 2147483648
    %v2415 = vsel %vm2413, %v2407, %v2414
    %vm2416 = vcmp.eq.s32.totalorder %v2411, 2
    %v2417 = vxor.u32 %v2407, 2147483648
    %v2418 = vsel %vm2416, %v2417, %v2408
    %v2419 = vsel %vm2412, %v2415, %v2418
    %v2420 = vsel %vm2409, nan, %v2419
    %v2421 = vand.u32 2147483647, %v234
    %vm2422 = vcmp.le.f32.partialorder %v2421, 0.7853982
    %vm2423 = vcmp.lt.s32.totalorder %v234, 0
    %v2424 = vand.u32 %v234, 2139095040
    %v2425 = vshrl.u32 %v2424, 23
    %v2426 = vsub.s32 %v2425, 127
    %v2427 = vand.u32 2147483647, %v234
    %v2428 = vand.u32 %v2427, 8388607
    %v2429 = vor.u32 %v2428, 8388608
    %v2430 = vsub.s32 0, %v2429
    %v2431 = vadd.s32 %v2426, 1
    %vm2432 = vcmp.gt.s32.totalorder %v2431, 0
    %v2433 = vsel %vm2432, %v2431, 0
    %v2434 = vshrl.u32 %v2433, 5
    %v2435 = vand.u32 %v2433, 31
    %v2436 = vsub.s32 32, %v2435
    %v2437 = vshrl.u32 683565275, %v2436
    %v2438 = vshll.u32 683565275, %v2435
    %v2439 = vshrl.u32 2475754826, %v2436
    %v2440 = vor.u32 %v2438, %v2439
    %v2441 = vshll.u32 2475754826, %v2435
    %v2442 = vshrl.u32 2131351028, %v2436
    %v2443 = vor.u32 %v2441, %v2442
    %v2444 = vshll.u32 2131351028, %v2435
    %v2445 = vshrl.u32 2102212464, %v2436
    %v2446 = vor.u32 %v2444, %v2445
    %v2447 = vshll.u32 2102212464, %v2435
    %v2448 = vshrl.u32 920167782, %v2436
    %v2449 = vor.u32 %v2447, %v2448
    %v2450 = vshll.u32 920167782, %v2435
    %v2451 = vshrl.u32 1326507024, %v2436
    %v2452 = vor.u32 %v2450, %v2451
    %vm2453 = vcmp.lt.s32.totalorder %v2434, 1
    %vm2454 = vcmp.lt.s32.totalorder %v2434, 2
    %vm2455 = vcmp.lt.s32.totalorder %v2434, 3
    %vm2456 = vcmp.lt.s32.totalorder %v2434, 4
    %v2457 = vsel %vm2453, %v2437, %v2440
    %v2458 = vsel %vm2456, %v2446, 2102212464
    %v2459 = vsel %vm2455, %v2443, %v2458
    %v2460 = vsel %vm2454, %v2457, %v2459
    %v2461 = vsel %vm2453, %v2440, %v2443
    %v2462 = vsel %vm2456, %v2449, 920167782
    %v2463 = vsel %vm2455, %v2446, %v2462
    %v2464 = vsel %vm2454, %v2461, %v2463
    %v2465 = vsel %vm2453, %v2443, %v2446
    %v2466 = vsel %vm2456, %v2452, 1326507024
    %v2467 = vsel %vm2455, %v2449, %v2466
    %v2468 = vsel %vm2454, %v2465, %v2467
    %v2469 = vshll.u32 %v2429, 8
    %v2470 = vmul.u32.u64.compose %v2469, %v2468
    %v2471 = vextract.low.u32 %v2470
    %v2472 = vextract.high.u32 %v2470
    %v2473 = vmul.u32.u64.compose %v2469, %v2464
    %v2474 = vextract.low.u32 %v2473
    %v2475 = vextract.high.u32 %v2473
    %v2476 = vmul.u32 %v2469, %v2460
    %v2477 = vadd.s32 %v2472, %v2474
    %vm2478 = vc.u32 %v2472, %v2474
    %v2479 = vadd.s32 %v2475, 1
    %v2480 = vsel %vm2478, %v2479, %v2475
    %v2481 = vadd.s32 %v2476, %v2480
    %v2482 = vadd.s32 %v2481, 536870912
    %v2483 = vshrl.u32 %v2482, 30
    %v2484 = vshll.u32 %v2483, 30
    %v2485 = vsub.s32 %v2481, %v2484
    %vm2486 = vcmp.lt.s32.totalorder %v2485, 0
    %v2487 = vsub.s32 0, %v2485
    %v2488 = vsel %vm2486, %v2487, %v2485
    %v2489 = vclz %v2488
    %v2490 = vsub.s32 %v2489, 2
    %vm2491 = vcmp.gt.s32.totalorder 0, %v2490
    %v2492 = vsel %vm2491, 0, %v2490
    %v2493 = vsub.s32 32, %v2492
    %v2494 = vshll.u32 %v2485, %v2492
    %v2495 = vshrl.u32 %v2477, %v2493
    %v2496 = vor.u32 %v2494, %v2495
    %v2497 = vsub.s32 4294967266, %v2492
    %v2498 = vadd.s32 %v2497, 127
    %v2499 = vshll.u32 %v2498, 23
    %v2500 = vor.u32 4788187, %v2499
    %v2501 = vand.u32 2147483647, %v2500
    %v2503 = vcvt.s32.f32 %v2496
    %v2504 = vmul.f32 %v2503, %v2501
    %v2505 = vxor.u32 %v2504, 2147483648
    %v2506 = vsel %vm2423, %v2505, %v2504
    %v2507 = vsub.s32 4, %v2483
    %v2508 = vsel %vm2423, %v2507, %v2483
    %v2509 = vsel %vm2422, %v234, %v2506
    %v2510 = vsel %vm2422, 0, %v2508
    %v2511 = vcosq.f32.pop %v2509
    %v2512 = vsinq.f32.pop %v2509
    %vm2513 = vweird.f32 %v234
    %v2514 = vadd.s32 %v2510, 3
    %v2515 = vand.u32 %v2514, 3
    %vm2516 = vcmp.lt.s32.totalorder %v2515, 2
    %vm2517 = vcmp.eq.s32.totalorder %v2515, 0
    %v2518 = vxor.u32 %v2512, 2147483648
    %v2519 = vsel %vm2517, %v2511, %v2518
    %vm2520 = vcmp.eq.s32.totalorder %v2515, 2
    %v2521 = vxor.u32 %v2511, 2147483648
    %v2522 = vsel %vm2520, %v2521, %v2512
    %v2523 = vsel %vm2516, %v2519, %v2522
    %v2524 = vsel %vm2513, nan, %v2523
    %v2525 = vand.u32 2147483647, %v235
    %vm2526 = vcmp.le.f32.partialorder %v2525, 0.7853982
    %vm2527 = vcmp.lt.s32.totalorder %v235, 0
    %v2528 = vand.u32 %v235, 2139095040
    %v2529 = vshrl.u32 %v2528, 23
    %v2530 = vsub.s32 %v2529, 127
    %v2531 = vand.u32 2147483647, %v235
    %v2532 = vand.u32 %v2531, 8388607
    %v2533 = vor.u32 %v2532, 8388608
    %v2534 = vsub.s32 0, %v2533
    %v2535 = vadd.s32 %v2530, 1
    %vm2536 = vcmp.gt.s32.totalorder %v2535, 0
    %v2537 = vsel %vm2536, %v2535, 0
    %v2538 = vshrl.u32 %v2537, 5
    %v2539 = vand.u32 %v2537, 31
    %v2540 = vsub.s32 32, %v2539
    %v2541 = vshrl.u32 683565275, %v2540
    %v2542 = vshll.u32 683565275, %v2539
    %v2543 = vshrl.u32 2475754826, %v2540
    %v2544 = vor.u32 %v2542, %v2543
    %v2545 = vshll.u32 2475754826, %v2539
    %v2546 = vshrl.u32 2131351028, %v2540
    %v2547 = vor.u32 %v2545, %v2546
    %v2548 = vshll.u32 2131351028, %v2539
    %v2549 = vshrl.u32 2102212464, %v2540
    %v2550 = vor.u32 %v2548, %v2549
    %v2551 = vshll.u32 2102212464, %v2539
    %v2552 = vshrl.u32 920167782, %v2540
    %v2553 = vor.u32 %v2551, %v2552
    %v2554 = vshll.u32 920167782, %v2539
    %v2555 = vshrl.u32 1326507024, %v2540
    %v2556 = vor.u32 %v2554, %v2555
    %vm2557 = vcmp.lt.s32.totalorder %v2538, 1
    %vm2558 = vcmp.lt.s32.totalorder %v2538, 2
    %vm2559 = vcmp.lt.s32.totalorder %v2538, 3
    %vm2560 = vcmp.lt.s32.totalorder %v2538, 4
    %v2561 = vsel %vm2557, %v2541, %v2544
    %v2562 = vsel %vm2560, %v2550, 2102212464
    %v2563 = vsel %vm2559, %v2547, %v2562
    %v2564 = vsel %vm2558, %v2561, %v2563
    %v2565 = vsel %vm2557, %v2544, %v2547
    %v2566 = vsel %vm2560, %v2553, 920167782
    %v2567 = vsel %vm2559, %v2550, %v2566
    %v2568 = vsel %vm2558, %v2565, %v2567
    %v2569 = vsel %vm2557, %v2547, %v2550
    %v2570 = vsel %vm2560, %v2556, 1326507024
    %v2571 = vsel %vm2559, %v2553, %v2570
    %v2572 = vsel %vm2558, %v2569, %v2571
    %v2573 = vshll.u32 %v2533, 8
    %v2574 = vmul.u32.u64.compose %v2573, %v2572
    %v2575 = vextract.low.u32 %v2574
    %v2576 = vextract.high.u32 %v2574
    %v2577 = vmul.u32.u64.compose %v2573, %v2568
    %v2578 = vextract.low.u32 %v2577
    %v2579 = vextract.high.u32 %v2577
    %v2580 = vmul.u32 %v2573, %v2564
    %v2581 = vadd.s32 %v2576, %v2578
    %vm2582 = vc.u32 %v2576, %v2578
    %v2583 = vadd.s32 %v2579, 1
    %v2584 = vsel %vm2582, %v2583, %v2579
    %v2585 = vadd.s32 %v2580, %v2584
    %v2586 = vadd.s32 %v2585, 536870912
    %v2587 = vshrl.u32 %v2586, 30
    %v2588 = vshll.u32 %v2587, 30
    %v2589 = vsub.s32 %v2585, %v2588
    %vm2590 = vcmp.lt.s32.totalorder %v2589, 0
    %v2591 = vsub.s32 0, %v2589
    %v2592 = vsel %vm2590, %v2591, %v2589
    %v2593 = vclz %v2592
    %v2594 = vsub.s32 %v2593, 2
    %vm2595 = vcmp.gt.s32.totalorder 0, %v2594
    %v2596 = vsel %vm2595, 0, %v2594
    %v2597 = vsub.s32 32, %v2596
    %v2598 = vshll.u32 %v2589, %v2596
    %v2599 = vshrl.u32 %v2581, %v2597
    %v2600 = vor.u32 %v2598, %v2599
    %v2601 = vsub.s32 4294967266, %v2596
    %v2602 = vadd.s32 %v2601, 127
    %v2603 = vshll.u32 %v2602, 23
    %v2604 = vor.u32 4788187, %v2603
    %v2605 = vand.u32 2147483647, %v2604
    %v2607 = vcvt.s32.f32 %v2600
    %v2608 = vmul.f32 %v2607, %v2605
    %v2609 = vxor.u32 %v2608, 2147483648
    %v2610 = vsel %vm2527, %v2609, %v2608
    %v2611 = vsub.s32 4, %v2587
    %v2612 = vsel %vm2527, %v2611, %v2587
    %v2613 = vsel %vm2526, %v235, %v2610
    %v2614 = vsel %vm2526, 0, %v2612
    %v2615 = vcosq.f32.pop %v2613
    %v2616 = vsinq.f32.pop %v2613
    %vm2617 = vweird.f32 %v235
    %v2618 = vadd.s32 %v2614, 3
    %v2619 = vand.u32 %v2618, 3
    %vm2620 = vcmp.lt.s32.totalorder %v2619, 2
    %vm2621 = vcmp.eq.s32.totalorder %v2619, 0
    %v2622 = vxor.u32 %v2616, 2147483648
    %v2623 = vsel %vm2621, %v2615, %v2622
    %vm2624 = vcmp.eq.s32.totalorder %v2619, 2
    %v2625 = vxor.u32 %v2615, 2147483648
    %v2626 = vsel %vm2624, %v2625, %v2616
    %v2627 = vsel %vm2620, %v2623, %v2626
    %v2628 = vsel %vm2617, nan, %v2627
    %v2629 = vand.u32 2147483647, %v236
    %vm2630 = vcmp.le.f32.partialorder %v2629, 0.7853982
    %vm2631 = vcmp.lt.s32.totalorder %v236, 0
    %v2632 = vand.u32 %v236, 2139095040
    %v2633 = vshrl.u32 %v2632, 23
    %v2634 = vsub.s32 %v2633, 127
    %v2635 = vand.u32 2147483647, %v236
    %v2636 = vand.u32 %v2635, 8388607
    %v2637 = vor.u32 %v2636, 8388608
    %v2638 = vsub.s32 0, %v2637
    %v2639 = vadd.s32 %v2634, 1
    %vm2640 = vcmp.gt.s32.totalorder %v2639, 0
    %v2641 = vsel %vm2640, %v2639, 0
    %v2642 = vshrl.u32 %v2641, 5
    %v2643 = vand.u32 %v2641, 31
    %v2644 = vsub.s32 32, %v2643
    %v2645 = vshrl.u32 683565275, %v2644
    %v2646 = vshll.u32 683565275, %v2643
    %v2647 = vshrl.u32 2475754826, %v2644
    %v2648 = vor.u32 %v2646, %v2647
    %v2649 = vshll.u32 2475754826, %v2643
    %v2650 = vshrl.u32 2131351028, %v2644
    %v2651 = vor.u32 %v2649, %v2650
    %v2652 = vshll.u32 2131351028, %v2643
    %v2653 = vshrl.u32 2102212464, %v2644
    %v2654 = vor.u32 %v2652, %v2653
    %v2655 = vshll.u32 2102212464, %v2643
    %v2656 = vshrl.u32 920167782, %v2644
    %v2657 = vor.u32 %v2655, %v2656
    %v2658 = vshll.u32 920167782, %v2643
    %v2659 = vshrl.u32 1326507024, %v2644
    %v2660 = vor.u32 %v2658, %v2659
    %vm2661 = vcmp.lt.s32.totalorder %v2642, 1
    %vm2662 = vcmp.lt.s32.totalorder %v2642, 2
    %vm2663 = vcmp.lt.s32.totalorder %v2642, 3
    %vm2664 = vcmp.lt.s32.totalorder %v2642, 4
    %v2665 = vsel %vm2661, %v2645, %v2648
    %v2666 = vsel %vm2664, %v2654, 2102212464
    %v2667 = vsel %vm2663, %v2651, %v2666
    %v2668 = vsel %vm2662, %v2665, %v2667
    %v2669 = vsel %vm2661, %v2648, %v2651
    %v2670 = vsel %vm2664, %v2657, 920167782
    %v2671 = vsel %vm2663, %v2654, %v2670
    %v2672 = vsel %vm2662, %v2669, %v2671
    %v2673 = vsel %vm2661, %v2651, %v2654
    %v2674 = vsel %vm2664, %v2660, 1326507024
    %v2675 = vsel %vm2663, %v2657, %v2674
    %v2676 = vsel %vm2662, %v2673, %v2675
    %v2677 = vshll.u32 %v2637, 8
    %v2678 = vmul.u32.u64.compose %v2677, %v2676
    %v2679 = vextract.low.u32 %v2678
    %v2680 = vextract.high.u32 %v2678
    %v2681 = vmul.u32.u64.compose %v2677, %v2672
    %v2682 = vextract.low.u32 %v2681
    %v2683 = vextract.high.u32 %v2681
    %v2684 = vmul.u32 %v2677, %v2668
    %v2685 = vadd.s32 %v2680, %v2682
    %vm2686 = vc.u32 %v2680, %v2682
    %v2687 = vadd.s32 %v2683, 1
    %v2688 = vsel %vm2686, %v2687, %v2683
    %v2689 = vadd.s32 %v2684, %v2688
    %v2690 = vadd.s32 %v2689, 536870912
    %v2691 = vshrl.u32 %v2690, 30
    %v2692 = vshll.u32 %v2691, 30
    %v2693 = vsub.s32 %v2689, %v2692
    %vm2694 = vcmp.lt.s32.totalorder %v2693, 0
    %v2695 = vsub.s32 0, %v2693
    %v2696 = vsel %vm2694, %v2695, %v2693
    %v2697 = vclz %v2696
    %v2698 = vsub.s32 %v2697, 2
    %vm2699 = vcmp.gt.s32.totalorder 0, %v2698
    %v2700 = vsel %vm2699, 0, %v2698
    %v2701 = vsub.s32 32, %v2700
    %v2702 = vshll.u32 %v2693, %v2700
    %v2703 = vshrl.u32 %v2685, %v2701
    %v2704 = vor.u32 %v2702, %v2703
    %v2705 = vsub.s32 4294967266, %v2700
    %v2706 = vadd.s32 %v2705, 127
    %v2707 = vshll.u32 %v2706, 23
    %v2708 = vor.u32 4788187, %v2707
    %v2709 = vand.u32 2147483647, %v2708
    %v2711 = vcvt.s32.f32 %v2704
    %v2712 = vmul.f32 %v2711, %v2709
    %v2713 = vxor.u32 %v2712, 2147483648
    %v2714 = vsel %vm2631, %v2713, %v2712
    %v2715 = vsub.s32 4, %v2691
    %v2716 = vsel %vm2631, %v2715, %v2691
    %v2717 = vsel %vm2630, %v236, %v2714
    %v2718 = vsel %vm2630, 0, %v2716
    %v2719 = vcosq.f32.pop %v2717
    %v2720 = vsinq.f32.pop %v2717
    %vm2721 = vweird.f32 %v236
    %v2722 = vadd.s32 %v2718, 3
    %v2723 = vand.u32 %v2722, 3
    %vm2724 = vcmp.lt.s32.totalorder %v2723, 2
    %vm2725 = vcmp.eq.s32.totalorder %v2723, 0
    %v2726 = vxor.u32 %v2720, 2147483648
    %v2727 = vsel %vm2725, %v2719, %v2726
    %vm2728 = vcmp.eq.s32.totalorder %v2723, 2
    %v2729 = vxor.u32 %v2719, 2147483648
    %v2730 = vsel %vm2728, %v2729, %v2720
    %v2731 = vsel %vm2724, %v2727, %v2730
    %v2732 = vsel %vm2721, nan, %v2731
    %v2733 = vand.u32 2147483647, %v212
    %vm2734 = vcmp.le.f32.partialorder %v2733, 0.7853982
    %vm2735 = vcmp.lt.s32.totalorder %v212, 0
    %v2736 = vand.u32 %v212, 2139095040
    %v2737 = vshrl.u32 %v2736, 23
    %v2738 = vsub.s32 %v2737, 127
    %v2739 = vand.u32 2147483647, %v212
    %v2740 = vand.u32 %v2739, 8388607
    %v2741 = vor.u32 %v2740, 8388608
    %v2742 = vsub.s32 0, %v2741
    %v2743 = vadd.s32 %v2738, 1
    %vm2744 = vcmp.gt.s32.totalorder %v2743, 0
    %v2745 = vsel %vm2744, %v2743, 0
    %v2746 = vshrl.u32 %v2745, 5
    %v2747 = vand.u32 %v2745, 31
    %v2748 = vsub.s32 32, %v2747
    %v2749 = vshrl.u32 683565275, %v2748
    %v2750 = vshll.u32 683565275, %v2747
    %v2751 = vshrl.u32 2475754826, %v2748
    %v2752 = vor.u32 %v2750, %v2751
    %v2753 = vshll.u32 2475754826, %v2747
    %v2754 = vshrl.u32 2131351028, %v2748
    %v2755 = vor.u32 %v2753, %v2754
    %v2756 = vshll.u32 2131351028, %v2747
    %v2757 = vshrl.u32 2102212464, %v2748
    %v2758 = vor.u32 %v2756, %v2757
    %v2759 = vshll.u32 2102212464, %v2747
    %v2760 = vshrl.u32 920167782, %v2748
    %v2761 = vor.u32 %v2759, %v2760
    %v2762 = vshll.u32 920167782, %v2747
    %v2763 = vshrl.u32 1326507024, %v2748
    %v2764 = vor.u32 %v2762, %v2763
    %vm2765 = vcmp.lt.s32.totalorder %v2746, 1
    %vm2766 = vcmp.lt.s32.totalorder %v2746, 2
    %vm2767 = vcmp.lt.s32.totalorder %v2746, 3
    %vm2768 = vcmp.lt.s32.totalorder %v2746, 4
    %v2769 = vsel %vm2765, %v2749, %v2752
    %v2770 = vsel %vm2768, %v2758, 2102212464
    %v2771 = vsel %vm2767, %v2755, %v2770
    %v2772 = vsel %vm2766, %v2769, %v2771
    %v2773 = vsel %vm2765, %v2752, %v2755
    %v2774 = vsel %vm2768, %v2761, 920167782
    %v2775 = vsel %vm2767, %v2758, %v2774
    %v2776 = vsel %vm2766, %v2773, %v2775
    %v2777 = vsel %vm2765, %v2755, %v2758
    %v2778 = vsel %vm2768, %v2764, 1326507024
    %v2779 = vsel %vm2767, %v2761, %v2778
    %v2780 = vsel %vm2766, %v2777, %v2779
    %v2781 = vshll.u32 %v2741, 8
    %v2782 = vmul.u32.u64.compose %v2781, %v2780
    %v2783 = vextract.low.u32 %v2782
    %v2784 = vextract.high.u32 %v2782
    %v2785 = vmul.u32.u64.compose %v2781, %v2776
    %v2786 = vextract.low.u32 %v2785
    %v2787 = vextract.high.u32 %v2785
    %v2788 = vmul.u32 %v2781, %v2772
    %v2789 = vadd.s32 %v2784, %v2786
    %vm2790 = vc.u32 %v2784, %v2786
    %v2791 = vadd.s32 %v2787, 1
    %v2792 = vsel %vm2790, %v2791, %v2787
    %v2793 = vadd.s32 %v2788, %v2792
    %v2794 = vadd.s32 %v2793, 536870912
    %v2795 = vshrl.u32 %v2794, 30
    %v2796 = vshll.u32 %v2795, 30
    %v2797 = vsub.s32 %v2793, %v2796
    %vm2798 = vcmp.lt.s32.totalorder %v2797, 0
    %v2799 = vsub.s32 0, %v2797
    %v2800 = vsel %vm2798, %v2799, %v2797
    %v2801 = vclz %v2800
    %v2802 = vsub.s32 %v2801, 2
    %vm2803 = vcmp.gt.s32.totalorder 0, %v2802
    %v2804 = vsel %vm2803, 0, %v2802
    %v2805 = vsub.s32 32, %v2804
    %v2806 = vshll.u32 %v2797, %v2804
    %v2807 = vshrl.u32 %v2789, %v2805
    %v2808 = vor.u32 %v2806, %v2807
    %v2809 = vsub.s32 4294967266, %v2804
    %v2810 = vadd.s32 %v2809, 127
    %v2811 = vshll.u32 %v2810, 23
    %v2812 = vor.u32 4788187, %v2811
    %v2813 = vand.u32 2147483647, %v2812
    %v2815 = vcvt.s32.f32 %v2808
    %v2816 = vmul.f32 %v2815, %v2813
    %v2817 = vxor.u32 %v2816, 2147483648
    %v2818 = vsel %vm2735, %v2817, %v2816
    %v2819 = vsub.s32 4, %v2795
    %v2820 = vsel %vm2735, %v2819, %v2795
    %v2821 = vsel %vm2734, %v212, %v2818
    %v2822 = vsel %vm2734, 0, %v2820
    %v2823 = vcosq.f32.pop %v2821
    %v2824 = vsinq.f32.pop %v2821
    %vm2825 = vweird.f32 %v212
    %v2826 = vand.u32 %v2822, 3
    %vm2827 = vcmp.lt.s32.totalorder %v2826, 2
    %vm2828 = vcmp.eq.s32.totalorder %v2826, 0
    %v2829 = vxor.u32 %v2824, 2147483648
    %v2830 = vsel %vm2828, %v2823, %v2829
    %vm2831 = vcmp.eq.s32.totalorder %v2826, 2
    %v2832 = vxor.u32 %v2823, 2147483648
    %v2833 = vsel %vm2831, %v2832, %v2824
    %v2834 = vsel %vm2827, %v2830, %v2833
    %v2835 = vsel %vm2825, nan, %v2834
    %v2836 = vand.u32 2147483647, %v213
    %vm2837 = vcmp.le.f32.partialorder %v2836, 0.7853982
    %vm2838 = vcmp.lt.s32.totalorder %v213, 0
    %v2839 = vand.u32 %v213, 2139095040
    %v2840 = vshrl.u32 %v2839, 23
    %v2841 = vsub.s32 %v2840, 127
    %v2842 = vand.u32 2147483647, %v213
    %v2843 = vand.u32 %v2842, 8388607
    %v2844 = vor.u32 %v2843, 8388608
    %v2845 = vsub.s32 0, %v2844
    %v2846 = vadd.s32 %v2841, 1
    %vm2847 = vcmp.gt.s32.totalorder %v2846, 0
    %v2848 = vsel %vm2847, %v2846, 0
    %v2849 = vshrl.u32 %v2848, 5
    %v2850 = vand.u32 %v2848, 31
    %v2851 = vsub.s32 32, %v2850
    %v2852 = vshrl.u32 683565275, %v2851
    %v2853 = vshll.u32 683565275, %v2850
    %v2854 = vshrl.u32 2475754826, %v2851
    %v2855 = vor.u32 %v2853, %v2854
    %v2856 = vshll.u32 2475754826, %v2850
    %v2857 = vshrl.u32 2131351028, %v2851
    %v2858 = vor.u32 %v2856, %v2857
    %v2859 = vshll.u32 2131351028, %v2850
    %v2860 = vshrl.u32 2102212464, %v2851
    %v2861 = vor.u32 %v2859, %v2860
    %v2862 = vshll.u32 2102212464, %v2850
    %v2863 = vshrl.u32 920167782, %v2851
    %v2864 = vor.u32 %v2862, %v2863
    %v2865 = vshll.u32 920167782, %v2850
    %v2866 = vshrl.u32 1326507024, %v2851
    %v2867 = vor.u32 %v2865, %v2866
    %vm2868 = vcmp.lt.s32.totalorder %v2849, 1
    %vm2869 = vcmp.lt.s32.totalorder %v2849, 2
    %vm2870 = vcmp.lt.s32.totalorder %v2849, 3
    %vm2871 = vcmp.lt.s32.totalorder %v2849, 4
    %v2872 = vsel %vm2868, %v2852, %v2855
    %v2873 = vsel %vm2871, %v2861, 2102212464
    %v2874 = vsel %vm2870, %v2858, %v2873
    %v2875 = vsel %vm2869, %v2872, %v2874
    %v2876 = vsel %vm2868, %v2855, %v2858
    %v2877 = vsel %vm2871, %v2864, 920167782
    %v2878 = vsel %vm2870, %v2861, %v2877
    %v2879 = vsel %vm2869, %v2876, %v2878
    %v2880 = vsel %vm2868, %v2858, %v2861
    %v2881 = vsel %vm2871, %v2867, 1326507024
    %v2882 = vsel %vm2870, %v2864, %v2881
    %v2883 = vsel %vm2869, %v2880, %v2882
    %v2884 = vshll.u32 %v2844, 8
    %v2885 = vmul.u32.u64.compose %v2884, %v2883
    %v2886 = vextract.low.u32 %v2885
    %v2887 = vextract.high.u32 %v2885
    %v2888 = vmul.u32.u64.compose %v2884, %v2879
    %v2889 = vextract.low.u32 %v2888
    %v2890 = vextract.high.u32 %v2888
    %v2891 = vmul.u32 %v2884, %v2875
    %v2892 = vadd.s32 %v2887, %v2889
    %vm2893 = vc.u32 %v2887, %v2889
    %v2894 = vadd.s32 %v2890, 1
    %v2895 = vsel %vm2893, %v2894, %v2890
    %v2896 = vadd.s32 %v2891, %v2895
    %v2897 = vadd.s32 %v2896, 536870912
    %v2898 = vshrl.u32 %v2897, 30
    %v2899 = vshll.u32 %v2898, 30
    %v2900 = vsub.s32 %v2896, %v2899
    %vm2901 = vcmp.lt.s32.totalorder %v2900, 0
    %v2902 = vsub.s32 0, %v2900
    %v2903 = vsel %vm2901, %v2902, %v2900
    %v2904 = vclz %v2903
    %v2905 = vsub.s32 %v2904, 2
    %vm2906 = vcmp.gt.s32.totalorder 0, %v2905
    %v2907 = vsel %vm2906, 0, %v2905
    %v2908 = vsub.s32 32, %v2907
    %v2909 = vshll.u32 %v2900, %v2907
    %v2910 = vshrl.u32 %v2892, %v2908
    %v2911 = vor.u32 %v2909, %v2910
    %v2912 = vsub.s32 4294967266, %v2907
    %v2913 = vadd.s32 %v2912, 127
    %v2914 = vshll.u32 %v2913, 23
    %v2915 = vor.u32 4788187, %v2914
    %v2916 = vand.u32 2147483647, %v2915
    %v2918 = vcvt.s32.f32 %v2911
    %v2919 = vmul.f32 %v2918, %v2916
    %v2920 = vxor.u32 %v2919, 2147483648
    %v2921 = vsel %vm2838, %v2920, %v2919
    %v2922 = vsub.s32 4, %v2898
    %v2923 = vsel %vm2838, %v2922, %v2898
    %v2924 = vsel %vm2837, %v213, %v2921
    %v2925 = vsel %vm2837, 0, %v2923
    %v2926 = vcosq.f32.pop %v2924
    %v2927 = vsinq.f32.pop %v2924
    %vm2928 = vweird.f32 %v213
    %v2929 = vand.u32 %v2925, 3
    %vm2930 = vcmp.lt.s32.totalorder %v2929, 2
    %vm2931 = vcmp.eq.s32.totalorder %v2929, 0
    %v2932 = vxor.u32 %v2927, 2147483648
    %v2933 = vsel %vm2931, %v2926, %v2932
    %vm2934 = vcmp.eq.s32.totalorder %v2929, 2
    %v2935 = vxor.u32 %v2926, 2147483648
    %v2936 = vsel %vm2934, %v2935, %v2927
    %v2937 = vsel %vm2930, %v2933, %v2936
    %v2938 = vsel %vm2928, nan, %v2937
    %v2939 = vand.u32 2147483647, %v214
    %vm2940 = vcmp.le.f32.partialorder %v2939, 0.7853982
    %vm2941 = vcmp.lt.s32.totalorder %v214, 0
    %v2942 = vand.u32 %v214, 2139095040
    %v2943 = vshrl.u32 %v2942, 23
    %v2944 = vsub.s32 %v2943, 127
    %v2945 = vand.u32 2147483647, %v214
    %v2946 = vand.u32 %v2945, 8388607
    %v2947 = vor.u32 %v2946, 8388608
    %v2948 = vsub.s32 0, %v2947
    %v2949 = vadd.s32 %v2944, 1
    %vm2950 = vcmp.gt.s32.totalorder %v2949, 0
    %v2951 = vsel %vm2950, %v2949, 0
    %v2952 = vshrl.u32 %v2951, 5
    %v2953 = vand.u32 %v2951, 31
    %v2954 = vsub.s32 32, %v2953
    %v2955 = vshrl.u32 683565275, %v2954
    %v2956 = vshll.u32 683565275, %v2953
    %v2957 = vshrl.u32 2475754826, %v2954
    %v2958 = vor.u32 %v2956, %v2957
    %v2959 = vshll.u32 2475754826, %v2953
    %v2960 = vshrl.u32 2131351028, %v2954
    %v2961 = vor.u32 %v2959, %v2960
    %v2962 = vshll.u32 2131351028, %v2953
    %v2963 = vshrl.u32 2102212464, %v2954
    %v2964 = vor.u32 %v2962, %v2963
    %v2965 = vshll.u32 2102212464, %v2953
    %v2966 = vshrl.u32 920167782, %v2954
    %v2967 = vor.u32 %v2965, %v2966
    %v2968 = vshll.u32 920167782, %v2953
    %v2969 = vshrl.u32 1326507024, %v2954
    %v2970 = vor.u32 %v2968, %v2969
    %vm2971 = vcmp.lt.s32.totalorder %v2952, 1
    %vm2972 = vcmp.lt.s32.totalorder %v2952, 2
    %vm2973 = vcmp.lt.s32.totalorder %v2952, 3
    %vm2974 = vcmp.lt.s32.totalorder %v2952, 4
    %v2975 = vsel %vm2971, %v2955, %v2958
    %v2976 = vsel %vm2974, %v2964, 2102212464
    %v2977 = vsel %vm2973, %v2961, %v2976
    %v2978 = vsel %vm2972, %v2975, %v2977
    %v2979 = vsel %vm2971, %v2958, %v2961
    %v2980 = vsel %vm2974, %v2967, 920167782
    %v2981 = vsel %vm2973, %v2964, %v2980
    %v2982 = vsel %vm2972, %v2979, %v2981
    %v2983 = vsel %vm2971, %v2961, %v2964
    %v2984 = vsel %vm2974, %v2970, 1326507024
    %v2985 = vsel %vm2973, %v2967, %v2984
    %v2986 = vsel %vm2972, %v2983, %v2985
    %v2987 = vshll.u32 %v2947, 8
    %v2988 = vmul.u32.u64.compose %v2987, %v2986
    %v2989 = vextract.low.u32 %v2988
    %v2990 = vextract.high.u32 %v2988
    %v2991 = vmul.u32.u64.compose %v2987, %v2982
    %v2992 = vextract.low.u32 %v2991
    %v2993 = vextract.high.u32 %v2991
    %v2994 = vmul.u32 %v2987, %v2978
    %v2995 = vadd.s32 %v2990, %v2992
    %vm2996 = vc.u32 %v2990, %v2992
    %v2997 = vadd.s32 %v2993, 1
    %v2998 = vsel %vm2996, %v2997, %v2993
    %v2999 = vadd.s32 %v2994, %v2998
    %v3000 = vadd.s32 %v2999, 536870912
    %v3001 = vshrl.u32 %v3000, 30
    %v3002 = vshll.u32 %v3001, 30
    %v3003 = vsub.s32 %v2999, %v3002
    %vm3004 = vcmp.lt.s32.totalorder %v3003, 0
    %v3005 = vsub.s32 0, %v3003
    %v3006 = vsel %vm3004, %v3005, %v3003
    %v3007 = vclz %v3006
    %v3008 = vsub.s32 %v3007, 2
    %vm3009 = vcmp.gt.s32.totalorder 0, %v3008
    %v3010 = vsel %vm3009, 0, %v3008
    %v3011 = vsub.s32 32, %v3010
    %v3012 = vshll.u32 %v3003, %v3010
    %v3013 = vshrl.u32 %v2995, %v3011
    %v3014 = vor.u32 %v3012, %v3013
    %v3015 = vsub.s32 4294967266, %v3010
    %v3016 = vadd.s32 %v3015, 127
    %v3017 = vshll.u32 %v3016, 23
    %v3018 = vor.u32 4788187, %v3017
    %v3019 = vand.u32 2147483647, %v3018
    %v3021 = vcvt.s32.f32 %v3014
    %v3022 = vmul.f32 %v3021, %v3019
    %v3023 = vxor.u32 %v3022, 2147483648
    %v3024 = vsel %vm2941, %v3023, %v3022
    %v3025 = vsub.s32 4, %v3001
    %v3026 = vsel %vm2941, %v3025, %v3001
    %v3027 = vsel %vm2940, %v214, %v3024
    %v3028 = vsel %vm2940, 0, %v3026
    %v3029 = vcosq.f32.pop %v3027
    %v3030 = vsinq.f32.pop %v3027
    %vm3031 = vweird.f32 %v214
    %v3032 = vand.u32 %v3028, 3
    %vm3033 = vcmp.lt.s32.totalorder %v3032, 2
    %vm3034 = vcmp.eq.s32.totalorder %v3032, 0
    %v3035 = vxor.u32 %v3030, 2147483648
    %v3036 = vsel %vm3034, %v3029, %v3035
    %vm3037 = vcmp.eq.s32.totalorder %v3032, 2
    %v3038 = vxor.u32 %v3029, 2147483648
    %v3039 = vsel %vm3037, %v3038, %v3030
    %v3040 = vsel %vm3033, %v3036, %v3039
    %v3041 = vsel %vm3031, nan, %v3040
    %v3042 = vand.u32 2147483647, %v215
    %vm3043 = vcmp.le.f32.partialorder %v3042, 0.7853982
    %vm3044 = vcmp.lt.s32.totalorder %v215, 0
    %v3045 = vand.u32 %v215, 2139095040
    %v3046 = vshrl.u32 %v3045, 23
    %v3047 = vsub.s32 %v3046, 127
    %v3048 = vand.u32 2147483647, %v215
    %v3049 = vand.u32 %v3048, 8388607
    %v3050 = vor.u32 %v3049, 8388608
    %v3051 = vsub.s32 0, %v3050
    %v3052 = vadd.s32 %v3047, 1
    %vm3053 = vcmp.gt.s32.totalorder %v3052, 0
    %v3054 = vsel %vm3053, %v3052, 0
    %v3055 = vshrl.u32 %v3054, 5
    %v3056 = vand.u32 %v3054, 31
    %v3057 = vsub.s32 32, %v3056
    %v3058 = vshrl.u32 683565275, %v3057
    %v3059 = vshll.u32 683565275, %v3056
    %v3060 = vshrl.u32 2475754826, %v3057
    %v3061 = vor.u32 %v3059, %v3060
    %v3062 = vshll.u32 2475754826, %v3056
    %v3063 = vshrl.u32 2131351028, %v3057
    %v3064 = vor.u32 %v3062, %v3063
    %v3065 = vshll.u32 2131351028, %v3056
    %v3066 = vshrl.u32 2102212464, %v3057
    %v3067 = vor.u32 %v3065, %v3066
    %v3068 = vshll.u32 2102212464, %v3056
    %v3069 = vshrl.u32 920167782, %v3057
    %v3070 = vor.u32 %v3068, %v3069
    %v3071 = vshll.u32 920167782, %v3056
    %v3072 = vshrl.u32 1326507024, %v3057
    %v3073 = vor.u32 %v3071, %v3072
    %vm3074 = vcmp.lt.s32.totalorder %v3055, 1
    %vm3075 = vcmp.lt.s32.totalorder %v3055, 2
    %vm3076 = vcmp.lt.s32.totalorder %v3055, 3
    %vm3077 = vcmp.lt.s32.totalorder %v3055, 4
    %v3078 = vsel %vm3074, %v3058, %v3061
    %v3079 = vsel %vm3077, %v3067, 2102212464
    %v3080 = vsel %vm3076, %v3064, %v3079
    %v3081 = vsel %vm3075, %v3078, %v3080
    %v3082 = vsel %vm3074, %v3061, %v3064
    %v3083 = vsel %vm3077, %v3070, 920167782
    %v3084 = vsel %vm3076, %v3067, %v3083
    %v3085 = vsel %vm3075, %v3082, %v3084
    %v3086 = vsel %vm3074, %v3064, %v3067
    %v3087 = vsel %vm3077, %v3073, 1326507024
    %v3088 = vsel %vm3076, %v3070, %v3087
    %v3089 = vsel %vm3075, %v3086, %v3088
    %v3090 = vshll.u32 %v3050, 8
    %v3091 = vmul.u32.u64.compose %v3090, %v3089
    %v3092 = vextract.low.u32 %v3091
    %v3093 = vextract.high.u32 %v3091
    %v3094 = vmul.u32.u64.compose %v3090, %v3085
    %v3095 = vextract.low.u32 %v3094
    %v3096 = vextract.high.u32 %v3094
    %v3097 = vmul.u32 %v3090, %v3081
    %v3098 = vadd.s32 %v3093, %v3095
    %vm3099 = vc.u32 %v3093, %v3095
    %v3100 = vadd.s32 %v3096, 1
    %v3101 = vsel %vm3099, %v3100, %v3096
    %v3102 = vadd.s32 %v3097, %v3101
    %v3103 = vadd.s32 %v3102, 536870912
    %v3104 = vshrl.u32 %v3103, 30
    %v3105 = vshll.u32 %v3104, 30
    %v3106 = vsub.s32 %v3102, %v3105
    %vm3107 = vcmp.lt.s32.totalorder %v3106, 0
    %v3108 = vsub.s32 0, %v3106
    %v3109 = vsel %vm3107, %v3108, %v3106
    %v3110 = vclz %v3109
    %v3111 = vsub.s32 %v3110, 2
    %vm3112 = vcmp.gt.s32.totalorder 0, %v3111
    %v3113 = vsel %vm3112, 0, %v3111
    %v3114 = vsub.s32 32, %v3113
    %v3115 = vshll.u32 %v3106, %v3113
    %v3116 = vshrl.u32 %v3098, %v3114
    %v3117 = vor.u32 %v3115, %v3116
    %v3118 = vsub.s32 4294967266, %v3113
    %v3119 = vadd.s32 %v3118, 127
    %v3120 = vshll.u32 %v3119, 23
    %v3121 = vor.u32 4788187, %v3120
    %v3122 = vand.u32 2147483647, %v3121
    %v3124 = vcvt.s32.f32 %v3117
    %v3125 = vmul.f32 %v3124, %v3122
    %v3126 = vxor.u32 %v3125, 2147483648
    %v3127 = vsel %vm3044, %v3126, %v3125
    %v3128 = vsub.s32 4, %v3104
    %v3129 = vsel %vm3044, %v3128, %v3104
    %v3130 = vsel %vm3043, %v215, %v3127
    %v3131 = vsel %vm3043, 0, %v3129
    %v3132 = vcosq.f32.pop %v3130
    %v3133 = vsinq.f32.pop %v3130
    %vm3134 = vweird.f32 %v215
    %v3135 = vand.u32 %v3131, 3
    %vm3136 = vcmp.lt.s32.totalorder %v3135, 2
    %vm3137 = vcmp.eq.s32.totalorder %v3135, 0
    %v3138 = vxor.u32 %v3133, 2147483648
    %v3139 = vsel %vm3137, %v3132, %v3138
    %vm3140 = vcmp.eq.s32.totalorder %v3135, 2
    %v3141 = vxor.u32 %v3132, 2147483648
    %v3142 = vsel %vm3140, %v3141, %v3133
    %v3143 = vsel %vm3136, %v3139, %v3142
    %v3144 = vsel %vm3134, nan, %v3143
    %v3145 = vand.u32 2147483647, %v216
    %vm3146 = vcmp.le.f32.partialorder %v3145, 0.7853982
    %vm3147 = vcmp.lt.s32.totalorder %v216, 0
    %v3148 = vand.u32 %v216, 2139095040
    %v3149 = vshrl.u32 %v3148, 23
    %v3150 = vsub.s32 %v3149, 127
    %v3151 = vand.u32 2147483647, %v216
    %v3152 = vand.u32 %v3151, 8388607
    %v3153 = vor.u32 %v3152, 8388608
    %v3154 = vsub.s32 0, %v3153
    %v3155 = vadd.s32 %v3150, 1
    %vm3156 = vcmp.gt.s32.totalorder %v3155, 0
    %v3157 = vsel %vm3156, %v3155, 0
    %v3158 = vshrl.u32 %v3157, 5
    %v3159 = vand.u32 %v3157, 31
    %v3160 = vsub.s32 32, %v3159
    %v3161 = vshrl.u32 683565275, %v3160
    %v3162 = vshll.u32 683565275, %v3159
    %v3163 = vshrl.u32 2475754826, %v3160
    %v3164 = vor.u32 %v3162, %v3163
    %v3165 = vshll.u32 2475754826, %v3159
    %v3166 = vshrl.u32 2131351028, %v3160
    %v3167 = vor.u32 %v3165, %v3166
    %v3168 = vshll.u32 2131351028, %v3159
    %v3169 = vshrl.u32 2102212464, %v3160
    %v3170 = vor.u32 %v3168, %v3169
    %v3171 = vshll.u32 2102212464, %v3159
    %v3172 = vshrl.u32 920167782, %v3160
    %v3173 = vor.u32 %v3171, %v3172
    %v3174 = vshll.u32 920167782, %v3159
    %v3175 = vshrl.u32 1326507024, %v3160
    %v3176 = vor.u32 %v3174, %v3175
    %vm3177 = vcmp.lt.s32.totalorder %v3158, 1
    %vm3178 = vcmp.lt.s32.totalorder %v3158, 2
    %vm3179 = vcmp.lt.s32.totalorder %v3158, 3
    %vm3180 = vcmp.lt.s32.totalorder %v3158, 4
    %v3181 = vsel %vm3177, %v3161, %v3164
    %v3182 = vsel %vm3180, %v3170, 2102212464
    %v3183 = vsel %vm3179, %v3167, %v3182
    %v3184 = vsel %vm3178, %v3181, %v3183
    %v3185 = vsel %vm3177, %v3164, %v3167
    %v3186 = vsel %vm3180, %v3173, 920167782
    %v3187 = vsel %vm3179, %v3170, %v3186
    %v3188 = vsel %vm3178, %v3185, %v3187
    %v3189 = vsel %vm3177, %v3167, %v3170
    %v3190 = vsel %vm3180, %v3176, 1326507024
    %v3191 = vsel %vm3179, %v3173, %v3190
    %v3192 = vsel %vm3178, %v3189, %v3191
    %v3193 = vshll.u32 %v3153, 8
    %v3194 = vmul.u32.u64.compose %v3193, %v3192
    %v3195 = vextract.low.u32 %v3194
    %v3196 = vextract.high.u32 %v3194
    %v3197 = vmul.u32.u64.compose %v3193, %v3188
    %v3198 = vextract.low.u32 %v3197
    %v3199 = vextract.high.u32 %v3197
    %v3200 = vmul.u32 %v3193, %v3184
    %v3201 = vadd.s32 %v3196, %v3198
    %vm3202 = vc.u32 %v3196, %v3198
    %v3203 = vadd.s32 %v3199, 1
    %v3204 = vsel %vm3202, %v3203, %v3199
    %v3205 = vadd.s32 %v3200, %v3204
    %v3206 = vadd.s32 %v3205, 536870912
    %v3207 = vshrl.u32 %v3206, 30
    %v3208 = vshll.u32 %v3207, 30
    %v3209 = vsub.s32 %v3205, %v3208
    %vm3210 = vcmp.lt.s32.totalorder %v3209, 0
    %v3211 = vsub.s32 0, %v3209
    %v3212 = vsel %vm3210, %v3211, %v3209
    %v3213 = vclz %v3212
    %v3214 = vsub.s32 %v3213, 2
    %vm3215 = vcmp.gt.s32.totalorder 0, %v3214
    %v3216 = vsel %vm3215, 0, %v3214
    %v3217 = vsub.s32 32, %v3216
    %v3218 = vshll.u32 %v3209, %v3216
    %v3219 = vshrl.u32 %v3201, %v3217
    %v3220 = vor.u32 %v3218, %v3219
    %v3221 = vsub.s32 4294967266, %v3216
    %v3222 = vadd.s32 %v3221, 127
    %v3223 = vshll.u32 %v3222, 23
    %v3224 = vor.u32 4788187, %v3223
    %v3225 = vand.u32 2147483647, %v3224
    %v3227 = vcvt.s32.f32 %v3220
    %v3228 = vmul.f32 %v3227, %v3225
    %v3229 = vxor.u32 %v3228, 2147483648
    %v3230 = vsel %vm3147, %v3229, %v3228
    %v3231 = vsub.s32 4, %v3207
    %v3232 = vsel %vm3147, %v3231, %v3207
    %v3233 = vsel %vm3146, %v216, %v3230
    %v3234 = vsel %vm3146, 0, %v3232
    %v3235 = vcosq.f32.pop %v3233
    %v3236 = vsinq.f32.pop %v3233
    %vm3237 = vweird.f32 %v216
    %v3238 = vand.u32 %v3234, 3
    %vm3239 = vcmp.lt.s32.totalorder %v3238, 2
    %vm3240 = vcmp.eq.s32.totalorder %v3238, 0
    %v3241 = vxor.u32 %v3236, 2147483648
    %v3242 = vsel %vm3240, %v3235, %v3241
    %vm3243 = vcmp.eq.s32.totalorder %v3238, 2
    %v3244 = vxor.u32 %v3235, 2147483648
    %v3245 = vsel %vm3243, %v3244, %v3236
    %v3246 = vsel %vm3239, %v3242, %v3245
    %v3247 = vsel %vm3237, nan, %v3246
    %v3248 = vand.u32 2147483647, %v217
    %vm3249 = vcmp.le.f32.partialorder %v3248, 0.7853982
    %vm3250 = vcmp.lt.s32.totalorder %v217, 0
    %v3251 = vand.u32 %v217, 2139095040
    %v3252 = vshrl.u32 %v3251, 23
    %v3253 = vsub.s32 %v3252, 127
    %v3254 = vand.u32 2147483647, %v217
    %v3255 = vand.u32 %v3254, 8388607
    %v3256 = vor.u32 %v3255, 8388608
    %v3257 = vsub.s32 0, %v3256
    %v3258 = vadd.s32 %v3253, 1
    %vm3259 = vcmp.gt.s32.totalorder %v3258, 0
    %v3260 = vsel %vm3259, %v3258, 0
    %v3261 = vshrl.u32 %v3260, 5
    %v3262 = vand.u32 %v3260, 31
    %v3263 = vsub.s32 32, %v3262
    %v3264 = vshrl.u32 683565275, %v3263
    %v3265 = vshll.u32 683565275, %v3262
    %v3266 = vshrl.u32 2475754826, %v3263
    %v3267 = vor.u32 %v3265, %v3266
    %v3268 = vshll.u32 2475754826, %v3262
    %v3269 = vshrl.u32 2131351028, %v3263
    %v3270 = vor.u32 %v3268, %v3269
    %v3271 = vshll.u32 2131351028, %v3262
    %v3272 = vshrl.u32 2102212464, %v3263
    %v3273 = vor.u32 %v3271, %v3272
    %v3274 = vshll.u32 2102212464, %v3262
    %v3275 = vshrl.u32 920167782, %v3263
    %v3276 = vor.u32 %v3274, %v3275
    %v3277 = vshll.u32 920167782, %v3262
    %v3278 = vshrl.u32 1326507024, %v3263
    %v3279 = vor.u32 %v3277, %v3278
    %vm3280 = vcmp.lt.s32.totalorder %v3261, 1
    %vm3281 = vcmp.lt.s32.totalorder %v3261, 2
    %vm3282 = vcmp.lt.s32.totalorder %v3261, 3
    %vm3283 = vcmp.lt.s32.totalorder %v3261, 4
    %v3284 = vsel %vm3280, %v3264, %v3267
    %v3285 = vsel %vm3283, %v3273, 2102212464
    %v3286 = vsel %vm3282, %v3270, %v3285
    %v3287 = vsel %vm3281, %v3284, %v3286
    %v3288 = vsel %vm3280, %v3267, %v3270
    %v3289 = vsel %vm3283, %v3276, 920167782
    %v3290 = vsel %vm3282, %v3273, %v3289
    %v3291 = vsel %vm3281, %v3288, %v3290
    %v3292 = vsel %vm3280, %v3270, %v3273
    %v3293 = vsel %vm3283, %v3279, 1326507024
    %v3294 = vsel %vm3282, %v3276, %v3293
    %v3295 = vsel %vm3281, %v3292, %v3294
    %v3296 = vshll.u32 %v3256, 8
    %v3297 = vmul.u32.u64.compose %v3296, %v3295
    %v3298 = vextract.low.u32 %v3297
    %v3299 = vextract.high.u32 %v3297
    %v3300 = vmul.u32.u64.compose %v3296, %v3291
    %v3301 = vextract.low.u32 %v3300
    %v3302 = vextract.high.u32 %v3300
    %v3303 = vmul.u32 %v3296, %v3287
    %v3304 = vadd.s32 %v3299, %v3301
    %vm3305 = vc.u32 %v3299, %v3301
    %v3306 = vadd.s32 %v3302, 1
    %v3307 = vsel %vm3305, %v3306, %v3302
    %v3308 = vadd.s32 %v3303, %v3307
    %v3309 = vadd.s32 %v3308, 536870912
    %v3310 = vshrl.u32 %v3309, 30
    %v3311 = vshll.u32 %v3310, 30
    %v3312 = vsub.s32 %v3308, %v3311
    %vm3313 = vcmp.lt.s32.totalorder %v3312, 0
    %v3314 = vsub.s32 0, %v3312
    %v3315 = vsel %vm3313, %v3314, %v3312
    %v3316 = vclz %v3315
    %v3317 = vsub.s32 %v3316, 2
    %vm3318 = vcmp.gt.s32.totalorder 0, %v3317
    %v3319 = vsel %vm3318, 0, %v3317
    %v3320 = vsub.s32 32, %v3319
    %v3321 = vshll.u32 %v3312, %v3319
    %v3322 = vshrl.u32 %v3304, %v3320
    %v3323 = vor.u32 %v3321, %v3322
    %v3324 = vsub.s32 4294967266, %v3319
    %v3325 = vadd.s32 %v3324, 127
    %v3326 = vshll.u32 %v3325, 23
    %v3327 = vor.u32 4788187, %v3326
    %v3328 = vand.u32 2147483647, %v3327
    %v3330 = vcvt.s32.f32 %v3323
    %v3331 = vmul.f32 %v3330, %v3328
    %v3332 = vxor.u32 %v3331, 2147483648
    %v3333 = vsel %vm3250, %v3332, %v3331
    %v3334 = vsub.s32 4, %v3310
    %v3335 = vsel %vm3250, %v3334, %v3310
    %v3336 = vsel %vm3249, %v217, %v3333
    %v3337 = vsel %vm3249, 0, %v3335
    %v3338 = vcosq.f32.pop %v3336
    %v3339 = vsinq.f32.pop %v3336
    %vm3340 = vweird.f32 %v217
    %v3341 = vand.u32 %v3337, 3
    %vm3342 = vcmp.lt.s32.totalorder %v3341, 2
    %vm3343 = vcmp.eq.s32.totalorder %v3341, 0
    %v3344 = vxor.u32 %v3339, 2147483648
    %v3345 = vsel %vm3343, %v3338, %v3344
    %vm3346 = vcmp.eq.s32.totalorder %v3341, 2
    %v3347 = vxor.u32 %v3338, 2147483648
    %v3348 = vsel %vm3346, %v3347, %v3339
    %v3349 = vsel %vm3342, %v3345, %v3348
    %v3350 = vsel %vm3340, nan, %v3349
    %v3351 = vand.u32 2147483647, %v218
    %vm3352 = vcmp.le.f32.partialorder %v3351, 0.7853982
    %vm3353 = vcmp.lt.s32.totalorder %v218, 0
    %v3354 = vand.u32 %v218, 2139095040
    %v3355 = vshrl.u32 %v3354, 23
    %v3356 = vsub.s32 %v3355, 127
    %v3357 = vand.u32 2147483647, %v218
    %v3358 = vand.u32 %v3357, 8388607
    %v3359 = vor.u32 %v3358, 8388608
    %v3360 = vsub.s32 0, %v3359
    %v3361 = vadd.s32 %v3356, 1
    %vm3362 = vcmp.gt.s32.totalorder %v3361, 0
    %v3363 = vsel %vm3362, %v3361, 0
    %v3364 = vshrl.u32 %v3363, 5
    %v3365 = vand.u32 %v3363, 31
    %v3366 = vsub.s32 32, %v3365
    %v3367 = vshrl.u32 683565275, %v3366
    %v3368 = vshll.u32 683565275, %v3365
    %v3369 = vshrl.u32 2475754826, %v3366
    %v3370 = vor.u32 %v3368, %v3369
    %v3371 = vshll.u32 2475754826, %v3365
    %v3372 = vshrl.u32 2131351028, %v3366
    %v3373 = vor.u32 %v3371, %v3372
    %v3374 = vshll.u32 2131351028, %v3365
    %v3375 = vshrl.u32 2102212464, %v3366
    %v3376 = vor.u32 %v3374, %v3375
    %v3377 = vshll.u32 2102212464, %v3365
    %v3378 = vshrl.u32 920167782, %v3366
    %v3379 = vor.u32 %v3377, %v3378
    %v3380 = vshll.u32 920167782, %v3365
    %v3381 = vshrl.u32 1326507024, %v3366
    %v3382 = vor.u32 %v3380, %v3381
    %vm3383 = vcmp.lt.s32.totalorder %v3364, 1
    %vm3384 = vcmp.lt.s32.totalorder %v3364, 2
    %vm3385 = vcmp.lt.s32.totalorder %v3364, 3
    %vm3386 = vcmp.lt.s32.totalorder %v3364, 4
    %v3387 = vsel %vm3383, %v3367, %v3370
    %v3388 = vsel %vm3386, %v3376, 2102212464
    %v3389 = vsel %vm3385, %v3373, %v3388
    %v3390 = vsel %vm3384, %v3387, %v3389
    %v3391 = vsel %vm3383, %v3370, %v3373
    %v3392 = vsel %vm3386, %v3379, 920167782
    %v3393 = vsel %vm3385, %v3376, %v3392
    %v3394 = vsel %vm3384, %v3391, %v3393
    %v3395 = vsel %vm3383, %v3373, %v3376
    %v3396 = vsel %vm3386, %v3382, 1326507024
    %v3397 = vsel %vm3385, %v3379, %v3396
    %v3398 = vsel %vm3384, %v3395, %v3397
    %v3399 = vshll.u32 %v3359, 8
    %v3400 = vmul.u32.u64.compose %v3399, %v3398
    %v3401 = vextract.low.u32 %v3400
    %v3402 = vextract.high.u32 %v3400
    %v3403 = vmul.u32.u64.compose %v3399, %v3394
    %v3404 = vextract.low.u32 %v3403
    %v3405 = vextract.high.u32 %v3403
    %v3406 = vmul.u32 %v3399, %v3390
    %v3407 = vadd.s32 %v3402, %v3404
    %vm3408 = vc.u32 %v3402, %v3404
    %v3409 = vadd.s32 %v3405, 1
    %v3410 = vsel %vm3408, %v3409, %v3405
    %v3411 = vadd.s32 %v3406, %v3410
    %v3412 = vadd.s32 %v3411, 536870912
    %v3413 = vshrl.u32 %v3412, 30
    %v3414 = vshll.u32 %v3413, 30
    %v3415 = vsub.s32 %v3411, %v3414
    %vm3416 = vcmp.lt.s32.totalorder %v3415, 0
    %v3417 = vsub.s32 0, %v3415
    %v3418 = vsel %vm3416, %v3417, %v3415
    %v3419 = vclz %v3418
    %v3420 = vsub.s32 %v3419, 2
    %vm3421 = vcmp.gt.s32.totalorder 0, %v3420
    %v3422 = vsel %vm3421, 0, %v3420
    %v3423 = vsub.s32 32, %v3422
    %v3424 = vshll.u32 %v3415, %v3422
    %v3425 = vshrl.u32 %v3407, %v3423
    %v3426 = vor.u32 %v3424, %v3425
    %v3427 = vsub.s32 4294967266, %v3422
    %v3428 = vadd.s32 %v3427, 127
    %v3429 = vshll.u32 %v3428, 23
    %v3430 = vor.u32 4788187, %v3429
    %v3431 = vand.u32 2147483647, %v3430
    %v3433 = vcvt.s32.f32 %v3426
    %v3434 = vmul.f32 %v3433, %v3431
    %v3435 = vxor.u32 %v3434, 2147483648
    %v3436 = vsel %vm3353, %v3435, %v3434
    %v3437 = vsub.s32 4, %v3413
    %v3438 = vsel %vm3353, %v3437, %v3413
    %v3439 = vsel %vm3352, %v218, %v3436
    %v3440 = vsel %vm3352, 0, %v3438
    %v3441 = vcosq.f32.pop %v3439
    %v3442 = vsinq.f32.pop %v3439
    %vm3443 = vweird.f32 %v218
    %v3444 = vand.u32 %v3440, 3
    %vm3445 = vcmp.lt.s32.totalorder %v3444, 2
    %vm3446 = vcmp.eq.s32.totalorder %v3444, 0
    %v3447 = vxor.u32 %v3442, 2147483648
    %v3448 = vsel %vm3446, %v3441, %v3447
    %vm3449 = vcmp.eq.s32.totalorder %v3444, 2
    %v3450 = vxor.u32 %v3441, 2147483648
    %v3451 = vsel %vm3449, %v3450, %v3442
    %v3452 = vsel %vm3445, %v3448, %v3451
    %v3453 = vsel %vm3443, nan, %v3452
    %v3454 = vand.u32 2147483647, %v219
    %vm3455 = vcmp.le.f32.partialorder %v3454, 0.7853982
    %vm3456 = vcmp.lt.s32.totalorder %v219, 0
    %v3457 = vand.u32 %v219, 2139095040
    %v3458 = vshrl.u32 %v3457, 23
    %v3459 = vsub.s32 %v3458, 127
    %v3460 = vand.u32 2147483647, %v219
    %v3461 = vand.u32 %v3460, 8388607
    %v3462 = vor.u32 %v3461, 8388608
    %v3463 = vsub.s32 0, %v3462
    %v3464 = vadd.s32 %v3459, 1
    %vm3465 = vcmp.gt.s32.totalorder %v3464, 0
    %v3466 = vsel %vm3465, %v3464, 0
    %v3467 = vshrl.u32 %v3466, 5
    %v3468 = vand.u32 %v3466, 31
    %v3469 = vsub.s32 32, %v3468
    %v3470 = vshrl.u32 683565275, %v3469
    %v3471 = vshll.u32 683565275, %v3468
    %v3472 = vshrl.u32 2475754826, %v3469
    %v3473 = vor.u32 %v3471, %v3472
    %v3474 = vshll.u32 2475754826, %v3468
    %v3475 = vshrl.u32 2131351028, %v3469
    %v3476 = vor.u32 %v3474, %v3475
    %v3477 = vshll.u32 2131351028, %v3468
    %v3478 = vshrl.u32 2102212464, %v3469
    %v3479 = vor.u32 %v3477, %v3478
    %v3480 = vshll.u32 2102212464, %v3468
    %v3481 = vshrl.u32 920167782, %v3469
    %v3482 = vor.u32 %v3480, %v3481
    %v3483 = vshll.u32 920167782, %v3468
    %v3484 = vshrl.u32 1326507024, %v3469
    %v3485 = vor.u32 %v3483, %v3484
    %vm3486 = vcmp.lt.s32.totalorder %v3467, 1
    %vm3487 = vcmp.lt.s32.totalorder %v3467, 2
    %vm3488 = vcmp.lt.s32.totalorder %v3467, 3
    %vm3489 = vcmp.lt.s32.totalorder %v3467, 4
    %v3490 = vsel %vm3486, %v3470, %v3473
    %v3491 = vsel %vm3489, %v3479, 2102212464
    %v3492 = vsel %vm3488, %v3476, %v3491
    %v3493 = vsel %vm3487, %v3490, %v3492
    %v3494 = vsel %vm3486, %v3473, %v3476
    %v3495 = vsel %vm3489, %v3482, 920167782
    %v3496 = vsel %vm3488, %v3479, %v3495
    %v3497 = vsel %vm3487, %v3494, %v3496
    %v3498 = vsel %vm3486, %v3476, %v3479
    %v3499 = vsel %vm3489, %v3485, 1326507024
    %v3500 = vsel %vm3488, %v3482, %v3499
    %v3501 = vsel %vm3487, %v3498, %v3500
    %v3502 = vshll.u32 %v3462, 8
    %v3503 = vmul.u32.u64.compose %v3502, %v3501
    %v3504 = vextract.low.u32 %v3503
    %v3505 = vextract.high.u32 %v3503
    %v3506 = vmul.u32.u64.compose %v3502, %v3497
    %v3507 = vextract.low.u32 %v3506
    %v3508 = vextract.high.u32 %v3506
    %v3509 = vmul.u32 %v3502, %v3493
    %v3510 = vadd.s32 %v3505, %v3507
    %vm3511 = vc.u32 %v3505, %v3507
    %v3512 = vadd.s32 %v3508, 1
    %v3513 = vsel %vm3511, %v3512, %v3508
    %v3514 = vadd.s32 %v3509, %v3513
    %v3515 = vadd.s32 %v3514, 536870912
    %v3516 = vshrl.u32 %v3515, 30
    %v3517 = vshll.u32 %v3516, 30
    %v3518 = vsub.s32 %v3514, %v3517
    %vm3519 = vcmp.lt.s32.totalorder %v3518, 0
    %v3520 = vsub.s32 0, %v3518
    %v3521 = vsel %vm3519, %v3520, %v3518
    %v3522 = vclz %v3521
    %v3523 = vsub.s32 %v3522, 2
    %vm3524 = vcmp.gt.s32.totalorder 0, %v3523
    %v3525 = vsel %vm3524, 0, %v3523
    %v3526 = vsub.s32 32, %v3525
    %v3527 = vshll.u32 %v3518, %v3525
    %v3528 = vshrl.u32 %v3510, %v3526
    %v3529 = vor.u32 %v3527, %v3528
    %v3530 = vsub.s32 4294967266, %v3525
    %v3531 = vadd.s32 %v3530, 127
    %v3532 = vshll.u32 %v3531, 23
    %v3533 = vor.u32 4788187, %v3532
    %v3534 = vand.u32 2147483647, %v3533
    %v3536 = vcvt.s32.f32 %v3529
    %v3537 = vmul.f32 %v3536, %v3534
    %v3538 = vxor.u32 %v3537, 2147483648
    %v3539 = vsel %vm3456, %v3538, %v3537
    %v3540 = vsub.s32 4, %v3516
    %v3541 = vsel %vm3456, %v3540, %v3516
    %v3542 = vsel %vm3455, %v219, %v3539
    %v3543 = vsel %vm3455, 0, %v3541
    %v3544 = vcosq.f32.pop %v3542
    %v3545 = vsinq.f32.pop %v3542
    %vm3546 = vweird.f32 %v219
    %v3547 = vand.u32 %v3543, 3
    %vm3548 = vcmp.lt.s32.totalorder %v3547, 2
    %vm3549 = vcmp.eq.s32.totalorder %v3547, 0
    %v3550 = vxor.u32 %v3545, 2147483648
    %v3551 = vsel %vm3549, %v3544, %v3550
    %vm3552 = vcmp.eq.s32.totalorder %v3547, 2
    %v3553 = vxor.u32 %v3544, 2147483648
    %v3554 = vsel %vm3552, %v3553, %v3545
    %v3555 = vsel %vm3548, %v3551, %v3554
    %v3556 = vsel %vm3546, nan, %v3555
    %v3557 = vand.u32 2147483647, %v220
    %vm3558 = vcmp.le.f32.partialorder %v3557, 0.7853982
    %vm3559 = vcmp.lt.s32.totalorder %v220, 0
    %v3560 = vand.u32 %v220, 2139095040
    %v3561 = vshrl.u32 %v3560, 23
    %v3562 = vsub.s32 %v3561, 127
    %v3563 = vand.u32 2147483647, %v220
    %v3564 = vand.u32 %v3563, 8388607
    %v3565 = vor.u32 %v3564, 8388608
    %v3566 = vsub.s32 0, %v3565
    %v3567 = vadd.s32 %v3562, 1
    %vm3568 = vcmp.gt.s32.totalorder %v3567, 0
    %v3569 = vsel %vm3568, %v3567, 0
    %v3570 = vshrl.u32 %v3569, 5
    %v3571 = vand.u32 %v3569, 31
    %v3572 = vsub.s32 32, %v3571
    %v3573 = vshrl.u32 683565275, %v3572
    %v3574 = vshll.u32 683565275, %v3571
    %v3575 = vshrl.u32 2475754826, %v3572
    %v3576 = vor.u32 %v3574, %v3575
    %v3577 = vshll.u32 2475754826, %v3571
    %v3578 = vshrl.u32 2131351028, %v3572
    %v3579 = vor.u32 %v3577, %v3578
    %v3580 = vshll.u32 2131351028, %v3571
    %v3581 = vshrl.u32 2102212464, %v3572
    %v3582 = vor.u32 %v3580, %v3581
    %v3583 = vshll.u32 2102212464, %v3571
    %v3584 = vshrl.u32 920167782, %v3572
    %v3585 = vor.u32 %v3583, %v3584
    %v3586 = vshll.u32 920167782, %v3571
    %v3587 = vshrl.u32 1326507024, %v3572
    %v3588 = vor.u32 %v3586, %v3587
    %vm3589 = vcmp.lt.s32.totalorder %v3570, 1
    %vm3590 = vcmp.lt.s32.totalorder %v3570, 2
    %vm3591 = vcmp.lt.s32.totalorder %v3570, 3
    %vm3592 = vcmp.lt.s32.totalorder %v3570, 4
    %v3593 = vsel %vm3589, %v3573, %v3576
    %v3594 = vsel %vm3592, %v3582, 2102212464
    %v3595 = vsel %vm3591, %v3579, %v3594
    %v3596 = vsel %vm3590, %v3593, %v3595
    %v3597 = vsel %vm3589, %v3576, %v3579
    %v3598 = vsel %vm3592, %v3585, 920167782
    %v3599 = vsel %vm3591, %v3582, %v3598
    %v3600 = vsel %vm3590, %v3597, %v3599
    %v3601 = vsel %vm3589, %v3579, %v3582
    %v3602 = vsel %vm3592, %v3588, 1326507024
    %v3603 = vsel %vm3591, %v3585, %v3602
    %v3604 = vsel %vm3590, %v3601, %v3603
    %v3605 = vshll.u32 %v3565, 8
    %v3606 = vmul.u32.u64.compose %v3605, %v3604
    %v3607 = vextract.low.u32 %v3606
    %v3608 = vextract.high.u32 %v3606
    %v3609 = vmul.u32.u64.compose %v3605, %v3600
    %v3610 = vextract.low.u32 %v3609
    %v3611 = vextract.high.u32 %v3609
    %v3612 = vmul.u32 %v3605, %v3596
    %v3613 = vadd.s32 %v3608, %v3610
    %vm3614 = vc.u32 %v3608, %v3610
    %v3615 = vadd.s32 %v3611, 1
    %v3616 = vsel %vm3614, %v3615, %v3611
    %v3617 = vadd.s32 %v3612, %v3616
    %v3618 = vadd.s32 %v3617, 536870912
    %v3619 = vshrl.u32 %v3618, 30
    %v3620 = vshll.u32 %v3619, 30
    %v3621 = vsub.s32 %v3617, %v3620
    %vm3622 = vcmp.lt.s32.totalorder %v3621, 0
    %v3623 = vsub.s32 0, %v3621
    %v3624 = vsel %vm3622, %v3623, %v3621
    %v3625 = vclz %v3624
    %v3626 = vsub.s32 %v3625, 2
    %vm3627 = vcmp.gt.s32.totalorder 0, %v3626
    %v3628 = vsel %vm3627, 0, %v3626
    %v3629 = vsub.s32 32, %v3628
    %v3630 = vshll.u32 %v3621, %v3628
    %v3631 = vshrl.u32 %v3613, %v3629
    %v3632 = vor.u32 %v3630, %v3631
    %v3633 = vsub.s32 4294967266, %v3628
    %v3634 = vadd.s32 %v3633, 127
    %v3635 = vshll.u32 %v3634, 23
    %v3636 = vor.u32 4788187, %v3635
    %v3637 = vand.u32 2147483647, %v3636
    %v3639 = vcvt.s32.f32 %v3632
    %v3640 = vmul.f32 %v3639, %v3637
    %v3641 = vxor.u32 %v3640, 2147483648
    %v3642 = vsel %vm3559, %v3641, %v3640
    %v3643 = vsub.s32 4, %v3619
    %v3644 = vsel %vm3559, %v3643, %v3619
    %v3645 = vsel %vm3558, %v220, %v3642
    %v3646 = vsel %vm3558, 0, %v3644
    %v3647 = vcosq.f32.pop %v3645
    %v3648 = vsinq.f32.pop %v3645
    %vm3649 = vweird.f32 %v220
    %v3650 = vand.u32 %v3646, 3
    %vm3651 = vcmp.lt.s32.totalorder %v3650, 2
    %vm3652 = vcmp.eq.s32.totalorder %v3650, 0
    %v3653 = vxor.u32 %v3648, 2147483648
    %v3654 = vsel %vm3652, %v3647, %v3653
    %vm3655 = vcmp.eq.s32.totalorder %v3650, 2
    %v3656 = vxor.u32 %v3647, 2147483648
    %v3657 = vsel %vm3655, %v3656, %v3648
    %v3658 = vsel %vm3651, %v3654, %v3657
    %v3659 = vsel %vm3649, nan, %v3658
    %v3660 = vand.u32 2147483647, %v221
    %vm3661 = vcmp.le.f32.partialorder %v3660, 0.7853982
    %vm3662 = vcmp.lt.s32.totalorder %v221, 0
    %v3663 = vand.u32 %v221, 2139095040
    %v3664 = vshrl.u32 %v3663, 23
    %v3665 = vsub.s32 %v3664, 127
    %v3666 = vand.u32 2147483647, %v221
    %v3667 = vand.u32 %v3666, 8388607
    %v3668 = vor.u32 %v3667, 8388608
    %v3669 = vsub.s32 0, %v3668
    %v3670 = vadd.s32 %v3665, 1
    %vm3671 = vcmp.gt.s32.totalorder %v3670, 0
    %v3672 = vsel %vm3671, %v3670, 0
    %v3673 = vshrl.u32 %v3672, 5
    %v3674 = vand.u32 %v3672, 31
    %v3675 = vsub.s32 32, %v3674
    %v3676 = vshrl.u32 683565275, %v3675
    %v3677 = vshll.u32 683565275, %v3674
    %v3678 = vshrl.u32 2475754826, %v3675
    %v3679 = vor.u32 %v3677, %v3678
    %v3680 = vshll.u32 2475754826, %v3674
    %v3681 = vshrl.u32 2131351028, %v3675
    %v3682 = vor.u32 %v3680, %v3681
    %v3683 = vshll.u32 2131351028, %v3674
    %v3684 = vshrl.u32 2102212464, %v3675
    %v3685 = vor.u32 %v3683, %v3684
    %v3686 = vshll.u32 2102212464, %v3674
    %v3687 = vshrl.u32 920167782, %v3675
    %v3688 = vor.u32 %v3686, %v3687
    %v3689 = vshll.u32 920167782, %v3674
    %v3690 = vshrl.u32 1326507024, %v3675
    %v3691 = vor.u32 %v3689, %v3690
    %vm3692 = vcmp.lt.s32.totalorder %v3673, 1
    %vm3693 = vcmp.lt.s32.totalorder %v3673, 2
    %vm3694 = vcmp.lt.s32.totalorder %v3673, 3
    %vm3695 = vcmp.lt.s32.totalorder %v3673, 4
    %v3696 = vsel %vm3692, %v3676, %v3679
    %v3697 = vsel %vm3695, %v3685, 2102212464
    %v3698 = vsel %vm3694, %v3682, %v3697
    %v3699 = vsel %vm3693, %v3696, %v3698
    %v3700 = vsel %vm3692, %v3679, %v3682
    %v3701 = vsel %vm3695, %v3688, 920167782
    %v3702 = vsel %vm3694, %v3685, %v3701
    %v3703 = vsel %vm3693, %v3700, %v3702
    %v3704 = vsel %vm3692, %v3682, %v3685
    %v3705 = vsel %vm3695, %v3691, 1326507024
    %v3706 = vsel %vm3694, %v3688, %v3705
    %v3707 = vsel %vm3693, %v3704, %v3706
    %v3708 = vshll.u32 %v3668, 8
    %v3709 = vmul.u32.u64.compose %v3708, %v3707
    %v3710 = vextract.low.u32 %v3709
    %v3711 = vextract.high.u32 %v3709
    %v3712 = vmul.u32.u64.compose %v3708, %v3703
    %v3713 = vextract.low.u32 %v3712
    %v3714 = vextract.high.u32 %v3712
    %v3715 = vmul.u32 %v3708, %v3699
    %v3716 = vadd.s32 %v3711, %v3713
    %vm3717 = vc.u32 %v3711, %v3713
    %v3718 = vadd.s32 %v3714, 1
    %v3719 = vsel %vm3717, %v3718, %v3714
    %v3720 = vadd.s32 %v3715, %v3719
    %v3721 = vadd.s32 %v3720, 536870912
    %v3722 = vshrl.u32 %v3721, 30
    %v3723 = vshll.u32 %v3722, 30
    %v3724 = vsub.s32 %v3720, %v3723
    %vm3725 = vcmp.lt.s32.totalorder %v3724, 0
    %v3726 = vsub.s32 0, %v3724
    %v3727 = vsel %vm3725, %v3726, %v3724
    %v3728 = vclz %v3727
    %v3729 = vsub.s32 %v3728, 2
    %vm3730 = vcmp.gt.s32.totalorder 0, %v3729
    %v3731 = vsel %vm3730, 0, %v3729
    %v3732 = vsub.s32 32, %v3731
    %v3733 = vshll.u32 %v3724, %v3731
    %v3734 = vshrl.u32 %v3716, %v3732
    %v3735 = vor.u32 %v3733, %v3734
    %v3736 = vsub.s32 4294967266, %v3731
    %v3737 = vadd.s32 %v3736, 127
    %v3738 = vshll.u32 %v3737, 23
    %v3739 = vor.u32 4788187, %v3738
    %v3740 = vand.u32 2147483647, %v3739
    %v3742 = vcvt.s32.f32 %v3735
    %v3743 = vmul.f32 %v3742, %v3740
    %v3744 = vxor.u32 %v3743, 2147483648
    %v3745 = vsel %vm3662, %v3744, %v3743
    %v3746 = vsub.s32 4, %v3722
    %v3747 = vsel %vm3662, %v3746, %v3722
    %v3748 = vsel %vm3661, %v221, %v3745
    %v3749 = vsel %vm3661, 0, %v3747
    %v3750 = vcosq.f32.pop %v3748
    %v3751 = vsinq.f32.pop %v3748
    %vm3752 = vweird.f32 %v221
    %v3753 = vand.u32 %v3749, 3
    %vm3754 = vcmp.lt.s32.totalorder %v3753, 2
    %vm3755 = vcmp.eq.s32.totalorder %v3753, 0
    %v3756 = vxor.u32 %v3751, 2147483648
    %v3757 = vsel %vm3755, %v3750, %v3756
    %vm3758 = vcmp.eq.s32.totalorder %v3753, 2
    %v3759 = vxor.u32 %v3750, 2147483648
    %v3760 = vsel %vm3758, %v3759, %v3751
    %v3761 = vsel %vm3754, %v3757, %v3760
    %v3762 = vsel %vm3752, nan, %v3761
    %v3763 = vand.u32 2147483647, %v222
    %vm3764 = vcmp.le.f32.partialorder %v3763, 0.7853982
    %vm3765 = vcmp.lt.s32.totalorder %v222, 0
    %v3766 = vand.u32 %v222, 2139095040
    %v3767 = vshrl.u32 %v3766, 23
    %v3768 = vsub.s32 %v3767, 127
    %v3769 = vand.u32 2147483647, %v222
    %v3770 = vand.u32 %v3769, 8388607
    %v3771 = vor.u32 %v3770, 8388608
    %v3772 = vsub.s32 0, %v3771
    %v3773 = vadd.s32 %v3768, 1
    %vm3774 = vcmp.gt.s32.totalorder %v3773, 0
    %v3775 = vsel %vm3774, %v3773, 0
    %v3776 = vshrl.u32 %v3775, 5
    %v3777 = vand.u32 %v3775, 31
    %v3778 = vsub.s32 32, %v3777
    %v3779 = vshrl.u32 683565275, %v3778
    %v3780 = vshll.u32 683565275, %v3777
    %v3781 = vshrl.u32 2475754826, %v3778
    %v3782 = vor.u32 %v3780, %v3781
    %v3783 = vshll.u32 2475754826, %v3777
    %v3784 = vshrl.u32 2131351028, %v3778
    %v3785 = vor.u32 %v3783, %v3784
    %v3786 = vshll.u32 2131351028, %v3777
    %v3787 = vshrl.u32 2102212464, %v3778
    %v3788 = vor.u32 %v3786, %v3787
    %v3789 = vshll.u32 2102212464, %v3777
    %v3790 = vshrl.u32 920167782, %v3778
    %v3791 = vor.u32 %v3789, %v3790
    %v3792 = vshll.u32 920167782, %v3777
    %v3793 = vshrl.u32 1326507024, %v3778
    %v3794 = vor.u32 %v3792, %v3793
    %vm3795 = vcmp.lt.s32.totalorder %v3776, 1
    %vm3796 = vcmp.lt.s32.totalorder %v3776, 2
    %vm3797 = vcmp.lt.s32.totalorder %v3776, 3
    %vm3798 = vcmp.lt.s32.totalorder %v3776, 4
    %v3799 = vsel %vm3795, %v3779, %v3782
    %v3800 = vsel %vm3798, %v3788, 2102212464
    %v3801 = vsel %vm3797, %v3785, %v3800
    %v3802 = vsel %vm3796, %v3799, %v3801
    %v3803 = vsel %vm3795, %v3782, %v3785
    %v3804 = vsel %vm3798, %v3791, 920167782
    %v3805 = vsel %vm3797, %v3788, %v3804
    %v3806 = vsel %vm3796, %v3803, %v3805
    %v3807 = vsel %vm3795, %v3785, %v3788
    %v3808 = vsel %vm3798, %v3794, 1326507024
    %v3809 = vsel %vm3797, %v3791, %v3808
    %v3810 = vsel %vm3796, %v3807, %v3809
    %v3811 = vshll.u32 %v3771, 8
    %v3812 = vmul.u32.u64.compose %v3811, %v3810
    %v3813 = vextract.low.u32 %v3812
    %v3814 = vextract.high.u32 %v3812
    %v3815 = vmul.u32.u64.compose %v3811, %v3806
    %v3816 = vextract.low.u32 %v3815
    %v3817 = vextract.high.u32 %v3815
    %v3818 = vmul.u32 %v3811, %v3802
    %v3819 = vadd.s32 %v3814, %v3816
    %vm3820 = vc.u32 %v3814, %v3816
    %v3821 = vadd.s32 %v3817, 1
    %v3822 = vsel %vm3820, %v3821, %v3817
    %v3823 = vadd.s32 %v3818, %v3822
    %v3824 = vadd.s32 %v3823, 536870912
    %v3825 = vshrl.u32 %v3824, 30
    %v3826 = vshll.u32 %v3825, 30
    %v3827 = vsub.s32 %v3823, %v3826
    %vm3828 = vcmp.lt.s32.totalorder %v3827, 0
    %v3829 = vsub.s32 0, %v3827
    %v3830 = vsel %vm3828, %v3829, %v3827
    %v3831 = vclz %v3830
    %v3832 = vsub.s32 %v3831, 2
    %vm3833 = vcmp.gt.s32.totalorder 0, %v3832
    %v3834 = vsel %vm3833, 0, %v3832
    %v3835 = vsub.s32 32, %v3834
    %v3836 = vshll.u32 %v3827, %v3834
    %v3837 = vshrl.u32 %v3819, %v3835
    %v3838 = vor.u32 %v3836, %v3837
    %v3839 = vsub.s32 4294967266, %v3834
    %v3840 = vadd.s32 %v3839, 127
    %v3841 = vshll.u32 %v3840, 23
    %v3842 = vor.u32 4788187, %v3841
    %v3843 = vand.u32 2147483647, %v3842
    %v3845 = vcvt.s32.f32 %v3838
    %v3846 = vmul.f32 %v3845, %v3843
    %v3847 = vxor.u32 %v3846, 2147483648
    %v3848 = vsel %vm3765, %v3847, %v3846
    %v3849 = vsub.s32 4, %v3825
    %v3850 = vsel %vm3765, %v3849, %v3825
    %v3851 = vsel %vm3764, %v222, %v3848
    %v3852 = vsel %vm3764, 0, %v3850
    %v3853 = vcosq.f32.pop %v3851
    %v3854 = vsinq.f32.pop %v3851
    %vm3855 = vweird.f32 %v222
    %v3856 = vand.u32 %v3852, 3
    %vm3857 = vcmp.lt.s32.totalorder %v3856, 2
    %vm3858 = vcmp.eq.s32.totalorder %v3856, 0
    %v3859 = vxor.u32 %v3854, 2147483648
    %v3860 = vsel %vm3858, %v3853, %v3859
    %vm3861 = vcmp.eq.s32.totalorder %v3856, 2
    %v3862 = vxor.u32 %v3853, 2147483648
    %v3863 = vsel %vm3861, %v3862, %v3854
    %v3864 = vsel %vm3857, %v3860, %v3863
    %v3865 = vsel %vm3855, nan, %v3864
    %v3866 = vand.u32 2147483647, %v223
    %vm3867 = vcmp.le.f32.partialorder %v3866, 0.7853982
    %vm3868 = vcmp.lt.s32.totalorder %v223, 0
    %v3869 = vand.u32 %v223, 2139095040
    %v3870 = vshrl.u32 %v3869, 23
    %v3871 = vsub.s32 %v3870, 127
    %v3872 = vand.u32 2147483647, %v223
    %v3873 = vand.u32 %v3872, 8388607
    %v3874 = vor.u32 %v3873, 8388608
    %v3875 = vsub.s32 0, %v3874
    %v3876 = vadd.s32 %v3871, 1
    %vm3877 = vcmp.gt.s32.totalorder %v3876, 0
    %v3878 = vsel %vm3877, %v3876, 0
    %v3879 = vshrl.u32 %v3878, 5
    %v3880 = vand.u32 %v3878, 31
    %v3881 = vsub.s32 32, %v3880
    %v3882 = vshrl.u32 683565275, %v3881
    %v3883 = vshll.u32 683565275, %v3880
    %v3884 = vshrl.u32 2475754826, %v3881
    %v3885 = vor.u32 %v3883, %v3884
    %v3886 = vshll.u32 2475754826, %v3880
    %v3887 = vshrl.u32 2131351028, %v3881
    %v3888 = vor.u32 %v3886, %v3887
    %v3889 = vshll.u32 2131351028, %v3880
    %v3890 = vshrl.u32 2102212464, %v3881
    %v3891 = vor.u32 %v3889, %v3890
    %v3892 = vshll.u32 2102212464, %v3880
    %v3893 = vshrl.u32 920167782, %v3881
    %v3894 = vor.u32 %v3892, %v3893
    %v3895 = vshll.u32 920167782, %v3880
    %v3896 = vshrl.u32 1326507024, %v3881
    %v3897 = vor.u32 %v3895, %v3896
    %vm3898 = vcmp.lt.s32.totalorder %v3879, 1
    %vm3899 = vcmp.lt.s32.totalorder %v3879, 2
    %vm3900 = vcmp.lt.s32.totalorder %v3879, 3
    %vm3901 = vcmp.lt.s32.totalorder %v3879, 4
    %v3902 = vsel %vm3898, %v3882, %v3885
    %v3903 = vsel %vm3901, %v3891, 2102212464
    %v3904 = vsel %vm3900, %v3888, %v3903
    %v3905 = vsel %vm3899, %v3902, %v3904
    %v3906 = vsel %vm3898, %v3885, %v3888
    %v3907 = vsel %vm3901, %v3894, 920167782
    %v3908 = vsel %vm3900, %v3891, %v3907
    %v3909 = vsel %vm3899, %v3906, %v3908
    %v3910 = vsel %vm3898, %v3888, %v3891
    %v3911 = vsel %vm3901, %v3897, 1326507024
    %v3912 = vsel %vm3900, %v3894, %v3911
    %v3913 = vsel %vm3899, %v3910, %v3912
    %v3914 = vshll.u32 %v3874, 8
    %v3915 = vmul.u32.u64.compose %v3914, %v3913
    %v3916 = vextract.low.u32 %v3915
    %v3917 = vextract.high.u32 %v3915
    %v3918 = vmul.u32.u64.compose %v3914, %v3909
    %v3919 = vextract.low.u32 %v3918
    %v3920 = vextract.high.u32 %v3918
    %v3921 = vmul.u32 %v3914, %v3905
    %v3922 = vadd.s32 %v3917, %v3919
    %vm3923 = vc.u32 %v3917, %v3919
    %v3924 = vadd.s32 %v3920, 1
    %v3925 = vsel %vm3923, %v3924, %v3920
    %v3926 = vadd.s32 %v3921, %v3925
    %v3927 = vadd.s32 %v3926, 536870912
    %v3928 = vshrl.u32 %v3927, 30
    %v3929 = vshll.u32 %v3928, 30
    %v3930 = vsub.s32 %v3926, %v3929
    %vm3931 = vcmp.lt.s32.totalorder %v3930, 0
    %v3932 = vsub.s32 0, %v3930
    %v3933 = vsel %vm3931, %v3932, %v3930
    %v3934 = vclz %v3933
    %v3935 = vsub.s32 %v3934, 2
    %vm3936 = vcmp.gt.s32.totalorder 0, %v3935
    %v3937 = vsel %vm3936, 0, %v3935
    %v3938 = vsub.s32 32, %v3937
    %v3939 = vshll.u32 %v3930, %v3937
    %v3940 = vshrl.u32 %v3922, %v3938
    %v3941 = vor.u32 %v3939, %v3940
    %v3942 = vsub.s32 4294967266, %v3937
    %v3943 = vadd.s32 %v3942, 127
    %v3944 = vshll.u32 %v3943, 23
    %v3945 = vor.u32 4788187, %v3944
    %v3946 = vand.u32 2147483647, %v3945
    %v3948 = vcvt.s32.f32 %v3941
    %v3949 = vmul.f32 %v3948, %v3946
    %v3950 = vxor.u32 %v3949, 2147483648
    %v3951 = vsel %vm3868, %v3950, %v3949
    %v3952 = vsub.s32 4, %v3928
    %v3953 = vsel %vm3868, %v3952, %v3928
    %v3954 = vsel %vm3867, %v223, %v3951
    %v3955 = vsel %vm3867, 0, %v3953
    %v3956 = vcosq.f32.pop %v3954
    %v3957 = vsinq.f32.pop %v3954
    %vm3958 = vweird.f32 %v223
    %v3959 = vand.u32 %v3955, 3
    %vm3960 = vcmp.lt.s32.totalorder %v3959, 2
    %vm3961 = vcmp.eq.s32.totalorder %v3959, 0
    %v3962 = vxor.u32 %v3957, 2147483648
    %v3963 = vsel %vm3961, %v3956, %v3962
    %vm3964 = vcmp.eq.s32.totalorder %v3959, 2
    %v3965 = vxor.u32 %v3956, 2147483648
    %v3966 = vsel %vm3964, %v3965, %v3957
    %v3967 = vsel %vm3960, %v3963, %v3966
    %v3968 = vsel %vm3958, nan, %v3967
    %v3969 = vand.u32 2147483647, %v225
    %vm3970 = vcmp.le.f32.partialorder %v3969, 0.7853982
    %vm3971 = vcmp.lt.s32.totalorder %v225, 0
    %v3972 = vand.u32 %v225, 2139095040
    %v3973 = vshrl.u32 %v3972, 23
    %v3974 = vsub.s32 %v3973, 127
    %v3975 = vand.u32 2147483647, %v225
    %v3976 = vand.u32 %v3975, 8388607
    %v3977 = vor.u32 %v3976, 8388608
    %v3978 = vsub.s32 0, %v3977
    %v3979 = vadd.s32 %v3974, 1
    %vm3980 = vcmp.gt.s32.totalorder %v3979, 0
    %v3981 = vsel %vm3980, %v3979, 0
    %v3982 = vshrl.u32 %v3981, 5
    %v3983 = vand.u32 %v3981, 31
    %v3984 = vsub.s32 32, %v3983
    %v3985 = vshrl.u32 683565275, %v3984
    %v3986 = vshll.u32 683565275, %v3983
    %v3987 = vshrl.u32 2475754826, %v3984
    %v3988 = vor.u32 %v3986, %v3987
    %v3989 = vshll.u32 2475754826, %v3983
    %v3990 = vshrl.u32 2131351028, %v3984
    %v3991 = vor.u32 %v3989, %v3990
    %v3992 = vshll.u32 2131351028, %v3983
    %v3993 = vshrl.u32 2102212464, %v3984
    %v3994 = vor.u32 %v3992, %v3993
    %v3995 = vshll.u32 2102212464, %v3983
    %v3996 = vshrl.u32 920167782, %v3984
    %v3997 = vor.u32 %v3995, %v3996
    %v3998 = vshll.u32 920167782, %v3983
    %v3999 = vshrl.u32 1326507024, %v3984
    %v4000 = vor.u32 %v3998, %v3999
    %vm4001 = vcmp.lt.s32.totalorder %v3982, 1
    %vm4002 = vcmp.lt.s32.totalorder %v3982, 2
    %vm4003 = vcmp.lt.s32.totalorder %v3982, 3
    %vm4004 = vcmp.lt.s32.totalorder %v3982, 4
    %v4005 = vsel %vm4001, %v3985, %v3988
    %v4006 = vsel %vm4004, %v3994, 2102212464
    %v4007 = vsel %vm4003, %v3991, %v4006
    %v4008 = vsel %vm4002, %v4005, %v4007
    %v4009 = vsel %vm4001, %v3988, %v3991
    %v4010 = vsel %vm4004, %v3997, 920167782
    %v4011 = vsel %vm4003, %v3994, %v4010
    %v4012 = vsel %vm4002, %v4009, %v4011
    %v4013 = vsel %vm4001, %v3991, %v3994
    %v4014 = vsel %vm4004, %v4000, 1326507024
    %v4015 = vsel %vm4003, %v3997, %v4014
    %v4016 = vsel %vm4002, %v4013, %v4015
    %v4017 = vshll.u32 %v3977, 8
    %v4018 = vmul.u32.u64.compose %v4017, %v4016
    %v4019 = vextract.low.u32 %v4018
    %v4020 = vextract.high.u32 %v4018
    %v4021 = vmul.u32.u64.compose %v4017, %v4012
    %v4022 = vextract.low.u32 %v4021
    %v4023 = vextract.high.u32 %v4021
    %v4024 = vmul.u32 %v4017, %v4008
    %v4025 = vadd.s32 %v4020, %v4022
    %vm4026 = vc.u32 %v4020, %v4022
    %v4027 = vadd.s32 %v4023, 1
    %v4028 = vsel %vm4026, %v4027, %v4023
    %v4029 = vadd.s32 %v4024, %v4028
    %v4030 = vadd.s32 %v4029, 536870912
    %v4031 = vshrl.u32 %v4030, 30
    %v4032 = vshll.u32 %v4031, 30
    %v4033 = vsub.s32 %v4029, %v4032
    %vm4034 = vcmp.lt.s32.totalorder %v4033, 0
    %v4035 = vsub.s32 0, %v4033
    %v4036 = vsel %vm4034, %v4035, %v4033
    %v4037 = vclz %v4036
    %v4038 = vsub.s32 %v4037, 2
    %vm4039 = vcmp.gt.s32.totalorder 0, %v4038
    %v4040 = vsel %vm4039, 0, %v4038
    %v4041 = vsub.s32 32, %v4040
    %v4042 = vshll.u32 %v4033, %v4040
    %v4043 = vshrl.u32 %v4025, %v4041
    %v4044 = vor.u32 %v4042, %v4043
    %v4045 = vsub.s32 4294967266, %v4040
    %v4046 = vadd.s32 %v4045, 127
    %v4047 = vshll.u32 %v4046, 23
    %v4048 = vor.u32 4788187, %v4047
    %v4049 = vand.u32 2147483647, %v4048
    %v4051 = vcvt.s32.f32 %v4044
    %v4052 = vmul.f32 %v4051, %v4049
    %v4053 = vxor.u32 %v4052, 2147483648
    %v4054 = vsel %vm3971, %v4053, %v4052
    %v4055 = vsub.s32 4, %v4031
    %v4056 = vsel %vm3971, %v4055, %v4031
    %v4057 = vsel %vm3970, %v225, %v4054
    %v4058 = vsel %vm3970, 0, %v4056
    %v4059 = vcosq.f32.pop %v4057
    %v4060 = vsinq.f32.pop %v4057
    %vm4061 = vweird.f32 %v225
    %v4062 = vand.u32 %v4058, 3
    %vm4063 = vcmp.lt.s32.totalorder %v4062, 2
    %vm4064 = vcmp.eq.s32.totalorder %v4062, 0
    %v4065 = vxor.u32 %v4060, 2147483648
    %v4066 = vsel %vm4064, %v4059, %v4065
    %vm4067 = vcmp.eq.s32.totalorder %v4062, 2
    %v4068 = vxor.u32 %v4059, 2147483648
    %v4069 = vsel %vm4067, %v4068, %v4060
    %v4070 = vsel %vm4063, %v4066, %v4069
    %v4071 = vsel %vm4061, nan, %v4070
    %v4072 = vand.u32 2147483647, %v226
    %vm4073 = vcmp.le.f32.partialorder %v4072, 0.7853982
    %vm4074 = vcmp.lt.s32.totalorder %v226, 0
    %v4075 = vand.u32 %v226, 2139095040
    %v4076 = vshrl.u32 %v4075, 23
    %v4077 = vsub.s32 %v4076, 127
    %v4078 = vand.u32 2147483647, %v226
    %v4079 = vand.u32 %v4078, 8388607
    %v4080 = vor.u32 %v4079, 8388608
    %v4081 = vsub.s32 0, %v4080
    %v4082 = vadd.s32 %v4077, 1
    %vm4083 = vcmp.gt.s32.totalorder %v4082, 0
    %v4084 = vsel %vm4083, %v4082, 0
    %v4085 = vshrl.u32 %v4084, 5
    %v4086 = vand.u32 %v4084, 31
    %v4087 = vsub.s32 32, %v4086
    %v4088 = vshrl.u32 683565275, %v4087
    %v4089 = vshll.u32 683565275, %v4086
    %v4090 = vshrl.u32 2475754826, %v4087
    %v4091 = vor.u32 %v4089, %v4090
    %v4092 = vshll.u32 2475754826, %v4086
    %v4093 = vshrl.u32 2131351028, %v4087
    %v4094 = vor.u32 %v4092, %v4093
    %v4095 = vshll.u32 2131351028, %v4086
    %v4096 = vshrl.u32 2102212464, %v4087
    %v4097 = vor.u32 %v4095, %v4096
    %v4098 = vshll.u32 2102212464, %v4086
    %v4099 = vshrl.u32 920167782, %v4087
    %v4100 = vor.u32 %v4098, %v4099
    %v4101 = vshll.u32 920167782, %v4086
    %v4102 = vshrl.u32 1326507024, %v4087
    %v4103 = vor.u32 %v4101, %v4102
    %vm4104 = vcmp.lt.s32.totalorder %v4085, 1
    %vm4105 = vcmp.lt.s32.totalorder %v4085, 2
    %vm4106 = vcmp.lt.s32.totalorder %v4085, 3
    %vm4107 = vcmp.lt.s32.totalorder %v4085, 4
    %v4108 = vsel %vm4104, %v4088, %v4091
    %v4109 = vsel %vm4107, %v4097, 2102212464
    %v4110 = vsel %vm4106, %v4094, %v4109
    %v4111 = vsel %vm4105, %v4108, %v4110
    %v4112 = vsel %vm4104, %v4091, %v4094
    %v4113 = vsel %vm4107, %v4100, 920167782
    %v4114 = vsel %vm4106, %v4097, %v4113
    %v4115 = vsel %vm4105, %v4112, %v4114
    %v4116 = vsel %vm4104, %v4094, %v4097
    %v4117 = vsel %vm4107, %v4103, 1326507024
    %v4118 = vsel %vm4106, %v4100, %v4117
    %v4119 = vsel %vm4105, %v4116, %v4118
    %v4120 = vshll.u32 %v4080, 8
    %v4121 = vmul.u32.u64.compose %v4120, %v4119
    %v4122 = vextract.low.u32 %v4121
    %v4123 = vextract.high.u32 %v4121
    %v4124 = vmul.u32.u64.compose %v4120, %v4115
    %v4125 = vextract.low.u32 %v4124
    %v4126 = vextract.high.u32 %v4124
    %v4127 = vmul.u32 %v4120, %v4111
    %v4128 = vadd.s32 %v4123, %v4125
    %vm4129 = vc.u32 %v4123, %v4125
    %v4130 = vadd.s32 %v4126, 1
    %v4131 = vsel %vm4129, %v4130, %v4126
    %v4132 = vadd.s32 %v4127, %v4131
    %v4133 = vadd.s32 %v4132, 536870912
    %v4134 = vshrl.u32 %v4133, 30
    %v4135 = vshll.u32 %v4134, 30
    %v4136 = vsub.s32 %v4132, %v4135
    %vm4137 = vcmp.lt.s32.totalorder %v4136, 0
    %v4138 = vsub.s32 0, %v4136
    %v4139 = vsel %vm4137, %v4138, %v4136
    %v4140 = vclz %v4139
    %v4141 = vsub.s32 %v4140, 2
    %vm4142 = vcmp.gt.s32.totalorder 0, %v4141
    %v4143 = vsel %vm4142, 0, %v4141
    %v4144 = vsub.s32 32, %v4143
    %v4145 = vshll.u32 %v4136, %v4143
    %v4146 = vshrl.u32 %v4128, %v4144
    %v4147 = vor.u32 %v4145, %v4146
    %v4148 = vsub.s32 4294967266, %v4143
    %v4149 = vadd.s32 %v4148, 127
    %v4150 = vshll.u32 %v4149, 23
    %v4151 = vor.u32 4788187, %v4150
    %v4152 = vand.u32 2147483647, %v4151
    %v4154 = vcvt.s32.f32 %v4147
    %v4155 = vmul.f32 %v4154, %v4152
    %v4156 = vxor.u32 %v4155, 2147483648
    %v4157 = vsel %vm4074, %v4156, %v4155
    %v4158 = vsub.s32 4, %v4134
    %v4159 = vsel %vm4074, %v4158, %v4134
    %v4160 = vsel %vm4073, %v226, %v4157
    %v4161 = vsel %vm4073, 0, %v4159
    %v4162 = vcosq.f32.pop %v4160
    %v4163 = vsinq.f32.pop %v4160
    %vm4164 = vweird.f32 %v226
    %v4165 = vand.u32 %v4161, 3
    %vm4166 = vcmp.lt.s32.totalorder %v4165, 2
    %vm4167 = vcmp.eq.s32.totalorder %v4165, 0
    %v4168 = vxor.u32 %v4163, 2147483648
    %v4169 = vsel %vm4167, %v4162, %v4168
    %vm4170 = vcmp.eq.s32.totalorder %v4165, 2
    %v4171 = vxor.u32 %v4162, 2147483648
    %v4172 = vsel %vm4170, %v4171, %v4163
    %v4173 = vsel %vm4166, %v4169, %v4172
    %v4174 = vsel %vm4164, nan, %v4173
    %v4175 = vand.u32 2147483647, %v227
    %vm4176 = vcmp.le.f32.partialorder %v4175, 0.7853982
    %vm4177 = vcmp.lt.s32.totalorder %v227, 0
    %v4178 = vand.u32 %v227, 2139095040
    %v4179 = vshrl.u32 %v4178, 23
    %v4180 = vsub.s32 %v4179, 127
    %v4181 = vand.u32 2147483647, %v227
    %v4182 = vand.u32 %v4181, 8388607
    %v4183 = vor.u32 %v4182, 8388608
    %v4184 = vsub.s32 0, %v4183
    %v4185 = vadd.s32 %v4180, 1
    %vm4186 = vcmp.gt.s32.totalorder %v4185, 0
    %v4187 = vsel %vm4186, %v4185, 0
    %v4188 = vshrl.u32 %v4187, 5
    %v4189 = vand.u32 %v4187, 31
    %v4190 = vsub.s32 32, %v4189
    %v4191 = vshrl.u32 683565275, %v4190
    %v4192 = vshll.u32 683565275, %v4189
    %v4193 = vshrl.u32 2475754826, %v4190
    %v4194 = vor.u32 %v4192, %v4193
    %v4195 = vshll.u32 2475754826, %v4189
    %v4196 = vshrl.u32 2131351028, %v4190
    %v4197 = vor.u32 %v4195, %v4196
    %v4198 = vshll.u32 2131351028, %v4189
    %v4199 = vshrl.u32 2102212464, %v4190
    %v4200 = vor.u32 %v4198, %v4199
    %v4201 = vshll.u32 2102212464, %v4189
    %v4202 = vshrl.u32 920167782, %v4190
    %v4203 = vor.u32 %v4201, %v4202
    %v4204 = vshll.u32 920167782, %v4189
    %v4205 = vshrl.u32 1326507024, %v4190
    %v4206 = vor.u32 %v4204, %v4205
    %vm4207 = vcmp.lt.s32.totalorder %v4188, 1
    %vm4208 = vcmp.lt.s32.totalorder %v4188, 2
    %vm4209 = vcmp.lt.s32.totalorder %v4188, 3
    %vm4210 = vcmp.lt.s32.totalorder %v4188, 4
    %v4211 = vsel %vm4207, %v4191, %v4194
    %v4212 = vsel %vm4210, %v4200, 2102212464
    %v4213 = vsel %vm4209, %v4197, %v4212
    %v4214 = vsel %vm4208, %v4211, %v4213
    %v4215 = vsel %vm4207, %v4194, %v4197
    %v4216 = vsel %vm4210, %v4203, 920167782
    %v4217 = vsel %vm4209, %v4200, %v4216
    %v4218 = vsel %vm4208, %v4215, %v4217
    %v4219 = vsel %vm4207, %v4197, %v4200
    %v4220 = vsel %vm4210, %v4206, 1326507024
    %v4221 = vsel %vm4209, %v4203, %v4220
    %v4222 = vsel %vm4208, %v4219, %v4221
    %v4223 = vshll.u32 %v4183, 8
    %v4224 = vmul.u32.u64.compose %v4223, %v4222
    %v4225 = vextract.low.u32 %v4224
    %v4226 = vextract.high.u32 %v4224
    %v4227 = vmul.u32.u64.compose %v4223, %v4218
    %v4228 = vextract.low.u32 %v4227
    %v4229 = vextract.high.u32 %v4227
    %v4230 = vmul.u32 %v4223, %v4214
    %v4231 = vadd.s32 %v4226, %v4228
    %vm4232 = vc.u32 %v4226, %v4228
    %v4233 = vadd.s32 %v4229, 1
    %v4234 = vsel %vm4232, %v4233, %v4229
    %v4235 = vadd.s32 %v4230, %v4234
    %v4236 = vadd.s32 %v4235, 536870912
    %v4237 = vshrl.u32 %v4236, 30
    %v4238 = vshll.u32 %v4237, 30
    %v4239 = vsub.s32 %v4235, %v4238
    %vm4240 = vcmp.lt.s32.totalorder %v4239, 0
    %v4241 = vsub.s32 0, %v4239
    %v4242 = vsel %vm4240, %v4241, %v4239
    %v4243 = vclz %v4242
    %v4244 = vsub.s32 %v4243, 2
    %vm4245 = vcmp.gt.s32.totalorder 0, %v4244
    %v4246 = vsel %vm4245, 0, %v4244
    %v4247 = vsub.s32 32, %v4246
    %v4248 = vshll.u32 %v4239, %v4246
    %v4249 = vshrl.u32 %v4231, %v4247
    %v4250 = vor.u32 %v4248, %v4249
    %v4251 = vsub.s32 4294967266, %v4246
    %v4252 = vadd.s32 %v4251, 127
    %v4253 = vshll.u32 %v4252, 23
    %v4254 = vor.u32 4788187, %v4253
    %v4255 = vand.u32 2147483647, %v4254
    %v4257 = vcvt.s32.f32 %v4250
    %v4258 = vmul.f32 %v4257, %v4255
    %v4259 = vxor.u32 %v4258, 2147483648
    %v4260 = vsel %vm4177, %v4259, %v4258
    %v4261 = vsub.s32 4, %v4237
    %v4262 = vsel %vm4177, %v4261, %v4237
    %v4263 = vsel %vm4176, %v227, %v4260
    %v4264 = vsel %vm4176, 0, %v4262
    %v4265 = vcosq.f32.pop %v4263
    %v4266 = vsinq.f32.pop %v4263
    %vm4267 = vweird.f32 %v227
    %v4268 = vand.u32 %v4264, 3
    %vm4269 = vcmp.lt.s32.totalorder %v4268, 2
    %vm4270 = vcmp.eq.s32.totalorder %v4268, 0
    %v4271 = vxor.u32 %v4266, 2147483648
    %v4272 = vsel %vm4270, %v4265, %v4271
    %vm4273 = vcmp.eq.s32.totalorder %v4268, 2
    %v4274 = vxor.u32 %v4265, 2147483648
    %v4275 = vsel %vm4273, %v4274, %v4266
    %v4276 = vsel %vm4269, %v4272, %v4275
    %v4277 = vsel %vm4267, nan, %v4276
    %v4278 = vand.u32 2147483647, %v228
    %vm4279 = vcmp.le.f32.partialorder %v4278, 0.7853982
    %vm4280 = vcmp.lt.s32.totalorder %v228, 0
    %v4281 = vand.u32 %v228, 2139095040
    %v4282 = vshrl.u32 %v4281, 23
    %v4283 = vsub.s32 %v4282, 127
    %v4284 = vand.u32 2147483647, %v228
    %v4285 = vand.u32 %v4284, 8388607
    %v4286 = vor.u32 %v4285, 8388608
    %v4287 = vsub.s32 0, %v4286
    %v4288 = vadd.s32 %v4283, 1
    %vm4289 = vcmp.gt.s32.totalorder %v4288, 0
    %v4290 = vsel %vm4289, %v4288, 0
    %v4291 = vshrl.u32 %v4290, 5
    %v4292 = vand.u32 %v4290, 31
    %v4293 = vsub.s32 32, %v4292
    %v4294 = vshrl.u32 683565275, %v4293
    %v4295 = vshll.u32 683565275, %v4292
    %v4296 = vshrl.u32 2475754826, %v4293
    %v4297 = vor.u32 %v4295, %v4296
    %v4298 = vshll.u32 2475754826, %v4292
    %v4299 = vshrl.u32 2131351028, %v4293
    %v4300 = vor.u32 %v4298, %v4299
    %v4301 = vshll.u32 2131351028, %v4292
    %v4302 = vshrl.u32 2102212464, %v4293
    %v4303 = vor.u32 %v4301, %v4302
    %v4304 = vshll.u32 2102212464, %v4292
    %v4305 = vshrl.u32 920167782, %v4293
    %v4306 = vor.u32 %v4304, %v4305
    %v4307 = vshll.u32 920167782, %v4292
    %v4308 = vshrl.u32 1326507024, %v4293
    %v4309 = vor.u32 %v4307, %v4308
    %vm4310 = vcmp.lt.s32.totalorder %v4291, 1
    %vm4311 = vcmp.lt.s32.totalorder %v4291, 2
    %vm4312 = vcmp.lt.s32.totalorder %v4291, 3
    %vm4313 = vcmp.lt.s32.totalorder %v4291, 4
    %v4314 = vsel %vm4310, %v4294, %v4297
    %v4315 = vsel %vm4313, %v4303, 2102212464
    %v4316 = vsel %vm4312, %v4300, %v4315
    %v4317 = vsel %vm4311, %v4314, %v4316
    %v4318 = vsel %vm4310, %v4297, %v4300
    %v4319 = vsel %vm4313, %v4306, 920167782
    %v4320 = vsel %vm4312, %v4303, %v4319
    %v4321 = vsel %vm4311, %v4318, %v4320
    %v4322 = vsel %vm4310, %v4300, %v4303
    %v4323 = vsel %vm4313, %v4309, 1326507024
    %v4324 = vsel %vm4312, %v4306, %v4323
    %v4325 = vsel %vm4311, %v4322, %v4324
    %v4326 = vshll.u32 %v4286, 8
    %v4327 = vmul.u32.u64.compose %v4326, %v4325
    %v4328 = vextract.low.u32 %v4327
    %v4329 = vextract.high.u32 %v4327
    %v4330 = vmul.u32.u64.compose %v4326, %v4321
    %v4331 = vextract.low.u32 %v4330
    %v4332 = vextract.high.u32 %v4330
    %v4333 = vmul.u32 %v4326, %v4317
    %v4334 = vadd.s32 %v4329, %v4331
    %vm4335 = vc.u32 %v4329, %v4331
    %v4336 = vadd.s32 %v4332, 1
    %v4337 = vsel %vm4335, %v4336, %v4332
    %v4338 = vadd.s32 %v4333, %v4337
    %v4339 = vadd.s32 %v4338, 536870912
    %v4340 = vshrl.u32 %v4339, 30
    %v4341 = vshll.u32 %v4340, 30
    %v4342 = vsub.s32 %v4338, %v4341
    %vm4343 = vcmp.lt.s32.totalorder %v4342, 0
    %v4344 = vsub.s32 0, %v4342
    %v4345 = vsel %vm4343, %v4344, %v4342
    %v4346 = vclz %v4345
    %v4347 = vsub.s32 %v4346, 2
    %vm4348 = vcmp.gt.s32.totalorder 0, %v4347
    %v4349 = vsel %vm4348, 0, %v4347
    %v4350 = vsub.s32 32, %v4349
    %v4351 = vshll.u32 %v4342, %v4349
    %v4352 = vshrl.u32 %v4334, %v4350
    %v4353 = vor.u32 %v4351, %v4352
    %v4354 = vsub.s32 4294967266, %v4349
    %v4355 = vadd.s32 %v4354, 127
    %v4356 = vshll.u32 %v4355, 23
    %v4357 = vor.u32 4788187, %v4356
    %v4358 = vand.u32 2147483647, %v4357
    %v4360 = vcvt.s32.f32 %v4353
    %v4361 = vmul.f32 %v4360, %v4358
    %v4362 = vxor.u32 %v4361, 2147483648
    %v4363 = vsel %vm4280, %v4362, %v4361
    %v4364 = vsub.s32 4, %v4340
    %v4365 = vsel %vm4280, %v4364, %v4340
    %v4366 = vsel %vm4279, %v228, %v4363
    %v4367 = vsel %vm4279, 0, %v4365
    %v4368 = vcosq.f32.pop %v4366
    %v4369 = vsinq.f32.pop %v4366
    %vm4370 = vweird.f32 %v228
    %v4371 = vand.u32 %v4367, 3
    %vm4372 = vcmp.lt.s32.totalorder %v4371, 2
    %vm4373 = vcmp.eq.s32.totalorder %v4371, 0
    %v4374 = vxor.u32 %v4369, 2147483648
    %v4375 = vsel %vm4373, %v4368, %v4374
    %vm4376 = vcmp.eq.s32.totalorder %v4371, 2
    %v4377 = vxor.u32 %v4368, 2147483648
    %v4378 = vsel %vm4376, %v4377, %v4369
    %v4379 = vsel %vm4372, %v4375, %v4378
    %v4380 = vsel %vm4370, nan, %v4379
    %v4381 = vand.u32 2147483647, %v229
    %vm4382 = vcmp.le.f32.partialorder %v4381, 0.7853982
    %vm4383 = vcmp.lt.s32.totalorder %v229, 0
    %v4384 = vand.u32 %v229, 2139095040
    %v4385 = vshrl.u32 %v4384, 23
    %v4386 = vsub.s32 %v4385, 127
    %v4387 = vand.u32 2147483647, %v229
    %v4388 = vand.u32 %v4387, 8388607
    %v4389 = vor.u32 %v4388, 8388608
    %v4390 = vsub.s32 0, %v4389
    %v4391 = vadd.s32 %v4386, 1
    %vm4392 = vcmp.gt.s32.totalorder %v4391, 0
    %v4393 = vsel %vm4392, %v4391, 0
    %v4394 = vshrl.u32 %v4393, 5
    %v4395 = vand.u32 %v4393, 31
    %v4396 = vsub.s32 32, %v4395
    %v4397 = vshrl.u32 683565275, %v4396
    %v4398 = vshll.u32 683565275, %v4395
    %v4399 = vshrl.u32 2475754826, %v4396
    %v4400 = vor.u32 %v4398, %v4399
    %v4401 = vshll.u32 2475754826, %v4395
    %v4402 = vshrl.u32 2131351028, %v4396
    %v4403 = vor.u32 %v4401, %v4402
    %v4404 = vshll.u32 2131351028, %v4395
    %v4405 = vshrl.u32 2102212464, %v4396
    %v4406 = vor.u32 %v4404, %v4405
    %v4407 = vshll.u32 2102212464, %v4395
    %v4408 = vshrl.u32 920167782, %v4396
    %v4409 = vor.u32 %v4407, %v4408
    %v4410 = vshll.u32 920167782, %v4395
    %v4411 = vshrl.u32 1326507024, %v4396
    %v4412 = vor.u32 %v4410, %v4411
    %vm4413 = vcmp.lt.s32.totalorder %v4394, 1
    %vm4414 = vcmp.lt.s32.totalorder %v4394, 2
    %vm4415 = vcmp.lt.s32.totalorder %v4394, 3
    %vm4416 = vcmp.lt.s32.totalorder %v4394, 4
    %v4417 = vsel %vm4413, %v4397, %v4400
    %v4418 = vsel %vm4416, %v4406, 2102212464
    %v4419 = vsel %vm4415, %v4403, %v4418
    %v4420 = vsel %vm4414, %v4417, %v4419
    %v4421 = vsel %vm4413, %v4400, %v4403
    %v4422 = vsel %vm4416, %v4409, 920167782
    %v4423 = vsel %vm4415, %v4406, %v4422
    %v4424 = vsel %vm4414, %v4421, %v4423
    %v4425 = vsel %vm4413, %v4403, %v4406
    %v4426 = vsel %vm4416, %v4412, 1326507024
    %v4427 = vsel %vm4415, %v4409, %v4426
    %v4428 = vsel %vm4414, %v4425, %v4427
    %v4429 = vshll.u32 %v4389, 8
    %v4430 = vmul.u32.u64.compose %v4429, %v4428
    %v4431 = vextract.low.u32 %v4430
    %v4432 = vextract.high.u32 %v4430
    %v4433 = vmul.u32.u64.compose %v4429, %v4424
    %v4434 = vextract.low.u32 %v4433
    %v4435 = vextract.high.u32 %v4433
    %v4436 = vmul.u32 %v4429, %v4420
    %v4437 = vadd.s32 %v4432, %v4434
    %vm4438 = vc.u32 %v4432, %v4434
    %v4439 = vadd.s32 %v4435, 1
    %v4440 = vsel %vm4438, %v4439, %v4435
    %v4441 = vadd.s32 %v4436, %v4440
    %v4442 = vadd.s32 %v4441, 536870912
    %v4443 = vshrl.u32 %v4442, 30
    %v4444 = vshll.u32 %v4443, 30
    %v4445 = vsub.s32 %v4441, %v4444
    %vm4446 = vcmp.lt.s32.totalorder %v4445, 0
    %v4447 = vsub.s32 0, %v4445
    %v4448 = vsel %vm4446, %v4447, %v4445
    %v4449 = vclz %v4448
    %v4450 = vsub.s32 %v4449, 2
    %vm4451 = vcmp.gt.s32.totalorder 0, %v4450
    %v4452 = vsel %vm4451, 0, %v4450
    %v4453 = vsub.s32 32, %v4452
    %v4454 = vshll.u32 %v4445, %v4452
    %v4455 = vshrl.u32 %v4437, %v4453
    %v4456 = vor.u32 %v4454, %v4455
    %v4457 = vsub.s32 4294967266, %v4452
    %v4458 = vadd.s32 %v4457, 127
    %v4459 = vshll.u32 %v4458, 23
    %v4460 = vor.u32 4788187, %v4459
    %v4461 = vand.u32 2147483647, %v4460
    %v4463 = vcvt.s32.f32 %v4456
    %v4464 = vmul.f32 %v4463, %v4461
    %v4465 = vxor.u32 %v4464, 2147483648
    %v4466 = vsel %vm4383, %v4465, %v4464
    %v4467 = vsub.s32 4, %v4443
    %v4468 = vsel %vm4383, %v4467, %v4443
    %v4469 = vsel %vm4382, %v229, %v4466
    %v4470 = vsel %vm4382, 0, %v4468
    %v4471 = vcosq.f32.pop %v4469
    %v4472 = vsinq.f32.pop %v4469
    %vm4473 = vweird.f32 %v229
    %v4474 = vand.u32 %v4470, 3
    %vm4475 = vcmp.lt.s32.totalorder %v4474, 2
    %vm4476 = vcmp.eq.s32.totalorder %v4474, 0
    %v4477 = vxor.u32 %v4472, 2147483648
    %v4478 = vsel %vm4476, %v4471, %v4477
    %vm4479 = vcmp.eq.s32.totalorder %v4474, 2
    %v4480 = vxor.u32 %v4471, 2147483648
    %v4481 = vsel %vm4479, %v4480, %v4472
    %v4482 = vsel %vm4475, %v4478, %v4481
    %v4483 = vsel %vm4473, nan, %v4482
    %v4484 = vand.u32 2147483647, %v230
    %vm4485 = vcmp.le.f32.partialorder %v4484, 0.7853982
    %vm4486 = vcmp.lt.s32.totalorder %v230, 0
    %v4487 = vand.u32 %v230, 2139095040
    %v4488 = vshrl.u32 %v4487, 23
    %v4489 = vsub.s32 %v4488, 127
    %v4490 = vand.u32 2147483647, %v230
    %v4491 = vand.u32 %v4490, 8388607
    %v4492 = vor.u32 %v4491, 8388608
    %v4493 = vsub.s32 0, %v4492
    %v4494 = vadd.s32 %v4489, 1
    %vm4495 = vcmp.gt.s32.totalorder %v4494, 0
    %v4496 = vsel %vm4495, %v4494, 0
    %v4497 = vshrl.u32 %v4496, 5
    %v4498 = vand.u32 %v4496, 31
    %v4499 = vsub.s32 32, %v4498
    %v4500 = vshrl.u32 683565275, %v4499
    %v4501 = vshll.u32 683565275, %v4498
    %v4502 = vshrl.u32 2475754826, %v4499
    %v4503 = vor.u32 %v4501, %v4502
    %v4504 = vshll.u32 2475754826, %v4498
    %v4505 = vshrl.u32 2131351028, %v4499
    %v4506 = vor.u32 %v4504, %v4505
    %v4507 = vshll.u32 2131351028, %v4498
    %v4508 = vshrl.u32 2102212464, %v4499
    %v4509 = vor.u32 %v4507, %v4508
    %v4510 = vshll.u32 2102212464, %v4498
    %v4511 = vshrl.u32 920167782, %v4499
    %v4512 = vor.u32 %v4510, %v4511
    %v4513 = vshll.u32 920167782, %v4498
    %v4514 = vshrl.u32 1326507024, %v4499
    %v4515 = vor.u32 %v4513, %v4514
    %vm4516 = vcmp.lt.s32.totalorder %v4497, 1
    %vm4517 = vcmp.lt.s32.totalorder %v4497, 2
    %vm4518 = vcmp.lt.s32.totalorder %v4497, 3
    %vm4519 = vcmp.lt.s32.totalorder %v4497, 4
    %v4520 = vsel %vm4516, %v4500, %v4503
    %v4521 = vsel %vm4519, %v4509, 2102212464
    %v4522 = vsel %vm4518, %v4506, %v4521
    %v4523 = vsel %vm4517, %v4520, %v4522
    %v4524 = vsel %vm4516, %v4503, %v4506
    %v4525 = vsel %vm4519, %v4512, 920167782
    %v4526 = vsel %vm4518, %v4509, %v4525
    %v4527 = vsel %vm4517, %v4524, %v4526
    %v4528 = vsel %vm4516, %v4506, %v4509
    %v4529 = vsel %vm4519, %v4515, 1326507024
    %v4530 = vsel %vm4518, %v4512, %v4529
    %v4531 = vsel %vm4517, %v4528, %v4530
    %v4532 = vshll.u32 %v4492, 8
    %v4533 = vmul.u32.u64.compose %v4532, %v4531
    %v4534 = vextract.low.u32 %v4533
    %v4535 = vextract.high.u32 %v4533
    %v4536 = vmul.u32.u64.compose %v4532, %v4527
    %v4537 = vextract.low.u32 %v4536
    %v4538 = vextract.high.u32 %v4536
    %v4539 = vmul.u32 %v4532, %v4523
    %v4540 = vadd.s32 %v4535, %v4537
    %vm4541 = vc.u32 %v4535, %v4537
    %v4542 = vadd.s32 %v4538, 1
    %v4543 = vsel %vm4541, %v4542, %v4538
    %v4544 = vadd.s32 %v4539, %v4543
    %v4545 = vadd.s32 %v4544, 536870912
    %v4546 = vshrl.u32 %v4545, 30
    %v4547 = vshll.u32 %v4546, 30
    %v4548 = vsub.s32 %v4544, %v4547
    %vm4549 = vcmp.lt.s32.totalorder %v4548, 0
    %v4550 = vsub.s32 0, %v4548
    %v4551 = vsel %vm4549, %v4550, %v4548
    %v4552 = vclz %v4551
    %v4553 = vsub.s32 %v4552, 2
    %vm4554 = vcmp.gt.s32.totalorder 0, %v4553
    %v4555 = vsel %vm4554, 0, %v4553
    %v4556 = vsub.s32 32, %v4555
    %v4557 = vshll.u32 %v4548, %v4555
    %v4558 = vshrl.u32 %v4540, %v4556
    %v4559 = vor.u32 %v4557, %v4558
    %v4560 = vsub.s32 4294967266, %v4555
    %v4561 = vadd.s32 %v4560, 127
    %v4562 = vshll.u32 %v4561, 23
    %v4563 = vor.u32 4788187, %v4562
    %v4564 = vand.u32 2147483647, %v4563
    %v4566 = vcvt.s32.f32 %v4559
    %v4567 = vmul.f32 %v4566, %v4564
    %v4568 = vxor.u32 %v4567, 2147483648
    %v4569 = vsel %vm4486, %v4568, %v4567
    %v4570 = vsub.s32 4, %v4546
    %v4571 = vsel %vm4486, %v4570, %v4546
    %v4572 = vsel %vm4485, %v230, %v4569
    %v4573 = vsel %vm4485, 0, %v4571
    %v4574 = vcosq.f32.pop %v4572
    %v4575 = vsinq.f32.pop %v4572
    %vm4576 = vweird.f32 %v230
    %v4577 = vand.u32 %v4573, 3
    %vm4578 = vcmp.lt.s32.totalorder %v4577, 2
    %vm4579 = vcmp.eq.s32.totalorder %v4577, 0
    %v4580 = vxor.u32 %v4575, 2147483648
    %v4581 = vsel %vm4579, %v4574, %v4580
    %vm4582 = vcmp.eq.s32.totalorder %v4577, 2
    %v4583 = vxor.u32 %v4574, 2147483648
    %v4584 = vsel %vm4582, %v4583, %v4575
    %v4585 = vsel %vm4578, %v4581, %v4584
    %v4586 = vsel %vm4576, nan, %v4585
    %v4587 = vand.u32 2147483647, %v231
    %vm4588 = vcmp.le.f32.partialorder %v4587, 0.7853982
    %vm4589 = vcmp.lt.s32.totalorder %v231, 0
    %v4590 = vand.u32 %v231, 2139095040
    %v4591 = vshrl.u32 %v4590, 23
    %v4592 = vsub.s32 %v4591, 127
    %v4593 = vand.u32 2147483647, %v231
    %v4594 = vand.u32 %v4593, 8388607
    %v4595 = vor.u32 %v4594, 8388608
    %v4596 = vsub.s32 0, %v4595
    %v4597 = vadd.s32 %v4592, 1
    %vm4598 = vcmp.gt.s32.totalorder %v4597, 0
    %v4599 = vsel %vm4598, %v4597, 0
    %v4600 = vshrl.u32 %v4599, 5
    %v4601 = vand.u32 %v4599, 31
    %v4602 = vsub.s32 32, %v4601
    %v4603 = vshrl.u32 683565275, %v4602
    %v4604 = vshll.u32 683565275, %v4601
    %v4605 = vshrl.u32 2475754826, %v4602
    %v4606 = vor.u32 %v4604, %v4605
    %v4607 = vshll.u32 2475754826, %v4601
    %v4608 = vshrl.u32 2131351028, %v4602
    %v4609 = vor.u32 %v4607, %v4608
    %v4610 = vshll.u32 2131351028, %v4601
    %v4611 = vshrl.u32 2102212464, %v4602
    %v4612 = vor.u32 %v4610, %v4611
    %v4613 = vshll.u32 2102212464, %v4601
    %v4614 = vshrl.u32 920167782, %v4602
    %v4615 = vor.u32 %v4613, %v4614
    %v4616 = vshll.u32 920167782, %v4601
    %v4617 = vshrl.u32 1326507024, %v4602
    %v4618 = vor.u32 %v4616, %v4617
    %vm4619 = vcmp.lt.s32.totalorder %v4600, 1
    %vm4620 = vcmp.lt.s32.totalorder %v4600, 2
    %vm4621 = vcmp.lt.s32.totalorder %v4600, 3
    %vm4622 = vcmp.lt.s32.totalorder %v4600, 4
    %v4623 = vsel %vm4619, %v4603, %v4606
    %v4624 = vsel %vm4622, %v4612, 2102212464
    %v4625 = vsel %vm4621, %v4609, %v4624
    %v4626 = vsel %vm4620, %v4623, %v4625
    %v4627 = vsel %vm4619, %v4606, %v4609
    %v4628 = vsel %vm4622, %v4615, 920167782
    %v4629 = vsel %vm4621, %v4612, %v4628
    %v4630 = vsel %vm4620, %v4627, %v4629
    %v4631 = vsel %vm4619, %v4609, %v4612
    %v4632 = vsel %vm4622, %v4618, 1326507024
    %v4633 = vsel %vm4621, %v4615, %v4632
    %v4634 = vsel %vm4620, %v4631, %v4633
    %v4635 = vshll.u32 %v4595, 8
    %v4636 = vmul.u32.u64.compose %v4635, %v4634
    %v4637 = vextract.low.u32 %v4636
    %v4638 = vextract.high.u32 %v4636
    %v4639 = vmul.u32.u64.compose %v4635, %v4630
    %v4640 = vextract.low.u32 %v4639
    %v4641 = vextract.high.u32 %v4639
    %v4642 = vmul.u32 %v4635, %v4626
    %v4643 = vadd.s32 %v4638, %v4640
    %vm4644 = vc.u32 %v4638, %v4640
    %v4645 = vadd.s32 %v4641, 1
    %v4646 = vsel %vm4644, %v4645, %v4641
    %v4647 = vadd.s32 %v4642, %v4646
    %v4648 = vadd.s32 %v4647, 536870912
    %v4649 = vshrl.u32 %v4648, 30
    %v4650 = vshll.u32 %v4649, 30
    %v4651 = vsub.s32 %v4647, %v4650
    %vm4652 = vcmp.lt.s32.totalorder %v4651, 0
    %v4653 = vsub.s32 0, %v4651
    %v4654 = vsel %vm4652, %v4653, %v4651
    %v4655 = vclz %v4654
    %v4656 = vsub.s32 %v4655, 2
    %vm4657 = vcmp.gt.s32.totalorder 0, %v4656
    %v4658 = vsel %vm4657, 0, %v4656
    %v4659 = vsub.s32 32, %v4658
    %v4660 = vshll.u32 %v4651, %v4658
    %v4661 = vshrl.u32 %v4643, %v4659
    %v4662 = vor.u32 %v4660, %v4661
    %v4663 = vsub.s32 4294967266, %v4658
    %v4664 = vadd.s32 %v4663, 127
    %v4665 = vshll.u32 %v4664, 23
    %v4666 = vor.u32 4788187, %v4665
    %v4667 = vand.u32 2147483647, %v4666
    %v4669 = vcvt.s32.f32 %v4662
    %v4670 = vmul.f32 %v4669, %v4667
    %v4671 = vxor.u32 %v4670, 2147483648
    %v4672 = vsel %vm4589, %v4671, %v4670
    %v4673 = vsub.s32 4, %v4649
    %v4674 = vsel %vm4589, %v4673, %v4649
    %v4675 = vsel %vm4588, %v231, %v4672
    %v4676 = vsel %vm4588, 0, %v4674
    %v4677 = vcosq.f32.pop %v4675
    %v4678 = vsinq.f32.pop %v4675
    %vm4679 = vweird.f32 %v231
    %v4680 = vand.u32 %v4676, 3
    %vm4681 = vcmp.lt.s32.totalorder %v4680, 2
    %vm4682 = vcmp.eq.s32.totalorder %v4680, 0
    %v4683 = vxor.u32 %v4678, 2147483648
    %v4684 = vsel %vm4682, %v4677, %v4683
    %vm4685 = vcmp.eq.s32.totalorder %v4680, 2
    %v4686 = vxor.u32 %v4677, 2147483648
    %v4687 = vsel %vm4685, %v4686, %v4678
    %v4688 = vsel %vm4681, %v4684, %v4687
    %v4689 = vsel %vm4679, nan, %v4688
    %v4690 = vand.u32 2147483647, %v232
    %vm4691 = vcmp.le.f32.partialorder %v4690, 0.7853982
    %vm4692 = vcmp.lt.s32.totalorder %v232, 0
    %v4693 = vand.u32 %v232, 2139095040
    %v4694 = vshrl.u32 %v4693, 23
    %v4695 = vsub.s32 %v4694, 127
    %v4696 = vand.u32 2147483647, %v232
    %v4697 = vand.u32 %v4696, 8388607
    %v4698 = vor.u32 %v4697, 8388608
    %v4699 = vsub.s32 0, %v4698
    %v4700 = vadd.s32 %v4695, 1
    %vm4701 = vcmp.gt.s32.totalorder %v4700, 0
    %v4702 = vsel %vm4701, %v4700, 0
    %v4703 = vshrl.u32 %v4702, 5
    %v4704 = vand.u32 %v4702, 31
    %v4705 = vsub.s32 32, %v4704
    %v4706 = vshrl.u32 683565275, %v4705
    %v4707 = vshll.u32 683565275, %v4704
    %v4708 = vshrl.u32 2475754826, %v4705
    %v4709 = vor.u32 %v4707, %v4708
    %v4710 = vshll.u32 2475754826, %v4704
    %v4711 = vshrl.u32 2131351028, %v4705
    %v4712 = vor.u32 %v4710, %v4711
    %v4713 = vshll.u32 2131351028, %v4704
    %v4714 = vshrl.u32 2102212464, %v4705
    %v4715 = vor.u32 %v4713, %v4714
    %v4716 = vshll.u32 2102212464, %v4704
    %v4717 = vshrl.u32 920167782, %v4705
    %v4718 = vor.u32 %v4716, %v4717
    %v4719 = vshll.u32 920167782, %v4704
    %v4720 = vshrl.u32 1326507024, %v4705
    %v4721 = vor.u32 %v4719, %v4720
    %vm4722 = vcmp.lt.s32.totalorder %v4703, 1
    %vm4723 = vcmp.lt.s32.totalorder %v4703, 2
    %vm4724 = vcmp.lt.s32.totalorder %v4703, 3
    %vm4725 = vcmp.lt.s32.totalorder %v4703, 4
    %v4726 = vsel %vm4722, %v4706, %v4709
    %v4727 = vsel %vm4725, %v4715, 2102212464
    %v4728 = vsel %vm4724, %v4712, %v4727
    %v4729 = vsel %vm4723, %v4726, %v4728
    %v4730 = vsel %vm4722, %v4709, %v4712
    %v4731 = vsel %vm4725, %v4718, 920167782
    %v4732 = vsel %vm4724, %v4715, %v4731
    %v4733 = vsel %vm4723, %v4730, %v4732
    %v4734 = vsel %vm4722, %v4712, %v4715
    %v4735 = vsel %vm4725, %v4721, 1326507024
    %v4736 = vsel %vm4724, %v4718, %v4735
    %v4737 = vsel %vm4723, %v4734, %v4736
    %v4738 = vshll.u32 %v4698, 8
    %v4739 = vmul.u32.u64.compose %v4738, %v4737
    %v4740 = vextract.low.u32 %v4739
    %v4741 = vextract.high.u32 %v4739
    %v4742 = vmul.u32.u64.compose %v4738, %v4733
    %v4743 = vextract.low.u32 %v4742
    %v4744 = vextract.high.u32 %v4742
    %v4745 = vmul.u32 %v4738, %v4729
    %v4746 = vadd.s32 %v4741, %v4743
    %vm4747 = vc.u32 %v4741, %v4743
    %v4748 = vadd.s32 %v4744, 1
    %v4749 = vsel %vm4747, %v4748, %v4744
    %v4750 = vadd.s32 %v4745, %v4749
    %v4751 = vadd.s32 %v4750, 536870912
    %v4752 = vshrl.u32 %v4751, 30
    %v4753 = vshll.u32 %v4752, 30
    %v4754 = vsub.s32 %v4750, %v4753
    %vm4755 = vcmp.lt.s32.totalorder %v4754, 0
    %v4756 = vsub.s32 0, %v4754
    %v4757 = vsel %vm4755, %v4756, %v4754
    %v4758 = vclz %v4757
    %v4759 = vsub.s32 %v4758, 2
    %vm4760 = vcmp.gt.s32.totalorder 0, %v4759
    %v4761 = vsel %vm4760, 0, %v4759
    %v4762 = vsub.s32 32, %v4761
    %v4763 = vshll.u32 %v4754, %v4761
    %v4764 = vshrl.u32 %v4746, %v4762
    %v4765 = vor.u32 %v4763, %v4764
    %v4766 = vsub.s32 4294967266, %v4761
    %v4767 = vadd.s32 %v4766, 127
    %v4768 = vshll.u32 %v4767, 23
    %v4769 = vor.u32 4788187, %v4768
    %v4770 = vand.u32 2147483647, %v4769
    %v4772 = vcvt.s32.f32 %v4765
    %v4773 = vmul.f32 %v4772, %v4770
    %v4774 = vxor.u32 %v4773, 2147483648
    %v4775 = vsel %vm4692, %v4774, %v4773
    %v4776 = vsub.s32 4, %v4752
    %v4777 = vsel %vm4692, %v4776, %v4752
    %v4778 = vsel %vm4691, %v232, %v4775
    %v4779 = vsel %vm4691, 0, %v4777
    %v4780 = vcosq.f32.pop %v4778
    %v4781 = vsinq.f32.pop %v4778
    %vm4782 = vweird.f32 %v232
    %v4783 = vand.u32 %v4779, 3
    %vm4784 = vcmp.lt.s32.totalorder %v4783, 2
    %vm4785 = vcmp.eq.s32.totalorder %v4783, 0
    %v4786 = vxor.u32 %v4781, 2147483648
    %v4787 = vsel %vm4785, %v4780, %v4786
    %vm4788 = vcmp.eq.s32.totalorder %v4783, 2
    %v4789 = vxor.u32 %v4780, 2147483648
    %v4790 = vsel %vm4788, %v4789, %v4781
    %v4791 = vsel %vm4784, %v4787, %v4790
    %v4792 = vsel %vm4782, nan, %v4791
    %v4793 = vand.u32 2147483647, %v233
    %vm4794 = vcmp.le.f32.partialorder %v4793, 0.7853982
    %vm4795 = vcmp.lt.s32.totalorder %v233, 0
    %v4796 = vand.u32 %v233, 2139095040
    %v4797 = vshrl.u32 %v4796, 23
    %v4798 = vsub.s32 %v4797, 127
    %v4799 = vand.u32 2147483647, %v233
    %v4800 = vand.u32 %v4799, 8388607
    %v4801 = vor.u32 %v4800, 8388608
    %v4802 = vsub.s32 0, %v4801
    %v4803 = vadd.s32 %v4798, 1
    %vm4804 = vcmp.gt.s32.totalorder %v4803, 0
    %v4805 = vsel %vm4804, %v4803, 0
    %v4806 = vshrl.u32 %v4805, 5
    %v4807 = vand.u32 %v4805, 31
    %v4808 = vsub.s32 32, %v4807
    %v4809 = vshrl.u32 683565275, %v4808
    %v4810 = vshll.u32 683565275, %v4807
    %v4811 = vshrl.u32 2475754826, %v4808
    %v4812 = vor.u32 %v4810, %v4811
    %v4813 = vshll.u32 2475754826, %v4807
    %v4814 = vshrl.u32 2131351028, %v4808
    %v4815 = vor.u32 %v4813, %v4814
    %v4816 = vshll.u32 2131351028, %v4807
    %v4817 = vshrl.u32 2102212464, %v4808
    %v4818 = vor.u32 %v4816, %v4817
    %v4819 = vshll.u32 2102212464, %v4807
    %v4820 = vshrl.u32 920167782, %v4808
    %v4821 = vor.u32 %v4819, %v4820
    %v4822 = vshll.u32 920167782, %v4807
    %v4823 = vshrl.u32 1326507024, %v4808
    %v4824 = vor.u32 %v4822, %v4823
    %vm4825 = vcmp.lt.s32.totalorder %v4806, 1
    %vm4826 = vcmp.lt.s32.totalorder %v4806, 2
    %vm4827 = vcmp.lt.s32.totalorder %v4806, 3
    %vm4828 = vcmp.lt.s32.totalorder %v4806, 4
    %v4829 = vsel %vm4825, %v4809, %v4812
    %v4830 = vsel %vm4828, %v4818, 2102212464
    %v4831 = vsel %vm4827, %v4815, %v4830
    %v4832 = vsel %vm4826, %v4829, %v4831
    %v4833 = vsel %vm4825, %v4812, %v4815
    %v4834 = vsel %vm4828, %v4821, 920167782
    %v4835 = vsel %vm4827, %v4818, %v4834
    %v4836 = vsel %vm4826, %v4833, %v4835
    %v4837 = vsel %vm4825, %v4815, %v4818
    %v4838 = vsel %vm4828, %v4824, 1326507024
    %v4839 = vsel %vm4827, %v4821, %v4838
    %v4840 = vsel %vm4826, %v4837, %v4839
    %v4841 = vshll.u32 %v4801, 8
    %v4842 = vmul.u32.u64.compose %v4841, %v4840
    %v4843 = vextract.low.u32 %v4842
    %v4844 = vextract.high.u32 %v4842
    %v4845 = vmul.u32.u64.compose %v4841, %v4836
    %v4846 = vextract.low.u32 %v4845
    %v4847 = vextract.high.u32 %v4845
    %v4848 = vmul.u32 %v4841, %v4832
    %v4849 = vadd.s32 %v4844, %v4846
    %vm4850 = vc.u32 %v4844, %v4846
    %v4851 = vadd.s32 %v4847, 1
    %v4852 = vsel %vm4850, %v4851, %v4847
    %v4853 = vadd.s32 %v4848, %v4852
    %v4854 = vadd.s32 %v4853, 536870912
    %v4855 = vshrl.u32 %v4854, 30
    %v4856 = vshll.u32 %v4855, 30
    %v4857 = vsub.s32 %v4853, %v4856
    %vm4858 = vcmp.lt.s32.totalorder %v4857, 0
    %v4859 = vsub.s32 0, %v4857
    %v4860 = vsel %vm4858, %v4859, %v4857
    %v4861 = vclz %v4860
    %v4862 = vsub.s32 %v4861, 2
    %vm4863 = vcmp.gt.s32.totalorder 0, %v4862
    %v4864 = vsel %vm4863, 0, %v4862
    %v4865 = vsub.s32 32, %v4864
    %v4866 = vshll.u32 %v4857, %v4864
    %v4867 = vshrl.u32 %v4849, %v4865
    %v4868 = vor.u32 %v4866, %v4867
    %v4869 = vsub.s32 4294967266, %v4864
    %v4870 = vadd.s32 %v4869, 127
    %v4871 = vshll.u32 %v4870, 23
    %v4872 = vor.u32 4788187, %v4871
    %v4873 = vand.u32 2147483647, %v4872
    %v4875 = vcvt.s32.f32 %v4868
    %v4876 = vmul.f32 %v4875, %v4873
    %v4877 = vxor.u32 %v4876, 2147483648
    %v4878 = vsel %vm4795, %v4877, %v4876
    %v4879 = vsub.s32 4, %v4855
    %v4880 = vsel %vm4795, %v4879, %v4855
    %v4881 = vsel %vm4794, %v233, %v4878
    %v4882 = vsel %vm4794, 0, %v4880
    %v4883 = vcosq.f32.pop %v4881
    %v4884 = vsinq.f32.pop %v4881
    %vm4885 = vweird.f32 %v233
    %v4886 = vand.u32 %v4882, 3
    %vm4887 = vcmp.lt.s32.totalorder %v4886, 2
    %vm4888 = vcmp.eq.s32.totalorder %v4886, 0
    %v4889 = vxor.u32 %v4884, 2147483648
    %v4890 = vsel %vm4888, %v4883, %v4889
    %vm4891 = vcmp.eq.s32.totalorder %v4886, 2
    %v4892 = vxor.u32 %v4883, 2147483648
    %v4893 = vsel %vm4891, %v4892, %v4884
    %v4894 = vsel %vm4887, %v4890, %v4893
    %v4895 = vsel %vm4885, nan, %v4894
    %v4896 = vand.u32 2147483647, %v234
    %vm4897 = vcmp.le.f32.partialorder %v4896, 0.7853982
    %vm4898 = vcmp.lt.s32.totalorder %v234, 0
    %v4899 = vand.u32 %v234, 2139095040
    %v4900 = vshrl.u32 %v4899, 23
    %v4901 = vsub.s32 %v4900, 127
    %v4902 = vand.u32 2147483647, %v234
    %v4903 = vand.u32 %v4902, 8388607
    %v4904 = vor.u32 %v4903, 8388608
    %v4905 = vsub.s32 0, %v4904
    %v4906 = vadd.s32 %v4901, 1
    %vm4907 = vcmp.gt.s32.totalorder %v4906, 0
    %v4908 = vsel %vm4907, %v4906, 0
    %v4909 = vshrl.u32 %v4908, 5
    %v4910 = vand.u32 %v4908, 31
    %v4911 = vsub.s32 32, %v4910
    %v4912 = vshrl.u32 683565275, %v4911
    %v4913 = vshll.u32 683565275, %v4910
    %v4914 = vshrl.u32 2475754826, %v4911
    %v4915 = vor.u32 %v4913, %v4914
    %v4916 = vshll.u32 2475754826, %v4910
    %v4917 = vshrl.u32 2131351028, %v4911
    %v4918 = vor.u32 %v4916, %v4917
    %v4919 = vshll.u32 2131351028, %v4910
    %v4920 = vshrl.u32 2102212464, %v4911
    %v4921 = vor.u32 %v4919, %v4920
    %v4922 = vshll.u32 2102212464, %v4910
    %v4923 = vshrl.u32 920167782, %v4911
    %v4924 = vor.u32 %v4922, %v4923
    %v4925 = vshll.u32 920167782, %v4910
    %v4926 = vshrl.u32 1326507024, %v4911
    %v4927 = vor.u32 %v4925, %v4926
    %vm4928 = vcmp.lt.s32.totalorder %v4909, 1
    %vm4929 = vcmp.lt.s32.totalorder %v4909, 2
    %vm4930 = vcmp.lt.s32.totalorder %v4909, 3
    %vm4931 = vcmp.lt.s32.totalorder %v4909, 4
    %v4932 = vsel %vm4928, %v4912, %v4915
    %v4933 = vsel %vm4931, %v4921, 2102212464
    %v4934 = vsel %vm4930, %v4918, %v4933
    %v4935 = vsel %vm4929, %v4932, %v4934
    %v4936 = vsel %vm4928, %v4915, %v4918
    %v4937 = vsel %vm4931, %v4924, 920167782
    %v4938 = vsel %vm4930, %v4921, %v4937
    %v4939 = vsel %vm4929, %v4936, %v4938
    %v4940 = vsel %vm4928, %v4918, %v4921
    %v4941 = vsel %vm4931, %v4927, 1326507024
    %v4942 = vsel %vm4930, %v4924, %v4941
    %v4943 = vsel %vm4929, %v4940, %v4942
    %v4944 = vshll.u32 %v4904, 8
    %v4945 = vmul.u32.u64.compose %v4944, %v4943
    %v4946 = vextract.low.u32 %v4945
    %v4947 = vextract.high.u32 %v4945
    %v4948 = vmul.u32.u64.compose %v4944, %v4939
    %v4949 = vextract.low.u32 %v4948
    %v4950 = vextract.high.u32 %v4948
    %v4951 = vmul.u32 %v4944, %v4935
    %v4952 = vadd.s32 %v4947, %v4949
    %vm4953 = vc.u32 %v4947, %v4949
    %v4954 = vadd.s32 %v4950, 1
    %v4955 = vsel %vm4953, %v4954, %v4950
    %v4956 = vadd.s32 %v4951, %v4955
    %v4957 = vadd.s32 %v4956, 536870912
    %v4958 = vshrl.u32 %v4957, 30
    %v4959 = vshll.u32 %v4958, 30
    %v4960 = vsub.s32 %v4956, %v4959
    %vm4961 = vcmp.lt.s32.totalorder %v4960, 0
    %v4962 = vsub.s32 0, %v4960
    %v4963 = vsel %vm4961, %v4962, %v4960
    %v4964 = vclz %v4963
    %v4965 = vsub.s32 %v4964, 2
    %vm4966 = vcmp.gt.s32.totalorder 0, %v4965
    %v4967 = vsel %vm4966, 0, %v4965
    %v4968 = vsub.s32 32, %v4967
    %v4969 = vshll.u32 %v4960, %v4967
    %v4970 = vshrl.u32 %v4952, %v4968
    %v4971 = vor.u32 %v4969, %v4970
    %v4972 = vsub.s32 4294967266, %v4967
    %v4973 = vadd.s32 %v4972, 127
    %v4974 = vshll.u32 %v4973, 23
    %v4975 = vor.u32 4788187, %v4974
    %v4976 = vand.u32 2147483647, %v4975
    %v4978 = vcvt.s32.f32 %v4971
    %v4979 = vmul.f32 %v4978, %v4976
    %v4980 = vxor.u32 %v4979, 2147483648
    %v4981 = vsel %vm4898, %v4980, %v4979
    %v4982 = vsub.s32 4, %v4958
    %v4983 = vsel %vm4898, %v4982, %v4958
    %v4984 = vsel %vm4897, %v234, %v4981
    %v4985 = vsel %vm4897, 0, %v4983
    %v4986 = vcosq.f32.pop %v4984
    %v4987 = vsinq.f32.pop %v4984
    %vm4988 = vweird.f32 %v234
    %v4989 = vand.u32 %v4985, 3
    %vm4990 = vcmp.lt.s32.totalorder %v4989, 2
    %vm4991 = vcmp.eq.s32.totalorder %v4989, 0
    %v4992 = vxor.u32 %v4987, 2147483648
    %v4993 = vsel %vm4991, %v4986, %v4992
    %vm4994 = vcmp.eq.s32.totalorder %v4989, 2
    %v4995 = vxor.u32 %v4986, 2147483648
    %v4996 = vsel %vm4994, %v4995, %v4987
    %v4997 = vsel %vm4990, %v4993, %v4996
    %v4998 = vsel %vm4988, nan, %v4997
    %v4999 = vand.u32 2147483647, %v235
    %vm5000 = vcmp.le.f32.partialorder %v4999, 0.7853982
    %vm5001 = vcmp.lt.s32.totalorder %v235, 0
    %v5002 = vand.u32 %v235, 2139095040
    %v5003 = vshrl.u32 %v5002, 23
    %v5004 = vsub.s32 %v5003, 127
    %v5005 = vand.u32 2147483647, %v235
    %v5006 = vand.u32 %v5005, 8388607
    %v5007 = vor.u32 %v5006, 8388608
    %v5008 = vsub.s32 0, %v5007
    %v5009 = vadd.s32 %v5004, 1
    %vm5010 = vcmp.gt.s32.totalorder %v5009, 0
    %v5011 = vsel %vm5010, %v5009, 0
    %v5012 = vshrl.u32 %v5011, 5
    %v5013 = vand.u32 %v5011, 31
    %v5014 = vsub.s32 32, %v5013
    %v5015 = vshrl.u32 683565275, %v5014
    %v5016 = vshll.u32 683565275, %v5013
    %v5017 = vshrl.u32 2475754826, %v5014
    %v5018 = vor.u32 %v5016, %v5017
    %v5019 = vshll.u32 2475754826, %v5013
    %v5020 = vshrl.u32 2131351028, %v5014
    %v5021 = vor.u32 %v5019, %v5020
    %v5022 = vshll.u32 2131351028, %v5013
    %v5023 = vshrl.u32 2102212464, %v5014
    %v5024 = vor.u32 %v5022, %v5023
    %v5025 = vshll.u32 2102212464, %v5013
    %v5026 = vshrl.u32 920167782, %v5014
    %v5027 = vor.u32 %v5025, %v5026
    %v5028 = vshll.u32 920167782, %v5013
    %v5029 = vshrl.u32 1326507024, %v5014
    %v5030 = vor.u32 %v5028, %v5029
    %vm5031 = vcmp.lt.s32.totalorder %v5012, 1
    %vm5032 = vcmp.lt.s32.totalorder %v5012, 2
    %vm5033 = vcmp.lt.s32.totalorder %v5012, 3
    %vm5034 = vcmp.lt.s32.totalorder %v5012, 4
    %v5035 = vsel %vm5031, %v5015, %v5018
    %v5036 = vsel %vm5034, %v5024, 2102212464
    %v5037 = vsel %vm5033, %v5021, %v5036
    %v5038 = vsel %vm5032, %v5035, %v5037
    %v5039 = vsel %vm5031, %v5018, %v5021
    %v5040 = vsel %vm5034, %v5027, 920167782
    %v5041 = vsel %vm5033, %v5024, %v5040
    %v5042 = vsel %vm5032, %v5039, %v5041
    %v5043 = vsel %vm5031, %v5021, %v5024
    %v5044 = vsel %vm5034, %v5030, 1326507024
    %v5045 = vsel %vm5033, %v5027, %v5044
    %v5046 = vsel %vm5032, %v5043, %v5045
    %v5047 = vshll.u32 %v5007, 8
    %v5048 = vmul.u32.u64.compose %v5047, %v5046
    %v5049 = vextract.low.u32 %v5048
    %v5050 = vextract.high.u32 %v5048
    %v5051 = vmul.u32.u64.compose %v5047, %v5042
    %v5052 = vextract.low.u32 %v5051
    %v5053 = vextract.high.u32 %v5051
    %v5054 = vmul.u32 %v5047, %v5038
    %v5055 = vadd.s32 %v5050, %v5052
    %vm5056 = vc.u32 %v5050, %v5052
    %v5057 = vadd.s32 %v5053, 1
    %v5058 = vsel %vm5056, %v5057, %v5053
    %v5059 = vadd.s32 %v5054, %v5058
    %v5060 = vadd.s32 %v5059, 536870912
    %v5061 = vshrl.u32 %v5060, 30
    %v5062 = vshll.u32 %v5061, 30
    %v5063 = vsub.s32 %v5059, %v5062
    %vm5064 = vcmp.lt.s32.totalorder %v5063, 0
    %v5065 = vsub.s32 0, %v5063
    %v5066 = vsel %vm5064, %v5065, %v5063
    %v5067 = vclz %v5066
    %v5068 = vsub.s32 %v5067, 2
    %vm5069 = vcmp.gt.s32.totalorder 0, %v5068
    %v5070 = vsel %vm5069, 0, %v5068
    %v5071 = vsub.s32 32, %v5070
    %v5072 = vshll.u32 %v5063, %v5070
    %v5073 = vshrl.u32 %v5055, %v5071
    %v5074 = vor.u32 %v5072, %v5073
    %v5075 = vsub.s32 4294967266, %v5070
    %v5076 = vadd.s32 %v5075, 127
    %v5077 = vshll.u32 %v5076, 23
    %v5078 = vor.u32 4788187, %v5077
    %v5079 = vand.u32 2147483647, %v5078
    %v5081 = vcvt.s32.f32 %v5074
    %v5082 = vmul.f32 %v5081, %v5079
    %v5083 = vxor.u32 %v5082, 2147483648
    %v5084 = vsel %vm5001, %v5083, %v5082
    %v5085 = vsub.s32 4, %v5061
    %v5086 = vsel %vm5001, %v5085, %v5061
    %v5087 = vsel %vm5000, %v235, %v5084
    %v5088 = vsel %vm5000, 0, %v5086
    %v5089 = vcosq.f32.pop %v5087
    %v5090 = vsinq.f32.pop %v5087
    %vm5091 = vweird.f32 %v235
    %v5092 = vand.u32 %v5088, 3
    %vm5093 = vcmp.lt.s32.totalorder %v5092, 2
    %vm5094 = vcmp.eq.s32.totalorder %v5092, 0
    %v5095 = vxor.u32 %v5090, 2147483648
    %v5096 = vsel %vm5094, %v5089, %v5095
    %vm5097 = vcmp.eq.s32.totalorder %v5092, 2
    %v5098 = vxor.u32 %v5089, 2147483648
    %v5099 = vsel %vm5097, %v5098, %v5090
    %v5100 = vsel %vm5093, %v5096, %v5099
    %v5101 = vsel %vm5091, nan, %v5100
    %v5102 = vand.u32 2147483647, %v236
    %vm5103 = vcmp.le.f32.partialorder %v5102, 0.7853982
    %vm5104 = vcmp.lt.s32.totalorder %v236, 0
    %v5105 = vand.u32 %v236, 2139095040
    %v5106 = vshrl.u32 %v5105, 23
    %v5107 = vsub.s32 %v5106, 127
    %v5108 = vand.u32 2147483647, %v236
    %v5109 = vand.u32 %v5108, 8388607
    %v5110 = vor.u32 %v5109, 8388608
    %v5111 = vsub.s32 0, %v5110
    %v5112 = vadd.s32 %v5107, 1
    %vm5113 = vcmp.gt.s32.totalorder %v5112, 0
    %v5114 = vsel %vm5113, %v5112, 0
    %v5115 = vshrl.u32 %v5114, 5
    %v5116 = vand.u32 %v5114, 31
    %v5117 = vsub.s32 32, %v5116
    %v5118 = vshrl.u32 683565275, %v5117
    %v5119 = vshll.u32 683565275, %v5116
    %v5120 = vshrl.u32 2475754826, %v5117
    %v5121 = vor.u32 %v5119, %v5120
    %v5122 = vshll.u32 2475754826, %v5116
    %v5123 = vshrl.u32 2131351028, %v5117
    %v5124 = vor.u32 %v5122, %v5123
    %v5125 = vshll.u32 2131351028, %v5116
    %v5126 = vshrl.u32 2102212464, %v5117
    %v5127 = vor.u32 %v5125, %v5126
    %v5128 = vshll.u32 2102212464, %v5116
    %v5129 = vshrl.u32 920167782, %v5117
    %v5130 = vor.u32 %v5128, %v5129
    %v5131 = vshll.u32 920167782, %v5116
    %v5132 = vshrl.u32 1326507024, %v5117
    %v5133 = vor.u32 %v5131, %v5132
    %vm5134 = vcmp.lt.s32.totalorder %v5115, 1
    %vm5135 = vcmp.lt.s32.totalorder %v5115, 2
    %vm5136 = vcmp.lt.s32.totalorder %v5115, 3
    %vm5137 = vcmp.lt.s32.totalorder %v5115, 4
    %v5138 = vsel %vm5134, %v5118, %v5121
    %v5139 = vsel %vm5137, %v5127, 2102212464
    %v5140 = vsel %vm5136, %v5124, %v5139
    %v5141 = vsel %vm5135, %v5138, %v5140
    %v5142 = vsel %vm5134, %v5121, %v5124
    %v5143 = vsel %vm5137, %v5130, 920167782
    %v5144 = vsel %vm5136, %v5127, %v5143
    %v5145 = vsel %vm5135, %v5142, %v5144
    %v5146 = vsel %vm5134, %v5124, %v5127
    %v5147 = vsel %vm5137, %v5133, 1326507024
    %v5148 = vsel %vm5136, %v5130, %v5147
    %v5149 = vsel %vm5135, %v5146, %v5148
    %v5150 = vshll.u32 %v5110, 8
    %v5151 = vmul.u32.u64.compose %v5150, %v5149
    %v5152 = vextract.low.u32 %v5151
    %v5153 = vextract.high.u32 %v5151
    %v5154 = vmul.u32.u64.compose %v5150, %v5145
    %v5155 = vextract.low.u32 %v5154
    %v5156 = vextract.high.u32 %v5154
    %v5157 = vmul.u32 %v5150, %v5141
    %v5158 = vadd.s32 %v5153, %v5155
    %vm5159 = vc.u32 %v5153, %v5155
    %v5160 = vadd.s32 %v5156, 1
    %v5161 = vsel %vm5159, %v5160, %v5156
    %v5162 = vadd.s32 %v5157, %v5161
    %v5163 = vadd.s32 %v5162, 536870912
    %v5164 = vshrl.u32 %v5163, 30
    %v5165 = vshll.u32 %v5164, 30
    %v5166 = vsub.s32 %v5162, %v5165
    %vm5167 = vcmp.lt.s32.totalorder %v5166, 0
    %v5168 = vsub.s32 0, %v5166
    %v5169 = vsel %vm5167, %v5168, %v5166
    %v5170 = vclz %v5169
    %v5171 = vsub.s32 %v5170, 2
    %vm5172 = vcmp.gt.s32.totalorder 0, %v5171
    %v5173 = vsel %vm5172, 0, %v5171
    %v5174 = vsub.s32 32, %v5173
    %v5175 = vshll.u32 %v5166, %v5173
    %v5176 = vshrl.u32 %v5158, %v5174
    %v5177 = vor.u32 %v5175, %v5176
    %v5178 = vsub.s32 4294967266, %v5173
    %v5179 = vadd.s32 %v5178, 127
    %v5180 = vshll.u32 %v5179, 23
    %v5181 = vor.u32 4788187, %v5180
    %v5182 = vand.u32 2147483647, %v5181
    %v5184 = vcvt.s32.f32 %v5177
    %v5185 = vmul.f32 %v5184, %v5182
    %v5186 = vxor.u32 %v5185, 2147483648
    %v5187 = vsel %vm5104, %v5186, %v5185
    %v5188 = vsub.s32 4, %v5164
    %v5189 = vsel %vm5104, %v5188, %v5164
    %v5190 = vsel %vm5103, %v236, %v5187
    %v5191 = vsel %vm5103, 0, %v5189
    %v5192 = vcosq.f32.pop %v5190
    %v5193 = vsinq.f32.pop %v5190
    %vm5194 = vweird.f32 %v236
    %v5195 = vand.u32 %v5191, 3
    %vm5196 = vcmp.lt.s32.totalorder %v5195, 2
    %vm5197 = vcmp.eq.s32.totalorder %v5195, 0
    %v5198 = vxor.u32 %v5193, 2147483648
    %v5199 = vsel %vm5197, %v5192, %v5198
    %vm5200 = vcmp.eq.s32.totalorder %v5195, 2
    %v5201 = vxor.u32 %v5192, 2147483648
    %v5202 = vsel %vm5200, %v5201, %v5193
    %v5203 = vsel %vm5196, %v5199, %v5202
    %v5204 = vsel %vm5194, nan, %v5203
    %v5229 = vrot.slane %v340, 5
    %v5230 = vrot.slane %v444, 5
    %v5231 = vrot.slane %v548, 5
    %v5232 = vrot.slane %v652, 5
    %v5233 = vrot.slane %v756, 5
    %v5234 = vrot.slane %v860, 5
    %v5235 = vrot.slane %v964, 5
    %v5236 = vrot.slane %v1068, 5
    %v5237 = vrot.slane %v1172, 5
    %v5238 = vrot.slane %v1276, 5
    %v5239 = vrot.slane %v1380, 5
    %v5240 = vrot.slane %v1484, 5
    %v5241 = vrot.slane %v1588, 5
    %v5242 = vsel %vm198, %v5229, %v5241
    %v5243 = vrot.slane %v1692, 5
    %v5244 = vsel %vm198, %v5230, %v5243
    %v5245 = vrot.slane %v1796, 5
    %v5246 = vsel %vm198, %v5231, %v5245
    %v5247 = vrot.slane %v1900, 5
    %v5248 = vsel %vm198, %v5232, %v5247
    %v5249 = vrot.slane %v2004, 5
    %v5250 = vsel %vm198, %v5233, %v5249
    %v5251 = vrot.slane %v2108, 5
    %v5252 = vsel %vm198, %v5234, %v5251
    %v5253 = vrot.slane %v2212, 5
    %v5254 = vsel %vm198, %v5235, %v5253
    %v5255 = vrot.slane %v2316, 5
    %v5256 = vsel %vm198, %v5236, %v5255
    %v5257 = vrot.slane %v2420, 5
    %v5258 = vsel %vm198, %v5237, %v5257
    %v5259 = vrot.slane %v2524, 5
    %v5260 = vsel %vm198, %v5238, %v5259
    %v5261 = vrot.slane %v2628, 5
    %v5262 = vsel %vm198, %v5239, %v5261
    %v5263 = vrot.slane %v2732, 5
    %v5264 = vsel %vm198, %v5240, %v5263
    %vm5313 = vcmask 1046528
    %v5314 = vrot.slane %v2835, 1
    %v5315 = vrot.slane %v2938, 1
    %v5316 = vrot.slane %v3041, 1
    %v5317 = vrot.slane %v3144, 1
    %v5318 = vrot.slane %v3247, 1
    %v5319 = vrot.slane %v3350, 1
    %v5320 = vrot.slane %v3453, 1
    %v5321 = vrot.slane %v3556, 1
    %v5322 = vrot.slane %v3659, 1
    %v5323 = vrot.slane %v3762, 1
    %v5324 = vrot.slane %v3865, 1
    %v5325 = vrot.slane %v3968, 1
    %v5326 = vrot.slane %v4071, 1
    %v5327 = vsel %vm5313, %v5314, %v5326
    %v5328 = vrot.slane %v4174, 1
    %v5329 = vsel %vm5313, %v5315, %v5328
    %v5330 = vrot.slane %v4277, 1
    %v5331 = vsel %vm5313, %v5316, %v5330
    %v5332 = vrot.slane %v4380, 1
    %v5333 = vsel %vm5313, %v5317, %v5332
    %v5334 = vrot.slane %v4483, 1
    %v5335 = vsel %vm5313, %v5318, %v5334
    %v5336 = vrot.slane %v4586, 1
    %v5337 = vsel %vm5313, %v5319, %v5336
    %v5338 = vrot.slane %v4689, 1
    %v5339 = vsel %vm5313, %v5320, %v5338
    %v5340 = vrot.slane %v4792, 1
    %v5341 = vsel %vm5313, %v5321, %v5340
    %v5342 = vrot.slane %v4895, 1
    %v5343 = vsel %vm5313, %v5322, %v5342
    %v5344 = vrot.slane %v4998, 1
    %v5345 = vsel %vm5313, %v5323, %v5344
    %v5346 = vrot.slane %v5101, 1
    %v5347 = vsel %vm5313, %v5324, %v5346
    %v5348 = vrot.slane %v5204, 1
    %v5349 = vsel %vm5313, %v5325, %v5348
    %v5374 = vsel %vm198, %v48, %v5229
    %v5375 = vsel %vm198, %v78, %v5230
    %v5376 = vsel %vm198, %v49, %v5231
    %v5377 = vsel %vm198, %v79, %v5232
    %v5378 = vsel %vm198, %v50, %v5233
    %v5379 = vsel %vm198, %v80, %v5234
    %v5380 = vsel %vm198, %v51, %v5235
    %v5381 = vsel %vm198, %v81, %v5236
    %v5382 = vsel %vm198, %v52, %v5237
    %v5383 = vsel %vm198, %v82, %v5238
    %v5384 = vsel %vm198, %v53, %v5239
    %v5385 = vsel %vm198, %v83, %v5240
    %v5386 = vsel %vm5313, %v5242, %v5314
    %v5387 = vsel %vm5313, %v5244, %v5315
    %v5388 = vsel %vm5313, %v5246, %v5316
    %v5389 = vsel %vm5313, %v5248, %v5317
    %v5390 = vsel %vm5313, %v5250, %v5318
    %v5391 = vsel %vm5313, %v5252, %v5319
    %v5392 = vsel %vm5313, %v5254, %v5320
    %v5393 = vsel %vm5313, %v5256, %v5321
    %v5394 = vsel %vm5313, %v5258, %v5322
    %v5395 = vsel %vm5313, %v5260, %v5323
    %v5396 = vsel %vm5313, %v5262, %v5324
    %v5397 = vsel %vm5313, %v5264, %v5325
    %v5398 = vld [vmem:[%s1] sm:$0xff]
    %v5399 = vld [vmem:[%s1 + $0x8] sm:$0xff]
    %v5400 = vld [vmem:[%s1 + $0x10] sm:$0xff]
    %v5401 = vld [vmem:[%s1 + $0x18] sm:$0xff]
    %v5402 = vld [vmem:[%s2] sm:$0xff]
    %v5403 = vld [vmem:[%s2 + $0x8] sm:$0xff]
    %v5404 = vld [vmem:[%s2 + $0x10] sm:$0xff]
    %v5405 = vld [vmem:[%s2 + $0x18] sm:$0xff]
    %5407 = vset.pattern.permute.xlu0 0
    %5408 = vperm.xlu0 %5407, %v5402
    %v5409 = vpop.permute.xlu0 %5408
    %5412 = vset.pattern.permute.xlu0 0
    %5413 = vperm.xlu0 %5412, %v5403
    %v5414 = vpop.permute.xlu0 %5413
    %5417 = vset.pattern.permute.xlu0 0
    %5418 = vperm.xlu0 %5417, %v5404
    %v5419 = vpop.permute.xlu0 %5418
    %5422 = vset.pattern.permute.xlu0 0
    %5423 = vperm.xlu0 %5422, %v5405
    %v5424 = vpop.permute.xlu0 %5423
    %vm5426 = vcmask 220160
    %v5428 = vsel %vm5426, %v5398, 0
    %v5431 = vsel %vm5426, %v5399, 0
    %v5434 = vsel %vm5426, %v5400, 0
    %v5437 = vsel %vm5426, %v5401, 0
    %v5439 = vsel %vm198, %v5326, 0
    %v5441 = vsel %vm198, %v5328, 0
    %v5443 = vsel %vm198, %v5330, 0
    %v5445 = vsel %vm198, %v5332, 0
    %v5447 = vsel %vm198, %v5334, 0
    %v5449 = vsel %vm198, %v5336, 0
    %v5451 = vsel %vm198, %v5338, 0
    %v5453 = vsel %vm198, %v5340, 0
    %v5455 = vsel %vm198, %v5342, 0
    %v5457 = vsel %vm198, %v5344, 0
    %v5459 = vsel %vm198, %v5346, 0
    %v5461 = vsel %vm198, %v5348, 0
    %5463 = vmatprep.subr.mxu0 0.0
    %5464 = vmatpush1.msra.mxu0 0.0
    %5465 = vmatprep.subr.mxu0 0.0
    %5466 = vmatpush1.msra.mxu0 0.0
    %5467 = vmatprep.subr.mxu0 0.0
    %5468 = vmatpush1.msra.mxu0 0.0
    %5469 = vmatprep.subr.mxu0 0.0
    %5470 = vmatpush1.msra.mxu0 0.0
    %5471 = vmatprep.subr.mxu0 0.0
    %5472 = vmatpush1.msra.mxu0 0.0
    %5473 = vmatprep.subr.mxu0 0.0
    %5474 = vmatpush1.msra.mxu0 0.0
    %5475 = vmatprep.subr.mxu0 0.0
    %5476 = vmatpush1.msra.mxu0 0.0
    %5477 = vmatprep.subr.mxu0 0.0
    %5478 = vmatpush1.msra.mxu0 0.0
    %5479 = vmatprep.subr.mxu0 0.0
    %5480 = vmatpush1.msra.mxu0 0.0
    %5481 = vmatprep.subr.mxu0 0.0
    %5482 = vmatpush1.msra.mxu0 0.0
    %5483 = vmatprep.subr.mxu0 0.0
    %5484 = vmatpush1.msra.mxu0 0.0
    %5485 = vmatprep.subr.mxu0 0.0
    %5486 = vmatpush1.msra.mxu0 0.0
    %5487 = vmatprep.subr.mxu0 %v5441
    %5488 = vmatpush1.msra.mxu0 %v5439
    %5489 = vmatprep.subr.mxu0 %v5329
    %5490 = vmatpush1.msra.mxu0 %v5327
    %5491 = vmatprep.subr.mxu0 %v5387
    %5492 = vmatpush1.msra.mxu0 %v5386
    %5493 = vmatprep.subr.mxu0 %v5375
    %5494 = vmatpush1.msra.mxu0 %v5374
    %5495 = vmatprep.subr.mxu0 0.0
    %5496 = vmatpush2.msra.mxu0 0.0
    %5497 = vmatprep.subr.mxu0 0.0
    %5498 = vmatpush2.msra.mxu0 0.0
    %5499 = vmatprep.subr.mxu0 0.0
    %5500 = vmatpush2.msra.mxu0 0.0
    %5501 = vmatprep.subr.mxu0 0.0
    %5502 = vmatpush2.msra.mxu0 0.0
    %5503 = vmatprep.subr.mxu0 0.0
    %5504 = vmatpush2.msra.mxu0 0.0
    %5505 = vmatprep.subr.mxu0 0.0
    %5506 = vmatpush2.msra.mxu0 0.0
    %5507 = vmatprep.subr.mxu0 0.0
    %5508 = vmatpush2.msra.mxu0 0.0
    %5509 = vmatprep.subr.mxu0 0.0
    %5510 = vmatpush2.msra.mxu0 0.0
    %5511 = vmatprep.subr.mxu0 0.0
    %5512 = vmatpush2.msra.mxu0 0.0
    %5513 = vmatprep.subr.mxu0 0.0
    %5514 = vmatpush2.msra.mxu0 0.0
    %5515 = vmatprep.subr.mxu0 0.0
    %5516 = vmatpush2.msra.mxu0 0.0
    %5517 = vmatprep.subr.mxu0 0.0
    %5518 = vmatpush2.msra.mxu0 0.0
    %5519 = vmatprep.subr.mxu0 0.0
    %5520 = vmatpush2.msra.mxu0 0.0
    %5521 = vmatprep.subr.mxu0 0.0
    %5522 = vmatpush2.msra.mxu0 0.0
    %5523 = vmatprep.subr.mxu0 0.0
    %5524 = vmatpush2.msra.mxu0 0.0
    %5525 = vmatprep.subr.mxu0 0.0
    %5526 = vmatpush2.msra.mxu0 0.0
    %5527 = vmatprep.mubr.f32.mxu0 0.0
    %5528 = vmatmul.mubr.f32.gmra.mxu0 %v5428
    %v5529 = vpop.f32.mrf.mxu0
    %v5530 = vadd.f32 %v5409, %v5529
    %v5531 = vpop.f32.mrf.mxu0
    %v5532 = vadd.f32 %v5409, %v5531
    %5533 = vmatprep.mubr.f32.mxu0 0.0
    %5534 = vmatmul.mubr.f32.gmra.mxu0 %v5431
    %v5535 = vpop.f32.mrf.mxu0
    %v5536 = vadd.f32 %v5414, %v5535
    %v5537 = vpop.f32.mrf.mxu0
    %v5538 = vadd.f32 %v5414, %v5537
    %5539 = vmatprep.mubr.f32.mxu0 0.0
    %5540 = vmatmul.mubr.f32.gmra.mxu0 %v5434
    %v5541 = vpop.f32.mrf.mxu0
    %v5542 = vadd.f32 %v5419, %v5541
    %v5543 = vpop.f32.mrf.mxu0
    %v5544 = vadd.f32 %v5419, %v5543
    %5545 = vmatprep.mubr.f32.mxu0 0.0
    %5546 = vmatmul.mubr.f32.gmra.mxu0 %v5437
    %v5547 = vpop.f32.mrf.mxu0
    %v5548 = vadd.f32 %v5424, %v5547
    %v5549 = vpop.f32.mrf.mxu0
    %v5550 = vadd.f32 %v5424, %v5549
    %5551 = vdwg.mxu0
    %5552 = vmatprep.subr.mxu0 0.0
    %5553 = vmatpush1.msra.mxu0 0.0
    %5554 = vmatprep.subr.mxu0 0.0
    %5555 = vmatpush1.msra.mxu0 0.0
    %5556 = vmatprep.subr.mxu0 0.0
    %5557 = vmatpush1.msra.mxu0 0.0
    %5558 = vmatprep.subr.mxu0 0.0
    %5559 = vmatpush1.msra.mxu0 0.0
    %5560 = vmatprep.subr.mxu0 0.0
    %5561 = vmatpush1.msra.mxu0 0.0
    %5562 = vmatprep.subr.mxu0 0.0
    %5563 = vmatpush1.msra.mxu0 0.0
    %5564 = vmatprep.subr.mxu0 0.0
    %5565 = vmatpush1.msra.mxu0 0.0
    %5566 = vmatprep.subr.mxu0 0.0
    %5567 = vmatpush1.msra.mxu0 0.0
    %5568 = vmatprep.subr.mxu0 0.0
    %5569 = vmatpush1.msra.mxu0 0.0
    %5570 = vmatprep.subr.mxu0 0.0
    %5571 = vmatpush1.msra.mxu0 0.0
    %5572 = vmatprep.subr.mxu0 0.0
    %5573 = vmatpush1.msra.mxu0 0.0
    %5574 = vmatprep.subr.mxu0 0.0
    %5575 = vmatpush1.msra.mxu0 0.0
    %5576 = vmatprep.subr.mxu0 %v5445
    %5577 = vmatpush1.msra.mxu0 %v5443
    %5578 = vmatprep.subr.mxu0 %v5333
    %5579 = vmatpush1.msra.mxu0 %v5331
    %5580 = vmatprep.subr.mxu0 %v5389
    %5581 = vmatpush1.msra.mxu0 %v5388
    %5582 = vmatprep.subr.mxu0 %v5377
    %5583 = vmatpush1.msra.mxu0 %v5376
    %5584 = vmatprep.subr.mxu0 0.0
    %5585 = vmatpush2.msra.mxu0 0.0
    %5586 = vmatprep.subr.mxu0 0.0
    %5587 = vmatpush2.msra.mxu0 0.0
    %5588 = vmatprep.subr.mxu0 0.0
    %5589 = vmatpush2.msra.mxu0 0.0
    %5590 = vmatprep.subr.mxu0 0.0
    %5591 = vmatpush2.msra.mxu0 0.0
    %5592 = vmatprep.subr.mxu0 0.0
    %5593 = vmatpush2.msra.mxu0 0.0
    %5594 = vmatprep.subr.mxu0 0.0
    %5595 = vmatpush2.msra.mxu0 0.0
    %5596 = vmatprep.subr.mxu0 0.0
    %5597 = vmatpush2.msra.mxu0 0.0
    %5598 = vmatprep.subr.mxu0 0.0
    %5599 = vmatpush2.msra.mxu0 0.0
    %5600 = vmatprep.subr.mxu0 0.0
    %5601 = vmatpush2.msra.mxu0 0.0
    %5602 = vmatprep.subr.mxu0 0.0
    %5603 = vmatpush2.msra.mxu0 0.0
    %5604 = vmatprep.subr.mxu0 0.0
    %5605 = vmatpush2.msra.mxu0 0.0
    %5606 = vmatprep.subr.mxu0 0.0
    %5607 = vmatpush2.msra.mxu0 0.0
    %5608 = vmatprep.subr.mxu0 0.0
    %5609 = vmatpush2.msra.mxu0 0.0
    %5610 = vmatprep.subr.mxu0 0.0
    %5611 = vmatpush2.msra.mxu0 0.0
    %5612 = vmatprep.subr.mxu0 0.0
    %5613 = vmatpush2.msra.mxu0 0.0
    %5614 = vmatprep.subr.mxu0 0.0
    %5615 = vmatpush2.msra.mxu0 0.0
    %5616 = vmatprep.mubr.f32.mxu0 0.0
    %5617 = vmatmul.mubr.f32.gmra.mxu0 %v5428
    %v5618 = vpop.f32.mrf.mxu0
    %v5619 = vadd.f32 %v5409, %v5618
    %v5620 = vpop.f32.mrf.mxu0
    %v5621 = vadd.f32 %v5409, %v5620
    %5622 = vmatprep.mubr.f32.mxu0 0.0
    %5623 = vmatmul.mubr.f32.gmra.mxu0 %v5431
    %v5624 = vpop.f32.mrf.mxu0
    %v5625 = vadd.f32 %v5414, %v5624
    %v5626 = vpop.f32.mrf.mxu0
    %v5627 = vadd.f32 %v5414, %v5626
    %5628 = vmatprep.mubr.f32.mxu0 0.0
    %5629 = vmatmul.mubr.f32.gmra.mxu0 %v5434
    %v5630 = vpop.f32.mrf.mxu0
    %v5631 = vadd.f32 %v5419, %v5630
    %v5632 = vpop.f32.mrf.mxu0
    %v5633 = vadd.f32 %v5419, %v5632
    %5634 = vmatprep.mubr.f32.mxu0 0.0
    %5635 = vmatmul.mubr.f32.gmra.mxu0 %v5437
    %v5636 = vpop.f32.mrf.mxu0
    %v5637 = vadd.f32 %v5424, %v5636
    %v5638 = vpop.f32.mrf.mxu0
    %v5639 = vadd.f32 %v5424, %v5638
    %5640 = vdwg.mxu0
    %5641 = vmatprep.subr.mxu0 0.0
    %5642 = vmatpush1.msra.mxu0 0.0
    %5643 = vmatprep.subr.mxu0 0.0
    %5644 = vmatpush1.msra.mxu0 0.0
    %5645 = vmatprep.subr.mxu0 0.0
    %5646 = vmatpush1.msra.mxu0 0.0
    %5647 = vmatprep.subr.mxu0 0.0
    %5648 = vmatpush1.msra.mxu0 0.0
    %5649 = vmatprep.subr.mxu0 0.0
    %5650 = vmatpush1.msra.mxu0 0.0
    %5651 = vmatprep.subr.mxu0 0.0
    %5652 = vmatpush1.msra.mxu0 0.0
    %5653 = vmatprep.subr.mxu0 0.0
    %5654 = vmatpush1.msra.mxu0 0.0
    %5655 = vmatprep.subr.mxu0 0.0
    %5656 = vmatpush1.msra.mxu0 0.0
    %5657 = vmatprep.subr.mxu0 0.0
    %5658 = vmatpush1.msra.mxu0 0.0
    %5659 = vmatprep.subr.mxu0 0.0
    %5660 = vmatpush1.msra.mxu0 0.0
    %5661 = vmatprep.subr.mxu0 0.0
    %5662 = vmatpush1.msra.mxu0 0.0
    %5663 = vmatprep.subr.mxu0 0.0
    %5664 = vmatpush1.msra.mxu0 0.0
    %5665 = vmatprep.subr.mxu0 %v5449
    %5666 = vmatpush1.msra.mxu0 %v5447
    %5667 = vmatprep.subr.mxu0 %v5337
    %5668 = vmatpush1.msra.mxu0 %v5335
    %5669 = vmatprep.subr.mxu0 %v5391
    %5670 = vmatpush1.msra.mxu0 %v5390
    %5671 = vmatprep.subr.mxu0 %v5379
    %5672 = vmatpush1.msra.mxu0 %v5378
    %5673 = vmatprep.subr.mxu0 0.0
    %5674 = vmatpush2.msra.mxu0 0.0
    %5675 = vmatprep.subr.mxu0 0.0
    %5676 = vmatpush2.msra.mxu0 0.0
    %5677 = vmatprep.subr.mxu0 0.0
    %5678 = vmatpush2.msra.mxu0 0.0
    %5679 = vmatprep.subr.mxu0 0.0
    %5680 = vmatpush2.msra.mxu0 0.0
    %5681 = vmatprep.subr.mxu0 0.0
    %5682 = vmatpush2.msra.mxu0 0.0
    %5683 = vmatprep.subr.mxu0 0.0
    %5684 = vmatpush2.msra.mxu0 0.0
    %5685 = vmatprep.subr.mxu0 0.0
    %5686 = vmatpush2.msra.mxu0 0.0
    %5687 = vmatprep.subr.mxu0 0.0
    %5688 = vmatpush2.msra.mxu0 0.0
    %5689 = vmatprep.subr.mxu0 0.0
    %5690 = vmatpush2.msra.mxu0 0.0
    %5691 = vmatprep.subr.mxu0 0.0
    %5692 = vmatpush2.msra.mxu0 0.0
    %5693 = vmatprep.subr.mxu0 0.0
    %5694 = vmatpush2.msra.mxu0 0.0
    %5695 = vmatprep.subr.mxu0 0.0
    %5696 = vmatpush2.msra.mxu0 0.0
    %5697 = vmatprep.subr.mxu0 0.0
    %5698 = vmatpush2.msra.mxu0 0.0
    %5699 = vmatprep.subr.mxu0 0.0
    %5700 = vmatpush2.msra.mxu0 0.0
    %5701 = vmatprep.subr.mxu0 0.0
    %5702 = vmatpush2.msra.mxu0 0.0
    %5703 = vmatprep.subr.mxu0 0.0
    %5704 = vmatpush2.msra.mxu0 0.0
    %5705 = vmatprep.mubr.f32.mxu0 0.0
    %5706 = vmatmul.mubr.f32.gmra.mxu0 %v5428
    %v5707 = vpop.f32.mrf.mxu0
    %v5708 = vadd.f32 %v5409, %v5707
    %v5709 = vpop.f32.mrf.mxu0
    %v5710 = vadd.f32 %v5409, %v5709
    %5711 = vmatprep.mubr.f32.mxu0 0.0
    %5712 = vmatmul.mubr.f32.gmra.mxu0 %v5431
    %v5713 = vpop.f32.mrf.mxu0
    %v5714 = vadd.f32 %v5414, %v5713
    %v5715 = vpop.f32.mrf.mxu0
    %v5716 = vadd.f32 %v5414, %v5715
    %5717 = vmatprep.mubr.f32.mxu0 0.0
    %5718 = vmatmul.mubr.f32.gmra.mxu0 %v5434
    %v5719 = vpop.f32.mrf.mxu0
    %v5720 = vadd.f32 %v5419, %v5719
    %v5721 = vpop.f32.mrf.mxu0
    %v5722 = vadd.f32 %v5419, %v5721
    %5723 = vmatprep.mubr.f32.mxu0 0.0
    %5724 = vmatmul.mubr.f32.gmra.mxu0 %v5437
    %v5725 = vpop.f32.mrf.mxu0
    %v5726 = vadd.f32 %v5424, %v5725
    %v5727 = vpop.f32.mrf.mxu0
    %v5728 = vadd.f32 %v5424, %v5727
    %5729 = vdwg.mxu0
    %5730 = vmatprep.subr.mxu0 0.0
    %5731 = vmatpush1.msra.mxu0 0.0
    %5732 = vmatprep.subr.mxu0 0.0
    %5733 = vmatpush1.msra.mxu0 0.0
    %5734 = vmatprep.subr.mxu0 0.0
    %5735 = vmatpush1.msra.mxu0 0.0
    %5736 = vmatprep.subr.mxu0 0.0
    %5737 = vmatpush1.msra.mxu0 0.0
    %5738 = vmatprep.subr.mxu0 0.0
    %5739 = vmatpush1.msra.mxu0 0.0
    %5740 = vmatprep.subr.mxu0 0.0
    %5741 = vmatpush1.msra.mxu0 0.0
    %5742 = vmatprep.subr.mxu0 0.0
    %5743 = vmatpush1.msra.mxu0 0.0
    %5744 = vmatprep.subr.mxu0 0.0
    %5745 = vmatpush1.msra.mxu0 0.0
    %5746 = vmatprep.subr.mxu0 0.0
    %5747 = vmatpush1.msra.mxu0 0.0
    %5748 = vmatprep.subr.mxu0 0.0
    %5749 = vmatpush1.msra.mxu0 0.0
    %5750 = vmatprep.subr.mxu0 0.0
    %5751 = vmatpush1.msra.mxu0 0.0
    %5752 = vmatprep.subr.mxu0 0.0
    %5753 = vmatpush1.msra.mxu0 0.0
    %5754 = vmatprep.subr.mxu0 %v5453
    %5755 = vmatpush1.msra.mxu0 %v5451
    %5756 = vmatprep.subr.mxu0 %v5341
    %5757 = vmatpush1.msra.mxu0 %v5339
    %5758 = vmatprep.subr.mxu0 %v5393
    %5759 = vmatpush1.msra.mxu0 %v5392
    %5760 = vmatprep.subr.mxu0 %v5381
    %5761 = vmatpush1.msra.mxu0 %v5380
    %5762 = vmatprep.subr.mxu0 0.0
    %5763 = vmatpush2.msra.mxu0 0.0
    %5764 = vmatprep.subr.mxu0 0.0
    %5765 = vmatpush2.msra.mxu0 0.0
    %5766 = vmatprep.subr.mxu0 0.0
    %5767 = vmatpush2.msra.mxu0 0.0
    %5768 = vmatprep.subr.mxu0 0.0
    %5769 = vmatpush2.msra.mxu0 0.0
    %5770 = vmatprep.subr.mxu0 0.0
    %5771 = vmatpush2.msra.mxu0 0.0
    %5772 = vmatprep.subr.mxu0 0.0
    %5773 = vmatpush2.msra.mxu0 0.0
    %5774 = vmatprep.subr.mxu0 0.0
    %5775 = vmatpush2.msra.mxu0 0.0
    %5776 = vmatprep.subr.mxu0 0.0
    %5777 = vmatpush2.msra.mxu0 0.0
    %5778 = vmatprep.subr.mxu0 0.0
    %5779 = vmatpush2.msra.mxu0 0.0
    %5780 = vmatprep.subr.mxu0 0.0
    %5781 = vmatpush2.msra.mxu0 0.0
    %5782 = vmatprep.subr.mxu0 0.0
    %5783 = vmatpush2.msra.mxu0 0.0
    %5784 = vmatprep.subr.mxu0 0.0
    %5785 = vmatpush2.msra.mxu0 0.0
    %5786 = vmatprep.subr.mxu0 0.0
    %5787 = vmatpush2.msra.mxu0 0.0
    %5788 = vmatprep.subr.mxu0 0.0
    %5789 = vmatpush2.msra.mxu0 0.0
    %5790 = vmatprep.subr.mxu0 0.0
    %5791 = vmatpush2.msra.mxu0 0.0
    %5792 = vmatprep.subr.mxu0 0.0
    %5793 = vmatpush2.msra.mxu0 0.0
    %5794 = vmatprep.mubr.f32.mxu0 0.0
    %5795 = vmatmul.mubr.f32.gmra.mxu0 %v5428
    %v5796 = vpop.f32.mrf.mxu0
    %v5797 = vadd.f32 %v5409, %v5796
    %v5798 = vpop.f32.mrf.mxu0
    %v5799 = vadd.f32 %v5409, %v5798
    %5800 = vmatprep.mubr.f32.mxu0 0.0
    %5801 = vmatmul.mubr.f32.gmra.mxu0 %v5431
    %v5802 = vpop.f32.mrf.mxu0
    %v5803 = vadd.f32 %v5414, %v5802
    %v5804 = vpop.f32.mrf.mxu0
    %v5805 = vadd.f32 %v5414, %v5804
    %5806 = vmatprep.mubr.f32.mxu0 0.0
    %5807 = vmatmul.mubr.f32.gmra.mxu0 %v5434
    %v5808 = vpop.f32.mrf.mxu0
    %v5809 = vadd.f32 %v5419, %v5808
    %v5810 = vpop.f32.mrf.mxu0
    %v5811 = vadd.f32 %v5419, %v5810
    %5812 = vmatprep.mubr.f32.mxu0 0.0
    %5813 = vmatmul.mubr.f32.gmra.mxu0 %v5437
    %v5814 = vpop.f32.mrf.mxu0
    %v5815 = vadd.f32 %v5424, %v5814
    %v5816 = vpop.f32.mrf.mxu0
    %v5817 = vadd.f32 %v5424, %v5816
    %5818 = vdwg.mxu0
    %5819 = vmatprep.subr.mxu0 0.0
    %5820 = vmatpush1.msra.mxu0 0.0
    %5821 = vmatprep.subr.mxu0 0.0
    %5822 = vmatpush1.msra.mxu0 0.0
    %5823 = vmatprep.subr.mxu0 0.0
    %5824 = vmatpush1.msra.mxu0 0.0
    %5825 = vmatprep.subr.mxu0 0.0
    %5826 = vmatpush1.msra.mxu0 0.0
    %5827 = vmatprep.subr.mxu0 0.0
    %5828 = vmatpush1.msra.mxu0 0.0
    %5829 = vmatprep.subr.mxu0 0.0
    %5830 = vmatpush1.msra.mxu0 0.0
    %5831 = vmatprep.subr.mxu0 0.0
    %5832 = vmatpush1.msra.mxu0 0.0
    %5833 = vmatprep.subr.mxu0 0.0
    %5834 = vmatpush1.msra.mxu0 0.0
    %5835 = vmatprep.subr.mxu0 0.0
    %5836 = vmatpush1.msra.mxu0 0.0
    %5837 = vmatprep.subr.mxu0 0.0
    %5838 = vmatpush1.msra.mxu0 0.0
    %5839 = vmatprep.subr.mxu0 0.0
    %5840 = vmatpush1.msra.mxu0 0.0
    %5841 = vmatprep.subr.mxu0 0.0
    %5842 = vmatpush1.msra.mxu0 0.0
    %5843 = vmatprep.subr.mxu0 %v5457
    %5844 = vmatpush1.msra.mxu0 %v5455
    %5845 = vmatprep.subr.mxu0 %v5345
    %5846 = vmatpush1.msra.mxu0 %v5343
    %5847 = vmatprep.subr.mxu0 %v5395
    %5848 = vmatpush1.msra.mxu0 %v5394
    %5849 = vmatprep.subr.mxu0 %v5383
    %5850 = vmatpush1.msra.mxu0 %v5382
    %5851 = vmatprep.subr.mxu0 0.0
    %5852 = vmatpush2.msra.mxu0 0.0
    %5853 = vmatprep.subr.mxu0 0.0
    %5854 = vmatpush2.msra.mxu0 0.0
    %5855 = vmatprep.subr.mxu0 0.0
    %5856 = vmatpush2.msra.mxu0 0.0
    %5857 = vmatprep.subr.mxu0 0.0
    %5858 = vmatpush2.msra.mxu0 0.0
    %5859 = vmatprep.subr.mxu0 0.0
    %5860 = vmatpush2.msra.mxu0 0.0
    %5861 = vmatprep.subr.mxu0 0.0
    %5862 = vmatpush2.msra.mxu0 0.0
    %5863 = vmatprep.subr.mxu0 0.0
    %5864 = vmatpush2.msra.mxu0 0.0
    %5865 = vmatprep.subr.mxu0 0.0
    %5866 = vmatpush2.msra.mxu0 0.0
    %5867 = vmatprep.subr.mxu0 0.0
    %5868 = vmatpush2.msra.mxu0 0.0
    %5869 = vmatprep.subr.mxu0 0.0
    %5870 = vmatpush2.msra.mxu0 0.0
    %5871 = vmatprep.subr.mxu0 0.0
    %5872 = vmatpush2.msra.mxu0 0.0
    %5873 = vmatprep.subr.mxu0 0.0
    %5874 = vmatpush2.msra.mxu0 0.0
    %5875 = vmatprep.subr.mxu0 0.0
    %5876 = vmatpush2.msra.mxu0 0.0
    %5877 = vmatprep.subr.mxu0 0.0
    %5878 = vmatpush2.msra.mxu0 0.0
    %5879 = vmatprep.subr.mxu0 0.0
    %5880 = vmatpush2.msra.mxu0 0.0
    %5881 = vmatprep.subr.mxu0 0.0
    %5882 = vmatpush2.msra.mxu0 0.0
    %5883 = vmatprep.mubr.f32.mxu0 0.0
    %5884 = vmatmul.mubr.f32.gmra.mxu0 %v5428
    %v5885 = vpop.f32.mrf.mxu0
    %v5886 = vadd.f32 %v5409, %v5885
    %v5887 = vpop.f32.mrf.mxu0
    %v5888 = vadd.f32 %v5409, %v5887
    %5889 = vmatprep.mubr.f32.mxu0 0.0
    %5890 = vmatmul.mubr.f32.gmra.mxu0 %v5431
    %v5891 = vpop.f32.mrf.mxu0
    %v5892 = vadd.f32 %v5414, %v5891
    %v5893 = vpop.f32.mrf.mxu0
    %v5894 = vadd.f32 %v5414, %v5893
    %5895 = vmatprep.mubr.f32.mxu0 0.0
    %5896 = vmatmul.mubr.f32.gmra.mxu0 %v5434
    %v5897 = vpop.f32.mrf.mxu0
    %v5898 = vadd.f32 %v5419, %v5897
    %v5899 = vpop.f32.mrf.mxu0
    %v5900 = vadd.f32 %v5419, %v5899
    %5901 = vmatprep.mubr.f32.mxu0 0.0
    %5902 = vmatmul.mubr.f32.gmra.mxu0 %v5437
    %v5903 = vpop.f32.mrf.mxu0
    %v5904 = vadd.f32 %v5424, %v5903
    %v5905 = vpop.f32.mrf.mxu0
    %v5906 = vadd.f32 %v5424, %v5905
    %5907 = vdwg.mxu0
    %5908 = vmatprep.subr.mxu0 0.0
    %5909 = vmatpush1.msra.mxu0 0.0
    %5910 = vmatprep.subr.mxu0 0.0
    %5911 = vmatpush1.msra.mxu0 0.0
    %5912 = vmatprep.subr.mxu0 0.0
    %5913 = vmatpush1.msra.mxu0 0.0
    %5914 = vmatprep.subr.mxu0 0.0
    %5915 = vmatpush1.msra.mxu0 0.0
    %5916 = vmatprep.subr.mxu0 0.0
    %5917 = vmatpush1.msra.mxu0 0.0
    %5918 = vmatprep.subr.mxu0 0.0
    %5919 = vmatpush1.msra.mxu0 0.0
    %5920 = vmatprep.subr.mxu0 0.0
    %5921 = vmatpush1.msra.mxu0 0.0
    %5922 = vmatprep.subr.mxu0 0.0
    %5923 = vmatpush1.msra.mxu0 0.0
    %5924 = vmatprep.subr.mxu0 0.0
    %5925 = vmatpush1.msra.mxu0 0.0
    %5926 = vmatprep.subr.mxu0 0.0
    %5927 = vmatpush1.msra.mxu0 0.0
    %5928 = vmatprep.subr.mxu0 0.0
    %5929 = vmatpush1.msra.mxu0 0.0
    %5930 = vmatprep.subr.mxu0 0.0
    %5931 = vmatpush1.msra.mxu0 0.0
    %5932 = vmatprep.subr.mxu0 %v5461
    %5933 = vmatpush1.msra.mxu0 %v5459
    %5934 = vmatprep.subr.mxu0 %v5349
    %5935 = vmatpush1.msra.mxu0 %v5347
    %5936 = vmatprep.subr.mxu0 %v5397
    %5937 = vmatpush1.msra.mxu0 %v5396
    %5938 = vmatprep.subr.mxu0 %v5385
    %5939 = vmatpush1.msra.mxu0 %v5384
    %5940 = vmatprep.subr.mxu0 0.0
    %5941 = vmatpush2.msra.mxu0 0.0
    %5942 = vmatprep.subr.mxu0 0.0
    %5943 = vmatpush2.msra.mxu0 0.0
    %5944 = vmatprep.subr.mxu0 0.0
    %5945 = vmatpush2.msra.mxu0 0.0
    %5946 = vmatprep.subr.mxu0 0.0
    %5947 = vmatpush2.msra.mxu0 0.0
    %5948 = vmatprep.subr.mxu0 0.0
    %5949 = vmatpush2.msra.mxu0 0.0
    %5950 = vmatprep.subr.mxu0 0.0
    %5951 = vmatpush2.msra.mxu0 0.0
    %5952 = vmatprep.subr.mxu0 0.0
    %5953 = vmatpush2.msra.mxu0 0.0
    %5954 = vmatprep.subr.mxu0 0.0
    %5955 = vmatpush2.msra.mxu0 0.0
    %5956 = vmatprep.subr.mxu0 0.0
    %5957 = vmatpush2.msra.mxu0 0.0
    %5958 = vmatprep.subr.mxu0 0.0
    %5959 = vmatpush2.msra.mxu0 0.0
    %5960 = vmatprep.subr.mxu0 0.0
    %5961 = vmatpush2.msra.mxu0 0.0
    %5962 = vmatprep.subr.mxu0 0.0
    %5963 = vmatpush2.msra.mxu0 0.0
    %5964 = vmatprep.subr.mxu0 0.0
    %5965 = vmatpush2.msra.mxu0 0.0
    %5966 = vmatprep.subr.mxu0 0.0
    %5967 = vmatpush2.msra.mxu0 0.0
    %5968 = vmatprep.subr.mxu0 0.0
    %5969 = vmatpush2.msra.mxu0 0.0
    %5970 = vmatprep.subr.mxu0 0.0
    %5971 = vmatpush2.msra.mxu0 0.0
    %5972 = vmatprep.mubr.f32.mxu0 0.0
    %5973 = vmatmul.mubr.f32.gmra.mxu0 %v5428
    %v5974 = vpop.f32.mrf.mxu0
    %v5975 = vadd.f32 %v5409, %v5974
    %v5976 = vpop.f32.mrf.mxu0
    %v5977 = vadd.f32 %v5409, %v5976
    %5978 = vmatprep.mubr.f32.mxu0 0.0
    %5979 = vmatmul.mubr.f32.gmra.mxu0 %v5431
    %v5980 = vpop.f32.mrf.mxu0
    %v5981 = vadd.f32 %v5414, %v5980
    %v5982 = vpop.f32.mrf.mxu0
    %v5983 = vadd.f32 %v5414, %v5982
    %5984 = vmatprep.mubr.f32.mxu0 0.0
    %5985 = vmatmul.mubr.f32.gmra.mxu0 %v5434
    %v5986 = vpop.f32.mrf.mxu0
    %v5987 = vadd.f32 %v5419, %v5986
    %v5988 = vpop.f32.mrf.mxu0
    %v5989 = vadd.f32 %v5419, %v5988
    %5990 = vmatprep.mubr.f32.mxu0 0.0
    %5991 = vmatmul.mubr.f32.gmra.mxu0 %v5437
    %v5992 = vpop.f32.mrf.mxu0
    %v5993 = vadd.f32 %v5424, %v5992
    %v5994 = vpop.f32.mrf.mxu0
    %v5995 = vadd.f32 %v5424, %v5994
    %5996 = vdwg.mxu0
    %v5997 = vmul.f32 %v5530, 100.0
    %v5998 = vmul.f32 %v5532, 100.0
    %v5999 = vmul.f32 %v5619, 100.0
    %v6000 = vmul.f32 %v5621, 100.0
    %v6001 = vmul.f32 %v5708, 100.0
    %v6002 = vmul.f32 %v5710, 100.0
    %v6003 = vmul.f32 %v5797, 100.0
    %v6004 = vmul.f32 %v5799, 100.0
    %v6005 = vmul.f32 %v5886, 100.0
    %v6006 = vmul.f32 %v5888, 100.0
    %v6007 = vmul.f32 %v5975, 100.0
    %v6008 = vmul.f32 %v5977, 100.0
    %v6009 = vmul.f32 %v5536, 100.0
    %v6010 = vmul.f32 %v5538, 100.0
    %v6011 = vmul.f32 %v5625, 100.0
    %v6012 = vmul.f32 %v5627, 100.0
    %v6013 = vmul.f32 %v5714, 100.0
    %v6014 = vmul.f32 %v5716, 100.0
    %v6015 = vmul.f32 %v5803, 100.0
    %v6016 = vmul.f32 %v5805, 100.0
    %v6017 = vmul.f32 %v5892, 100.0
    %v6018 = vmul.f32 %v5894, 100.0
    %v6019 = vmul.f32 %v5981, 100.0
    %v6020 = vmul.f32 %v5983, 100.0
    %v6021 = vmul.f32 %v5542, 100.0
    %v6022 = vmul.f32 %v5544, 100.0
    %v6023 = vmul.f32 %v5631, 100.0
    %v6024 = vmul.f32 %v5633, 100.0
    %v6025 = vmul.f32 %v5720, 100.0
    %v6026 = vmul.f32 %v5722, 100.0
    %v6027 = vmul.f32 %v5809, 100.0
    %v6028 = vmul.f32 %v5811, 100.0
    %v6029 = vmul.f32 %v5898, 100.0
    %v6030 = vmul.f32 %v5900, 100.0
    %v6031 = vmul.f32 %v5987, 100.0
    %v6032 = vmul.f32 %v5989, 100.0
    %v6033 = vmul.f32 %v5548, 100.0
    %v6034 = vmul.f32 %v5550, 100.0
    %v6035 = vmul.f32 %v5637, 100.0
    %v6036 = vmul.f32 %v5639, 100.0
    %v6037 = vmul.f32 %v5726, 100.0
    %v6038 = vmul.f32 %v5728, 100.0
    %v6039 = vmul.f32 %v5815, 100.0
    %v6040 = vmul.f32 %v5817, 100.0
    %v6041 = vmul.f32 %v5904, 100.0
    %v6042 = vmul.f32 %v5906, 100.0
    %v6043 = vmul.f32 %v5993, 100.0
    %v6044 = vmul.f32 %v5995, 100.0
    %v6045 = vmin.f32 %v5997, 20.0
    %v6046 = vmin.f32 %v5998, 20.0
    %v6047 = vmin.f32 %v5999, 20.0
    %v6048 = vmin.f32 %v6000, 20.0
    %v6049 = vmin.f32 %v6001, 20.0
    %v6050 = vmin.f32 %v6002, 20.0
    %v6051 = vmin.f32 %v6003, 20.0
    %v6052 = vmin.f32 %v6004, 20.0
    %v6053 = vmin.f32 %v6005, 20.0
    %v6054 = vmin.f32 %v6006, 20.0
    %v6055 = vmin.f32 %v6007, 20.0
    %v6056 = vmin.f32 %v6008, 20.0
    %v6057 = vmin.f32 %v6009, 20.0
    %v6058 = vmin.f32 %v6010, 20.0
    %v6059 = vmin.f32 %v6011, 20.0
    %v6060 = vmin.f32 %v6012, 20.0
    %v6061 = vmin.f32 %v6013, 20.0
    %v6062 = vmin.f32 %v6014, 20.0
    %v6063 = vmin.f32 %v6015, 20.0
    %v6064 = vmin.f32 %v6016, 20.0
    %v6065 = vmin.f32 %v6017, 20.0
    %v6066 = vmin.f32 %v6018, 20.0
    %v6067 = vmin.f32 %v6019, 20.0
    %v6068 = vmin.f32 %v6020, 20.0
    %v6069 = vmin.f32 %v6021, 20.0
    %v6070 = vmin.f32 %v6022, 20.0
    %v6071 = vmin.f32 %v6023, 20.0
    %v6072 = vmin.f32 %v6024, 20.0
    %v6073 = vmin.f32 %v6025, 20.0
    %v6074 = vmin.f32 %v6026, 20.0
    %v6075 = vmin.f32 %v6027, 20.0
    %v6076 = vmin.f32 %v6028, 20.0
    %v6077 = vmin.f32 %v6029, 20.0
    %v6078 = vmin.f32 %v6030, 20.0
    %v6079 = vmin.f32 %v6031, 20.0
    %v6080 = vmin.f32 %v6032, 20.0
    %v6081 = vmin.f32 %v6033, 20.0
    %v6082 = vmin.f32 %v6034, 20.0
    %v6083 = vmin.f32 %v6035, 20.0
    %v6084 = vmin.f32 %v6036, 20.0
    %v6085 = vmin.f32 %v6037, 20.0
    %v6086 = vmin.f32 %v6038, 20.0
    %v6087 = vmin.f32 %v6039, 20.0
    %v6088 = vmin.f32 %v6040, 20.0
    %v6089 = vmin.f32 %v6041, 20.0
    %v6090 = vmin.f32 %v6042, 20.0
    %v6091 = vmin.f32 %v6043, 20.0
    %v6092 = vmin.f32 %v6044, 20.0
    %v6093 = vmul.f32 %v6045, 1.442695
    %v6094 = vpow.pop %v6093
    %v6095 = vmul.f32 %v6046, 1.442695
    %v6096 = vpow.pop %v6095
    %v6097 = vmul.f32 %v6047, 1.442695
    %v6098 = vpow.pop %v6097
    %v6099 = vmul.f32 %v6048, 1.442695
    %v6100 = vpow.pop %v6099
    %v6101 = vmul.f32 %v6049, 1.442695
    %v6102 = vpow.pop %v6101
    %v6103 = vmul.f32 %v6050, 1.442695
    %v6104 = vpow.pop %v6103
    %v6105 = vmul.f32 %v6051, 1.442695
    %v6106 = vpow.pop %v6105
    %v6107 = vmul.f32 %v6052, 1.442695
    %v6108 = vpow.pop %v6107
    %v6109 = vmul.f32 %v6053, 1.442695
    %v6110 = vpow.pop %v6109
    %v6111 = vmul.f32 %v6054, 1.442695
    %v6112 = vpow.pop %v6111
    %v6113 = vmul.f32 %v6055, 1.442695
    %v6114 = vpow.pop %v6113
    %v6115 = vmul.f32 %v6056, 1.442695
    %v6116 = vpow.pop %v6115
    %v6117 = vmul.f32 %v6057, 1.442695
    %v6118 = vpow.pop %v6117
    %v6119 = vmul.f32 %v6058, 1.442695
    %v6120 = vpow.pop %v6119
    %v6121 = vmul.f32 %v6059, 1.442695
    %v6122 = vpow.pop %v6121
    %v6123 = vmul.f32 %v6060, 1.442695
    %v6124 = vpow.pop %v6123
    %v6125 = vmul.f32 %v6061, 1.442695
    %v6126 = vpow.pop %v6125
    %v6127 = vmul.f32 %v6062, 1.442695
    %v6128 = vpow.pop %v6127
    %v6129 = vmul.f32 %v6063, 1.442695
    %v6130 = vpow.pop %v6129
    %v6131 = vmul.f32 %v6064, 1.442695
    %v6132 = vpow.pop %v6131
    %v6133 = vmul.f32 %v6065, 1.442695
    %v6134 = vpow.pop %v6133
    %v6135 = vmul.f32 %v6066, 1.442695
    %v6136 = vpow.pop %v6135
    %v6137 = vmul.f32 %v6067, 1.442695
    %v6138 = vpow.pop %v6137
    %v6139 = vmul.f32 %v6068, 1.442695
    %v6140 = vpow.pop %v6139
    %v6141 = vmul.f32 %v6069, 1.442695
    %v6142 = vpow.pop %v6141
    %v6143 = vmul.f32 %v6070, 1.442695
    %v6144 = vpow.pop %v6143
    %v6145 = vmul.f32 %v6071, 1.442695
    %v6146 = vpow.pop %v6145
    %v6147 = vmul.f32 %v6072, 1.442695
    %v6148 = vpow.pop %v6147
    %v6149 = vmul.f32 %v6073, 1.442695
    %v6150 = vpow.pop %v6149
    %v6151 = vmul.f32 %v6074, 1.442695
    %v6152 = vpow.pop %v6151
    %v6153 = vmul.f32 %v6075, 1.442695
    %v6154 = vpow.pop %v6153
    %v6155 = vmul.f32 %v6076, 1.442695
    %v6156 = vpow.pop %v6155
    %v6157 = vmul.f32 %v6077, 1.442695
    %v6158 = vpow.pop %v6157
    %v6159 = vmul.f32 %v6078, 1.442695
    %v6160 = vpow.pop %v6159
    %v6161 = vmul.f32 %v6079, 1.442695
    %v6162 = vpow.pop %v6161
    %v6163 = vmul.f32 %v6080, 1.442695
    %v6164 = vpow.pop %v6163
    %v6165 = vmul.f32 %v6081, 1.442695
    %v6166 = vpow.pop %v6165
    %v6167 = vmul.f32 %v6082, 1.442695
    %v6168 = vpow.pop %v6167
    %v6169 = vmul.f32 %v6083, 1.442695
    %v6170 = vpow.pop %v6169
    %v6171 = vmul.f32 %v6084, 1.442695
    %v6172 = vpow.pop %v6171
    %v6173 = vmul.f32 %v6085, 1.442695
    %v6174 = vpow.pop %v6173
    %v6175 = vmul.f32 %v6086, 1.442695
    %v6176 = vpow.pop %v6175
    %v6177 = vmul.f32 %v6087, 1.442695
    %v6178 = vpow.pop %v6177
    %v6179 = vmul.f32 %v6088, 1.442695
    %v6180 = vpow.pop %v6179
    %v6181 = vmul.f32 %v6089, 1.442695
    %v6182 = vpow.pop %v6181
    %v6183 = vmul.f32 %v6090, 1.442695
    %v6184 = vpow.pop %v6183
    %v6185 = vmul.f32 %v6091, 1.442695
    %v6186 = vpow.pop %v6185
    %v6187 = vmul.f32 %v6092, 1.442695
    %v6188 = vpow.pop %v6187
    %v6189 = vadd.f32 %v6094, 1.0
    %v6190 = vlog2.pop %v6189
    %v6191 = vmul.f32 %v6190, 0.6931472
    %v6192 = vmul.f32 -0.5, %v6094
    %v6193 = vadd.f32 %v6192, 1.0
    %v6194 = vmul.f32 %v6193, %v6094
    %v6195 = vand.u32 2147483647, %v6094
    %vm6196 = vcmp.lt.f32.partialorder %v6195, 0.0004427343
    %v6197 = vsel %vm6196, %v6194, %v6191
    %v6198 = vadd.f32 %v6096, 1.0
    %v6199 = vlog2.pop %v6198
    %v6200 = vmul.f32 %v6199, 0.6931472
    %v6201 = vmul.f32 -0.5, %v6096
    %v6202 = vadd.f32 %v6201, 1.0
    %v6203 = vmul.f32 %v6202, %v6096
    %v6204 = vand.u32 2147483647, %v6096
    %vm6205 = vcmp.lt.f32.partialorder %v6204, 0.0004427343
    %v6206 = vsel %vm6205, %v6203, %v6200
    %v6207 = vadd.f32 %v6098, 1.0
    %v6208 = vlog2.pop %v6207
    %v6209 = vmul.f32 %v6208, 0.6931472
    %v6210 = vmul.f32 -0.5, %v6098
    %v6211 = vadd.f32 %v6210, 1.0
    %v6212 = vmul.f32 %v6211, %v6098
    %v6213 = vand.u32 2147483647, %v6098
    %vm6214 = vcmp.lt.f32.partialorder %v6213, 0.0004427343
    %v6215 = vsel %vm6214, %v6212, %v6209
    %v6216 = vadd.f32 %v6100, 1.0
    %v6217 = vlog2.pop %v6216
    %v6218 = vmul.f32 %v6217, 0.6931472
    %v6219 = vmul.f32 -0.5, %v6100
    %v6220 = vadd.f32 %v6219, 1.0
    %v6221 = vmul.f32 %v6220, %v6100
    %v6222 = vand.u32 2147483647, %v6100
    %vm6223 = vcmp.lt.f32.partialorder %v6222, 0.0004427343
    %v6224 = vsel %vm6223, %v6221, %v6218
    %v6225 = vadd.f32 %v6102, 1.0
    %v6226 = vlog2.pop %v6225
    %v6227 = vmul.f32 %v6226, 0.6931472
    %v6228 = vmul.f32 -0.5, %v6102
    %v6229 = vadd.f32 %v6228, 1.0
    %v6230 = vmul.f32 %v6229, %v6102
    %v6231 = vand.u32 2147483647, %v6102
    %vm6232 = vcmp.lt.f32.partialorder %v6231, 0.0004427343
    %v6233 = vsel %vm6232, %v6230, %v6227
    %v6234 = vadd.f32 %v6104, 1.0
    %v6235 = vlog2.pop %v6234
    %v6236 = vmul.f32 %v6235, 0.6931472
    %v6237 = vmul.f32 -0.5, %v6104
    %v6238 = vadd.f32 %v6237, 1.0
    %v6239 = vmul.f32 %v6238, %v6104
    %v6240 = vand.u32 2147483647, %v6104
    %vm6241 = vcmp.lt.f32.partialorder %v6240, 0.0004427343
    %v6242 = vsel %vm6241, %v6239, %v6236
    %v6243 = vadd.f32 %v6106, 1.0
    %v6244 = vlog2.pop %v6243
    %v6245 = vmul.f32 %v6244, 0.6931472
    %v6246 = vmul.f32 -0.5, %v6106
    %v6247 = vadd.f32 %v6246, 1.0
    %v6248 = vmul.f32 %v6247, %v6106
    %v6249 = vand.u32 2147483647, %v6106
    %vm6250 = vcmp.lt.f32.partialorder %v6249, 0.0004427343
    %v6251 = vsel %vm6250, %v6248, %v6245
    %v6252 = vadd.f32 %v6108, 1.0
    %v6253 = vlog2.pop %v6252
    %v6254 = vmul.f32 %v6253, 0.6931472
    %v6255 = vmul.f32 -0.5, %v6108
    %v6256 = vadd.f32 %v6255, 1.0
    %v6257 = vmul.f32 %v6256, %v6108
    %v6258 = vand.u32 2147483647, %v6108
    %vm6259 = vcmp.lt.f32.partialorder %v6258, 0.0004427343
    %v6260 = vsel %vm6259, %v6257, %v6254
    %v6261 = vadd.f32 %v6110, 1.0
    %v6262 = vlog2.pop %v6261
    %v6263 = vmul.f32 %v6262, 0.6931472
    %v6264 = vmul.f32 -0.5, %v6110
    %v6265 = vadd.f32 %v6264, 1.0
    %v6266 = vmul.f32 %v6265, %v6110
    %v6267 = vand.u32 2147483647, %v6110
    %vm6268 = vcmp.lt.f32.partialorder %v6267, 0.0004427343
    %v6269 = vsel %vm6268, %v6266, %v6263
    %v6270 = vadd.f32 %v6112, 1.0
    %v6271 = vlog2.pop %v6270
    %v6272 = vmul.f32 %v6271, 0.6931472
    %v6273 = vmul.f32 -0.5, %v6112
    %v6274 = vadd.f32 %v6273, 1.0
    %v6275 = vmul.f32 %v6274, %v6112
    %v6276 = vand.u32 2147483647, %v6112
    %vm6277 = vcmp.lt.f32.partialorder %v6276, 0.0004427343
    %v6278 = vsel %vm6277, %v6275, %v6272
    %v6279 = vadd.f32 %v6114, 1.0
    %v6280 = vlog2.pop %v6279
    %v6281 = vmul.f32 %v6280, 0.6931472
    %v6282 = vmul.f32 -0.5, %v6114
    %v6283 = vadd.f32 %v6282, 1.0
    %v6284 = vmul.f32 %v6283, %v6114
    %v6285 = vand.u32 2147483647, %v6114
    %vm6286 = vcmp.lt.f32.partialorder %v6285, 0.0004427343
    %v6287 = vsel %vm6286, %v6284, %v6281
    %v6288 = vadd.f32 %v6116, 1.0
    %v6289 = vlog2.pop %v6288
    %v6290 = vmul.f32 %v6289, 0.6931472
    %v6291 = vmul.f32 -0.5, %v6116
    %v6292 = vadd.f32 %v6291, 1.0
    %v6293 = vmul.f32 %v6292, %v6116
    %v6294 = vand.u32 2147483647, %v6116
    %vm6295 = vcmp.lt.f32.partialorder %v6294, 0.0004427343
    %v6296 = vsel %vm6295, %v6293, %v6290
    %v6297 = vadd.f32 %v6118, 1.0
    %v6298 = vlog2.pop %v6297
    %v6299 = vmul.f32 %v6298, 0.6931472
    %v6300 = vmul.f32 -0.5, %v6118
    %v6301 = vadd.f32 %v6300, 1.0
    %v6302 = vmul.f32 %v6301, %v6118
    %v6303 = vand.u32 2147483647, %v6118
    %vm6304 = vcmp.lt.f32.partialorder %v6303, 0.0004427343
    %v6305 = vsel %vm6304, %v6302, %v6299
    %v6306 = vadd.f32 %v6120, 1.0
    %v6307 = vlog2.pop %v6306
    %v6308 = vmul.f32 %v6307, 0.6931472
    %v6309 = vmul.f32 -0.5, %v6120
    %v6310 = vadd.f32 %v6309, 1.0
    %v6311 = vmul.f32 %v6310, %v6120
    %v6312 = vand.u32 2147483647, %v6120
    %vm6313 = vcmp.lt.f32.partialorder %v6312, 0.0004427343
    %v6314 = vsel %vm6313, %v6311, %v6308
    %v6315 = vadd.f32 %v6122, 1.0
    %v6316 = vlog2.pop %v6315
    %v6317 = vmul.f32 %v6316, 0.6931472
    %v6318 = vmul.f32 -0.5, %v6122
    %v6319 = vadd.f32 %v6318, 1.0
    %v6320 = vmul.f32 %v6319, %v6122
    %v6321 = vand.u32 2147483647, %v6122
    %vm6322 = vcmp.lt.f32.partialorder %v6321, 0.0004427343
    %v6323 = vsel %vm6322, %v6320, %v6317
    %v6324 = vadd.f32 %v6124, 1.0
    %v6325 = vlog2.pop %v6324
    %v6326 = vmul.f32 %v6325, 0.6931472
    %v6327 = vmul.f32 -0.5, %v6124
    %v6328 = vadd.f32 %v6327, 1.0
    %v6329 = vmul.f32 %v6328, %v6124
    %v6330 = vand.u32 2147483647, %v6124
    %vm6331 = vcmp.lt.f32.partialorder %v6330, 0.0004427343
    %v6332 = vsel %vm6331, %v6329, %v6326
    %v6333 = vadd.f32 %v6126, 1.0
    %v6334 = vlog2.pop %v6333
    %v6335 = vmul.f32 %v6334, 0.6931472
    %v6336 = vmul.f32 -0.5, %v6126
    %v6337 = vadd.f32 %v6336, 1.0
    %v6338 = vmul.f32 %v6337, %v6126
    %v6339 = vand.u32 2147483647, %v6126
    %vm6340 = vcmp.lt.f32.partialorder %v6339, 0.0004427343
    %v6341 = vsel %vm6340, %v6338, %v6335
    %v6342 = vadd.f32 %v6128, 1.0
    %v6343 = vlog2.pop %v6342
    %v6344 = vmul.f32 %v6343, 0.6931472
    %v6345 = vmul.f32 -0.5, %v6128
    %v6346 = vadd.f32 %v6345, 1.0
    %v6347 = vmul.f32 %v6346, %v6128
    %v6348 = vand.u32 2147483647, %v6128
    %vm6349 = vcmp.lt.f32.partialorder %v6348, 0.0004427343
    %v6350 = vsel %vm6349, %v6347, %v6344
    %v6351 = vadd.f32 %v6130, 1.0
    %v6352 = vlog2.pop %v6351
    %v6353 = vmul.f32 %v6352, 0.6931472
    %v6354 = vmul.f32 -0.5, %v6130
    %v6355 = vadd.f32 %v6354, 1.0
    %v6356 = vmul.f32 %v6355, %v6130
    %v6357 = vand.u32 2147483647, %v6130
    %vm6358 = vcmp.lt.f32.partialorder %v6357, 0.0004427343
    %v6359 = vsel %vm6358, %v6356, %v6353
    %v6360 = vadd.f32 %v6132, 1.0
    %v6361 = vlog2.pop %v6360
    %v6362 = vmul.f32 %v6361, 0.6931472
    %v6363 = vmul.f32 -0.5, %v6132
    %v6364 = vadd.f32 %v6363, 1.0
    %v6365 = vmul.f32 %v6364, %v6132
    %v6366 = vand.u32 2147483647, %v6132
    %vm6367 = vcmp.lt.f32.partialorder %v6366, 0.0004427343
    %v6368 = vsel %vm6367, %v6365, %v6362
    %v6369 = vadd.f32 %v6134, 1.0
    %v6370 = vlog2.pop %v6369
    %v6371 = vmul.f32 %v6370, 0.6931472
    %v6372 = vmul.f32 -0.5, %v6134
    %v6373 = vadd.f32 %v6372, 1.0
    %v6374 = vmul.f32 %v6373, %v6134
    %v6375 = vand.u32 2147483647, %v6134
    %vm6376 = vcmp.lt.f32.partialorder %v6375, 0.0004427343
    %v6377 = vsel %vm6376, %v6374, %v6371
    %v6378 = vadd.f32 %v6136, 1.0
    %v6379 = vlog2.pop %v6378
    %v6380 = vmul.f32 %v6379, 0.6931472
    %v6381 = vmul.f32 -0.5, %v6136
    %v6382 = vadd.f32 %v6381, 1.0
    %v6383 = vmul.f32 %v6382, %v6136
    %v6384 = vand.u32 2147483647, %v6136
    %vm6385 = vcmp.lt.f32.partialorder %v6384, 0.0004427343
    %v6386 = vsel %vm6385, %v6383, %v6380
    %v6387 = vadd.f32 %v6138, 1.0
    %v6388 = vlog2.pop %v6387
    %v6389 = vmul.f32 %v6388, 0.6931472
    %v6390 = vmul.f32 -0.5, %v6138
    %v6391 = vadd.f32 %v6390, 1.0
    %v6392 = vmul.f32 %v6391, %v6138
    %v6393 = vand.u32 2147483647, %v6138
    %vm6394 = vcmp.lt.f32.partialorder %v6393, 0.0004427343
    %v6395 = vsel %vm6394, %v6392, %v6389
    %v6396 = vadd.f32 %v6140, 1.0
    %v6397 = vlog2.pop %v6396
    %v6398 = vmul.f32 %v6397, 0.6931472
    %v6399 = vmul.f32 -0.5, %v6140
    %v6400 = vadd.f32 %v6399, 1.0
    %v6401 = vmul.f32 %v6400, %v6140
    %v6402 = vand.u32 2147483647, %v6140
    %vm6403 = vcmp.lt.f32.partialorder %v6402, 0.0004427343
    %v6404 = vsel %vm6403, %v6401, %v6398
    %v6405 = vadd.f32 %v6142, 1.0
    %v6406 = vlog2.pop %v6405
    %v6407 = vmul.f32 %v6406, 0.6931472
    %v6408 = vmul.f32 -0.5, %v6142
    %v6409 = vadd.f32 %v6408, 1.0
    %v6410 = vmul.f32 %v6409, %v6142
    %v6411 = vand.u32 2147483647, %v6142
    %vm6412 = vcmp.lt.f32.partialorder %v6411, 0.0004427343
    %v6413 = vsel %vm6412, %v6410, %v6407
    %v6414 = vadd.f32 %v6144, 1.0
    %v6415 = vlog2.pop %v6414
    %v6416 = vmul.f32 %v6415, 0.6931472
    %v6417 = vmul.f32 -0.5, %v6144
    %v6418 = vadd.f32 %v6417, 1.0
    %v6419 = vmul.f32 %v6418, %v6144
    %v6420 = vand.u32 2147483647, %v6144
    %vm6421 = vcmp.lt.f32.partialorder %v6420, 0.0004427343
    %v6422 = vsel %vm6421, %v6419, %v6416
    %v6423 = vadd.f32 %v6146, 1.0
    %v6424 = vlog2.pop %v6423
    %v6425 = vmul.f32 %v6424, 0.6931472
    %v6426 = vmul.f32 -0.5, %v6146
    %v6427 = vadd.f32 %v6426, 1.0
    %v6428 = vmul.f32 %v6427, %v6146
    %v6429 = vand.u32 2147483647, %v6146
    %vm6430 = vcmp.lt.f32.partialorder %v6429, 0.0004427343
    %v6431 = vsel %vm6430, %v6428, %v6425
    %v6432 = vadd.f32 %v6148, 1.0
    %v6433 = vlog2.pop %v6432
    %v6434 = vmul.f32 %v6433, 0.6931472
    %v6435 = vmul.f32 -0.5, %v6148
    %v6436 = vadd.f32 %v6435, 1.0
    %v6437 = vmul.f32 %v6436, %v6148
    %v6438 = vand.u32 2147483647, %v6148
    %vm6439 = vcmp.lt.f32.partialorder %v6438, 0.0004427343
    %v6440 = vsel %vm6439, %v6437, %v6434
    %v6441 = vadd.f32 %v6150, 1.0
    %v6442 = vlog2.pop %v6441
    %v6443 = vmul.f32 %v6442, 0.6931472
    %v6444 = vmul.f32 -0.5, %v6150
    %v6445 = vadd.f32 %v6444, 1.0
    %v6446 = vmul.f32 %v6445, %v6150
    %v6447 = vand.u32 2147483647, %v6150
    %vm6448 = vcmp.lt.f32.partialorder %v6447, 0.0004427343
    %v6449 = vsel %vm6448, %v6446, %v6443
    %v6450 = vadd.f32 %v6152, 1.0
    %v6451 = vlog2.pop %v6450
    %v6452 = vmul.f32 %v6451, 0.6931472
    %v6453 = vmul.f32 -0.5, %v6152
    %v6454 = vadd.f32 %v6453, 1.0
    %v6455 = vmul.f32 %v6454, %v6152
    %v6456 = vand.u32 2147483647, %v6152
    %vm6457 = vcmp.lt.f32.partialorder %v6456, 0.0004427343
    %v6458 = vsel %vm6457, %v6455, %v6452
    %v6459 = vadd.f32 %v6154, 1.0
    %v6460 = vlog2.pop %v6459
    %v6461 = vmul.f32 %v6460, 0.6931472
    %v6462 = vmul.f32 -0.5, %v6154
    %v6463 = vadd.f32 %v6462, 1.0
    %v6464 = vmul.f32 %v6463, %v6154
    %v6465 = vand.u32 2147483647, %v6154
    %vm6466 = vcmp.lt.f32.partialorder %v6465, 0.0004427343
    %v6467 = vsel %vm6466, %v6464, %v6461
    %v6468 = vadd.f32 %v6156, 1.0
    %v6469 = vlog2.pop %v6468
    %v6470 = vmul.f32 %v6469, 0.6931472
    %v6471 = vmul.f32 -0.5, %v6156
    %v6472 = vadd.f32 %v6471, 1.0
    %v6473 = vmul.f32 %v6472, %v6156
    %v6474 = vand.u32 2147483647, %v6156
    %vm6475 = vcmp.lt.f32.partialorder %v6474, 0.0004427343
    %v6476 = vsel %vm6475, %v6473, %v6470
    %v6477 = vadd.f32 %v6158, 1.0
    %v6478 = vlog2.pop %v6477
    %v6479 = vmul.f32 %v6478, 0.6931472
    %v6480 = vmul.f32 -0.5, %v6158
    %v6481 = vadd.f32 %v6480, 1.0
    %v6482 = vmul.f32 %v6481, %v6158
    %v6483 = vand.u32 2147483647, %v6158
    %vm6484 = vcmp.lt.f32.partialorder %v6483, 0.0004427343
    %v6485 = vsel %vm6484, %v6482, %v6479
    %v6486 = vadd.f32 %v6160, 1.0
    %v6487 = vlog2.pop %v6486
    %v6488 = vmul.f32 %v6487, 0.6931472
    %v6489 = vmul.f32 -0.5, %v6160
    %v6490 = vadd.f32 %v6489, 1.0
    %v6491 = vmul.f32 %v6490, %v6160
    %v6492 = vand.u32 2147483647, %v6160
    %vm6493 = vcmp.lt.f32.partialorder %v6492, 0.0004427343
    %v6494 = vsel %vm6493, %v6491, %v6488
    %v6495 = vadd.f32 %v6162, 1.0
    %v6496 = vlog2.pop %v6495
    %v6497 = vmul.f32 %v6496, 0.6931472
    %v6498 = vmul.f32 -0.5, %v6162
    %v6499 = vadd.f32 %v6498, 1.0
    %v6500 = vmul.f32 %v6499, %v6162
    %v6501 = vand.u32 2147483647, %v6162
    %vm6502 = vcmp.lt.f32.partialorder %v6501, 0.0004427343
    %v6503 = vsel %vm6502, %v6500, %v6497
    %v6504 = vadd.f32 %v6164, 1.0
    %v6505 = vlog2.pop %v6504
    %v6506 = vmul.f32 %v6505, 0.6931472
    %v6507 = vmul.f32 -0.5, %v6164
    %v6508 = vadd.f32 %v6507, 1.0
    %v6509 = vmul.f32 %v6508, %v6164
    %v6510 = vand.u32 2147483647, %v6164
    %vm6511 = vcmp.lt.f32.partialorder %v6510, 0.0004427343
    %v6512 = vsel %vm6511, %v6509, %v6506
    %v6513 = vadd.f32 %v6166, 1.0
    %v6514 = vlog2.pop %v6513
    %v6515 = vmul.f32 %v6514, 0.6931472
    %v6516 = vmul.f32 -0.5, %v6166
    %v6517 = vadd.f32 %v6516, 1.0
    %v6518 = vmul.f32 %v6517, %v6166
    %v6519 = vand.u32 2147483647, %v6166
    %vm6520 = vcmp.lt.f32.partialorder %v6519, 0.0004427343
    %v6521 = vsel %vm6520, %v6518, %v6515
    %v6522 = vadd.f32 %v6168, 1.0
    %v6523 = vlog2.pop %v6522
    %v6524 = vmul.f32 %v6523, 0.6931472
    %v6525 = vmul.f32 -0.5, %v6168
    %v6526 = vadd.f32 %v6525, 1.0
    %v6527 = vmul.f32 %v6526, %v6168
    %v6528 = vand.u32 2147483647, %v6168
    %vm6529 = vcmp.lt.f32.partialorder %v6528, 0.0004427343
    %v6530 = vsel %vm6529, %v6527, %v6524
    %v6531 = vadd.f32 %v6170, 1.0
    %v6532 = vlog2.pop %v6531
    %v6533 = vmul.f32 %v6532, 0.6931472
    %v6534 = vmul.f32 -0.5, %v6170
    %v6535 = vadd.f32 %v6534, 1.0
    %v6536 = vmul.f32 %v6535, %v6170
    %v6537 = vand.u32 2147483647, %v6170
    %vm6538 = vcmp.lt.f32.partialorder %v6537, 0.0004427343
    %v6539 = vsel %vm6538, %v6536, %v6533
    %v6540 = vadd.f32 %v6172, 1.0
    %v6541 = vlog2.pop %v6540
    %v6542 = vmul.f32 %v6541, 0.6931472
    %v6543 = vmul.f32 -0.5, %v6172
    %v6544 = vadd.f32 %v6543, 1.0
    %v6545 = vmul.f32 %v6544, %v6172
    %v6546 = vand.u32 2147483647, %v6172
    %vm6547 = vcmp.lt.f32.partialorder %v6546, 0.0004427343
    %v6548 = vsel %vm6547, %v6545, %v6542
    %v6549 = vadd.f32 %v6174, 1.0
    %v6550 = vlog2.pop %v6549
    %v6551 = vmul.f32 %v6550, 0.6931472
    %v6552 = vmul.f32 -0.5, %v6174
    %v6553 = vadd.f32 %v6552, 1.0
    %v6554 = vmul.f32 %v6553, %v6174
    %v6555 = vand.u32 2147483647, %v6174
    %vm6556 = vcmp.lt.f32.partialorder %v6555, 0.0004427343
    %v6557 = vsel %vm6556, %v6554, %v6551
    %v6558 = vadd.f32 %v6176, 1.0
    %v6559 = vlog2.pop %v6558
    %v6560 = vmul.f32 %v6559, 0.6931472
    %v6561 = vmul.f32 -0.5, %v6176
    %v6562 = vadd.f32 %v6561, 1.0
    %v6563 = vmul.f32 %v6562, %v6176
    %v6564 = vand.u32 2147483647, %v6176
    %vm6565 = vcmp.lt.f32.partialorder %v6564, 0.0004427343
    %v6566 = vsel %vm6565, %v6563, %v6560
    %v6567 = vadd.f32 %v6178, 1.0
    %v6568 = vlog2.pop %v6567
    %v6569 = vmul.f32 %v6568, 0.6931472
    %v6570 = vmul.f32 -0.5, %v6178
    %v6571 = vadd.f32 %v6570, 1.0
    %v6572 = vmul.f32 %v6571, %v6178
    %v6573 = vand.u32 2147483647, %v6178
    %vm6574 = vcmp.lt.f32.partialorder %v6573, 0.0004427343
    %v6575 = vsel %vm6574, %v6572, %v6569
    %v6576 = vadd.f32 %v6180, 1.0
    %v6577 = vlog2.pop %v6576
    %v6578 = vmul.f32 %v6577, 0.6931472
    %v6579 = vmul.f32 -0.5, %v6180
    %v6580 = vadd.f32 %v6579, 1.0
    %v6581 = vmul.f32 %v6580, %v6180
    %v6582 = vand.u32 2147483647, %v6180
    %vm6583 = vcmp.lt.f32.partialorder %v6582, 0.0004427343
    %v6584 = vsel %vm6583, %v6581, %v6578
    %v6585 = vadd.f32 %v6182, 1.0
    %v6586 = vlog2.pop %v6585
    %v6587 = vmul.f32 %v6586, 0.6931472
    %v6588 = vmul.f32 -0.5, %v6182
    %v6589 = vadd.f32 %v6588, 1.0
    %v6590 = vmul.f32 %v6589, %v6182
    %v6591 = vand.u32 2147483647, %v6182
    %vm6592 = vcmp.lt.f32.partialorder %v6591, 0.0004427343
    %v6593 = vsel %vm6592, %v6590, %v6587
    %v6594 = vadd.f32 %v6184, 1.0
    %v6595 = vlog2.pop %v6594
    %v6596 = vmul.f32 %v6595, 0.6931472
    %v6597 = vmul.f32 -0.5, %v6184
    %v6598 = vadd.f32 %v6597, 1.0
    %v6599 = vmul.f32 %v6598, %v6184
    %v6600 = vand.u32 2147483647, %v6184
    %vm6601 = vcmp.lt.f32.partialorder %v6600, 0.0004427343
    %v6602 = vsel %vm6601, %v6599, %v6596
    %v6603 = vadd.f32 %v6186, 1.0
    %v6604 = vlog2.pop %v6603
    %v6605 = vmul.f32 %v6604, 0.6931472
    %v6606 = vmul.f32 -0.5, %v6186
    %v6607 = vadd.f32 %v6606, 1.0
    %v6608 = vmul.f32 %v6607, %v6186
    %v6609 = vand.u32 2147483647, %v6186
    %vm6610 = vcmp.lt.f32.partialorder %v6609, 0.0004427343
    %v6611 = vsel %vm6610, %v6608, %v6605
    %v6612 = vadd.f32 %v6188, 1.0
    %v6613 = vlog2.pop %v6612
    %v6614 = vmul.f32 %v6613, 0.6931472
    %v6615 = vmul.f32 -0.5, %v6188
    %v6616 = vadd.f32 %v6615, 1.0
    %v6617 = vmul.f32 %v6616, %v6188
    %v6618 = vand.u32 2147483647, %v6188
    %vm6619 = vcmp.lt.f32.partialorder %v6618, 0.0004427343
    %v6620 = vsel %vm6619, %v6617, %v6614
    %v6621 = vmul.f32 %v6197, 0.01
    %v6622 = vmul.f32 %v6206, 0.01
    %v6623 = vmul.f32 %v6215, 0.01
    %v6624 = vmul.f32 %v6224, 0.01
    %v6625 = vmul.f32 %v6233, 0.01
    %v6626 = vmul.f32 %v6242, 0.01
    %v6627 = vmul.f32 %v6251, 0.01
    %v6628 = vmul.f32 %v6260, 0.01
    %v6629 = vmul.f32 %v6269, 0.01
    %v6630 = vmul.f32 %v6278, 0.01
    %v6631 = vmul.f32 %v6287, 0.01
    %v6632 = vmul.f32 %v6296, 0.01
    %v6633 = vmul.f32 %v6305, 0.01
    %v6634 = vmul.f32 %v6314, 0.01
    %v6635 = vmul.f32 %v6323, 0.01
    %v6636 = vmul.f32 %v6332, 0.01
    %v6637 = vmul.f32 %v6341, 0.01
    %v6638 = vmul.f32 %v6350, 0.01
    %v6639 = vmul.f32 %v6359, 0.01
    %v6640 = vmul.f32 %v6368, 0.01
    %v6641 = vmul.f32 %v6377, 0.01
    %v6642 = vmul.f32 %v6386, 0.01
    %v6643 = vmul.f32 %v6395, 0.01
    %v6644 = vmul.f32 %v6404, 0.01
    %v6645 = vmul.f32 %v6413, 0.01
    %v6646 = vmul.f32 %v6422, 0.01
    %v6647 = vmul.f32 %v6431, 0.01
    %v6648 = vmul.f32 %v6440, 0.01
    %v6649 = vmul.f32 %v6449, 0.01
    %v6650 = vmul.f32 %v6458, 0.01
    %v6651 = vmul.f32 %v6467, 0.01
    %v6652 = vmul.f32 %v6476, 0.01
    %v6653 = vmul.f32 %v6485, 0.01
    %v6654 = vmul.f32 %v6494, 0.01
    %v6655 = vmul.f32 %v6503, 0.01
    %v6656 = vmul.f32 %v6512, 0.01
    %v6657 = vmul.f32 %v6521, 0.01
    %v6658 = vmul.f32 %v6530, 0.01
    %v6659 = vmul.f32 %v6539, 0.01
    %v6660 = vmul.f32 %v6548, 0.01
    %v6661 = vmul.f32 %v6557, 0.01
    %v6662 = vmul.f32 %v6566, 0.01
    %v6663 = vmul.f32 %v6575, 0.01
    %v6664 = vmul.f32 %v6584, 0.01
    %v6665 = vmul.f32 %v6593, 0.01
    %v6666 = vmul.f32 %v6602, 0.01
    %v6667 = vmul.f32 %v6611, 0.01
    %v6668 = vmul.f32 %v6620, 0.01
    %vm6669 = vcmp.gt.f32.partialorder %v5997, 20.0
    %vm6670 = vcmp.gt.f32.partialorder %v5998, 20.0
    %vm6671 = vcmp.gt.f32.partialorder %v5999, 20.0
    %vm6672 = vcmp.gt.f32.partialorder %v6000, 20.0
    %vm6673 = vcmp.gt.f32.partialorder %v6001, 20.0
    %vm6674 = vcmp.gt.f32.partialorder %v6002, 20.0
    %vm6675 = vcmp.gt.f32.partialorder %v6003, 20.0
    %vm6676 = vcmp.gt.f32.partialorder %v6004, 20.0
    %vm6677 = vcmp.gt.f32.partialorder %v6005, 20.0
    %vm6678 = vcmp.gt.f32.partialorder %v6006, 20.0
    %vm6679 = vcmp.gt.f32.partialorder %v6007, 20.0
    %vm6680 = vcmp.gt.f32.partialorder %v6008, 20.0
    %vm6681 = vcmp.gt.f32.partialorder %v6009, 20.0
    %vm6682 = vcmp.gt.f32.partialorder %v6010, 20.0
    %vm6683 = vcmp.gt.f32.partialorder %v6011, 20.0
    %vm6684 = vcmp.gt.f32.partialorder %v6012, 20.0
    %vm6685 = vcmp.gt.f32.partialorder %v6013, 20.0
    %vm6686 = vcmp.gt.f32.partialorder %v6014, 20.0
    %vm6687 = vcmp.gt.f32.partialorder %v6015, 20.0
    %vm6688 = vcmp.gt.f32.partialorder %v6016, 20.0
    %vm6689 = vcmp.gt.f32.partialorder %v6017, 20.0
    %vm6690 = vcmp.gt.f32.partialorder %v6018, 20.0
    %vm6691 = vcmp.gt.f32.partialorder %v6019, 20.0
    %vm6692 = vcmp.gt.f32.partialorder %v6020, 20.0
    %vm6693 = vcmp.gt.f32.partialorder %v6021, 20.0
    %vm6694 = vcmp.gt.f32.partialorder %v6022, 20.0
    %vm6695 = vcmp.gt.f32.partialorder %v6023, 20.0
    %vm6696 = vcmp.gt.f32.partialorder %v6024, 20.0
    %vm6697 = vcmp.gt.f32.partialorder %v6025, 20.0
    %vm6698 = vcmp.gt.f32.partialorder %v6026, 20.0
    %vm6699 = vcmp.gt.f32.partialorder %v6027, 20.0
    %vm6700 = vcmp.gt.f32.partialorder %v6028, 20.0
    %vm6701 = vcmp.gt.f32.partialorder %v6029, 20.0
    %vm6702 = vcmp.gt.f32.partialorder %v6030, 20.0
    %vm6703 = vcmp.gt.f32.partialorder %v6031, 20.0
    %vm6704 = vcmp.gt.f32.partialorder %v6032, 20.0
    %vm6705 = vcmp.gt.f32.partialorder %v6033, 20.0
    %vm6706 = vcmp.gt.f32.partialorder %v6034, 20.0
    %vm6707 = vcmp.gt.f32.partialorder %v6035, 20.0
    %vm6708 = vcmp.gt.f32.partialorder %v6036, 20.0
    %vm6709 = vcmp.gt.f32.partialorder %v6037, 20.0
    %vm6710 = vcmp.gt.f32.partialorder %v6038, 20.0
    %vm6711 = vcmp.gt.f32.partialorder %v6039, 20.0
    %vm6712 = vcmp.gt.f32.partialorder %v6040, 20.0
    %vm6713 = vcmp.gt.f32.partialorder %v6041, 20.0
    %vm6714 = vcmp.gt.f32.partialorder %v6042, 20.0
    %vm6715 = vcmp.gt.f32.partialorder %v6043, 20.0
    %vm6716 = vcmp.gt.f32.partialorder %v6044, 20.0
    %v6717 = vsel %vm6669, %v5530, %v6621
    %v6718 = vsel %vm6670, %v5532, %v6622
    %v6719 = vsel %vm6671, %v5619, %v6623
    %v6720 = vsel %vm6672, %v5621, %v6624
    %v6721 = vsel %vm6673, %v5708, %v6625
    %v6722 = vsel %vm6674, %v5710, %v6626
    %v6723 = vsel %vm6675, %v5797, %v6627
    %v6724 = vsel %vm6676, %v5799, %v6628
    %v6725 = vsel %vm6677, %v5886, %v6629
    %v6726 = vsel %vm6678, %v5888, %v6630
    %v6727 = vsel %vm6679, %v5975, %v6631
    %v6728 = vsel %vm6680, %v5977, %v6632
    %v6729 = vsel %vm6681, %v5536, %v6633
    %v6730 = vsel %vm6682, %v5538, %v6634
    %v6731 = vsel %vm6683, %v5625, %v6635
    %v6732 = vsel %vm6684, %v5627, %v6636
    %v6733 = vsel %vm6685, %v5714, %v6637
    %v6734 = vsel %vm6686, %v5716, %v6638
    %v6735 = vsel %vm6687, %v5803, %v6639
    %v6736 = vsel %vm6688, %v5805, %v6640
    %v6737 = vsel %vm6689, %v5892, %v6641
    %v6738 = vsel %vm6690, %v5894, %v6642
    %v6739 = vsel %vm6691, %v5981, %v6643
    %v6740 = vsel %vm6692, %v5983, %v6644
    %v6741 = vsel %vm6693, %v5542, %v6645
    %v6742 = vsel %vm6694, %v5544, %v6646
    %v6743 = vsel %vm6695, %v5631, %v6647
    %v6744 = vsel %vm6696, %v5633, %v6648
    %v6745 = vsel %vm6697, %v5720, %v6649
    %v6746 = vsel %vm6698, %v5722, %v6650
    %v6747 = vsel %vm6699, %v5809, %v6651
    %v6748 = vsel %vm6700, %v5811, %v6652
    %v6749 = vsel %vm6701, %v5898, %v6653
    %v6750 = vsel %vm6702, %v5900, %v6654
    %v6751 = vsel %vm6703, %v5987, %v6655
    %v6752 = vsel %vm6704, %v5989, %v6656
    %v6753 = vsel %vm6705, %v5548, %v6657
    %v6754 = vsel %vm6706, %v5550, %v6658
    %v6755 = vsel %vm6707, %v5637, %v6659
    %v6756 = vsel %vm6708, %v5639, %v6660
    %v6757 = vsel %vm6709, %v5726, %v6661
    %v6758 = vsel %vm6710, %v5728, %v6662
    %v6759 = vsel %vm6711, %v5815, %v6663
    %v6760 = vsel %vm6712, %v5817, %v6664
    %v6761 = vsel %vm6713, %v5904, %v6665
    %v6762 = vsel %vm6714, %v5906, %v6666
    %v6763 = vsel %vm6715, %v5993, %v6667
    %v6764 = vsel %vm6716, %v5995, %v6668
    %v6765 = vld [vmem:[#allocation2] sm:$0x1f]
    %v6766 = vld [vmem:[%s4] sm:$0x1f]
    %6768 = vset.pattern.permute.xlu0 0
    %6769 = vperm.xlu0 %6768, %v6766
    %v6770 = vpop.permute.xlu0 %6769
    %vm6772 = vcmask 261120
    %v6774 = vsel %vm6772, %v6765, 0
    %6776 = vmatprep.subr.mxu0 0.0
    %6777 = vmatpush1.msra.mxu0 0.0
    %6778 = vmatprep.subr.mxu0 0.0
    %6779 = vmatpush1.msra.mxu0 0.0
    %6780 = vmatprep.subr.mxu0 0.0
    %6781 = vmatpush1.msra.mxu0 0.0
    %6782 = vmatprep.subr.mxu0 0.0
    %6783 = vmatpush1.msra.mxu0 0.0
    %6784 = vmatprep.subr.mxu0 0.0
    %6785 = vmatpush1.msra.mxu0 0.0
    %6786 = vmatprep.subr.mxu0 0.0
    %6787 = vmatpush1.msra.mxu0 0.0
    %6788 = vmatprep.subr.mxu0 0.0
    %6789 = vmatpush1.msra.mxu0 0.0
    %6790 = vmatprep.subr.mxu0 0.0
    %6791 = vmatpush1.msra.mxu0 0.0
    %6792 = vmatprep.subr.mxu0 0.0
    %6793 = vmatpush1.msra.mxu0 0.0
    %6794 = vmatprep.subr.mxu0 0.0
    %6795 = vmatpush1.msra.mxu0 0.0
    %6796 = vmatprep.subr.mxu0 0.0
    %6797 = vmatpush1.msra.mxu0 0.0
    %6798 = vmatprep.subr.mxu0 0.0
    %6799 = vmatpush1.msra.mxu0 0.0
    %6800 = vmatprep.subr.mxu0 %v6754
    %6801 = vmatpush1.msra.mxu0 %v6753
    %6802 = vmatprep.subr.mxu0 %v6742
    %6803 = vmatpush1.msra.mxu0 %v6741
    %6804 = vmatprep.subr.mxu0 %v6730
    %6805 = vmatpush1.msra.mxu0 %v6729
    %6806 = vmatprep.subr.mxu0 %v6718
    %6807 = vmatpush1.msra.mxu0 %v6717
    %6808 = vmatprep.subr.mxu0 0.0
    %6809 = vmatpush2.msra.mxu0 0.0
    %6810 = vmatprep.subr.mxu0 0.0
    %6811 = vmatpush2.msra.mxu0 0.0
    %6812 = vmatprep.subr.mxu0 0.0
    %6813 = vmatpush2.msra.mxu0 0.0
    %6814 = vmatprep.subr.mxu0 0.0
    %6815 = vmatpush2.msra.mxu0 0.0
    %6816 = vmatprep.subr.mxu0 0.0
    %6817 = vmatpush2.msra.mxu0 0.0
    %6818 = vmatprep.subr.mxu0 0.0
    %6819 = vmatpush2.msra.mxu0 0.0
    %6820 = vmatprep.subr.mxu0 0.0
    %6821 = vmatpush2.msra.mxu0 0.0
    %6822 = vmatprep.subr.mxu0 0.0
    %6823 = vmatpush2.msra.mxu0 0.0
    %6824 = vmatprep.subr.mxu0 0.0
    %6825 = vmatpush2.msra.mxu0 0.0
    %6826 = vmatprep.subr.mxu0 0.0
    %6827 = vmatpush2.msra.mxu0 0.0
    %6828 = vmatprep.subr.mxu0 0.0
    %6829 = vmatpush2.msra.mxu0 0.0
    %6830 = vmatprep.subr.mxu0 0.0
    %6831 = vmatpush2.msra.mxu0 0.0
    %6832 = vmatprep.subr.mxu0 0.0
    %6833 = vmatpush2.msra.mxu0 0.0
    %6834 = vmatprep.subr.mxu0 0.0
    %6835 = vmatpush2.msra.mxu0 0.0
    %6836 = vmatprep.subr.mxu0 0.0
    %6837 = vmatpush2.msra.mxu0 0.0
    %6838 = vmatprep.subr.mxu0 0.0
    %6839 = vmatpush2.msra.mxu0 0.0
    %6840 = vmatprep.mubr.f32.mxu0 0.0
    %6841 = vmatmul.mubr.f32.gmra.mxu0 %v6774
    %v6842 = vpop.f32.mrf.mxu0
    %v6843 = vadd.f32 %v6770, %v6842
    %v6844 = vpop.f32.mrf.mxu0
    %v6845 = vadd.f32 %v6770, %v6844
    %6846 = vdwg.mxu0
    %6847 = vmatprep.subr.mxu0 0.0
    %6848 = vmatpush1.msra.mxu0 0.0
    %6849 = vmatprep.subr.mxu0 0.0
    %6850 = vmatpush1.msra.mxu0 0.0
    %6851 = vmatprep.subr.mxu0 0.0
    %6852 = vmatpush1.msra.mxu0 0.0
    %6853 = vmatprep.subr.mxu0 0.0
    %6854 = vmatpush1.msra.mxu0 0.0
    %6855 = vmatprep.subr.mxu0 0.0
    %6856 = vmatpush1.msra.mxu0 0.0
    %6857 = vmatprep.subr.mxu0 0.0
    %6858 = vmatpush1.msra.mxu0 0.0
    %6859 = vmatprep.subr.mxu0 0.0
    %6860 = vmatpush1.msra.mxu0 0.0
    %6861 = vmatprep.subr.mxu0 0.0
    %6862 = vmatpush1.msra.mxu0 0.0
    %6863 = vmatprep.subr.mxu0 0.0
    %6864 = vmatpush1.msra.mxu0 0.0
    %6865 = vmatprep.subr.mxu0 0.0
    %6866 = vmatpush1.msra.mxu0 0.0
    %6867 = vmatprep.subr.mxu0 0.0
    %6868 = vmatpush1.msra.mxu0 0.0
    %6869 = vmatprep.subr.mxu0 0.0
    %6870 = vmatpush1.msra.mxu0 0.0
    %6871 = vmatprep.subr.mxu0 %v6756
    %6872 = vmatpush1.msra.mxu0 %v6755
    %6873 = vmatprep.subr.mxu0 %v6744
    %6874 = vmatpush1.msra.mxu0 %v6743
    %6875 = vmatprep.subr.mxu0 %v6732
    %6876 = vmatpush1.msra.mxu0 %v6731
    %6877 = vmatprep.subr.mxu0 %v6720
    %6878 = vmatpush1.msra.mxu0 %v6719
    %6879 = vmatprep.subr.mxu0 0.0
    %6880 = vmatpush2.msra.mxu0 0.0
    %6881 = vmatprep.subr.mxu0 0.0
    %6882 = vmatpush2.msra.mxu0 0.0
    %6883 = vmatprep.subr.mxu0 0.0
    %6884 = vmatpush2.msra.mxu0 0.0
    %6885 = vmatprep.subr.mxu0 0.0
    %6886 = vmatpush2.msra.mxu0 0.0
    %6887 = vmatprep.subr.mxu0 0.0
    %6888 = vmatpush2.msra.mxu0 0.0
    %6889 = vmatprep.subr.mxu0 0.0
    %6890 = vmatpush2.msra.mxu0 0.0
    %6891 = vmatprep.subr.mxu0 0.0
    %6892 = vmatpush2.msra.mxu0 0.0
    %6893 = vmatprep.subr.mxu0 0.0
    %6894 = vmatpush2.msra.mxu0 0.0
    %6895 = vmatprep.subr.mxu0 0.0
    %6896 = vmatpush2.msra.mxu0 0.0
    %6897 = vmatprep.subr.mxu0 0.0
    %6898 = vmatpush2.msra.mxu0 0.0
    %6899 = vmatprep.subr.mxu0 0.0
    %6900 = vmatpush2.msra.mxu0 0.0
    %6901 = vmatprep.subr.mxu0 0.0
    %6902 = vmatpush2.msra.mxu0 0.0
    %6903 = vmatprep.subr.mxu0 0.0
    %6904 = vmatpush2.msra.mxu0 0.0
    %6905 = vmatprep.subr.mxu0 0.0
    %6906 = vmatpush2.msra.mxu0 0.0
    %6907 = vmatprep.subr.mxu0 0.0
    %6908 = vmatpush2.msra.mxu0 0.0
    %6909 = vmatprep.subr.mxu0 0.0
    %6910 = vmatpush2.msra.mxu0 0.0
    %6911 = vmatprep.mubr.f32.mxu0 0.0
    %6912 = vmatmul.mubr.f32.gmra.mxu0 %v6774
    %v6913 = vpop.f32.mrf.mxu0
    %v6914 = vadd.f32 %v6770, %v6913
    %v6915 = vpop.f32.mrf.mxu0
    %v6916 = vadd.f32 %v6770, %v6915
    %6917 = vdwg.mxu0
    %6918 = vmatprep.subr.mxu0 0.0
    %6919 = vmatpush1.msra.mxu0 0.0
    %6920 = vmatprep.subr.mxu0 0.0
    %6921 = vmatpush1.msra.mxu0 0.0
    %6922 = vmatprep.subr.mxu0 0.0
    %6923 = vmatpush1.msra.mxu0 0.0
    %6924 = vmatprep.subr.mxu0 0.0
    %6925 = vmatpush1.msra.mxu0 0.0
    %6926 = vmatprep.subr.mxu0 0.0
    %6927 = vmatpush1.msra.mxu0 0.0
    %6928 = vmatprep.subr.mxu0 0.0
    %6929 = vmatpush1.msra.mxu0 0.0
    %6930 = vmatprep.subr.mxu0 0.0
    %6931 = vmatpush1.msra.mxu0 0.0
    %6932 = vmatprep.subr.mxu0 0.0
    %6933 = vmatpush1.msra.mxu0 0.0
    %6934 = vmatprep.subr.mxu0 0.0
    %6935 = vmatpush1.msra.mxu0 0.0
    %6936 = vmatprep.subr.mxu0 0.0
    %6937 = vmatpush1.msra.mxu0 0.0
    %6938 = vmatprep.subr.mxu0 0.0
    %6939 = vmatpush1.msra.mxu0 0.0
    %6940 = vmatprep.subr.mxu0 0.0
    %6941 = vmatpush1.msra.mxu0 0.0
    %6942 = vmatprep.subr.mxu0 %v6758
    %6943 = vmatpush1.msra.mxu0 %v6757
    %6944 = vmatprep.subr.mxu0 %v6746
    %6945 = vmatpush1.msra.mxu0 %v6745
    %6946 = vmatprep.subr.mxu0 %v6734
    %6947 = vmatpush1.msra.mxu0 %v6733
    %6948 = vmatprep.subr.mxu0 %v6722
    %6949 = vmatpush1.msra.mxu0 %v6721
    %6950 = vmatprep.subr.mxu0 0.0
    %6951 = vmatpush2.msra.mxu0 0.0
    %6952 = vmatprep.subr.mxu0 0.0
    %6953 = vmatpush2.msra.mxu0 0.0
    %6954 = vmatprep.subr.mxu0 0.0
    %6955 = vmatpush2.msra.mxu0 0.0
    %6956 = vmatprep.subr.mxu0 0.0
    %6957 = vmatpush2.msra.mxu0 0.0
    %6958 = vmatprep.subr.mxu0 0.0
    %6959 = vmatpush2.msra.mxu0 0.0
    %6960 = vmatprep.subr.mxu0 0.0
    %6961 = vmatpush2.msra.mxu0 0.0
    %6962 = vmatprep.subr.mxu0 0.0
    %6963 = vmatpush2.msra.mxu0 0.0
    %6964 = vmatprep.subr.mxu0 0.0
    %6965 = vmatpush2.msra.mxu0 0.0
    %6966 = vmatprep.subr.mxu0 0.0
    %6967 = vmatpush2.msra.mxu0 0.0
    %6968 = vmatprep.subr.mxu0 0.0
    %6969 = vmatpush2.msra.mxu0 0.0
    %6970 = vmatprep.subr.mxu0 0.0
    %6971 = vmatpush2.msra.mxu0 0.0
    %6972 = vmatprep.subr.mxu0 0.0
    %6973 = vmatpush2.msra.mxu0 0.0
    %6974 = vmatprep.subr.mxu0 0.0
    %6975 = vmatpush2.msra.mxu0 0.0
    %6976 = vmatprep.subr.mxu0 0.0
    %6977 = vmatpush2.msra.mxu0 0.0
    %6978 = vmatprep.subr.mxu0 0.0
    %6979 = vmatpush2.msra.mxu0 0.0
    %6980 = vmatprep.subr.mxu0 0.0
    %6981 = vmatpush2.msra.mxu0 0.0
    %6982 = vmatprep.mubr.f32.mxu0 0.0
    %6983 = vmatmul.mubr.f32.gmra.mxu0 %v6774
    %v6984 = vpop.f32.mrf.mxu0
    %v6985 = vadd.f32 %v6770, %v6984
    %v6986 = vpop.f32.mrf.mxu0
    %v6987 = vadd.f32 %v6770, %v6986
    %6988 = vdwg.mxu0
    %6989 = vmatprep.subr.mxu0 0.0
    %6990 = vmatpush1.msra.mxu0 0.0
    %6991 = vmatprep.subr.mxu0 0.0
    %6992 = vmatpush1.msra.mxu0 0.0
    %6993 = vmatprep.subr.mxu0 0.0
    %6994 = vmatpush1.msra.mxu0 0.0
    %6995 = vmatprep.subr.mxu0 0.0
    %6996 = vmatpush1.msra.mxu0 0.0
    %6997 = vmatprep.subr.mxu0 0.0
    %6998 = vmatpush1.msra.mxu0 0.0
    %6999 = vmatprep.subr.mxu0 0.0
    %7000 = vmatpush1.msra.mxu0 0.0
    %7001 = vmatprep.subr.mxu0 0.0
    %7002 = vmatpush1.msra.mxu0 0.0
    %7003 = vmatprep.subr.mxu0 0.0
    %7004 = vmatpush1.msra.mxu0 0.0
    %7005 = vmatprep.subr.mxu0 0.0
    %7006 = vmatpush1.msra.mxu0 0.0
    %7007 = vmatprep.subr.mxu0 0.0
    %7008 = vmatpush1.msra.mxu0 0.0
    %7009 = vmatprep.subr.mxu0 0.0
    %7010 = vmatpush1.msra.mxu0 0.0
    %7011 = vmatprep.subr.mxu0 0.0
    %7012 = vmatpush1.msra.mxu0 0.0
    %7013 = vmatprep.subr.mxu0 %v6760
    %7014 = vmatpush1.msra.mxu0 %v6759
    %7015 = vmatprep.subr.mxu0 %v6748
    %7016 = vmatpush1.msra.mxu0 %v6747
    %7017 = vmatprep.subr.mxu0 %v6736
    %7018 = vmatpush1.msra.mxu0 %v6735
    %7019 = vmatprep.subr.mxu0 %v6724
    %7020 = vmatpush1.msra.mxu0 %v6723
    %7021 = vmatprep.subr.mxu0 0.0
    %7022 = vmatpush2.msra.mxu0 0.0
    %7023 = vmatprep.subr.mxu0 0.0
    %7024 = vmatpush2.msra.mxu0 0.0
    %7025 = vmatprep.subr.mxu0 0.0
    %7026 = vmatpush2.msra.mxu0 0.0
    %7027 = vmatprep.subr.mxu0 0.0
    %7028 = vmatpush2.msra.mxu0 0.0
    %7029 = vmatprep.subr.mxu0 0.0
    %7030 = vmatpush2.msra.mxu0 0.0
    %7031 = vmatprep.subr.mxu0 0.0
    %7032 = vmatpush2.msra.mxu0 0.0
    %7033 = vmatprep.subr.mxu0 0.0
    %7034 = vmatpush2.msra.mxu0 0.0
    %7035 = vmatprep.subr.mxu0 0.0
    %7036 = vmatpush2.msra.mxu0 0.0
    %7037 = vmatprep.subr.mxu0 0.0
    %7038 = vmatpush2.msra.mxu0 0.0
    %7039 = vmatprep.subr.mxu0 0.0
    %7040 = vmatpush2.msra.mxu0 0.0
    %7041 = vmatprep.subr.mxu0 0.0
    %7042 = vmatpush2.msra.mxu0 0.0
    %7043 = vmatprep.subr.mxu0 0.0
    %7044 = vmatpush2.msra.mxu0 0.0
    %7045 = vmatprep.subr.mxu0 0.0
    %7046 = vmatpush2.msra.mxu0 0.0
    %7047 = vmatprep.subr.mxu0 0.0
    %7048 = vmatpush2.msra.mxu0 0.0
    %7049 = vmatprep.subr.mxu0 0.0
    %7050 = vmatpush2.msra.mxu0 0.0
    %7051 = vmatprep.subr.mxu0 0.0
    %7052 = vmatpush2.msra.mxu0 0.0
    %7053 = vmatprep.mubr.f32.mxu0 0.0
    %7054 = vmatmul.mubr.f32.gmra.mxu0 %v6774
    %v7055 = vpop.f32.mrf.mxu0
    %v7056 = vadd.f32 %v6770, %v7055
    %v7057 = vpop.f32.mrf.mxu0
    %v7058 = vadd.f32 %v6770, %v7057
    %7059 = vdwg.mxu0
    %7060 = vmatprep.subr.mxu0 0.0
    %7061 = vmatpush1.msra.mxu0 0.0
    %7062 = vmatprep.subr.mxu0 0.0
    %7063 = vmatpush1.msra.mxu0 0.0
    %7064 = vmatprep.subr.mxu0 0.0
    %7065 = vmatpush1.msra.mxu0 0.0
    %7066 = vmatprep.subr.mxu0 0.0
    %7067 = vmatpush1.msra.mxu0 0.0
    %7068 = vmatprep.subr.mxu0 0.0
    %7069 = vmatpush1.msra.mxu0 0.0
    %7070 = vmatprep.subr.mxu0 0.0
    %7071 = vmatpush1.msra.mxu0 0.0
    %7072 = vmatprep.subr.mxu0 0.0
    %7073 = vmatpush1.msra.mxu0 0.0
    %7074 = vmatprep.subr.mxu0 0.0
    %7075 = vmatpush1.msra.mxu0 0.0
    %7076 = vmatprep.subr.mxu0 0.0
    %7077 = vmatpush1.msra.mxu0 0.0
    %7078 = vmatprep.subr.mxu0 0.0
    %7079 = vmatpush1.msra.mxu0 0.0
    %7080 = vmatprep.subr.mxu0 0.0
    %7081 = vmatpush1.msra.mxu0 0.0
    %7082 = vmatprep.subr.mxu0 0.0
    %7083 = vmatpush1.msra.mxu0 0.0
    %7084 = vmatprep.subr.mxu0 %v6762
    %7085 = vmatpush1.msra.mxu0 %v6761
    %7086 = vmatprep.subr.mxu0 %v6750
    %7087 = vmatpush1.msra.mxu0 %v6749
    %7088 = vmatprep.subr.mxu0 %v6738
    %7089 = vmatpush1.msra.mxu0 %v6737
    %7090 = vmatprep.subr.mxu0 %v6726
    %7091 = vmatpush1.msra.mxu0 %v6725
    %7092 = vmatprep.subr.mxu0 0.0
    %7093 = vmatpush2.msra.mxu0 0.0
    %7094 = vmatprep.subr.mxu0 0.0
    %7095 = vmatpush2.msra.mxu0 0.0
    %7096 = vmatprep.subr.mxu0 0.0
    %7097 = vmatpush2.msra.mxu0 0.0
    %7098 = vmatprep.subr.mxu0 0.0
    %7099 = vmatpush2.msra.mxu0 0.0
    %7100 = vmatprep.subr.mxu0 0.0
    %7101 = vmatpush2.msra.mxu0 0.0
    %7102 = vmatprep.subr.mxu0 0.0
    %7103 = vmatpush2.msra.mxu0 0.0
    %7104 = vmatprep.subr.mxu0 0.0
    %7105 = vmatpush2.msra.mxu0 0.0
    %7106 = vmatprep.subr.mxu0 0.0
    %7107 = vmatpush2.msra.mxu0 0.0
    %7108 = vmatprep.subr.mxu0 0.0
    %7109 = vmatpush2.msra.mxu0 0.0
    %7110 = vmatprep.subr.mxu0 0.0
    %7111 = vmatpush2.msra.mxu0 0.0
    %7112 = vmatprep.subr.mxu0 0.0
    %7113 = vmatpush2.msra.mxu0 0.0
    %7114 = vmatprep.subr.mxu0 0.0
    %7115 = vmatpush2.msra.mxu0 0.0
    %7116 = vmatprep.subr.mxu0 0.0
    %7117 = vmatpush2.msra.mxu0 0.0
    %7118 = vmatprep.subr.mxu0 0.0
    %7119 = vmatpush2.msra.mxu0 0.0
    %7120 = vmatprep.subr.mxu0 0.0
    %7121 = vmatpush2.msra.mxu0 0.0
    %7122 = vmatprep.subr.mxu0 0.0
    %7123 = vmatpush2.msra.mxu0 0.0
    %7124 = vmatprep.mubr.f32.mxu0 0.0
    %7125 = vmatmul.mubr.f32.gmra.mxu0 %v6774
    %v7126 = vpop.f32.mrf.mxu0
    %v7127 = vadd.f32 %v6770, %v7126
    %v7128 = vpop.f32.mrf.mxu0
    %v7129 = vadd.f32 %v6770, %v7128
    %7130 = vdwg.mxu0
    %7131 = vmatprep.subr.mxu0 0.0
    %7132 = vmatpush1.msra.mxu0 0.0
    %7133 = vmatprep.subr.mxu0 0.0
    %7134 = vmatpush1.msra.mxu0 0.0
    %7135 = vmatprep.subr.mxu0 0.0
    %7136 = vmatpush1.msra.mxu0 0.0
    %7137 = vmatprep.subr.mxu0 0.0
    %7138 = vmatpush1.msra.mxu0 0.0
    %7139 = vmatprep.subr.mxu0 0.0
    %7140 = vmatpush1.msra.mxu0 0.0
    %7141 = vmatprep.subr.mxu0 0.0
    %7142 = vmatpush1.msra.mxu0 0.0
    %7143 = vmatprep.subr.mxu0 0.0
    %7144 = vmatpush1.msra.mxu0 0.0
    %7145 = vmatprep.subr.mxu0 0.0
    %7146 = vmatpush1.msra.mxu0 0.0
    %7147 = vmatprep.subr.mxu0 0.0
    %7148 = vmatpush1.msra.mxu0 0.0
    %7149 = vmatprep.subr.mxu0 0.0
    %7150 = vmatpush1.msra.mxu0 0.0
    %7151 = vmatprep.subr.mxu0 0.0
    %7152 = vmatpush1.msra.mxu0 0.0
    %7153 = vmatprep.subr.mxu0 0.0
    %7154 = vmatpush1.msra.mxu0 0.0
    %7155 = vmatprep.subr.mxu0 %v6764
    %7156 = vmatpush1.msra.mxu0 %v6763
    %7157 = vmatprep.subr.mxu0 %v6752
    %7158 = vmatpush1.msra.mxu0 %v6751
    %7159 = vmatprep.subr.mxu0 %v6740
    %7160 = vmatpush1.msra.mxu0 %v6739
    %7161 = vmatprep.subr.mxu0 %v6728
    %7162 = vmatpush1.msra.mxu0 %v6727
    %7163 = vmatprep.subr.mxu0 0.0
    %7164 = vmatpush2.msra.mxu0 0.0
    %7165 = vmatprep.subr.mxu0 0.0
    %7166 = vmatpush2.msra.mxu0 0.0
    %7167 = vmatprep.subr.mxu0 0.0
    %7168 = vmatpush2.msra.mxu0 0.0
    %7169 = vmatprep.subr.mxu0 0.0
    %7170 = vmatpush2.msra.mxu0 0.0
    %7171 = vmatprep.subr.mxu0 0.0
    %7172 = vmatpush2.msra.mxu0 0.0
    %7173 = vmatprep.subr.mxu0 0.0
    %7174 = vmatpush2.msra.mxu0 0.0
    %7175 = vmatprep.subr.mxu0 0.0
    %7176 = vmatpush2.msra.mxu0 0.0
    %7177 = vmatprep.subr.mxu0 0.0
    %7178 = vmatpush2.msra.mxu0 0.0
    %7179 = vmatprep.subr.mxu0 0.0
    %7180 = vmatpush2.msra.mxu0 0.0
    %7181 = vmatprep.subr.mxu0 0.0
    %7182 = vmatpush2.msra.mxu0 0.0
    %7183 = vmatprep.subr.mxu0 0.0
    %7184 = vmatpush2.msra.mxu0 0.0
    %7185 = vmatprep.subr.mxu0 0.0
    %7186 = vmatpush2.msra.mxu0 0.0
    %7187 = vmatprep.subr.mxu0 0.0
    %7188 = vmatpush2.msra.mxu0 0.0
    %7189 = vmatprep.subr.mxu0 0.0
    %7190 = vmatpush2.msra.mxu0 0.0
    %7191 = vmatprep.subr.mxu0 0.0
    %7192 = vmatpush2.msra.mxu0 0.0
    %7193 = vmatprep.subr.mxu0 0.0
    %7194 = vmatpush2.msra.mxu0 0.0
    %7195 = vmatprep.mubr.f32.mxu0 0.0
    %7196 = vmatmul.mubr.f32.gmra.mxu0 %v6774
    %v7197 = vpop.f32.mrf.mxu0
    %v7198 = vadd.f32 %v6770, %v7197
    %v7199 = vpop.f32.mrf.mxu0
    %v7200 = vadd.f32 %v6770, %v7199
    %7201 = vdwg.mxu0
    %v7202 = vmul.f32 %v6843, 100.0
    %v7203 = vmul.f32 %v6845, 100.0
    %v7204 = vmul.f32 %v6914, 100.0
    %v7205 = vmul.f32 %v6916, 100.0
    %v7206 = vmul.f32 %v6985, 100.0
    %v7207 = vmul.f32 %v6987, 100.0
    %v7208 = vmul.f32 %v7056, 100.0
    %v7209 = vmul.f32 %v7058, 100.0
    %v7210 = vmul.f32 %v7127, 100.0
    %v7211 = vmul.f32 %v7129, 100.0
    %v7212 = vmul.f32 %v7198, 100.0
    %v7213 = vmul.f32 %v7200, 100.0
    %v7214 = vmin.f32 %v7202, 20.0
    %v7215 = vmin.f32 %v7203, 20.0
    %v7216 = vmin.f32 %v7204, 20.0
    %v7217 = vmin.f32 %v7205, 20.0
    %v7218 = vmin.f32 %v7206, 20.0
    %v7219 = vmin.f32 %v7207, 20.0
    %v7220 = vmin.f32 %v7208, 20.0
    %v7221 = vmin.f32 %v7209, 20.0
    %v7222 = vmin.f32 %v7210, 20.0
    %v7223 = vmin.f32 %v7211, 20.0
    %v7224 = vmin.f32 %v7212, 20.0
    %v7225 = vmin.f32 %v7213, 20.0
    %v7226 = vmul.f32 %v7214, 1.442695
    %v7227 = vpow.pop %v7226
    %v7228 = vmul.f32 %v7215, 1.442695
    %v7229 = vpow.pop %v7228
    %v7230 = vmul.f32 %v7216, 1.442695
    %v7231 = vpow.pop %v7230
    %v7232 = vmul.f32 %v7217, 1.442695
    %v7233 = vpow.pop %v7232
    %v7234 = vmul.f32 %v7218, 1.442695
    %v7235 = vpow.pop %v7234
    %v7236 = vmul.f32 %v7219, 1.442695
    %v7237 = vpow.pop %v7236
    %v7238 = vmul.f32 %v7220, 1.442695
    %v7239 = vpow.pop %v7238
    %v7240 = vmul.f32 %v7221, 1.442695
    %v7241 = vpow.pop %v7240
    %v7242 = vmul.f32 %v7222, 1.442695
    %v7243 = vpow.pop %v7242
    %v7244 = vmul.f32 %v7223, 1.442695
    %v7245 = vpow.pop %v7244
    %v7246 = vmul.f32 %v7224, 1.442695
    %v7247 = vpow.pop %v7246
    %v7248 = vmul.f32 %v7225, 1.442695
    %v7249 = vpow.pop %v7248
    %v7250 = vadd.f32 %v7227, 1.0
    %v7251 = vlog2.pop %v7250
    %v7252 = vmul.f32 %v7251, 0.6931472
    %v7253 = vmul.f32 -0.5, %v7227
    %v7254 = vadd.f32 %v7253, 1.0
    %v7255 = vmul.f32 %v7254, %v7227
    %v7256 = vand.u32 2147483647, %v7227
    %vm7257 = vcmp.lt.f32.partialorder %v7256, 0.0004427343
    %v7258 = vsel %vm7257, %v7255, %v7252
    %v7259 = vadd.f32 %v7229, 1.0
    %v7260 = vlog2.pop %v7259
    %v7261 = vmul.f32 %v7260, 0.6931472
    %v7262 = vmul.f32 -0.5, %v7229
    %v7263 = vadd.f32 %v7262, 1.0
    %v7264 = vmul.f32 %v7263, %v7229
    %v7265 = vand.u32 2147483647, %v7229
    %vm7266 = vcmp.lt.f32.partialorder %v7265, 0.0004427343
    %v7267 = vsel %vm7266, %v7264, %v7261
    %v7268 = vadd.f32 %v7231, 1.0
    %v7269 = vlog2.pop %v7268
    %v7270 = vmul.f32 %v7269, 0.6931472
    %v7271 = vmul.f32 -0.5, %v7231
    %v7272 = vadd.f32 %v7271, 1.0
    %v7273 = vmul.f32 %v7272, %v7231
    %v7274 = vand.u32 2147483647, %v7231
    %vm7275 = vcmp.lt.f32.partialorder %v7274, 0.0004427343
    %v7276 = vsel %vm7275, %v7273, %v7270
    %v7277 = vadd.f32 %v7233, 1.0
    %v7278 = vlog2.pop %v7277
    %v7279 = vmul.f32 %v7278, 0.6931472
    %v7280 = vmul.f32 -0.5, %v7233
    %v7281 = vadd.f32 %v7280, 1.0
    %v7282 = vmul.f32 %v7281, %v7233
    %v7283 = vand.u32 2147483647, %v7233
    %vm7284 = vcmp.lt.f32.partialorder %v7283, 0.0004427343
    %v7285 = vsel %vm7284, %v7282, %v7279
    %v7286 = vadd.f32 %v7235, 1.0
    %v7287 = vlog2.pop %v7286
    %v7288 = vmul.f32 %v7287, 0.6931472
    %v7289 = vmul.f32 -0.5, %v7235
    %v7290 = vadd.f32 %v7289, 1.0
    %v7291 = vmul.f32 %v7290, %v7235
    %v7292 = vand.u32 2147483647, %v7235
    %vm7293 = vcmp.lt.f32.partialorder %v7292, 0.0004427343
    %v7294 = vsel %vm7293, %v7291, %v7288
    %v7295 = vadd.f32 %v7237, 1.0
    %v7296 = vlog2.pop %v7295
    %v7297 = vmul.f32 %v7296, 0.6931472
    %v7298 = vmul.f32 -0.5, %v7237
    %v7299 = vadd.f32 %v7298, 1.0
    %v7300 = vmul.f32 %v7299, %v7237
    %v7301 = vand.u32 2147483647, %v7237
    %vm7302 = vcmp.lt.f32.partialorder %v7301, 0.0004427343
    %v7303 = vsel %vm7302, %v7300, %v7297
    %v7304 = vadd.f32 %v7239, 1.0
    %v7305 = vlog2.pop %v7304
    %v7306 = vmul.f32 %v7305, 0.6931472
    %v7307 = vmul.f32 -0.5, %v7239
    %v7308 = vadd.f32 %v7307, 1.0
    %v7309 = vmul.f32 %v7308, %v7239
    %v7310 = vand.u32 2147483647, %v7239
    %vm7311 = vcmp.lt.f32.partialorder %v7310, 0.0004427343
    %v7312 = vsel %vm7311, %v7309, %v7306
    %v7313 = vadd.f32 %v7241, 1.0
    %v7314 = vlog2.pop %v7313
    %v7315 = vmul.f32 %v7314, 0.6931472
    %v7316 = vmul.f32 -0.5, %v7241
    %v7317 = vadd.f32 %v7316, 1.0
    %v7318 = vmul.f32 %v7317, %v7241
    %v7319 = vand.u32 2147483647, %v7241
    %vm7320 = vcmp.lt.f32.partialorder %v7319, 0.0004427343
    %v7321 = vsel %vm7320, %v7318, %v7315
    %v7322 = vadd.f32 %v7243, 1.0
    %v7323 = vlog2.pop %v7322
    %v7324 = vmul.f32 %v7323, 0.6931472
    %v7325 = vmul.f32 -0.5, %v7243
    %v7326 = vadd.f32 %v7325, 1.0
    %v7327 = vmul.f32 %v7326, %v7243
    %v7328 = vand.u32 2147483647, %v7243
    %vm7329 = vcmp.lt.f32.partialorder %v7328, 0.0004427343
    %v7330 = vsel %vm7329, %v7327, %v7324
    %v7331 = vadd.f32 %v7245, 1.0
    %v7332 = vlog2.pop %v7331
    %v7333 = vmul.f32 %v7332, 0.6931472
    %v7334 = vmul.f32 -0.5, %v7245
    %v7335 = vadd.f32 %v7334, 1.0
    %v7336 = vmul.f32 %v7335, %v7245
    %v7337 = vand.u32 2147483647, %v7245
    %vm7338 = vcmp.lt.f32.partialorder %v7337, 0.0004427343
    %v7339 = vsel %vm7338, %v7336, %v7333
    %v7340 = vadd.f32 %v7247, 1.0
    %v7341 = vlog2.pop %v7340
    %v7342 = vmul.f32 %v7341, 0.6931472
    %v7343 = vmul.f32 -0.5, %v7247
    %v7344 = vadd.f32 %v7343, 1.0
    %v7345 = vmul.f32 %v7344, %v7247
    %v7346 = vand.u32 2147483647, %v7247
    %vm7347 = vcmp.lt.f32.partialorder %v7346, 0.0004427343
    %v7348 = vsel %vm7347, %v7345, %v7342
    %v7349 = vadd.f32 %v7249, 1.0
    %v7350 = vlog2.pop %v7349
    %v7351 = vmul.f32 %v7350, 0.6931472
    %v7352 = vmul.f32 -0.5, %v7249
    %v7353 = vadd.f32 %v7352, 1.0
    %v7354 = vmul.f32 %v7353, %v7249
    %v7355 = vand.u32 2147483647, %v7249
    %vm7356 = vcmp.lt.f32.partialorder %v7355, 0.0004427343
    %v7357 = vsel %vm7356, %v7354, %v7351
    %v7358 = vmul.f32 %v7258, 0.01
    %v7359 = vmul.f32 %v7267, 0.01
    %v7360 = vmul.f32 %v7276, 0.01
    %v7361 = vmul.f32 %v7285, 0.01
    %v7362 = vmul.f32 %v7294, 0.01
    %v7363 = vmul.f32 %v7303, 0.01
    %v7364 = vmul.f32 %v7312, 0.01
    %v7365 = vmul.f32 %v7321, 0.01
    %v7366 = vmul.f32 %v7330, 0.01
    %v7367 = vmul.f32 %v7339, 0.01
    %v7368 = vmul.f32 %v7348, 0.01
    %v7369 = vmul.f32 %v7357, 0.01
    %vm7370 = vcmp.gt.f32.partialorder %v7202, 20.0
    %vm7371 = vcmp.gt.f32.partialorder %v7203, 20.0
    %vm7372 = vcmp.gt.f32.partialorder %v7204, 20.0
    %vm7373 = vcmp.gt.f32.partialorder %v7205, 20.0
    %vm7374 = vcmp.gt.f32.partialorder %v7206, 20.0
    %vm7375 = vcmp.gt.f32.partialorder %v7207, 20.0
    %vm7376 = vcmp.gt.f32.partialorder %v7208, 20.0
    %vm7377 = vcmp.gt.f32.partialorder %v7209, 20.0
    %vm7378 = vcmp.gt.f32.partialorder %v7210, 20.0
    %vm7379 = vcmp.gt.f32.partialorder %v7211, 20.0
    %vm7380 = vcmp.gt.f32.partialorder %v7212, 20.0
    %vm7381 = vcmp.gt.f32.partialorder %v7213, 20.0
    %v7382 = vsel %vm7370, %v6843, %v7358
    %v7383 = vsel %vm7371, %v6845, %v7359
    %v7384 = vsel %vm7372, %v6914, %v7360
    %v7385 = vsel %vm7373, %v6916, %v7361
    %v7386 = vsel %vm7374, %v6985, %v7362
    %v7387 = vsel %vm7375, %v6987, %v7363
    %v7388 = vsel %vm7376, %v7056, %v7364
    %v7389 = vsel %vm7377, %v7058, %v7365
    %v7390 = vsel %vm7378, %v7127, %v7366
    %v7391 = vsel %vm7379, %v7129, %v7367
    %v7392 = vsel %vm7380, %v7198, %v7368
    %v7393 = vsel %vm7381, %v7200, %v7369
    %v7394 = vld [vmem:[%s5] sm:$0xff]
    %v7395 = vld [vmem:[%s5 + $0x8] sm:$0xff]
    %v7396 = vld [vmem:[%s5 + $0x10] sm:$0xff]
    %v7397 = vld [vmem:[%s5 + $0x18] sm:$0xff]
    %v7398 = vld [vmem:[%s6] sm:$0xff]
    %v7399 = vld [vmem:[%s6 + $0x8] sm:$0xff]
    %v7400 = vld [vmem:[%s6 + $0x10] sm:$0xff]
    %v7401 = vld [vmem:[%s6 + $0x18] sm:$0xff]
    %v7403 = vsel %vm5426, %v7398, 0
    %v7406 = vsel %vm5426, %v7399, 0
    %v7409 = vsel %vm5426, %v7400, 0
    %v7412 = vsel %vm5426, %v7401, 0
    %7414 = vmatprep.subr.mxu0 0.0
    %7415 = vmatpush1.msra.mxu0 0.0
    %7416 = vmatprep.subr.mxu0 0.0
    %7417 = vmatpush1.msra.mxu0 0.0
    %7418 = vmatprep.subr.mxu0 0.0
    %7419 = vmatpush1.msra.mxu0 0.0
    %7420 = vmatprep.subr.mxu0 0.0
    %7421 = vmatpush1.msra.mxu0 0.0
    %7422 = vmatprep.subr.mxu0 0.0
    %7423 = vmatpush1.msra.mxu0 0.0
    %7424 = vmatprep.subr.mxu0 0.0
    %7425 = vmatpush1.msra.mxu0 0.0
    %7426 = vmatprep.subr.mxu0 0.0
    %7427 = vmatpush1.msra.mxu0 0.0
    %7428 = vmatprep.subr.mxu0 0.0
    %7429 = vmatpush1.msra.mxu0 0.0
    %7430 = vmatprep.subr.mxu0 0.0
    %7431 = vmatpush1.msra.mxu0 0.0
    %7432 = vmatprep.subr.mxu0 0.0
    %7433 = vmatpush1.msra.mxu0 0.0
    %7434 = vmatprep.subr.mxu0 0.0
    %7435 = vmatpush1.msra.mxu0 0.0
    %7436 = vmatprep.subr.mxu0 0.0
    %7437 = vmatpush1.msra.mxu0 0.0
    %7438 = vmatprep.subr.mxu0 %v5441
    %7439 = vmatpush1.msra.mxu0 %v5439
    %7440 = vmatprep.subr.mxu0 %v5329
    %7441 = vmatpush1.msra.mxu0 %v5327
    %7442 = vmatprep.subr.mxu0 %v5387
    %7443 = vmatpush1.msra.mxu0 %v5386
    %7444 = vmatprep.subr.mxu0 %v5375
    %7445 = vmatpush1.msra.mxu0 %v5374
    %7446 = vmatprep.subr.mxu0 0.0
    %7447 = vmatpush2.msra.mxu0 0.0
    %7448 = vmatprep.subr.mxu0 0.0
    %7449 = vmatpush2.msra.mxu0 0.0
    %7450 = vmatprep.subr.mxu0 0.0
    %7451 = vmatpush2.msra.mxu0 0.0
    %7452 = vmatprep.subr.mxu0 0.0
    %7453 = vmatpush2.msra.mxu0 0.0
    %7454 = vmatprep.subr.mxu0 0.0
    %7455 = vmatpush2.msra.mxu0 0.0
    %7456 = vmatprep.subr.mxu0 0.0
    %7457 = vmatpush2.msra.mxu0 0.0
    %7458 = vmatprep.subr.mxu0 0.0
    %7459 = vmatpush2.msra.mxu0 0.0
    %7460 = vmatprep.subr.mxu0 0.0
    %7461 = vmatpush2.msra.mxu0 0.0
    %7462 = vmatprep.subr.mxu0 0.0
    %7463 = vmatpush2.msra.mxu0 0.0
    %7464 = vmatprep.subr.mxu0 0.0
    %7465 = vmatpush2.msra.mxu0 0.0
    %7466 = vmatprep.subr.mxu0 0.0
    %7467 = vmatpush2.msra.mxu0 0.0
    %7468 = vmatprep.subr.mxu0 0.0
    %7469 = vmatpush2.msra.mxu0 0.0
    %7470 = vmatprep.subr.mxu0 0.0
    %7471 = vmatpush2.msra.mxu0 0.0
    %7472 = vmatprep.subr.mxu0 0.0
    %7473 = vmatpush2.msra.mxu0 0.0
    %7474 = vmatprep.subr.mxu0 0.0
    %7475 = vmatpush2.msra.mxu0 0.0
    %7476 = vmatprep.subr.mxu0 0.0
    %7477 = vmatpush2.msra.mxu0 0.0
    %7478 = vmatprep.mubr.f32.mxu0 0.0
    %7479 = vmatmul.mubr.f32.gmra.mxu0 %v7403
    %v7480 = vpop.f32.mrf.mxu0
    %v7481 = vadd.f32 0.0, %v7480
    %v7482 = vpop.f32.mrf.mxu0
    %v7483 = vadd.f32 0.0, %v7482
    %7484 = vmatprep.mubr.f32.mxu0 0.0
    %7485 = vmatmul.mubr.f32.gmra.mxu0 %v7406
    %v7486 = vpop.f32.mrf.mxu0
    %v7487 = vadd.f32 0.0, %v7486
    %v7488 = vpop.f32.mrf.mxu0
    %v7489 = vadd.f32 0.0, %v7488
    %7490 = vmatprep.mubr.f32.mxu0 0.0
    %7491 = vmatmul.mubr.f32.gmra.mxu0 %v7409
    %v7492 = vpop.f32.mrf.mxu0
    %v7493 = vadd.f32 0.0, %v7492
    %v7494 = vpop.f32.mrf.mxu0
    %v7495 = vadd.f32 0.0, %v7494
    %7496 = vmatprep.mubr.f32.mxu0 0.0
    %7497 = vmatmul.mubr.f32.gmra.mxu0 %v7412
    %v7498 = vpop.f32.mrf.mxu0
    %v7499 = vadd.f32 0.0, %v7498
    %v7500 = vpop.f32.mrf.mxu0
    %v7501 = vadd.f32 0.0, %v7500
    %7502 = vdwg.mxu0
    %7503 = vmatprep.subr.mxu0 0.0
    %7504 = vmatpush1.msra.mxu0 0.0
    %7505 = vmatprep.subr.mxu0 0.0
    %7506 = vmatpush1.msra.mxu0 0.0
    %7507 = vmatprep.subr.mxu0 0.0
    %7508 = vmatpush1.msra.mxu0 0.0
    %7509 = vmatprep.subr.mxu0 0.0
    %7510 = vmatpush1.msra.mxu0 0.0
    %7511 = vmatprep.subr.mxu0 0.0
    %7512 = vmatpush1.msra.mxu0 0.0
    %7513 = vmatprep.subr.mxu0 0.0
    %7514 = vmatpush1.msra.mxu0 0.0
    %7515 = vmatprep.subr.mxu0 0.0
    %7516 = vmatpush1.msra.mxu0 0.0
    %7517 = vmatprep.subr.mxu0 0.0
    %7518 = vmatpush1.msra.mxu0 0.0
    %7519 = vmatprep.subr.mxu0 0.0
    %7520 = vmatpush1.msra.mxu0 0.0
    %7521 = vmatprep.subr.mxu0 0.0
    %7522 = vmatpush1.msra.mxu0 0.0
    %7523 = vmatprep.subr.mxu0 0.0
    %7524 = vmatpush1.msra.mxu0 0.0
    %7525 = vmatprep.subr.mxu0 0.0
    %7526 = vmatpush1.msra.mxu0 0.0
    %7527 = vmatprep.subr.mxu0 %v5445
    %7528 = vmatpush1.msra.mxu0 %v5443
    %7529 = vmatprep.subr.mxu0 %v5333
    %7530 = vmatpush1.msra.mxu0 %v5331
    %7531 = vmatprep.subr.mxu0 %v5389
    %7532 = vmatpush1.msra.mxu0 %v5388
    %7533 = vmatprep.subr.mxu0 %v5377
    %7534 = vmatpush1.msra.mxu0 %v5376
    %7535 = vmatprep.subr.mxu0 0.0
    %7536 = vmatpush2.msra.mxu0 0.0
    %7537 = vmatprep.subr.mxu0 0.0
    %7538 = vmatpush2.msra.mxu0 0.0
    %7539 = vmatprep.subr.mxu0 0.0
    %7540 = vmatpush2.msra.mxu0 0.0
    %7541 = vmatprep.subr.mxu0 0.0
    %7542 = vmatpush2.msra.mxu0 0.0
    %7543 = vmatprep.subr.mxu0 0.0
    %7544 = vmatpush2.msra.mxu0 0.0
    %7545 = vmatprep.subr.mxu0 0.0
    %7546 = vmatpush2.msra.mxu0 0.0
    %7547 = vmatprep.subr.mxu0 0.0
    %7548 = vmatpush2.msra.mxu0 0.0
    %7549 = vmatprep.subr.mxu0 0.0
    %7550 = vmatpush2.msra.mxu0 0.0
    %7551 = vmatprep.subr.mxu0 0.0
    %7552 = vmatpush2.msra.mxu0 0.0
    %7553 = vmatprep.subr.mxu0 0.0
    %7554 = vmatpush2.msra.mxu0 0.0
    %7555 = vmatprep.subr.mxu0 0.0
    %7556 = vmatpush2.msra.mxu0 0.0
    %7557 = vmatprep.subr.mxu0 0.0
    %7558 = vmatpush2.msra.mxu0 0.0
    %7559 = vmatprep.subr.mxu0 0.0
    %7560 = vmatpush2.msra.mxu0 0.0
    %7561 = vmatprep.subr.mxu0 0.0
    %7562 = vmatpush2.msra.mxu0 0.0
    %7563 = vmatprep.subr.mxu0 0.0
    %7564 = vmatpush2.msra.mxu0 0.0
    %7565 = vmatprep.subr.mxu0 0.0
    %7566 = vmatpush2.msra.mxu0 0.0
    %7567 = vmatprep.mubr.f32.mxu0 0.0
    %7568 = vmatmul.mubr.f32.gmra.mxu0 %v7403
    %v7569 = vpop.f32.mrf.mxu0
    %v7570 = vadd.f32 0.0, %v7569
    %v7571 = vpop.f32.mrf.mxu0
    %v7572 = vadd.f32 0.0, %v7571
    %7573 = vmatprep.mubr.f32.mxu0 0.0
    %7574 = vmatmul.mubr.f32.gmra.mxu0 %v7406
    %v7575 = vpop.f32.mrf.mxu0
    %v7576 = vadd.f32 0.0, %v7575
    %v7577 = vpop.f32.mrf.mxu0
    %v7578 = vadd.f32 0.0, %v7577
    %7579 = vmatprep.mubr.f32.mxu0 0.0
    %7580 = vmatmul.mubr.f32.gmra.mxu0 %v7409
    %v7581 = vpop.f32.mrf.mxu0
    %v7582 = vadd.f32 0.0, %v7581
    %v7583 = vpop.f32.mrf.mxu0
    %v7584 = vadd.f32 0.0, %v7583
    %7585 = vmatprep.mubr.f32.mxu0 0.0
    %7586 = vmatmul.mubr.f32.gmra.mxu0 %v7412
    %v7587 = vpop.f32.mrf.mxu0
    %v7588 = vadd.f32 0.0, %v7587
    %v7589 = vpop.f32.mrf.mxu0
    %v7590 = vadd.f32 0.0, %v7589
    %7591 = vdwg.mxu0
    %7592 = vmatprep.subr.mxu0 0.0
    %7593 = vmatpush1.msra.mxu0 0.0
    %7594 = vmatprep.subr.mxu0 0.0
    %7595 = vmatpush1.msra.mxu0 0.0
    %7596 = vmatprep.subr.mxu0 0.0
    %7597 = vmatpush1.msra.mxu0 0.0
    %7598 = vmatprep.subr.mxu0 0.0
    %7599 = vmatpush1.msra.mxu0 0.0
    %7600 = vmatprep.subr.mxu0 0.0
    %7601 = vmatpush1.msra.mxu0 0.0
    %7602 = vmatprep.subr.mxu0 0.0
    %7603 = vmatpush1.msra.mxu0 0.0
    %7604 = vmatprep.subr.mxu0 0.0
    %7605 = vmatpush1.msra.mxu0 0.0
    %7606 = vmatprep.subr.mxu0 0.0
    %7607 = vmatpush1.msra.mxu0 0.0
    %7608 = vmatprep.subr.mxu0 0.0
    %7609 = vmatpush1.msra.mxu0 0.0
    %7610 = vmatprep.subr.mxu0 0.0
    %7611 = vmatpush1.msra.mxu0 0.0
    %7612 = vmatprep.subr.mxu0 0.0
    %7613 = vmatpush1.msra.mxu0 0.0
    %7614 = vmatprep.subr.mxu0 0.0
    %7615 = vmatpush1.msra.mxu0 0.0
    %7616 = vmatprep.subr.mxu0 %v5449
    %7617 = vmatpush1.msra.mxu0 %v5447
    %7618 = vmatprep.subr.mxu0 %v5337
    %7619 = vmatpush1.msra.mxu0 %v5335
    %7620 = vmatprep.subr.mxu0 %v5391
    %7621 = vmatpush1.msra.mxu0 %v5390
    %7622 = vmatprep.subr.mxu0 %v5379
    %7623 = vmatpush1.msra.mxu0 %v5378
    %7624 = vmatprep.subr.mxu0 0.0
    %7625 = vmatpush2.msra.mxu0 0.0
    %7626 = vmatprep.subr.mxu0 0.0
    %7627 = vmatpush2.msra.mxu0 0.0
    %7628 = vmatprep.subr.mxu0 0.0
    %7629 = vmatpush2.msra.mxu0 0.0
    %7630 = vmatprep.subr.mxu0 0.0
    %7631 = vmatpush2.msra.mxu0 0.0
    %7632 = vmatprep.subr.mxu0 0.0
    %7633 = vmatpush2.msra.mxu0 0.0
    %7634 = vmatprep.subr.mxu0 0.0
    %7635 = vmatpush2.msra.mxu0 0.0
    %7636 = vmatprep.subr.mxu0 0.0
    %7637 = vmatpush2.msra.mxu0 0.0
    %7638 = vmatprep.subr.mxu0 0.0
    %7639 = vmatpush2.msra.mxu0 0.0
    %7640 = vmatprep.subr.mxu0 0.0
    %7641 = vmatpush2.msra.mxu0 0.0
    %7642 = vmatprep.subr.mxu0 0.0
    %7643 = vmatpush2.msra.mxu0 0.0
    %7644 = vmatprep.subr.mxu0 0.0
    %7645 = vmatpush2.msra.mxu0 0.0
    %7646 = vmatprep.subr.mxu0 0.0
    %7647 = vmatpush2.msra.mxu0 0.0
    %7648 = vmatprep.subr.mxu0 0.0
    %7649 = vmatpush2.msra.mxu0 0.0
    %7650 = vmatprep.subr.mxu0 0.0
    %7651 = vmatpush2.msra.mxu0 0.0
    %7652 = vmatprep.subr.mxu0 0.0
    %7653 = vmatpush2.msra.mxu0 0.0
    %7654 = vmatprep.subr.mxu0 0.0
    %7655 = vmatpush2.msra.mxu0 0.0
    %7656 = vmatprep.mubr.f32.mxu0 0.0
    %7657 = vmatmul.mubr.f32.gmra.mxu0 %v7403
    %v7658 = vpop.f32.mrf.mxu0
    %v7659 = vadd.f32 0.0, %v7658
    %v7660 = vpop.f32.mrf.mxu0
    %v7661 = vadd.f32 0.0, %v7660
    %7662 = vmatprep.mubr.f32.mxu0 0.0
    %7663 = vmatmul.mubr.f32.gmra.mxu0 %v7406
    %v7664 = vpop.f32.mrf.mxu0
    %v7665 = vadd.f32 0.0, %v7664
    %v7666 = vpop.f32.mrf.mxu0
    %v7667 = vadd.f32 0.0, %v7666
    %7668 = vmatprep.mubr.f32.mxu0 0.0
    %7669 = vmatmul.mubr.f32.gmra.mxu0 %v7409
    %v7670 = vpop.f32.mrf.mxu0
    %v7671 = vadd.f32 0.0, %v7670
    %v7672 = vpop.f32.mrf.mxu0
    %v7673 = vadd.f32 0.0, %v7672
    %7674 = vmatprep.mubr.f32.mxu0 0.0
    %7675 = vmatmul.mubr.f32.gmra.mxu0 %v7412
    %v7676 = vpop.f32.mrf.mxu0
    %v7677 = vadd.f32 0.0, %v7676
    %v7678 = vpop.f32.mrf.mxu0
    %v7679 = vadd.f32 0.0, %v7678
    %7680 = vdwg.mxu0
    %7681 = vmatprep.subr.mxu0 0.0
    %7682 = vmatpush1.msra.mxu0 0.0
    %7683 = vmatprep.subr.mxu0 0.0
    %7684 = vmatpush1.msra.mxu0 0.0
    %7685 = vmatprep.subr.mxu0 0.0
    %7686 = vmatpush1.msra.mxu0 0.0
    %7687 = vmatprep.subr.mxu0 0.0
    %7688 = vmatpush1.msra.mxu0 0.0
    %7689 = vmatprep.subr.mxu0 0.0
    %7690 = vmatpush1.msra.mxu0 0.0
    %7691 = vmatprep.subr.mxu0 0.0
    %7692 = vmatpush1.msra.mxu0 0.0
    %7693 = vmatprep.subr.mxu0 0.0
    %7694 = vmatpush1.msra.mxu0 0.0
    %7695 = vmatprep.subr.mxu0 0.0
    %7696 = vmatpush1.msra.mxu0 0.0
    %7697 = vmatprep.subr.mxu0 0.0
    %7698 = vmatpush1.msra.mxu0 0.0
    %7699 = vmatprep.subr.mxu0 0.0
    %7700 = vmatpush1.msra.mxu0 0.0
    %7701 = vmatprep.subr.mxu0 0.0
    %7702 = vmatpush1.msra.mxu0 0.0
    %7703 = vmatprep.subr.mxu0 0.0
    %7704 = vmatpush1.msra.mxu0 0.0
    %7705 = vmatprep.subr.mxu0 %v5453
    %7706 = vmatpush1.msra.mxu0 %v5451
    %7707 = vmatprep.subr.mxu0 %v5341
    %7708 = vmatpush1.msra.mxu0 %v5339
    %7709 = vmatprep.subr.mxu0 %v5393
    %7710 = vmatpush1.msra.mxu0 %v5392
    %7711 = vmatprep.subr.mxu0 %v5381
    %7712 = vmatpush1.msra.mxu0 %v5380
    %7713 = vmatprep.subr.mxu0 0.0
    %7714 = vmatpush2.msra.mxu0 0.0
    %7715 = vmatprep.subr.mxu0 0.0
    %7716 = vmatpush2.msra.mxu0 0.0
    %7717 = vmatprep.subr.mxu0 0.0
    %7718 = vmatpush2.msra.mxu0 0.0
    %7719 = vmatprep.subr.mxu0 0.0
    %7720 = vmatpush2.msra.mxu0 0.0
    %7721 = vmatprep.subr.mxu0 0.0
    %7722 = vmatpush2.msra.mxu0 0.0
    %7723 = vmatprep.subr.mxu0 0.0
    %7724 = vmatpush2.msra.mxu0 0.0
    %7725 = vmatprep.subr.mxu0 0.0
    %7726 = vmatpush2.msra.mxu0 0.0
    %7727 = vmatprep.subr.mxu0 0.0
    %7728 = vmatpush2.msra.mxu0 0.0
    %7729 = vmatprep.subr.mxu0 0.0
    %7730 = vmatpush2.msra.mxu0 0.0
    %7731 = vmatprep.subr.mxu0 0.0
    %7732 = vmatpush2.msra.mxu0 0.0
    %7733 = vmatprep.subr.mxu0 0.0
    %7734 = vmatpush2.msra.mxu0 0.0
    %7735 = vmatprep.subr.mxu0 0.0
    %7736 = vmatpush2.msra.mxu0 0.0
    %7737 = vmatprep.subr.mxu0 0.0
    %7738 = vmatpush2.msra.mxu0 0.0
    %7739 = vmatprep.subr.mxu0 0.0
    %7740 = vmatpush2.msra.mxu0 0.0
    %7741 = vmatprep.subr.mxu0 0.0
    %7742 = vmatpush2.msra.mxu0 0.0
    %7743 = vmatprep.subr.mxu0 0.0
    %7744 = vmatpush2.msra.mxu0 0.0
    %7745 = vmatprep.mubr.f32.mxu0 0.0
    %7746 = vmatmul.mubr.f32.gmra.mxu0 %v7403
    %v7747 = vpop.f32.mrf.mxu0
    %v7748 = vadd.f32 0.0, %v7747
    %v7749 = vpop.f32.mrf.mxu0
    %v7750 = vadd.f32 0.0, %v7749
    %7751 = vmatprep.mubr.f32.mxu0 0.0
    %7752 = vmatmul.mubr.f32.gmra.mxu0 %v7406
    %v7753 = vpop.f32.mrf.mxu0
    %v7754 = vadd.f32 0.0, %v7753
    %v7755 = vpop.f32.mrf.mxu0
    %v7756 = vadd.f32 0.0, %v7755
    %7757 = vmatprep.mubr.f32.mxu0 0.0
    %7758 = vmatmul.mubr.f32.gmra.mxu0 %v7409
    %v7759 = vpop.f32.mrf.mxu0
    %v7760 = vadd.f32 0.0, %v7759
    %v7761 = vpop.f32.mrf.mxu0
    %v7762 = vadd.f32 0.0, %v7761
    %7763 = vmatprep.mubr.f32.mxu0 0.0
    %7764 = vmatmul.mubr.f32.gmra.mxu0 %v7412
    %v7765 = vpop.f32.mrf.mxu0
    %v7766 = vadd.f32 0.0, %v7765
    %v7767 = vpop.f32.mrf.mxu0
    %v7768 = vadd.f32 0.0, %v7767
    %7769 = vdwg.mxu0
    %7770 = vmatprep.subr.mxu0 0.0
    %7771 = vmatpush1.msra.mxu0 0.0
    %7772 = vmatprep.subr.mxu0 0.0
    %7773 = vmatpush1.msra.mxu0 0.0
    %7774 = vmatprep.subr.mxu0 0.0
    %7775 = vmatpush1.msra.mxu0 0.0
    %7776 = vmatprep.subr.mxu0 0.0
    %7777 = vmatpush1.msra.mxu0 0.0
    %7778 = vmatprep.subr.mxu0 0.0
    %7779 = vmatpush1.msra.mxu0 0.0
    %7780 = vmatprep.subr.mxu0 0.0
    %7781 = vmatpush1.msra.mxu0 0.0
    %7782 = vmatprep.subr.mxu0 0.0
    %7783 = vmatpush1.msra.mxu0 0.0
    %7784 = vmatprep.subr.mxu0 0.0
    %7785 = vmatpush1.msra.mxu0 0.0
    %7786 = vmatprep.subr.mxu0 0.0
    %7787 = vmatpush1.msra.mxu0 0.0
    %7788 = vmatprep.subr.mxu0 0.0
    %7789 = vmatpush1.msra.mxu0 0.0
    %7790 = vmatprep.subr.mxu0 0.0
    %7791 = vmatpush1.msra.mxu0 0.0
    %7792 = vmatprep.subr.mxu0 0.0
    %7793 = vmatpush1.msra.mxu0 0.0
    %7794 = vmatprep.subr.mxu0 %v5457
    %7795 = vmatpush1.msra.mxu0 %v5455
    %7796 = vmatprep.subr.mxu0 %v5345
    %7797 = vmatpush1.msra.mxu0 %v5343
    %7798 = vmatprep.subr.mxu0 %v5395
    %7799 = vmatpush1.msra.mxu0 %v5394
    %7800 = vmatprep.subr.mxu0 %v5383
    %7801 = vmatpush1.msra.mxu0 %v5382
    %7802 = vmatprep.subr.mxu0 0.0
    %7803 = vmatpush2.msra.mxu0 0.0
    %7804 = vmatprep.subr.mxu0 0.0
    %7805 = vmatpush2.msra.mxu0 0.0
    %7806 = vmatprep.subr.mxu0 0.0
    %7807 = vmatpush2.msra.mxu0 0.0
    %7808 = vmatprep.subr.mxu0 0.0
    %7809 = vmatpush2.msra.mxu0 0.0
    %7810 = vmatprep.subr.mxu0 0.0
    %7811 = vmatpush2.msra.mxu0 0.0
    %7812 = vmatprep.subr.mxu0 0.0
    %7813 = vmatpush2.msra.mxu0 0.0
    %7814 = vmatprep.subr.mxu0 0.0
    %7815 = vmatpush2.msra.mxu0 0.0
    %7816 = vmatprep.subr.mxu0 0.0
    %7817 = vmatpush2.msra.mxu0 0.0
    %7818 = vmatprep.subr.mxu0 0.0
    %7819 = vmatpush2.msra.mxu0 0.0
    %7820 = vmatprep.subr.mxu0 0.0
    %7821 = vmatpush2.msra.mxu0 0.0
    %7822 = vmatprep.subr.mxu0 0.0
    %7823 = vmatpush2.msra.mxu0 0.0
    %7824 = vmatprep.subr.mxu0 0.0
    %7825 = vmatpush2.msra.mxu0 0.0
    %7826 = vmatprep.subr.mxu0 0.0
    %7827 = vmatpush2.msra.mxu0 0.0
    %7828 = vmatprep.subr.mxu0 0.0
    %7829 = vmatpush2.msra.mxu0 0.0
    %7830 = vmatprep.subr.mxu0 0.0
    %7831 = vmatpush2.msra.mxu0 0.0
    %7832 = vmatprep.subr.mxu0 0.0
    %7833 = vmatpush2.msra.mxu0 0.0
    %7834 = vmatprep.mubr.f32.mxu0 0.0
    %7835 = vmatmul.mubr.f32.gmra.mxu0 %v7403
    %v7836 = vpop.f32.mrf.mxu0
    %v7837 = vadd.f32 0.0, %v7836
    %v7838 = vpop.f32.mrf.mxu0
    %v7839 = vadd.f32 0.0, %v7838
    %7840 = vmatprep.mubr.f32.mxu0 0.0
    %7841 = vmatmul.mubr.f32.gmra.mxu0 %v7406
    %v7842 = vpop.f32.mrf.mxu0
    %v7843 = vadd.f32 0.0, %v7842
    %v7844 = vpop.f32.mrf.mxu0
    %v7845 = vadd.f32 0.0, %v7844
    %7846 = vmatprep.mubr.f32.mxu0 0.0
    %7847 = vmatmul.mubr.f32.gmra.mxu0 %v7409
    %v7848 = vpop.f32.mrf.mxu0
    %v7849 = vadd.f32 0.0, %v7848
    %v7850 = vpop.f32.mrf.mxu0
    %v7851 = vadd.f32 0.0, %v7850
    %7852 = vmatprep.mubr.f32.mxu0 0.0
    %7853 = vmatmul.mubr.f32.gmra.mxu0 %v7412
    %v7854 = vpop.f32.mrf.mxu0
    %v7855 = vadd.f32 0.0, %v7854
    %v7856 = vpop.f32.mrf.mxu0
    %v7857 = vadd.f32 0.0, %v7856
    %7858 = vdwg.mxu0
    %7859 = vmatprep.subr.mxu0 0.0
    %7860 = vmatpush1.msra.mxu0 0.0
    %7861 = vmatprep.subr.mxu0 0.0
    %7862 = vmatpush1.msra.mxu0 0.0
    %7863 = vmatprep.subr.mxu0 0.0
    %7864 = vmatpush1.msra.mxu0 0.0
    %7865 = vmatprep.subr.mxu0 0.0
    %7866 = vmatpush1.msra.mxu0 0.0
    %7867 = vmatprep.subr.mxu0 0.0
    %7868 = vmatpush1.msra.mxu0 0.0
    %7869 = vmatprep.subr.mxu0 0.0
    %7870 = vmatpush1.msra.mxu0 0.0
    %7871 = vmatprep.subr.mxu0 0.0
    %7872 = vmatpush1.msra.mxu0 0.0
    %7873 = vmatprep.subr.mxu0 0.0
    %7874 = vmatpush1.msra.mxu0 0.0
    %7875 = vmatprep.subr.mxu0 0.0
    %7876 = vmatpush1.msra.mxu0 0.0
    %7877 = vmatprep.subr.mxu0 0.0
    %7878 = vmatpush1.msra.mxu0 0.0
    %7879 = vmatprep.subr.mxu0 0.0
    %7880 = vmatpush1.msra.mxu0 0.0
    %7881 = vmatprep.subr.mxu0 0.0
    %7882 = vmatpush1.msra.mxu0 0.0
    %7883 = vmatprep.subr.mxu0 %v5461
    %7884 = vmatpush1.msra.mxu0 %v5459
    %7885 = vmatprep.subr.mxu0 %v5349
    %7886 = vmatpush1.msra.mxu0 %v5347
    %7887 = vmatprep.subr.mxu0 %v5397
    %7888 = vmatpush1.msra.mxu0 %v5396
    %7889 = vmatprep.subr.mxu0 %v5385
    %7890 = vmatpush1.msra.mxu0 %v5384
    %7891 = vmatprep.subr.mxu0 0.0
    %7892 = vmatpush2.msra.mxu0 0.0
    %7893 = vmatprep.subr.mxu0 0.0
    %7894 = vmatpush2.msra.mxu0 0.0
    %7895 = vmatprep.subr.mxu0 0.0
    %7896 = vmatpush2.msra.mxu0 0.0
    %7897 = vmatprep.subr.mxu0 0.0
    %7898 = vmatpush2.msra.mxu0 0.0
    %7899 = vmatprep.subr.mxu0 0.0
    %7900 = vmatpush2.msra.mxu0 0.0
    %7901 = vmatprep.subr.mxu0 0.0
    %7902 = vmatpush2.msra.mxu0 0.0
    %7903 = vmatprep.subr.mxu0 0.0
    %7904 = vmatpush2.msra.mxu0 0.0
    %7905 = vmatprep.subr.mxu0 0.0
    %7906 = vmatpush2.msra.mxu0 0.0
    %7907 = vmatprep.subr.mxu0 0.0
    %7908 = vmatpush2.msra.mxu0 0.0
    %7909 = vmatprep.subr.mxu0 0.0
    %7910 = vmatpush2.msra.mxu0 0.0
    %7911 = vmatprep.subr.mxu0 0.0
    %7912 = vmatpush2.msra.mxu0 0.0
    %7913 = vmatprep.subr.mxu0 0.0
    %7914 = vmatpush2.msra.mxu0 0.0
    %7915 = vmatprep.subr.mxu0 0.0
    %7916 = vmatpush2.msra.mxu0 0.0
    %7917 = vmatprep.subr.mxu0 0.0
    %7918 = vmatpush2.msra.mxu0 0.0
    %7919 = vmatprep.subr.mxu0 0.0
    %7920 = vmatpush2.msra.mxu0 0.0
    %7921 = vmatprep.subr.mxu0 0.0
    %7922 = vmatpush2.msra.mxu0 0.0
    %7923 = vmatprep.mubr.f32.mxu0 0.0
    %7924 = vmatmul.mubr.f32.gmra.mxu0 %v7403
    %v7925 = vpop.f32.mrf.mxu0
    %v7926 = vadd.f32 0.0, %v7925
    %v7927 = vpop.f32.mrf.mxu0
    %v7928 = vadd.f32 0.0, %v7927
    %7929 = vmatprep.mubr.f32.mxu0 0.0
    %7930 = vmatmul.mubr.f32.gmra.mxu0 %v7406
    %v7931 = vpop.f32.mrf.mxu0
    %v7932 = vadd.f32 0.0, %v7931
    %v7933 = vpop.f32.mrf.mxu0
    %v7934 = vadd.f32 0.0, %v7933
    %7935 = vmatprep.mubr.f32.mxu0 0.0
    %7936 = vmatmul.mubr.f32.gmra.mxu0 %v7409
    %v7937 = vpop.f32.mrf.mxu0
    %v7938 = vadd.f32 0.0, %v7937
    %v7939 = vpop.f32.mrf.mxu0
    %v7940 = vadd.f32 0.0, %v7939
    %7941 = vmatprep.mubr.f32.mxu0 0.0
    %7942 = vmatmul.mubr.f32.gmra.mxu0 %v7412
    %v7943 = vpop.f32.mrf.mxu0
    %v7944 = vadd.f32 0.0, %v7943
    %v7945 = vpop.f32.mrf.mxu0
    %v7946 = vadd.f32 0.0, %v7945
    %7947 = vdwg.mxu0
    %vm7948 = vcmask 39936
    %v7950 = vsel %vm7948, %v7394, 0
    %v7953 = vsel %vm7948, %v7395, 0
    %v7956 = vsel %vm7948, %v7396, 0
    %v7959 = vsel %vm7948, %v7397, 0
    %vm7961 = vcmask 1044480
    %v7963 = vsel %vm7961, %v7382, 0
    %v7966 = vsel %vm7961, %v7383, 0
    %v7969 = vsel %vm7961, %v7384, 0
    %v7972 = vsel %vm7961, %v7385, 0
    %v7975 = vsel %vm7961, %v7386, 0
    %v7978 = vsel %vm7961, %v7387, 0
    %v7981 = vsel %vm7961, %v7388, 0
    %v7984 = vsel %vm7961, %v7389, 0
    %v7987 = vsel %vm7961, %v7390, 0
    %v7990 = vsel %vm7961, %v7391, 0
    %v7993 = vsel %vm7961, %v7392, 0
    %v7996 = vsel %vm7961, %v7393, 0
    %7998 = vmatprep.subr.mxu0 0.0
    %7999 = vmatpush1.msra.mxu0 0.0
    %8000 = vmatprep.subr.mxu0 0.0
    %8001 = vmatpush1.msra.mxu0 0.0
    %8002 = vmatprep.subr.mxu0 0.0
    %8003 = vmatpush1.msra.mxu0 0.0
    %8004 = vmatprep.subr.mxu0 0.0
    %8005 = vmatpush1.msra.mxu0 0.0
    %8006 = vmatprep.subr.mxu0 0.0
    %8007 = vmatpush1.msra.mxu0 0.0
    %8008 = vmatprep.subr.mxu0 0.0
    %8009 = vmatpush1.msra.mxu0 0.0
    %8010 = vmatprep.subr.mxu0 0.0
    %8011 = vmatpush1.msra.mxu0 0.0
    %8012 = vmatprep.subr.mxu0 0.0
    %8013 = vmatpush1.msra.mxu0 0.0
    %8014 = vmatprep.subr.mxu0 0.0
    %8015 = vmatpush1.msra.mxu0 0.0
    %8016 = vmatprep.subr.mxu0 0.0
    %8017 = vmatpush1.msra.mxu0 0.0
    %8018 = vmatprep.subr.mxu0 0.0
    %8019 = vmatpush1.msra.mxu0 0.0
    %8020 = vmatprep.subr.mxu0 0.0
    %8021 = vmatpush1.msra.mxu0 0.0
    %8022 = vmatprep.subr.mxu0 0.0
    %8023 = vmatpush1.msra.mxu0 0.0
    %8024 = vmatprep.subr.mxu0 0.0
    %8025 = vmatpush1.msra.mxu0 0.0
    %8026 = vmatprep.subr.mxu0 0.0
    %8027 = vmatpush1.msra.mxu0 0.0
    %8028 = vmatprep.subr.mxu0 %v7966
    %8029 = vmatpush1.msra.mxu0 %v7963
    %8030 = vmatprep.subr.mxu0 0.0
    %8031 = vmatpush2.msra.mxu0 0.0
    %8032 = vmatprep.subr.mxu0 0.0
    %8033 = vmatpush2.msra.mxu0 0.0
    %8034 = vmatprep.subr.mxu0 0.0
    %8035 = vmatpush2.msra.mxu0 0.0
    %8036 = vmatprep.subr.mxu0 0.0
    %8037 = vmatpush2.msra.mxu0 0.0
    %8038 = vmatprep.subr.mxu0 0.0
    %8039 = vmatpush2.msra.mxu0 0.0
    %8040 = vmatprep.subr.mxu0 0.0
    %8041 = vmatpush2.msra.mxu0 0.0
    %8042 = vmatprep.subr.mxu0 0.0
    %8043 = vmatpush2.msra.mxu0 0.0
    %8044 = vmatprep.subr.mxu0 0.0
    %8045 = vmatpush2.msra.mxu0 0.0
    %8046 = vmatprep.subr.mxu0 0.0
    %8047 = vmatpush2.msra.mxu0 0.0
    %8048 = vmatprep.subr.mxu0 0.0
    %8049 = vmatpush2.msra.mxu0 0.0
    %8050 = vmatprep.subr.mxu0 0.0
    %8051 = vmatpush2.msra.mxu0 0.0
    %8052 = vmatprep.subr.mxu0 0.0
    %8053 = vmatpush2.msra.mxu0 0.0
    %8054 = vmatprep.subr.mxu0 0.0
    %8055 = vmatpush2.msra.mxu0 0.0
    %8056 = vmatprep.subr.mxu0 0.0
    %8057 = vmatpush2.msra.mxu0 0.0
    %8058 = vmatprep.subr.mxu0 0.0
    %8059 = vmatpush2.msra.mxu0 0.0
    %8060 = vmatprep.subr.mxu0 0.0
    %8061 = vmatpush2.msra.mxu0 0.0
    %8062 = vmatprep.mubr.f32.mxu0 0.0
    %8063 = vmatmul.mubr.f32.gmra.mxu0 %v7950
    %v8064 = vpop.f32.mrf.mxu0
    %v8065 = vadd.f32 %v7481, %v8064
    %v8066 = vpop.f32.mrf.mxu0
    %v8067 = vadd.f32 %v7483, %v8066
    %8068 = vmatprep.mubr.f32.mxu0 0.0
    %8069 = vmatmul.mubr.f32.gmra.mxu0 %v7953
    %v8070 = vpop.f32.mrf.mxu0
    %v8071 = vadd.f32 %v7487, %v8070
    %v8072 = vpop.f32.mrf.mxu0
    %v8073 = vadd.f32 %v7489, %v8072
    %8074 = vmatprep.mubr.f32.mxu0 0.0
    %8075 = vmatmul.mubr.f32.gmra.mxu0 %v7956
    %v8076 = vpop.f32.mrf.mxu0
    %v8077 = vadd.f32 %v7493, %v8076
    %v8078 = vpop.f32.mrf.mxu0
    %v8079 = vadd.f32 %v7495, %v8078
    %8080 = vmatprep.mubr.f32.mxu0 0.0
    %8081 = vmatmul.mubr.f32.gmra.mxu0 %v7959
    %v8082 = vpop.f32.mrf.mxu0
    %v8083 = vadd.f32 %v7499, %v8082
    %v8084 = vpop.f32.mrf.mxu0
    %v8085 = vadd.f32 %v7501, %v8084
    %8086 = vdwg.mxu0
    %8087 = vmatprep.subr.mxu0 0.0
    %8088 = vmatpush1.msra.mxu0 0.0
    %8089 = vmatprep.subr.mxu0 0.0
    %8090 = vmatpush1.msra.mxu0 0.0
    %8091 = vmatprep.subr.mxu0 0.0
    %8092 = vmatpush1.msra.mxu0 0.0
    %8093 = vmatprep.subr.mxu0 0.0
    %8094 = vmatpush1.msra.mxu0 0.0
    %8095 = vmatprep.subr.mxu0 0.0
    %8096 = vmatpush1.msra.mxu0 0.0
    %8097 = vmatprep.subr.mxu0 0.0
    %8098 = vmatpush1.msra.mxu0 0.0
    %8099 = vmatprep.subr.mxu0 0.0
    %8100 = vmatpush1.msra.mxu0 0.0
    %8101 = vmatprep.subr.mxu0 0.0
    %8102 = vmatpush1.msra.mxu0 0.0
    %8103 = vmatprep.subr.mxu0 0.0
    %8104 = vmatpush1.msra.mxu0 0.0
    %8105 = vmatprep.subr.mxu0 0.0
    %8106 = vmatpush1.msra.mxu0 0.0
    %8107 = vmatprep.subr.mxu0 0.0
    %8108 = vmatpush1.msra.mxu0 0.0
    %8109 = vmatprep.subr.mxu0 0.0
    %8110 = vmatpush1.msra.mxu0 0.0
    %8111 = vmatprep.subr.mxu0 0.0
    %8112 = vmatpush1.msra.mxu0 0.0
    %8113 = vmatprep.subr.mxu0 0.0
    %8114 = vmatpush1.msra.mxu0 0.0
    %8115 = vmatprep.subr.mxu0 0.0
    %8116 = vmatpush1.msra.mxu0 0.0
    %8117 = vmatprep.subr.mxu0 %v7972
    %8118 = vmatpush1.msra.mxu0 %v7969
    %8119 = vmatprep.subr.mxu0 0.0
    %8120 = vmatpush2.msra.mxu0 0.0
    %8121 = vmatprep.subr.mxu0 0.0
    %8122 = vmatpush2.msra.mxu0 0.0
    %8123 = vmatprep.subr.mxu0 0.0
    %8124 = vmatpush2.msra.mxu0 0.0
    %8125 = vmatprep.subr.mxu0 0.0
    %8126 = vmatpush2.msra.mxu0 0.0
    %8127 = vmatprep.subr.mxu0 0.0
    %8128 = vmatpush2.msra.mxu0 0.0
    %8129 = vmatprep.subr.mxu0 0.0
    %8130 = vmatpush2.msra.mxu0 0.0
    %8131 = vmatprep.subr.mxu0 0.0
    %8132 = vmatpush2.msra.mxu0 0.0
    %8133 = vmatprep.subr.mxu0 0.0
    %8134 = vmatpush2.msra.mxu0 0.0
    %8135 = vmatprep.subr.mxu0 0.0
    %8136 = vmatpush2.msra.mxu0 0.0
    %8137 = vmatprep.subr.mxu0 0.0
    %8138 = vmatpush2.msra.mxu0 0.0
    %8139 = vmatprep.subr.mxu0 0.0
    %8140 = vmatpush2.msra.mxu0 0.0
    %8141 = vmatprep.subr.mxu0 0.0
    %8142 = vmatpush2.msra.mxu0 0.0
    %8143 = vmatprep.subr.mxu0 0.0
    %8144 = vmatpush2.msra.mxu0 0.0
    %8145 = vmatprep.subr.mxu0 0.0
    %8146 = vmatpush2.msra.mxu0 0.0
    %8147 = vmatprep.subr.mxu0 0.0
    %8148 = vmatpush2.msra.mxu0 0.0
    %8149 = vmatprep.subr.mxu0 0.0
    %8150 = vmatpush2.msra.mxu0 0.0
    %8151 = vmatprep.mubr.f32.mxu0 0.0
    %8152 = vmatmul.mubr.f32.gmra.mxu0 %v7950
    %v8153 = vpop.f32.mrf.mxu0
    %v8154 = vadd.f32 %v7570, %v8153
    %v8155 = vpop.f32.mrf.mxu0
    %v8156 = vadd.f32 %v7572, %v8155
    %8157 = vmatprep.mubr.f32.mxu0 0.0
    %8158 = vmatmul.mubr.f32.gmra.mxu0 %v7953
    %v8159 = vpop.f32.mrf.mxu0
    %v8160 = vadd.f32 %v7576, %v8159
    %v8161 = vpop.f32.mrf.mxu0
    %v8162 = vadd.f32 %v7578, %v8161
    %8163 = vmatprep.mubr.f32.mxu0 0.0
    %8164 = vmatmul.mubr.f32.gmra.mxu0 %v7956
    %v8165 = vpop.f32.mrf.mxu0
    %v8166 = vadd.f32 %v7582, %v8165
    %v8167 = vpop.f32.mrf.mxu0
    %v8168 = vadd.f32 %v7584, %v8167
    %8169 = vmatprep.mubr.f32.mxu0 0.0
    %8170 = vmatmul.mubr.f32.gmra.mxu0 %v7959
    %v8171 = vpop.f32.mrf.mxu0
    %v8172 = vadd.f32 %v7588, %v8171
    %v8173 = vpop.f32.mrf.mxu0
    %v8174 = vadd.f32 %v7590, %v8173
    %8175 = vdwg.mxu0
    %8176 = vmatprep.subr.mxu0 0.0
    %8177 = vmatpush1.msra.mxu0 0.0
    %8178 = vmatprep.subr.mxu0 0.0
    %8179 = vmatpush1.msra.mxu0 0.0
    %8180 = vmatprep.subr.mxu0 0.0
    %8181 = vmatpush1.msra.mxu0 0.0
    %8182 = vmatprep.subr.mxu0 0.0
    %8183 = vmatpush1.msra.mxu0 0.0
    %8184 = vmatprep.subr.mxu0 0.0
    %8185 = vmatpush1.msra.mxu0 0.0
    %8186 = vmatprep.subr.mxu0 0.0
    %8187 = vmatpush1.msra.mxu0 0.0
    %8188 = vmatprep.subr.mxu0 0.0
    %8189 = vmatpush1.msra.mxu0 0.0
    %8190 = vmatprep.subr.mxu0 0.0
    %8191 = vmatpush1.msra.mxu0 0.0
    %8192 = vmatprep.subr.mxu0 0.0
    %8193 = vmatpush1.msra.mxu0 0.0
    %8194 = vmatprep.subr.mxu0 0.0
    %8195 = vmatpush1.msra.mxu0 0.0
    %8196 = vmatprep.subr.mxu0 0.0
    %8197 = vmatpush1.msra.mxu0 0.0
    %8198 = vmatprep.subr.mxu0 0.0
    %8199 = vmatpush1.msra.mxu0 0.0
    %8200 = vmatprep.subr.mxu0 0.0
    %8201 = vmatpush1.msra.mxu0 0.0
    %8202 = vmatprep.subr.mxu0 0.0
    %8203 = vmatpush1.msra.mxu0 0.0
    %8204 = vmatprep.subr.mxu0 0.0
    %8205 = vmatpush1.msra.mxu0 0.0
    %8206 = vmatprep.subr.mxu0 %v7978
    %8207 = vmatpush1.msra.mxu0 %v7975
    %8208 = vmatprep.subr.mxu0 0.0
    %8209 = vmatpush2.msra.mxu0 0.0
    %8210 = vmatprep.subr.mxu0 0.0
    %8211 = vmatpush2.msra.mxu0 0.0
    %8212 = vmatprep.subr.mxu0 0.0
    %8213 = vmatpush2.msra.mxu0 0.0
    %8214 = vmatprep.subr.mxu0 0.0
    %8215 = vmatpush2.msra.mxu0 0.0
    %8216 = vmatprep.subr.mxu0 0.0
    %8217 = vmatpush2.msra.mxu0 0.0
    %8218 = vmatprep.subr.mxu0 0.0
    %8219 = vmatpush2.msra.mxu0 0.0
    %8220 = vmatprep.subr.mxu0 0.0
    %8221 = vmatpush2.msra.mxu0 0.0
    %8222 = vmatprep.subr.mxu0 0.0
    %8223 = vmatpush2.msra.mxu0 0.0
    %8224 = vmatprep.subr.mxu0 0.0
    %8225 = vmatpush2.msra.mxu0 0.0
    %8226 = vmatprep.subr.mxu0 0.0
    %8227 = vmatpush2.msra.mxu0 0.0
    %8228 = vmatprep.subr.mxu0 0.0
    %8229 = vmatpush2.msra.mxu0 0.0
    %8230 = vmatprep.subr.mxu0 0.0
    %8231 = vmatpush2.msra.mxu0 0.0
    %8232 = vmatprep.subr.mxu0 0.0
    %8233 = vmatpush2.msra.mxu0 0.0
    %8234 = vmatprep.subr.mxu0 0.0
    %8235 = vmatpush2.msra.mxu0 0.0
    %8236 = vmatprep.subr.mxu0 0.0
    %8237 = vmatpush2.msra.mxu0 0.0
    %8238 = vmatprep.subr.mxu0 0.0
    %8239 = vmatpush2.msra.mxu0 0.0
    %8240 = vmatprep.mubr.f32.mxu0 0.0
    %8241 = vmatmul.mubr.f32.gmra.mxu0 %v7950
    %v8242 = vpop.f32.mrf.mxu0
    %v8243 = vadd.f32 %v7659, %v8242
    %v8244 = vpop.f32.mrf.mxu0
    %v8245 = vadd.f32 %v7661, %v8244
    %8246 = vmatprep.mubr.f32.mxu0 0.0
    %8247 = vmatmul.mubr.f32.gmra.mxu0 %v7953
    %v8248 = vpop.f32.mrf.mxu0
    %v8249 = vadd.f32 %v7665, %v8248
    %v8250 = vpop.f32.mrf.mxu0
    %v8251 = vadd.f32 %v7667, %v8250
    %8252 = vmatprep.mubr.f32.mxu0 0.0
    %8253 = vmatmul.mubr.f32.gmra.mxu0 %v7956
    %v8254 = vpop.f32.mrf.mxu0
    %v8255 = vadd.f32 %v7671, %v8254
    %v8256 = vpop.f32.mrf.mxu0
    %v8257 = vadd.f32 %v7673, %v8256
    %8258 = vmatprep.mubr.f32.mxu0 0.0
    %8259 = vmatmul.mubr.f32.gmra.mxu0 %v7959
    %v8260 = vpop.f32.mrf.mxu0
    %v8261 = vadd.f32 %v7677, %v8260
    %v8262 = vpop.f32.mrf.mxu0
    %v8263 = vadd.f32 %v7679, %v8262
    %8264 = vdwg.mxu0
    %8265 = vmatprep.subr.mxu0 0.0
    %8266 = vmatpush1.msra.mxu0 0.0
    %8267 = vmatprep.subr.mxu0 0.0
    %8268 = vmatpush1.msra.mxu0 0.0
    %8269 = vmatprep.subr.mxu0 0.0
    %8270 = vmatpush1.msra.mxu0 0.0
    %8271 = vmatprep.subr.mxu0 0.0
    %8272 = vmatpush1.msra.mxu0 0.0
    %8273 = vmatprep.subr.mxu0 0.0
    %8274 = vmatpush1.msra.mxu0 0.0
    %8275 = vmatprep.subr.mxu0 0.0
    %8276 = vmatpush1.msra.mxu0 0.0
    %8277 = vmatprep.subr.mxu0 0.0
    %8278 = vmatpush1.msra.mxu0 0.0
    %8279 = vmatprep.subr.mxu0 0.0
    %8280 = vmatpush1.msra.mxu0 0.0
    %8281 = vmatprep.subr.mxu0 0.0
    %8282 = vmatpush1.msra.mxu0 0.0
    %8283 = vmatprep.subr.mxu0 0.0
    %8284 = vmatpush1.msra.mxu0 0.0
    %8285 = vmatprep.subr.mxu0 0.0
    %8286 = vmatpush1.msra.mxu0 0.0
    %8287 = vmatprep.subr.mxu0 0.0
    %8288 = vmatpush1.msra.mxu0 0.0
    %8289 = vmatprep.subr.mxu0 0.0
    %8290 = vmatpush1.msra.mxu0 0.0
    %8291 = vmatprep.subr.mxu0 0.0
    %8292 = vmatpush1.msra.mxu0 0.0
    %8293 = vmatprep.subr.mxu0 0.0
    %8294 = vmatpush1.msra.mxu0 0.0
    %8295 = vmatprep.subr.mxu0 %v7984
    %8296 = vmatpush1.msra.mxu0 %v7981
    %8297 = vmatprep.subr.mxu0 0.0
    %8298 = vmatpush2.msra.mxu0 0.0
    %8299 = vmatprep.subr.mxu0 0.0
    %8300 = vmatpush2.msra.mxu0 0.0
    %8301 = vmatprep.subr.mxu0 0.0
    %8302 = vmatpush2.msra.mxu0 0.0
    %8303 = vmatprep.subr.mxu0 0.0
    %8304 = vmatpush2.msra.mxu0 0.0
    %8305 = vmatprep.subr.mxu0 0.0
    %8306 = vmatpush2.msra.mxu0 0.0
    %8307 = vmatprep.subr.mxu0 0.0
    %8308 = vmatpush2.msra.mxu0 0.0
    %8309 = vmatprep.subr.mxu0 0.0
    %8310 = vmatpush2.msra.mxu0 0.0
    %8311 = vmatprep.subr.mxu0 0.0
    %8312 = vmatpush2.msra.mxu0 0.0
    %8313 = vmatprep.subr.mxu0 0.0
    %8314 = vmatpush2.msra.mxu0 0.0
    %8315 = vmatprep.subr.mxu0 0.0
    %8316 = vmatpush2.msra.mxu0 0.0
    %8317 = vmatprep.subr.mxu0 0.0
    %8318 = vmatpush2.msra.mxu0 0.0
    %8319 = vmatprep.subr.mxu0 0.0
    %8320 = vmatpush2.msra.mxu0 0.0
    %8321 = vmatprep.subr.mxu0 0.0
    %8322 = vmatpush2.msra.mxu0 0.0
    %8323 = vmatprep.subr.mxu0 0.0
    %8324 = vmatpush2.msra.mxu0 0.0
    %8325 = vmatprep.subr.mxu0 0.0
    %8326 = vmatpush2.msra.mxu0 0.0
    %8327 = vmatprep.subr.mxu0 0.0
    %8328 = vmatpush2.msra.mxu0 0.0
    %8329 = vmatprep.mubr.f32.mxu0 0.0
    %8330 = vmatmul.mubr.f32.gmra.mxu0 %v7950
    %v8331 = vpop.f32.mrf.mxu0
    %v8332 = vadd.f32 %v7748, %v8331
    %v8333 = vpop.f32.mrf.mxu0
    %v8334 = vadd.f32 %v7750, %v8333
    %8335 = vmatprep.mubr.f32.mxu0 0.0
    %8336 = vmatmul.mubr.f32.gmra.mxu0 %v7953
    %v8337 = vpop.f32.mrf.mxu0
    %v8338 = vadd.f32 %v7754, %v8337
    %v8339 = vpop.f32.mrf.mxu0
    %v8340 = vadd.f32 %v7756, %v8339
    %8341 = vmatprep.mubr.f32.mxu0 0.0
    %8342 = vmatmul.mubr.f32.gmra.mxu0 %v7956
    %v8343 = vpop.f32.mrf.mxu0
    %v8344 = vadd.f32 %v7760, %v8343
    %v8345 = vpop.f32.mrf.mxu0
    %v8346 = vadd.f32 %v7762, %v8345
    %8347 = vmatprep.mubr.f32.mxu0 0.0
    %8348 = vmatmul.mubr.f32.gmra.mxu0 %v7959
    %v8349 = vpop.f32.mrf.mxu0
    %v8350 = vadd.f32 %v7766, %v8349
    %v8351 = vpop.f32.mrf.mxu0
    %v8352 = vadd.f32 %v7768, %v8351
    %8353 = vdwg.mxu0
    %8354 = vmatprep.subr.mxu0 0.0
    %8355 = vmatpush1.msra.mxu0 0.0
    %8356 = vmatprep.subr.mxu0 0.0
    %8357 = vmatpush1.msra.mxu0 0.0
    %8358 = vmatprep.subr.mxu0 0.0
    %8359 = vmatpush1.msra.mxu0 0.0
    %8360 = vmatprep.subr.mxu0 0.0
    %8361 = vmatpush1.msra.mxu0 0.0
    %8362 = vmatprep.subr.mxu0 0.0
    %8363 = vmatpush1.msra.mxu0 0.0
    %8364 = vmatprep.subr.mxu0 0.0
    %8365 = vmatpush1.msra.mxu0 0.0
    %8366 = vmatprep.subr.mxu0 0.0
    %8367 = vmatpush1.msra.mxu0 0.0
    %8368 = vmatprep.subr.mxu0 0.0
    %8369 = vmatpush1.msra.mxu0 0.0
    %8370 = vmatprep.subr.mxu0 0.0
    %8371 = vmatpush1.msra.mxu0 0.0
    %8372 = vmatprep.subr.mxu0 0.0
    %8373 = vmatpush1.msra.mxu0 0.0
    %8374 = vmatprep.subr.mxu0 0.0
    %8375 = vmatpush1.msra.mxu0 0.0
    %8376 = vmatprep.subr.mxu0 0.0
    %8377 = vmatpush1.msra.mxu0 0.0
    %8378 = vmatprep.subr.mxu0 0.0
    %8379 = vmatpush1.msra.mxu0 0.0
    %8380 = vmatprep.subr.mxu0 0.0
    %8381 = vmatpush1.msra.mxu0 0.0
    %8382 = vmatprep.subr.mxu0 0.0
    %8383 = vmatpush1.msra.mxu0 0.0
    %8384 = vmatprep.subr.mxu0 %v7990
    %8385 = vmatpush1.msra.mxu0 %v7987
    %8386 = vmatprep.subr.mxu0 0.0
    %8387 = vmatpush2.msra.mxu0 0.0
    %8388 = vmatprep.subr.mxu0 0.0
    %8389 = vmatpush2.msra.mxu0 0.0
    %8390 = vmatprep.subr.mxu0 0.0
    %8391 = vmatpush2.msra.mxu0 0.0
    %8392 = vmatprep.subr.mxu0 0.0
    %8393 = vmatpush2.msra.mxu0 0.0
    %8394 = vmatprep.subr.mxu0 0.0
    %8395 = vmatpush2.msra.mxu0 0.0
    %8396 = vmatprep.subr.mxu0 0.0
    %8397 = vmatpush2.msra.mxu0 0.0
    %8398 = vmatprep.subr.mxu0 0.0
    %8399 = vmatpush2.msra.mxu0 0.0
    %8400 = vmatprep.subr.mxu0 0.0
    %8401 = vmatpush2.msra.mxu0 0.0
    %8402 = vmatprep.subr.mxu0 0.0
    %8403 = vmatpush2.msra.mxu0 0.0
    %8404 = vmatprep.subr.mxu0 0.0
    %8405 = vmatpush2.msra.mxu0 0.0
    %8406 = vmatprep.subr.mxu0 0.0
    %8407 = vmatpush2.msra.mxu0 0.0
    %8408 = vmatprep.subr.mxu0 0.0
    %8409 = vmatpush2.msra.mxu0 0.0
    %8410 = vmatprep.subr.mxu0 0.0
    %8411 = vmatpush2.msra.mxu0 0.0
    %8412 = vmatprep.subr.mxu0 0.0
    %8413 = vmatpush2.msra.mxu0 0.0
    %8414 = vmatprep.subr.mxu0 0.0
    %8415 = vmatpush2.msra.mxu0 0.0
    %8416 = vmatprep.subr.mxu0 0.0
    %8417 = vmatpush2.msra.mxu0 0.0
    %8418 = vmatprep.mubr.f32.mxu0 0.0
    %8419 = vmatmul.mubr.f32.gmra.mxu0 %v7950
    %v8420 = vpop.f32.mrf.mxu0
    %v8421 = vadd.f32 %v7837, %v8420
    %v8422 = vpop.f32.mrf.mxu0
    %v8423 = vadd.f32 %v7839, %v8422
    %8424 = vmatprep.mubr.f32.mxu0 0.0
    %8425 = vmatmul.mubr.f32.gmra.mxu0 %v7953
    %v8426 = vpop.f32.mrf.mxu0
    %v8427 = vadd.f32 %v7843, %v8426
    %v8428 = vpop.f32.mrf.mxu0
    %v8429 = vadd.f32 %v7845, %v8428
    %8430 = vmatprep.mubr.f32.mxu0 0.0
    %8431 = vmatmul.mubr.f32.gmra.mxu0 %v7956
    %v8432 = vpop.f32.mrf.mxu0
    %v8433 = vadd.f32 %v7849, %v8432
    %v8434 = vpop.f32.mrf.mxu0
    %v8435 = vadd.f32 %v7851, %v8434
    %8436 = vmatprep.mubr.f32.mxu0 0.0
    %8437 = vmatmul.mubr.f32.gmra.mxu0 %v7959
    %v8438 = vpop.f32.mrf.mxu0
    %v8439 = vadd.f32 %v7855, %v8438
    %v8440 = vpop.f32.mrf.mxu0
    %v8441 = vadd.f32 %v7857, %v8440
    %8442 = vdwg.mxu0
    %8443 = vmatprep.subr.mxu0 0.0
    %8444 = vmatpush1.msra.mxu0 0.0
    %8445 = vmatprep.subr.mxu0 0.0
    %8446 = vmatpush1.msra.mxu0 0.0
    %8447 = vmatprep.subr.mxu0 0.0
    %8448 = vmatpush1.msra.mxu0 0.0
    %8449 = vmatprep.subr.mxu0 0.0
    %8450 = vmatpush1.msra.mxu0 0.0
    %8451 = vmatprep.subr.mxu0 0.0
    %8452 = vmatpush1.msra.mxu0 0.0
    %8453 = vmatprep.subr.mxu0 0.0
    %8454 = vmatpush1.msra.mxu0 0.0
    %8455 = vmatprep.subr.mxu0 0.0
    %8456 = vmatpush1.msra.mxu0 0.0
    %8457 = vmatprep.subr.mxu0 0.0
    %8458 = vmatpush1.msra.mxu0 0.0
    %8459 = vmatprep.subr.mxu0 0.0
    %8460 = vmatpush1.msra.mxu0 0.0
    %8461 = vmatprep.subr.mxu0 0.0
    %8462 = vmatpush1.msra.mxu0 0.0
    %8463 = vmatprep.subr.mxu0 0.0
    %8464 = vmatpush1.msra.mxu0 0.0
    %8465 = vmatprep.subr.mxu0 0.0
    %8466 = vmatpush1.msra.mxu0 0.0
    %8467 = vmatprep.subr.mxu0 0.0
    %8468 = vmatpush1.msra.mxu0 0.0
    %8469 = vmatprep.subr.mxu0 0.0
    %8470 = vmatpush1.msra.mxu0 0.0
    %8471 = vmatprep.subr.mxu0 0.0
    %8472 = vmatpush1.msra.mxu0 0.0
    %8473 = vmatprep.subr.mxu0 %v7996
    %8474 = vmatpush1.msra.mxu0 %v7993
    %8475 = vmatprep.subr.mxu0 0.0
    %8476 = vmatpush2.msra.mxu0 0.0
    %8477 = vmatprep.subr.mxu0 0.0
    %8478 = vmatpush2.msra.mxu0 0.0
    %8479 = vmatprep.subr.mxu0 0.0
    %8480 = vmatpush2.msra.mxu0 0.0
    %8481 = vmatprep.subr.mxu0 0.0
    %8482 = vmatpush2.msra.mxu0 0.0
    %8483 = vmatprep.subr.mxu0 0.0
    %8484 = vmatpush2.msra.mxu0 0.0
    %8485 = vmatprep.subr.mxu0 0.0
    %8486 = vmatpush2.msra.mxu0 0.0
    %8487 = vmatprep.subr.mxu0 0.0
    %8488 = vmatpush2.msra.mxu0 0.0
    %8489 = vmatprep.subr.mxu0 0.0
    %8490 = vmatpush2.msra.mxu0 0.0
    %8491 = vmatprep.subr.mxu0 0.0
    %8492 = vmatpush2.msra.mxu0 0.0
    %8493 = vmatprep.subr.mxu0 0.0
    %8494 = vmatpush2.msra.mxu0 0.0
    %8495 = vmatprep.subr.mxu0 0.0
    %8496 = vmatpush2.msra.mxu0 0.0
    %8497 = vmatprep.subr.mxu0 0.0
    %8498 = vmatpush2.msra.mxu0 0.0
    %8499 = vmatprep.subr.mxu0 0.0
    %8500 = vmatpush2.msra.mxu0 0.0
    %8501 = vmatprep.subr.mxu0 0.0
    %8502 = vmatpush2.msra.mxu0 0.0
    %8503 = vmatprep.subr.mxu0 0.0
    %8504 = vmatpush2.msra.mxu0 0.0
    %8505 = vmatprep.subr.mxu0 0.0
    %8506 = vmatpush2.msra.mxu0 0.0
    %8507 = vmatprep.mubr.f32.mxu0 0.0
    %8508 = vmatmul.mubr.f32.gmra.mxu0 %v7950
    %v8509 = vpop.f32.mrf.mxu0
    %v8510 = vadd.f32 %v7926, %v8509
    %v8511 = vpop.f32.mrf.mxu0
    %v8512 = vadd.f32 %v7928, %v8511
    %8513 = vmatprep.mubr.f32.mxu0 0.0
    %8514 = vmatmul.mubr.f32.gmra.mxu0 %v7953
    %v8515 = vpop.f32.mrf.mxu0
    %v8516 = vadd.f32 %v7932, %v8515
    %v8517 = vpop.f32.mrf.mxu0
    %v8518 = vadd.f32 %v7934, %v8517
    %8519 = vmatprep.mubr.f32.mxu0 0.0
    %8520 = vmatmul.mubr.f32.gmra.mxu0 %v7956
    %v8521 = vpop.f32.mrf.mxu0
    %v8522 = vadd.f32 %v7938, %v8521
    %v8523 = vpop.f32.mrf.mxu0
    %v8524 = vadd.f32 %v7940, %v8523
    %8525 = vmatprep.mubr.f32.mxu0 0.0
    %8526 = vmatmul.mubr.f32.gmra.mxu0 %v7959
    %v8527 = vpop.f32.mrf.mxu0
    %v8528 = vadd.f32 %v7944, %v8527
    %v8529 = vpop.f32.mrf.mxu0
    %v8530 = vadd.f32 %v7946, %v8529
    %8531 = vdwg.mxu0
    %v8532 = vmul.f32 %v8065, 0.70710677
    %v8533 = vmul.f32 %v8067, 0.70710677
    %v8534 = vmul.f32 %v8154, 0.70710677
    %v8535 = vmul.f32 %v8156, 0.70710677
    %v8536 = vmul.f32 %v8243, 0.70710677
    %v8537 = vmul.f32 %v8245, 0.70710677
    %v8538 = vmul.f32 %v8332, 0.70710677
    %v8539 = vmul.f32 %v8334, 0.70710677
    %v8540 = vmul.f32 %v8421, 0.70710677
    %v8541 = vmul.f32 %v8423, 0.70710677
    %v8542 = vmul.f32 %v8510, 0.70710677
    %v8543 = vmul.f32 %v8512, 0.70710677
    %v8544 = vmul.f32 %v8071, 0.70710677
    %v8545 = vmul.f32 %v8073, 0.70710677
    %v8546 = vmul.f32 %v8160, 0.70710677
    %v8547 = vmul.f32 %v8162, 0.70710677
    %v8548 = vmul.f32 %v8249, 0.70710677
    %v8549 = vmul.f32 %v8251, 0.70710677
    %v8550 = vmul.f32 %v8338, 0.70710677
    %v8551 = vmul.f32 %v8340, 0.70710677
    %v8552 = vmul.f32 %v8427, 0.70710677
    %v8553 = vmul.f32 %v8429, 0.70710677
    %v8554 = vmul.f32 %v8516, 0.70710677
    %v8555 = vmul.f32 %v8518, 0.70710677
    %v8556 = vmul.f32 %v8077, 0.70710677
    %v8557 = vmul.f32 %v8079, 0.70710677
    %v8558 = vmul.f32 %v8166, 0.70710677
    %v8559 = vmul.f32 %v8168, 0.70710677
    %v8560 = vmul.f32 %v8255, 0.70710677
    %v8561 = vmul.f32 %v8257, 0.70710677
    %v8562 = vmul.f32 %v8344, 0.70710677
    %v8563 = vmul.f32 %v8346, 0.70710677
    %v8564 = vmul.f32 %v8433, 0.70710677
    %v8565 = vmul.f32 %v8435, 0.70710677
    %v8566 = vmul.f32 %v8522, 0.70710677
    %v8567 = vmul.f32 %v8524, 0.70710677
    %v8568 = vmul.f32 %v8083, 0.70710677
    %v8569 = vmul.f32 %v8085, 0.70710677
    %v8570 = vmul.f32 %v8172, 0.70710677
    %v8571 = vmul.f32 %v8174, 0.70710677
    %v8572 = vmul.f32 %v8261, 0.70710677
    %v8573 = vmul.f32 %v8263, 0.70710677
    %v8574 = vmul.f32 %v8350, 0.70710677
    %v8575 = vmul.f32 %v8352, 0.70710677
    %v8576 = vmul.f32 %v8439, 0.70710677
    %v8577 = vmul.f32 %v8441, 0.70710677
    %v8578 = vmul.f32 %v8528, 0.70710677
    %v8579 = vmul.f32 %v8530, 0.70710677
    %v8580 = vld [vmem:[%s7] sm:$0xff]
    %v8581 = vld [vmem:[%s7 + $0x8] sm:$0xff]
    %v8582 = vld [vmem:[%s7 + $0x10] sm:$0xff]
    %v8583 = vld [vmem:[%s7 + $0x18] sm:$0xff]
    %8585 = vset.pattern.permute.xlu0 0
    %8586 = vperm.xlu0 %8585, %v8580
    %v8587 = vpop.permute.xlu0 %8586
    %8590 = vset.pattern.permute.xlu0 0
    %8591 = vperm.xlu0 %8590, %v8581
    %v8592 = vpop.permute.xlu0 %8591
    %8595 = vset.pattern.permute.xlu0 0
    %8596 = vperm.xlu0 %8595, %v8582
    %v8597 = vpop.permute.xlu0 %8596
    %8600 = vset.pattern.permute.xlu0 0
    %8601 = vperm.xlu0 %8600, %v8583
    %v8602 = vpop.permute.xlu0 %8601
    %v8604 = vadd.f32 %v8532, %v8587
    %v8605 = vadd.f32 %v8533, %v8587
    %v8606 = vadd.f32 %v8534, %v8587
    %v8607 = vadd.f32 %v8535, %v8587
    %v8608 = vadd.f32 %v8536, %v8587
    %v8609 = vadd.f32 %v8537, %v8587
    %v8610 = vadd.f32 %v8538, %v8587
    %v8611 = vadd.f32 %v8539, %v8587
    %v8612 = vadd.f32 %v8540, %v8587
    %v8613 = vadd.f32 %v8541, %v8587
    %v8614 = vadd.f32 %v8542, %v8587
    %v8615 = vadd.f32 %v8543, %v8587
    %v8616 = vadd.f32 %v8544, %v8592
    %v8617 = vadd.f32 %v8545, %v8592
    %v8618 = vadd.f32 %v8546, %v8592
    %v8619 = vadd.f32 %v8547, %v8592
    %v8620 = vadd.f32 %v8548, %v8592
    %v8621 = vadd.f32 %v8549, %v8592
    %v8622 = vadd.f32 %v8550, %v8592
    %v8623 = vadd.f32 %v8551, %v8592
    %v8624 = vadd.f32 %v8552, %v8592
    %v8625 = vadd.f32 %v8553, %v8592
    %v8626 = vadd.f32 %v8554, %v8592
    %v8627 = vadd.f32 %v8555, %v8592
    %v8628 = vadd.f32 %v8556, %v8597
    %v8629 = vadd.f32 %v8557, %v8597
    %v8630 = vadd.f32 %v8558, %v8597
    %v8631 = vadd.f32 %v8559, %v8597
    %v8632 = vadd.f32 %v8560, %v8597
    %v8633 = vadd.f32 %v8561, %v8597
    %v8634 = vadd.f32 %v8562, %v8597
    %v8635 = vadd.f32 %v8563, %v8597
    %v8636 = vadd.f32 %v8564, %v8597
    %v8637 = vadd.f32 %v8565, %v8597
    %v8638 = vadd.f32 %v8566, %v8597
    %v8639 = vadd.f32 %v8567, %v8597
    %v8640 = vadd.f32 %v8568, %v8602
    %v8641 = vadd.f32 %v8569, %v8602
    %v8642 = vadd.f32 %v8570, %v8602
    %v8643 = vadd.f32 %v8571, %v8602
    %v8644 = vadd.f32 %v8572, %v8602
    %v8645 = vadd.f32 %v8573, %v8602
    %v8646 = vadd.f32 %v8574, %v8602
    %v8647 = vadd.f32 %v8575, %v8602
    %v8648 = vadd.f32 %v8576, %v8602
    %v8649 = vadd.f32 %v8577, %v8602
    %v8650 = vadd.f32 %v8578, %v8602
    %v8651 = vadd.f32 %v8579, %v8602
    %v8652 = vmul.f32 %v8604, 100.0
    %v8653 = vmul.f32 %v8605, 100.0
    %v8654 = vmul.f32 %v8606, 100.0
    %v8655 = vmul.f32 %v8607, 100.0
    %v8656 = vmul.f32 %v8608, 100.0
    %v8657 = vmul.f32 %v8609, 100.0
    %v8658 = vmul.f32 %v8610, 100.0
    %v8659 = vmul.f32 %v8611, 100.0
    %v8660 = vmul.f32 %v8612, 100.0
    %v8661 = vmul.f32 %v8613, 100.0
    %v8662 = vmul.f32 %v8614, 100.0
    %v8663 = vmul.f32 %v8615, 100.0
    %v8664 = vmul.f32 %v8616, 100.0
    %v8665 = vmul.f32 %v8617, 100.0
    %v8666 = vmul.f32 %v8618, 100.0
    %v8667 = vmul.f32 %v8619, 100.0
    %v8668 = vmul.f32 %v8620, 100.0
    %v8669 = vmul.f32 %v8621, 100.0
    %v8670 = vmul.f32 %v8622, 100.0
    %v8671 = vmul.f32 %v8623, 100.0
    %v8672 = vmul.f32 %v8624, 100.0
    %v8673 = vmul.f32 %v8625, 100.0
    %v8674 = vmul.f32 %v8626, 100.0
    %v8675 = vmul.f32 %v8627, 100.0
    %v8676 = vmul.f32 %v8628, 100.0
    %v8677 = vmul.f32 %v8629, 100.0
    %v8678 = vmul.f32 %v8630, 100.0
    %v8679 = vmul.f32 %v8631, 100.0
    %v8680 = vmul.f32 %v8632, 100.0
    %v8681 = vmul.f32 %v8633, 100.0
    %v8682 = vmul.f32 %v8634, 100.0
    %v8683 = vmul.f32 %v8635, 100.0
    %v8684 = vmul.f32 %v8636, 100.0
    %v8685 = vmul.f32 %v8637, 100.0
    %v8686 = vmul.f32 %v8638, 100.0
    %v8687 = vmul.f32 %v8639, 100.0
    %v8688 = vmul.f32 %v8640, 100.0
    %v8689 = vmul.f32 %v8641, 100.0
    %v8690 = vmul.f32 %v8642, 100.0
    %v8691 = vmul.f32 %v8643, 100.0
    %v8692 = vmul.f32 %v8644, 100.0
    %v8693 = vmul.f32 %v8645, 100.0
    %v8694 = vmul.f32 %v8646, 100.0
    %v8695 = vmul.f32 %v8647, 100.0
    %v8696 = vmul.f32 %v8648, 100.0
    %v8697 = vmul.f32 %v8649, 100.0
    %v8698 = vmul.f32 %v8650, 100.0
    %v8699 = vmul.f32 %v8651, 100.0
    %v8700 = vmin.f32 %v8652, 20.0
    %v8701 = vmin.f32 %v8653, 20.0
    %v8702 = vmin.f32 %v8654, 20.0
    %v8703 = vmin.f32 %v8655, 20.0
    %v8704 = vmin.f32 %v8656, 20.0
    %v8705 = vmin.f32 %v8657, 20.0
    %v8706 = vmin.f32 %v8658, 20.0
    %v8707 = vmin.f32 %v8659, 20.0
    %v8708 = vmin.f32 %v8660, 20.0
    %v8709 = vmin.f32 %v8661, 20.0
    %v8710 = vmin.f32 %v8662, 20.0
    %v8711 = vmin.f32 %v8663, 20.0
    %v8712 = vmin.f32 %v8664, 20.0
    %v8713 = vmin.f32 %v8665, 20.0
    %v8714 = vmin.f32 %v8666, 20.0
    %v8715 = vmin.f32 %v8667, 20.0
    %v8716 = vmin.f32 %v8668, 20.0
    %v8717 = vmin.f32 %v8669, 20.0
    %v8718 = vmin.f32 %v8670, 20.0
    %v8719 = vmin.f32 %v8671, 20.0
    %v8720 = vmin.f32 %v8672, 20.0
    %v8721 = vmin.f32 %v8673, 20.0
    %v8722 = vmin.f32 %v8674, 20.0
    %v8723 = vmin.f32 %v8675, 20.0
    %v8724 = vmin.f32 %v8676, 20.0
    %v8725 = vmin.f32 %v8677, 20.0
    %v8726 = vmin.f32 %v8678, 20.0
    %v8727 = vmin.f32 %v8679, 20.0
    %v8728 = vmin.f32 %v8680, 20.0
    %v8729 = vmin.f32 %v8681, 20.0
    %v8730 = vmin.f32 %v8682, 20.0
    %v8731 = vmin.f32 %v8683, 20.0
    %v8732 = vmin.f32 %v8684, 20.0
    %v8733 = vmin.f32 %v8685, 20.0
    %v8734 = vmin.f32 %v8686, 20.0
    %v8735 = vmin.f32 %v8687, 20.0
    %v8736 = vmin.f32 %v8688, 20.0
    %v8737 = vmin.f32 %v8689, 20.0
    %v8738 = vmin.f32 %v8690, 20.0
    %v8739 = vmin.f32 %v8691, 20.0
    %v8740 = vmin.f32 %v8692, 20.0
    %v8741 = vmin.f32 %v8693, 20.0
    %v8742 = vmin.f32 %v8694, 20.0
    %v8743 = vmin.f32 %v8695, 20.0
    %v8744 = vmin.f32 %v8696, 20.0
    %v8745 = vmin.f32 %v8697, 20.0
    %v8746 = vmin.f32 %v8698, 20.0
    %v8747 = vmin.f32 %v8699, 20.0
    %v8748 = vmul.f32 %v8700, 1.442695
    %v8749 = vpow.pop %v8748
    %v8750 = vmul.f32 %v8701, 1.442695
    %v8751 = vpow.pop %v8750
    %v8752 = vmul.f32 %v8702, 1.442695
    %v8753 = vpow.pop %v8752
    %v8754 = vmul.f32 %v8703, 1.442695
    %v8755 = vpow.pop %v8754
    %v8756 = vmul.f32 %v8704, 1.442695
    %v8757 = vpow.pop %v8756
    %v8758 = vmul.f32 %v8705, 1.442695
    %v8759 = vpow.pop %v8758
    %v8760 = vmul.f32 %v8706, 1.442695
    %v8761 = vpow.pop %v8760
    %v8762 = vmul.f32 %v8707, 1.442695
    %v8763 = vpow.pop %v8762
    %v8764 = vmul.f32 %v8708, 1.442695
    %v8765 = vpow.pop %v8764
    %v8766 = vmul.f32 %v8709, 1.442695
    %v8767 = vpow.pop %v8766
    %v8768 = vmul.f32 %v8710, 1.442695
    %v8769 = vpow.pop %v8768
    %v8770 = vmul.f32 %v8711, 1.442695
    %v8771 = vpow.pop %v8770
    %v8772 = vmul.f32 %v8712, 1.442695
    %v8773 = vpow.pop %v8772
    %v8774 = vmul.f32 %v8713, 1.442695
    %v8775 = vpow.pop %v8774
    %v8776 = vmul.f32 %v8714, 1.442695
    %v8777 = vpow.pop %v8776
    %v8778 = vmul.f32 %v8715, 1.442695
    %v8779 = vpow.pop %v8778
    %v8780 = vmul.f32 %v8716, 1.442695
    %v8781 = vpow.pop %v8780
    %v8782 = vmul.f32 %v8717, 1.442695
    %v8783 = vpow.pop %v8782
    %v8784 = vmul.f32 %v8718, 1.442695
    %v8785 = vpow.pop %v8784
    %v8786 = vmul.f32 %v8719, 1.442695
    %v8787 = vpow.pop %v8786
    %v8788 = vmul.f32 %v8720, 1.442695
    %v8789 = vpow.pop %v8788
    %v8790 = vmul.f32 %v8721, 1.442695
    %v8791 = vpow.pop %v8790
    %v8792 = vmul.f32 %v8722, 1.442695
    %v8793 = vpow.pop %v8792
    %v8794 = vmul.f32 %v8723, 1.442695
    %v8795 = vpow.pop %v8794
    %v8796 = vmul.f32 %v8724, 1.442695
    %v8797 = vpow.pop %v8796
    %v8798 = vmul.f32 %v8725, 1.442695
    %v8799 = vpow.pop %v8798
    %v8800 = vmul.f32 %v8726, 1.442695
    %v8801 = vpow.pop %v8800
    %v8802 = vmul.f32 %v8727, 1.442695
    %v8803 = vpow.pop %v8802
    %v8804 = vmul.f32 %v8728, 1.442695
    %v8805 = vpow.pop %v8804
    %v8806 = vmul.f32 %v8729, 1.442695
    %v8807 = vpow.pop %v8806
    %v8808 = vmul.f32 %v8730, 1.442695
    %v8809 = vpow.pop %v8808
    %v8810 = vmul.f32 %v8731, 1.442695
    %v8811 = vpow.pop %v8810
    %v8812 = vmul.f32 %v8732, 1.442695
    %v8813 = vpow.pop %v8812
    %v8814 = vmul.f32 %v8733, 1.442695
    %v8815 = vpow.pop %v8814
    %v8816 = vmul.f32 %v8734, 1.442695
    %v8817 = vpow.pop %v8816
    %v8818 = vmul.f32 %v8735, 1.442695
    %v8819 = vpow.pop %v8818
    %v8820 = vmul.f32 %v8736, 1.442695
    %v8821 = vpow.pop %v8820
    %v8822 = vmul.f32 %v8737, 1.442695
    %v8823 = vpow.pop %v8822
    %v8824 = vmul.f32 %v8738, 1.442695
    %v8825 = vpow.pop %v8824
    %v8826 = vmul.f32 %v8739, 1.442695
    %v8827 = vpow.pop %v8826
    %v8828 = vmul.f32 %v8740, 1.442695
    %v8829 = vpow.pop %v8828
    %v8830 = vmul.f32 %v8741, 1.442695
    %v8831 = vpow.pop %v8830
    %v8832 = vmul.f32 %v8742, 1.442695
    %v8833 = vpow.pop %v8832
    %v8834 = vmul.f32 %v8743, 1.442695
    %v8835 = vpow.pop %v8834
    %v8836 = vmul.f32 %v8744, 1.442695
    %v8837 = vpow.pop %v8836
    %v8838 = vmul.f32 %v8745, 1.442695
    %v8839 = vpow.pop %v8838
    %v8840 = vmul.f32 %v8746, 1.442695
    %v8841 = vpow.pop %v8840
    %v8842 = vmul.f32 %v8747, 1.442695
    %v8843 = vpow.pop %v8842
    %v8844 = vadd.f32 %v8749, 1.0
    %v8845 = vlog2.pop %v8844
    %v8846 = vmul.f32 %v8845, 0.6931472
    %v8847 = vmul.f32 -0.5, %v8749
    %v8848 = vadd.f32 %v8847, 1.0
    %v8849 = vmul.f32 %v8848, %v8749
    %v8850 = vand.u32 2147483647, %v8749
    %vm8851 = vcmp.lt.f32.partialorder %v8850, 0.0004427343
    %v8852 = vsel %vm8851, %v8849, %v8846
    %v8853 = vadd.f32 %v8751, 1.0
    %v8854 = vlog2.pop %v8853
    %v8855 = vmul.f32 %v8854, 0.6931472
    %v8856 = vmul.f32 -0.5, %v8751
    %v8857 = vadd.f32 %v8856, 1.0
    %v8858 = vmul.f32 %v8857, %v8751
    %v8859 = vand.u32 2147483647, %v8751
    %vm8860 = vcmp.lt.f32.partialorder %v8859, 0.0004427343
    %v8861 = vsel %vm8860, %v8858, %v8855
    %v8862 = vadd.f32 %v8753, 1.0
    %v8863 = vlog2.pop %v8862
    %v8864 = vmul.f32 %v8863, 0.6931472
    %v8865 = vmul.f32 -0.5, %v8753
    %v8866 = vadd.f32 %v8865, 1.0
    %v8867 = vmul.f32 %v8866, %v8753
    %v8868 = vand.u32 2147483647, %v8753
    %vm8869 = vcmp.lt.f32.partialorder %v8868, 0.0004427343
    %v8870 = vsel %vm8869, %v8867, %v8864
    %v8871 = vadd.f32 %v8755, 1.0
    %v8872 = vlog2.pop %v8871
    %v8873 = vmul.f32 %v8872, 0.6931472
    %v8874 = vmul.f32 -0.5, %v8755
    %v8875 = vadd.f32 %v8874, 1.0
    %v8876 = vmul.f32 %v8875, %v8755
    %v8877 = vand.u32 2147483647, %v8755
    %vm8878 = vcmp.lt.f32.partialorder %v8877, 0.0004427343
    %v8879 = vsel %vm8878, %v8876, %v8873
    %v8880 = vadd.f32 %v8757, 1.0
    %v8881 = vlog2.pop %v8880
    %v8882 = vmul.f32 %v8881, 0.6931472
    %v8883 = vmul.f32 -0.5, %v8757
    %v8884 = vadd.f32 %v8883, 1.0
    %v8885 = vmul.f32 %v8884, %v8757
    %v8886 = vand.u32 2147483647, %v8757
    %vm8887 = vcmp.lt.f32.partialorder %v8886, 0.0004427343
    %v8888 = vsel %vm8887, %v8885, %v8882
    %v8889 = vadd.f32 %v8759, 1.0
    %v8890 = vlog2.pop %v8889
    %v8891 = vmul.f32 %v8890, 0.6931472
    %v8892 = vmul.f32 -0.5, %v8759
    %v8893 = vadd.f32 %v8892, 1.0
    %v8894 = vmul.f32 %v8893, %v8759
    %v8895 = vand.u32 2147483647, %v8759
    %vm8896 = vcmp.lt.f32.partialorder %v8895, 0.0004427343
    %v8897 = vsel %vm8896, %v8894, %v8891
    %v8898 = vadd.f32 %v8761, 1.0
    %v8899 = vlog2.pop %v8898
    %v8900 = vmul.f32 %v8899, 0.6931472
    %v8901 = vmul.f32 -0.5, %v8761
    %v8902 = vadd.f32 %v8901, 1.0
    %v8903 = vmul.f32 %v8902, %v8761
    %v8904 = vand.u32 2147483647, %v8761
    %vm8905 = vcmp.lt.f32.partialorder %v8904, 0.0004427343
    %v8906 = vsel %vm8905, %v8903, %v8900
    %v8907 = vadd.f32 %v8763, 1.0
    %v8908 = vlog2.pop %v8907
    %v8909 = vmul.f32 %v8908, 0.6931472
    %v8910 = vmul.f32 -0.5, %v8763
    %v8911 = vadd.f32 %v8910, 1.0
    %v8912 = vmul.f32 %v8911, %v8763
    %v8913 = vand.u32 2147483647, %v8763
    %vm8914 = vcmp.lt.f32.partialorder %v8913, 0.0004427343
    %v8915 = vsel %vm8914, %v8912, %v8909
    %v8916 = vadd.f32 %v8765, 1.0
    %v8917 = vlog2.pop %v8916
    %v8918 = vmul.f32 %v8917, 0.6931472
    %v8919 = vmul.f32 -0.5, %v8765
    %v8920 = vadd.f32 %v8919, 1.0
    %v8921 = vmul.f32 %v8920, %v8765
    %v8922 = vand.u32 2147483647, %v8765
    %vm8923 = vcmp.lt.f32.partialorder %v8922, 0.0004427343
    %v8924 = vsel %vm8923, %v8921, %v8918
    %v8925 = vadd.f32 %v8767, 1.0
    %v8926 = vlog2.pop %v8925
    %v8927 = vmul.f32 %v8926, 0.6931472
    %v8928 = vmul.f32 -0.5, %v8767
    %v8929 = vadd.f32 %v8928, 1.0
    %v8930 = vmul.f32 %v8929, %v8767
    %v8931 = vand.u32 2147483647, %v8767
    %vm8932 = vcmp.lt.f32.partialorder %v8931, 0.0004427343
    %v8933 = vsel %vm8932, %v8930, %v8927
    %v8934 = vadd.f32 %v8769, 1.0
    %v8935 = vlog2.pop %v8934
    %v8936 = vmul.f32 %v8935, 0.6931472
    %v8937 = vmul.f32 -0.5, %v8769
    %v8938 = vadd.f32 %v8937, 1.0
    %v8939 = vmul.f32 %v8938, %v8769
    %v8940 = vand.u32 2147483647, %v8769
    %vm8941 = vcmp.lt.f32.partialorder %v8940, 0.0004427343
    %v8942 = vsel %vm8941, %v8939, %v8936
    %v8943 = vadd.f32 %v8771, 1.0
    %v8944 = vlog2.pop %v8943
    %v8945 = vmul.f32 %v8944, 0.6931472
    %v8946 = vmul.f32 -0.5, %v8771
    %v8947 = vadd.f32 %v8946, 1.0
    %v8948 = vmul.f32 %v8947, %v8771
    %v8949 = vand.u32 2147483647, %v8771
    %vm8950 = vcmp.lt.f32.partialorder %v8949, 0.0004427343
    %v8951 = vsel %vm8950, %v8948, %v8945
    %v8952 = vadd.f32 %v8773, 1.0
    %v8953 = vlog2.pop %v8952
    %v8954 = vmul.f32 %v8953, 0.6931472
    %v8955 = vmul.f32 -0.5, %v8773
    %v8956 = vadd.f32 %v8955, 1.0
    %v8957 = vmul.f32 %v8956, %v8773
    %v8958 = vand.u32 2147483647, %v8773
    %vm8959 = vcmp.lt.f32.partialorder %v8958, 0.0004427343
    %v8960 = vsel %vm8959, %v8957, %v8954
    %v8961 = vadd.f32 %v8775, 1.0
    %v8962 = vlog2.pop %v8961
    %v8963 = vmul.f32 %v8962, 0.6931472
    %v8964 = vmul.f32 -0.5, %v8775
    %v8965 = vadd.f32 %v8964, 1.0
    %v8966 = vmul.f32 %v8965, %v8775
    %v8967 = vand.u32 2147483647, %v8775
    %vm8968 = vcmp.lt.f32.partialorder %v8967, 0.0004427343
    %v8969 = vsel %vm8968, %v8966, %v8963
    %v8970 = vadd.f32 %v8777, 1.0
    %v8971 = vlog2.pop %v8970
    %v8972 = vmul.f32 %v8971, 0.6931472
    %v8973 = vmul.f32 -0.5, %v8777
    %v8974 = vadd.f32 %v8973, 1.0
    %v8975 = vmul.f32 %v8974, %v8777
    %v8976 = vand.u32 2147483647, %v8777
    %vm8977 = vcmp.lt.f32.partialorder %v8976, 0.0004427343
    %v8978 = vsel %vm8977, %v8975, %v8972
    %v8979 = vadd.f32 %v8779, 1.0
    %v8980 = vlog2.pop %v8979
    %v8981 = vmul.f32 %v8980, 0.6931472
    %v8982 = vmul.f32 -0.5, %v8779
    %v8983 = vadd.f32 %v8982, 1.0
    %v8984 = vmul.f32 %v8983, %v8779
    %v8985 = vand.u32 2147483647, %v8779
    %vm8986 = vcmp.lt.f32.partialorder %v8985, 0.0004427343
    %v8987 = vsel %vm8986, %v8984, %v8981
    %v8988 = vadd.f32 %v8781, 1.0
    %v8989 = vlog2.pop %v8988
    %v8990 = vmul.f32 %v8989, 0.6931472
    %v8991 = vmul.f32 -0.5, %v8781
    %v8992 = vadd.f32 %v8991, 1.0
    %v8993 = vmul.f32 %v8992, %v8781
    %v8994 = vand.u32 2147483647, %v8781
    %vm8995 = vcmp.lt.f32.partialorder %v8994, 0.0004427343
    %v8996 = vsel %vm8995, %v8993, %v8990
    %v8997 = vadd.f32 %v8783, 1.0
    %v8998 = vlog2.pop %v8997
    %v8999 = vmul.f32 %v8998, 0.6931472
    %v9000 = vmul.f32 -0.5, %v8783
    %v9001 = vadd.f32 %v9000, 1.0
    %v9002 = vmul.f32 %v9001, %v8783
    %v9003 = vand.u32 2147483647, %v8783
    %vm9004 = vcmp.lt.f32.partialorder %v9003, 0.0004427343
    %v9005 = vsel %vm9004, %v9002, %v8999
    %v9006 = vadd.f32 %v8785, 1.0
    %v9007 = vlog2.pop %v9006
    %v9008 = vmul.f32 %v9007, 0.6931472
    %v9009 = vmul.f32 -0.5, %v8785
    %v9010 = vadd.f32 %v9009, 1.0
    %v9011 = vmul.f32 %v9010, %v8785
    %v9012 = vand.u32 2147483647, %v8785
    %vm9013 = vcmp.lt.f32.partialorder %v9012, 0.0004427343
    %v9014 = vsel %vm9013, %v9011, %v9008
    %v9015 = vadd.f32 %v8787, 1.0
    %v9016 = vlog2.pop %v9015
    %v9017 = vmul.f32 %v9016, 0.6931472
    %v9018 = vmul.f32 -0.5, %v8787
    %v9019 = vadd.f32 %v9018, 1.0
    %v9020 = vmul.f32 %v9019, %v8787
    %v9021 = vand.u32 2147483647, %v8787
    %vm9022 = vcmp.lt.f32.partialorder %v9021, 0.0004427343
    %v9023 = vsel %vm9022, %v9020, %v9017
    %v9024 = vadd.f32 %v8789, 1.0
    %v9025 = vlog2.pop %v9024
    %v9026 = vmul.f32 %v9025, 0.6931472
    %v9027 = vmul.f32 -0.5, %v8789
    %v9028 = vadd.f32 %v9027, 1.0
    %v9029 = vmul.f32 %v9028, %v8789
    %v9030 = vand.u32 2147483647, %v8789
    %vm9031 = vcmp.lt.f32.partialorder %v9030, 0.0004427343
    %v9032 = vsel %vm9031, %v9029, %v9026
    %v9033 = vadd.f32 %v8791, 1.0
    %v9034 = vlog2.pop %v9033
    %v9035 = vmul.f32 %v9034, 0.6931472
    %v9036 = vmul.f32 -0.5, %v8791
    %v9037 = vadd.f32 %v9036, 1.0
    %v9038 = vmul.f32 %v9037, %v8791
    %v9039 = vand.u32 2147483647, %v8791
    %vm9040 = vcmp.lt.f32.partialorder %v9039, 0.0004427343
    %v9041 = vsel %vm9040, %v9038, %v9035
    %v9042 = vadd.f32 %v8793, 1.0
    %v9043 = vlog2.pop %v9042
    %v9044 = vmul.f32 %v9043, 0.6931472
    %v9045 = vmul.f32 -0.5, %v8793
    %v9046 = vadd.f32 %v9045, 1.0
    %v9047 = vmul.f32 %v9046, %v8793
    %v9048 = vand.u32 2147483647, %v8793
    %vm9049 = vcmp.lt.f32.partialorder %v9048, 0.0004427343
    %v9050 = vsel %vm9049, %v9047, %v9044
    %v9051 = vadd.f32 %v8795, 1.0
    %v9052 = vlog2.pop %v9051
    %v9053 = vmul.f32 %v9052, 0.6931472
    %v9054 = vmul.f32 -0.5, %v8795
    %v9055 = vadd.f32 %v9054, 1.0
    %v9056 = vmul.f32 %v9055, %v8795
    %v9057 = vand.u32 2147483647, %v8795
    %vm9058 = vcmp.lt.f32.partialorder %v9057, 0.0004427343
    %v9059 = vsel %vm9058, %v9056, %v9053
    %v9060 = vadd.f32 %v8797, 1.0
    %v9061 = vlog2.pop %v9060
    %v9062 = vmul.f32 %v9061, 0.6931472
    %v9063 = vmul.f32 -0.5, %v8797
    %v9064 = vadd.f32 %v9063, 1.0
    %v9065 = vmul.f32 %v9064, %v8797
    %v9066 = vand.u32 2147483647, %v8797
    %vm9067 = vcmp.lt.f32.partialorder %v9066, 0.0004427343
    %v9068 = vsel %vm9067, %v9065, %v9062
    %v9069 = vadd.f32 %v8799, 1.0
    %v9070 = vlog2.pop %v9069
    %v9071 = vmul.f32 %v9070, 0.6931472
    %v9072 = vmul.f32 -0.5, %v8799
    %v9073 = vadd.f32 %v9072, 1.0
    %v9074 = vmul.f32 %v9073, %v8799
    %v9075 = vand.u32 2147483647, %v8799
    %vm9076 = vcmp.lt.f32.partialorder %v9075, 0.0004427343
    %v9077 = vsel %vm9076, %v9074, %v9071
    %v9078 = vadd.f32 %v8801, 1.0
    %v9079 = vlog2.pop %v9078
    %v9080 = vmul.f32 %v9079, 0.6931472
    %v9081 = vmul.f32 -0.5, %v8801
    %v9082 = vadd.f32 %v9081, 1.0
    %v9083 = vmul.f32 %v9082, %v8801
    %v9084 = vand.u32 2147483647, %v8801
    %vm9085 = vcmp.lt.f32.partialorder %v9084, 0.0004427343
    %v9086 = vsel %vm9085, %v9083, %v9080
    %v9087 = vadd.f32 %v8803, 1.0
    %v9088 = vlog2.pop %v9087
    %v9089 = vmul.f32 %v9088, 0.6931472
    %v9090 = vmul.f32 -0.5, %v8803
    %v9091 = vadd.f32 %v9090, 1.0
    %v9092 = vmul.f32 %v9091, %v8803
    %v9093 = vand.u32 2147483647, %v8803
    %vm9094 = vcmp.lt.f32.partialorder %v9093, 0.0004427343
    %v9095 = vsel %vm9094, %v9092, %v9089
    %v9096 = vadd.f32 %v8805, 1.0
    %v9097 = vlog2.pop %v9096
    %v9098 = vmul.f32 %v9097, 0.6931472
    %v9099 = vmul.f32 -0.5, %v8805
    %v9100 = vadd.f32 %v9099, 1.0
    %v9101 = vmul.f32 %v9100, %v8805
    %v9102 = vand.u32 2147483647, %v8805
    %vm9103 = vcmp.lt.f32.partialorder %v9102, 0.0004427343
    %v9104 = vsel %vm9103, %v9101, %v9098
    %v9105 = vadd.f32 %v8807, 1.0
    %v9106 = vlog2.pop %v9105
    %v9107 = vmul.f32 %v9106, 0.6931472
    %v9108 = vmul.f32 -0.5, %v8807
    %v9109 = vadd.f32 %v9108, 1.0
    %v9110 = vmul.f32 %v9109, %v8807
    %v9111 = vand.u32 2147483647, %v8807
    %vm9112 = vcmp.lt.f32.partialorder %v9111, 0.0004427343
    %v9113 = vsel %vm9112, %v9110, %v9107
    %v9114 = vadd.f32 %v8809, 1.0
    %v9115 = vlog2.pop %v9114
    %v9116 = vmul.f32 %v9115, 0.6931472
    %v9117 = vmul.f32 -0.5, %v8809
    %v9118 = vadd.f32 %v9117, 1.0
    %v9119 = vmul.f32 %v9118, %v8809
    %v9120 = vand.u32 2147483647, %v8809
    %vm9121 = vcmp.lt.f32.partialorder %v9120, 0.0004427343
    %v9122 = vsel %vm9121, %v9119, %v9116
    %v9123 = vadd.f32 %v8811, 1.0
    %v9124 = vlog2.pop %v9123
    %v9125 = vmul.f32 %v9124, 0.6931472
    %v9126 = vmul.f32 -0.5, %v8811
    %v9127 = vadd.f32 %v9126, 1.0
    %v9128 = vmul.f32 %v9127, %v8811
    %v9129 = vand.u32 2147483647, %v8811
    %vm9130 = vcmp.lt.f32.partialorder %v9129, 0.0004427343
    %v9131 = vsel %vm9130, %v9128, %v9125
    %v9132 = vadd.f32 %v8813, 1.0
    %v9133 = vlog2.pop %v9132
    %v9134 = vmul.f32 %v9133, 0.6931472
    %v9135 = vmul.f32 -0.5, %v8813
    %v9136 = vadd.f32 %v9135, 1.0
    %v9137 = vmul.f32 %v9136, %v8813
    %v9138 = vand.u32 2147483647, %v8813
    %vm9139 = vcmp.lt.f32.partialorder %v9138, 0.0004427343
    %v9140 = vsel %vm9139, %v9137, %v9134
    %v9141 = vadd.f32 %v8815, 1.0
    %v9142 = vlog2.pop %v9141
    %v9143 = vmul.f32 %v9142, 0.6931472
    %v9144 = vmul.f32 -0.5, %v8815
    %v9145 = vadd.f32 %v9144, 1.0
    %v9146 = vmul.f32 %v9145, %v8815
    %v9147 = vand.u32 2147483647, %v8815
    %vm9148 = vcmp.lt.f32.partialorder %v9147, 0.0004427343
    %v9149 = vsel %vm9148, %v9146, %v9143
    %v9150 = vadd.f32 %v8817, 1.0
    %v9151 = vlog2.pop %v9150
    %v9152 = vmul.f32 %v9151, 0.6931472
    %v9153 = vmul.f32 -0.5, %v8817
    %v9154 = vadd.f32 %v9153, 1.0
    %v9155 = vmul.f32 %v9154, %v8817
    %v9156 = vand.u32 2147483647, %v8817
    %vm9157 = vcmp.lt.f32.partialorder %v9156, 0.0004427343
    %v9158 = vsel %vm9157, %v9155, %v9152
    %v9159 = vadd.f32 %v8819, 1.0
    %v9160 = vlog2.pop %v9159
    %v9161 = vmul.f32 %v9160, 0.6931472
    %v9162 = vmul.f32 -0.5, %v8819
    %v9163 = vadd.f32 %v9162, 1.0
    %v9164 = vmul.f32 %v9163, %v8819
    %v9165 = vand.u32 2147483647, %v8819
    %vm9166 = vcmp.lt.f32.partialorder %v9165, 0.0004427343
    %v9167 = vsel %vm9166, %v9164, %v9161
    %v9168 = vadd.f32 %v8821, 1.0
    %v9169 = vlog2.pop %v9168
    %v9170 = vmul.f32 %v9169, 0.6931472
    %v9171 = vmul.f32 -0.5, %v8821
    %v9172 = vadd.f32 %v9171, 1.0
    %v9173 = vmul.f32 %v9172, %v8821
    %v9174 = vand.u32 2147483647, %v8821
    %vm9175 = vcmp.lt.f32.partialorder %v9174, 0.0004427343
    %v9176 = vsel %vm9175, %v9173, %v9170
    %v9177 = vadd.f32 %v8823, 1.0
    %v9178 = vlog2.pop %v9177
    %v9179 = vmul.f32 %v9178, 0.6931472
    %v9180 = vmul.f32 -0.5, %v8823
    %v9181 = vadd.f32 %v9180, 1.0
    %v9182 = vmul.f32 %v9181, %v8823
    %v9183 = vand.u32 2147483647, %v8823
    %vm9184 = vcmp.lt.f32.partialorder %v9183, 0.0004427343
    %v9185 = vsel %vm9184, %v9182, %v9179
    %v9186 = vadd.f32 %v8825, 1.0
    %v9187 = vlog2.pop %v9186
    %v9188 = vmul.f32 %v9187, 0.6931472
    %v9189 = vmul.f32 -0.5, %v8825
    %v9190 = vadd.f32 %v9189, 1.0
    %v9191 = vmul.f32 %v9190, %v8825
    %v9192 = vand.u32 2147483647, %v8825
    %vm9193 = vcmp.lt.f32.partialorder %v9192, 0.0004427343
    %v9194 = vsel %vm9193, %v9191, %v9188
    %v9195 = vadd.f32 %v8827, 1.0
    %v9196 = vlog2.pop %v9195
    %v9197 = vmul.f32 %v9196, 0.6931472
    %v9198 = vmul.f32 -0.5, %v8827
    %v9199 = vadd.f32 %v9198, 1.0
    %v9200 = vmul.f32 %v9199, %v8827
    %v9201 = vand.u32 2147483647, %v8827
    %vm9202 = vcmp.lt.f32.partialorder %v9201, 0.0004427343
    %v9203 = vsel %vm9202, %v9200, %v9197
    %v9204 = vadd.f32 %v8829, 1.0
    %v9205 = vlog2.pop %v9204
    %v9206 = vmul.f32 %v9205, 0.6931472
    %v9207 = vmul.f32 -0.5, %v8829
    %v9208 = vadd.f32 %v9207, 1.0
    %v9209 = vmul.f32 %v9208, %v8829
    %v9210 = vand.u32 2147483647, %v8829
    %vm9211 = vcmp.lt.f32.partialorder %v9210, 0.0004427343
    %v9212 = vsel %vm9211, %v9209, %v9206
    %v9213 = vadd.f32 %v8831, 1.0
    %v9214 = vlog2.pop %v9213
    %v9215 = vmul.f32 %v9214, 0.6931472
    %v9216 = vmul.f32 -0.5, %v8831
    %v9217 = vadd.f32 %v9216, 1.0
    %v9218 = vmul.f32 %v9217, %v8831
    %v9219 = vand.u32 2147483647, %v8831
    %vm9220 = vcmp.lt.f32.partialorder %v9219, 0.0004427343
    %v9221 = vsel %vm9220, %v9218, %v9215
    %v9222 = vadd.f32 %v8833, 1.0
    %v9223 = vlog2.pop %v9222
    %v9224 = vmul.f32 %v9223, 0.6931472
    %v9225 = vmul.f32 -0.5, %v8833
    %v9226 = vadd.f32 %v9225, 1.0
    %v9227 = vmul.f32 %v9226, %v8833
    %v9228 = vand.u32 2147483647, %v8833
    %vm9229 = vcmp.lt.f32.partialorder %v9228, 0.0004427343
    %v9230 = vsel %vm9229, %v9227, %v9224
    %v9231 = vadd.f32 %v8835, 1.0
    %v9232 = vlog2.pop %v9231
    %v9233 = vmul.f32 %v9232, 0.6931472
    %v9234 = vmul.f32 -0.5, %v8835
    %v9235 = vadd.f32 %v9234, 1.0
    %v9236 = vmul.f32 %v9235, %v8835
    %v9237 = vand.u32 2147483647, %v8835
    %vm9238 = vcmp.lt.f32.partialorder %v9237, 0.0004427343
    %v9239 = vsel %vm9238, %v9236, %v9233
    %v9240 = vadd.f32 %v8837, 1.0
    %v9241 = vlog2.pop %v9240
    %v9242 = vmul.f32 %v9241, 0.6931472
    %v9243 = vmul.f32 -0.5, %v8837
    %v9244 = vadd.f32 %v9243, 1.0
    %v9245 = vmul.f32 %v9244, %v8837
    %v9246 = vand.u32 2147483647, %v8837
    %vm9247 = vcmp.lt.f32.partialorder %v9246, 0.0004427343
    %v9248 = vsel %vm9247, %v9245, %v9242
    %v9249 = vadd.f32 %v8839, 1.0
    %v9250 = vlog2.pop %v9249
    %v9251 = vmul.f32 %v9250, 0.6931472
    %v9252 = vmul.f32 -0.5, %v8839
    %v9253 = vadd.f32 %v9252, 1.0
    %v9254 = vmul.f32 %v9253, %v8839
    %v9255 = vand.u32 2147483647, %v8839
    %vm9256 = vcmp.lt.f32.partialorder %v9255, 0.0004427343
    %v9257 = vsel %vm9256, %v9254, %v9251
    %v9258 = vadd.f32 %v8841, 1.0
    %v9259 = vlog2.pop %v9258
    %v9260 = vmul.f32 %v9259, 0.6931472
    %v9261 = vmul.f32 -0.5, %v8841
    %v9262 = vadd.f32 %v9261, 1.0
    %v9263 = vmul.f32 %v9262, %v8841
    %v9264 = vand.u32 2147483647, %v8841
    %vm9265 = vcmp.lt.f32.partialorder %v9264, 0.0004427343
    %v9266 = vsel %vm9265, %v9263, %v9260
    %v9267 = vadd.f32 %v8843, 1.0
    %v9268 = vlog2.pop %v9267
    %v9269 = vmul.f32 %v9268, 0.6931472
    %v9270 = vmul.f32 -0.5, %v8843
    %v9271 = vadd.f32 %v9270, 1.0
    %v9272 = vmul.f32 %v9271, %v8843
    %v9273 = vand.u32 2147483647, %v8843
    %vm9274 = vcmp.lt.f32.partialorder %v9273, 0.0004427343
    %v9275 = vsel %vm9274, %v9272, %v9269
    %v9276 = vmul.f32 %v8852, 0.01
    %v9277 = vmul.f32 %v8861, 0.01
    %v9278 = vmul.f32 %v8870, 0.01
    %v9279 = vmul.f32 %v8879, 0.01
    %v9280 = vmul.f32 %v8888, 0.01
    %v9281 = vmul.f32 %v8897, 0.01
    %v9282 = vmul.f32 %v8906, 0.01
    %v9283 = vmul.f32 %v8915, 0.01
    %v9284 = vmul.f32 %v8924, 0.01
    %v9285 = vmul.f32 %v8933, 0.01
    %v9286 = vmul.f32 %v8942, 0.01
    %v9287 = vmul.f32 %v8951, 0.01
    %v9288 = vmul.f32 %v8960, 0.01
    %v9289 = vmul.f32 %v8969, 0.01
    %v9290 = vmul.f32 %v8978, 0.01
    %v9291 = vmul.f32 %v8987, 0.01
    %v9292 = vmul.f32 %v8996, 0.01
    %v9293 = vmul.f32 %v9005, 0.01
    %v9294 = vmul.f32 %v9014, 0.01
    %v9295 = vmul.f32 %v9023, 0.01
    %v9296 = vmul.f32 %v9032, 0.01
    %v9297 = vmul.f32 %v9041, 0.01
    %v9298 = vmul.f32 %v9050, 0.01
    %v9299 = vmul.f32 %v9059, 0.01
    %v9300 = vmul.f32 %v9068, 0.01
    %v9301 = vmul.f32 %v9077, 0.01
    %v9302 = vmul.f32 %v9086, 0.01
    %v9303 = vmul.f32 %v9095, 0.01
    %v9304 = vmul.f32 %v9104, 0.01
    %v9305 = vmul.f32 %v9113, 0.01
    %v9306 = vmul.f32 %v9122, 0.01
    %v9307 = vmul.f32 %v9131, 0.01
    %v9308 = vmul.f32 %v9140, 0.01
    %v9309 = vmul.f32 %v9149, 0.01
    %v9310 = vmul.f32 %v9158, 0.01
    %v9311 = vmul.f32 %v9167, 0.01
    %v9312 = vmul.f32 %v9176, 0.01
    %v9313 = vmul.f32 %v9185, 0.01
    %v9314 = vmul.f32 %v9194, 0.01
    %v9315 = vmul.f32 %v9203, 0.01
    %v9316 = vmul.f32 %v9212, 0.01
    %v9317 = vmul.f32 %v9221, 0.01
    %v9318 = vmul.f32 %v9230, 0.01
    %v9319 = vmul.f32 %v9239, 0.01
    %v9320 = vmul.f32 %v9248, 0.01
    %v9321 = vmul.f32 %v9257, 0.01
    %v9322 = vmul.f32 %v9266, 0.01
    %v9323 = vmul.f32 %v9275, 0.01
    %vm9324 = vcmp.gt.f32.partialorder %v8652, 20.0
    %vm9325 = vcmp.gt.f32.partialorder %v8653, 20.0
    %vm9326 = vcmp.gt.f32.partialorder %v8654, 20.0
    %vm9327 = vcmp.gt.f32.partialorder %v8655, 20.0
    %vm9328 = vcmp.gt.f32.partialorder %v8656, 20.0
    %vm9329 = vcmp.gt.f32.partialorder %v8657, 20.0
    %vm9330 = vcmp.gt.f32.partialorder %v8658, 20.0
    %vm9331 = vcmp.gt.f32.partialorder %v8659, 20.0
    %vm9332 = vcmp.gt.f32.partialorder %v8660, 20.0
    %vm9333 = vcmp.gt.f32.partialorder %v8661, 20.0
    %vm9334 = vcmp.gt.f32.partialorder %v8662, 20.0
    %vm9335 = vcmp.gt.f32.partialorder %v8663, 20.0
    %vm9336 = vcmp.gt.f32.partialorder %v8664, 20.0
    %vm9337 = vcmp.gt.f32.partialorder %v8665, 20.0
    %vm9338 = vcmp.gt.f32.partialorder %v8666, 20.0
    %vm9339 = vcmp.gt.f32.partialorder %v8667, 20.0
    %vm9340 = vcmp.gt.f32.partialorder %v8668, 20.0
    %vm9341 = vcmp.gt.f32.partialorder %v8669, 20.0
    %vm9342 = vcmp.gt.f32.partialorder %v8670, 20.0
    %vm9343 = vcmp.gt.f32.partialorder %v8671, 20.0
    %vm9344 = vcmp.gt.f32.partialorder %v8672, 20.0
    %vm9345 = vcmp.gt.f32.partialorder %v8673, 20.0
    %vm9346 = vcmp.gt.f32.partialorder %v8674, 20.0
    %vm9347 = vcmp.gt.f32.partialorder %v8675, 20.0
    %vm9348 = vcmp.gt.f32.partialorder %v8676, 20.0
    %vm9349 = vcmp.gt.f32.partialorder %v8677, 20.0
    %vm9350 = vcmp.gt.f32.partialorder %v8678, 20.0
    %vm9351 = vcmp.gt.f32.partialorder %v8679, 20.0
    %vm9352 = vcmp.gt.f32.partialorder %v8680, 20.0
    %vm9353 = vcmp.gt.f32.partialorder %v8681, 20.0
    %vm9354 = vcmp.gt.f32.partialorder %v8682, 20.0
    %vm9355 = vcmp.gt.f32.partialorder %v8683, 20.0
    %vm9356 = vcmp.gt.f32.partialorder %v8684, 20.0
    %vm9357 = vcmp.gt.f32.partialorder %v8685, 20.0
    %vm9358 = vcmp.gt.f32.partialorder %v8686, 20.0
    %vm9359 = vcmp.gt.f32.partialorder %v8687, 20.0
    %vm9360 = vcmp.gt.f32.partialorder %v8688, 20.0
    %vm9361 = vcmp.gt.f32.partialorder %v8689, 20.0
    %vm9362 = vcmp.gt.f32.partialorder %v8690, 20.0
    %vm9363 = vcmp.gt.f32.partialorder %v8691, 20.0
    %vm9364 = vcmp.gt.f32.partialorder %v8692, 20.0
    %vm9365 = vcmp.gt.f32.partialorder %v8693, 20.0
    %vm9366 = vcmp.gt.f32.partialorder %v8694, 20.0
    %vm9367 = vcmp.gt.f32.partialorder %v8695, 20.0
    %vm9368 = vcmp.gt.f32.partialorder %v8696, 20.0
    %vm9369 = vcmp.gt.f32.partialorder %v8697, 20.0
    %vm9370 = vcmp.gt.f32.partialorder %v8698, 20.0
    %vm9371 = vcmp.gt.f32.partialorder %v8699, 20.0
    %v9372 = vsel %vm9324, %v8604, %v9276
    %v9373 = vsel %vm9325, %v8605, %v9277
    %v9374 = vsel %vm9326, %v8606, %v9278
    %v9375 = vsel %vm9327, %v8607, %v9279
    %v9376 = vsel %vm9328, %v8608, %v9280
    %v9377 = vsel %vm9329, %v8609, %v9281
    %v9378 = vsel %vm9330, %v8610, %v9282
    %v9379 = vsel %vm9331, %v8611, %v9283
    %v9380 = vsel %vm9332, %v8612, %v9284
    %v9381 = vsel %vm9333, %v8613, %v9285
    %v9382 = vsel %vm9334, %v8614, %v9286
    %v9383 = vsel %vm9335, %v8615, %v9287
    %v9384 = vsel %vm9336, %v8616, %v9288
    %v9385 = vsel %vm9337, %v8617, %v9289
    %v9386 = vsel %vm9338, %v8618, %v9290
    %v9387 = vsel %vm9339, %v8619, %v9291
    %v9388 = vsel %vm9340, %v8620, %v9292
    %v9389 = vsel %vm9341, %v8621, %v9293
    %v9390 = vsel %vm9342, %v8622, %v9294
    %v9391 = vsel %vm9343, %v8623, %v9295
    %v9392 = vsel %vm9344, %v8624, %v9296
    %v9393 = vsel %vm9345, %v8625, %v9297
    %v9394 = vsel %vm9346, %v8626, %v9298
    %v9395 = vsel %vm9347, %v8627, %v9299
    %v9396 = vsel %vm9348, %v8628, %v9300
    %v9397 = vsel %vm9349, %v8629, %v9301
    %v9398 = vsel %vm9350, %v8630, %v9302
    %v9399 = vsel %vm9351, %v8631, %v9303
    %v9400 = vsel %vm9352, %v8632, %v9304
    %v9401 = vsel %vm9353, %v8633, %v9305
    %v9402 = vsel %vm9354, %v8634, %v9306
    %v9403 = vsel %vm9355, %v8635, %v9307
    %v9404 = vsel %vm9356, %v8636, %v9308
    %v9405 = vsel %vm9357, %v8637, %v9309
    %v9406 = vsel %vm9358, %v8638, %v9310
    %v9407 = vsel %vm9359, %v8639, %v9311
    %v9408 = vsel %vm9360, %v8640, %v9312
    %v9409 = vsel %vm9361, %v8641, %v9313
    %v9410 = vsel %vm9362, %v8642, %v9314
    %v9411 = vsel %vm9363, %v8643, %v9315
    %v9412 = vsel %vm9364, %v8644, %v9316
    %v9413 = vsel %vm9365, %v8645, %v9317
    %v9414 = vsel %vm9366, %v8646, %v9318
    %v9415 = vsel %vm9367, %v8647, %v9319
    %v9416 = vsel %vm9368, %v8648, %v9320
    %v9417 = vsel %vm9369, %v8649, %v9321
    %v9418 = vsel %vm9370, %v8650, %v9322
    %v9419 = vsel %vm9371, %v8651, %v9323
    %v9420 = vld [vmem:[%s8] sm:$0xff]
    %v9421 = vld [vmem:[%s8 + $0x8] sm:$0x1]
    %v9422 = vld [vmem:[%s9] sm:$0xff]
    %v9423 = vld [vmem:[%s9 + $0x8] sm:$0x1]
    %9425 = vset.pattern.permute.xlu0 0
    %9426 = vperm.xlu0 %9425, %v9422
    %v9427 = vpop.permute.xlu0 %9426
    %9430 = vset.pattern.permute.xlu0 0
    %9431 = vperm.xlu0 %9430, %v9423
    %v9432 = vpop.permute.xlu0 %9431
    %v9435 = vsel %vm6772, %v9420, 0
    %v9438 = vsel %vm6772, %v9421, 0
    %9440 = vmatprep.subr.mxu0 0.0
    %9441 = vmatpush1.msra.mxu0 0.0
    %9442 = vmatprep.subr.mxu0 0.0
    %9443 = vmatpush1.msra.mxu0 0.0
    %9444 = vmatprep.subr.mxu0 0.0
    %9445 = vmatpush1.msra.mxu0 0.0
    %9446 = vmatprep.subr.mxu0 0.0
    %9447 = vmatpush1.msra.mxu0 0.0
    %9448 = vmatprep.subr.mxu0 0.0
    %9449 = vmatpush1.msra.mxu0 0.0
    %9450 = vmatprep.subr.mxu0 0.0
    %9451 = vmatpush1.msra.mxu0 0.0
    %9452 = vmatprep.subr.mxu0 0.0
    %9453 = vmatpush1.msra.mxu0 0.0
    %9454 = vmatprep.subr.mxu0 0.0
    %9455 = vmatpush1.msra.mxu0 0.0
    %9456 = vmatprep.subr.mxu0 0.0
    %9457 = vmatpush1.msra.mxu0 0.0
    %9458 = vmatprep.subr.mxu0 0.0
    %9459 = vmatpush1.msra.mxu0 0.0
    %9460 = vmatprep.subr.mxu0 0.0
    %9461 = vmatpush1.msra.mxu0 0.0
    %9462 = vmatprep.subr.mxu0 0.0
    %9463 = vmatpush1.msra.mxu0 0.0
    %9464 = vmatprep.subr.mxu0 %v9409
    %9465 = vmatpush1.msra.mxu0 %v9408
    %9466 = vmatprep.subr.mxu0 %v9397
    %9467 = vmatpush1.msra.mxu0 %v9396
    %9468 = vmatprep.subr.mxu0 %v9385
    %9469 = vmatpush1.msra.mxu0 %v9384
    %9470 = vmatprep.subr.mxu0 %v9373
    %9471 = vmatpush1.msra.mxu0 %v9372
    %9472 = vmatprep.subr.mxu0 0.0
    %9473 = vmatpush2.msra.mxu0 0.0
    %9474 = vmatprep.subr.mxu0 0.0
    %9475 = vmatpush2.msra.mxu0 0.0
    %9476 = vmatprep.subr.mxu0 0.0
    %9477 = vmatpush2.msra.mxu0 0.0
    %9478 = vmatprep.subr.mxu0 0.0
    %9479 = vmatpush2.msra.mxu0 0.0
    %9480 = vmatprep.subr.mxu0 0.0
    %9481 = vmatpush2.msra.mxu0 0.0
    %9482 = vmatprep.subr.mxu0 0.0
    %9483 = vmatpush2.msra.mxu0 0.0
    %9484 = vmatprep.subr.mxu0 0.0
    %9485 = vmatpush2.msra.mxu0 0.0
    %9486 = vmatprep.subr.mxu0 0.0
    %9487 = vmatpush2.msra.mxu0 0.0
    %9488 = vmatprep.subr.mxu0 0.0
    %9489 = vmatpush2.msra.mxu0 0.0
    %9490 = vmatprep.subr.mxu0 0.0
    %9491 = vmatpush2.msra.mxu0 0.0
    %9492 = vmatprep.subr.mxu0 0.0
    %9493 = vmatpush2.msra.mxu0 0.0
    %9494 = vmatprep.subr.mxu0 0.0
    %9495 = vmatpush2.msra.mxu0 0.0
    %9496 = vmatprep.subr.mxu0 0.0
    %9497 = vmatpush2.msra.mxu0 0.0
    %9498 = vmatprep.subr.mxu0 0.0
    %9499 = vmatpush2.msra.mxu0 0.0
    %9500 = vmatprep.subr.mxu0 0.0
    %9501 = vmatpush2.msra.mxu0 0.0
    %9502 = vmatprep.subr.mxu0 0.0
    %9503 = vmatpush2.msra.mxu0 0.0
    %9504 = vmatprep.mubr.f32.mxu0 0.0
    %9505 = vmatmul.mubr.f32.gmra.mxu0 %v9435
    %v9506 = vpop.f32.mrf.mxu0
    %v9507 = vadd.f32 %v9427, %v9506
    %v9508 = vpop.f32.mrf.mxu0
    %v9509 = vadd.f32 %v9427, %v9508
    %9510 = vmatprep.mubr.f32.mxu0 0.0
    %9511 = vmatmul.mubr.f32.gmra.mxu0 %v9438
    %v9512 = vpop.f32.mrf.mxu0
    %v9513 = vadd.f32 %v9432, %v9512
    %v9514 = vpop.f32.mrf.mxu0
    %v9515 = vadd.f32 %v9432, %v9514
    %9516 = vdwg.mxu0
    %9517 = vmatprep.subr.mxu0 0.0
    %9518 = vmatpush1.msra.mxu0 0.0
    %9519 = vmatprep.subr.mxu0 0.0
    %9520 = vmatpush1.msra.mxu0 0.0
    %9521 = vmatprep.subr.mxu0 0.0
    %9522 = vmatpush1.msra.mxu0 0.0
    %9523 = vmatprep.subr.mxu0 0.0
    %9524 = vmatpush1.msra.mxu0 0.0
    %9525 = vmatprep.subr.mxu0 0.0
    %9526 = vmatpush1.msra.mxu0 0.0
    %9527 = vmatprep.subr.mxu0 0.0
    %9528 = vmatpush1.msra.mxu0 0.0
    %9529 = vmatprep.subr.mxu0 0.0
    %9530 = vmatpush1.msra.mxu0 0.0
    %9531 = vmatprep.subr.mxu0 0.0
    %9532 = vmatpush1.msra.mxu0 0.0
    %9533 = vmatprep.subr.mxu0 0.0
    %9534 = vmatpush1.msra.mxu0 0.0
    %9535 = vmatprep.subr.mxu0 0.0
    %9536 = vmatpush1.msra.mxu0 0.0
    %9537 = vmatprep.subr.mxu0 0.0
    %9538 = vmatpush1.msra.mxu0 0.0
    %9539 = vmatprep.subr.mxu0 0.0
    %9540 = vmatpush1.msra.mxu0 0.0
    %9541 = vmatprep.subr.mxu0 %v9411
    %9542 = vmatpush1.msra.mxu0 %v9410
    %9543 = vmatprep.subr.mxu0 %v9399
    %9544 = vmatpush1.msra.mxu0 %v9398
    %9545 = vmatprep.subr.mxu0 %v9387
    %9546 = vmatpush1.msra.mxu0 %v9386
    %9547 = vmatprep.subr.mxu0 %v9375
    %9548 = vmatpush1.msra.mxu0 %v9374
    %9549 = vmatprep.subr.mxu0 0.0
    %9550 = vmatpush2.msra.mxu0 0.0
    %9551 = vmatprep.subr.mxu0 0.0
    %9552 = vmatpush2.msra.mxu0 0.0
    %9553 = vmatprep.subr.mxu0 0.0
    %9554 = vmatpush2.msra.mxu0 0.0
    %9555 = vmatprep.subr.mxu0 0.0
    %9556 = vmatpush2.msra.mxu0 0.0
    %9557 = vmatprep.subr.mxu0 0.0
    %9558 = vmatpush2.msra.mxu0 0.0
    %9559 = vmatprep.subr.mxu0 0.0
    %9560 = vmatpush2.msra.mxu0 0.0
    %9561 = vmatprep.subr.mxu0 0.0
    %9562 = vmatpush2.msra.mxu0 0.0
    %9563 = vmatprep.subr.mxu0 0.0
    %9564 = vmatpush2.msra.mxu0 0.0
    %9565 = vmatprep.subr.mxu0 0.0
    %9566 = vmatpush2.msra.mxu0 0.0
    %9567 = vmatprep.subr.mxu0 0.0
    %9568 = vmatpush2.msra.mxu0 0.0
    %9569 = vmatprep.subr.mxu0 0.0
    %9570 = vmatpush2.msra.mxu0 0.0
    %9571 = vmatprep.subr.mxu0 0.0
    %9572 = vmatpush2.msra.mxu0 0.0
    %9573 = vmatprep.subr.mxu0 0.0
    %9574 = vmatpush2.msra.mxu0 0.0
    %9575 = vmatprep.subr.mxu0 0.0
    %9576 = vmatpush2.msra.mxu0 0.0
    %9577 = vmatprep.subr.mxu0 0.0
    %9578 = vmatpush2.msra.mxu0 0.0
    %9579 = vmatprep.subr.mxu0 0.0
    %9580 = vmatpush2.msra.mxu0 0.0
    %9581 = vmatprep.mubr.f32.mxu0 0.0
    %9582 = vmatmul.mubr.f32.gmra.mxu0 %v9435
    %v9583 = vpop.f32.mrf.mxu0
    %v9584 = vadd.f32 %v9427, %v9583
    %v9585 = vpop.f32.mrf.mxu0
    %v9586 = vadd.f32 %v9427, %v9585
    %9587 = vmatprep.mubr.f32.mxu0 0.0
    %9588 = vmatmul.mubr.f32.gmra.mxu0 %v9438
    %v9589 = vpop.f32.mrf.mxu0
    %v9590 = vadd.f32 %v9432, %v9589
    %v9591 = vpop.f32.mrf.mxu0
    %v9592 = vadd.f32 %v9432, %v9591
    %9593 = vdwg.mxu0
    %9594 = vmatprep.subr.mxu0 0.0
    %9595 = vmatpush1.msra.mxu0 0.0
    %9596 = vmatprep.subr.mxu0 0.0
    %9597 = vmatpush1.msra.mxu0 0.0
    %9598 = vmatprep.subr.mxu0 0.0
    %9599 = vmatpush1.msra.mxu0 0.0
    %9600 = vmatprep.subr.mxu0 0.0
    %9601 = vmatpush1.msra.mxu0 0.0
    %9602 = vmatprep.subr.mxu0 0.0
    %9603 = vmatpush1.msra.mxu0 0.0
    %9604 = vmatprep.subr.mxu0 0.0
    %9605 = vmatpush1.msra.mxu0 0.0
    %9606 = vmatprep.subr.mxu0 0.0
    %9607 = vmatpush1.msra.mxu0 0.0
    %9608 = vmatprep.subr.mxu0 0.0
    %9609 = vmatpush1.msra.mxu0 0.0
    %9610 = vmatprep.subr.mxu0 0.0
    %9611 = vmatpush1.msra.mxu0 0.0
    %9612 = vmatprep.subr.mxu0 0.0
    %9613 = vmatpush1.msra.mxu0 0.0
    %9614 = vmatprep.subr.mxu0 0.0
    %9615 = vmatpush1.msra.mxu0 0.0
    %9616 = vmatprep.subr.mxu0 0.0
    %9617 = vmatpush1.msra.mxu0 0.0
    %9618 = vmatprep.subr.mxu0 %v9413
    %9619 = vmatpush1.msra.mxu0 %v9412
    %9620 = vmatprep.subr.mxu0 %v9401
    %9621 = vmatpush1.msra.mxu0 %v9400
    %9622 = vmatprep.subr.mxu0 %v9389
    %9623 = vmatpush1.msra.mxu0 %v9388
    %9624 = vmatprep.subr.mxu0 %v9377
    %9625 = vmatpush1.msra.mxu0 %v9376
    %9626 = vmatprep.subr.mxu0 0.0
    %9627 = vmatpush2.msra.mxu0 0.0
    %9628 = vmatprep.subr.mxu0 0.0
    %9629 = vmatpush2.msra.mxu0 0.0
    %9630 = vmatprep.subr.mxu0 0.0
    %9631 = vmatpush2.msra.mxu0 0.0
    %9632 = vmatprep.subr.mxu0 0.0
    %9633 = vmatpush2.msra.mxu0 0.0
    %9634 = vmatprep.subr.mxu0 0.0
    %9635 = vmatpush2.msra.mxu0 0.0
    %9636 = vmatprep.subr.mxu0 0.0
    %9637 = vmatpush2.msra.mxu0 0.0
    %9638 = vmatprep.subr.mxu0 0.0
    %9639 = vmatpush2.msra.mxu0 0.0
    %9640 = vmatprep.subr.mxu0 0.0
    %9641 = vmatpush2.msra.mxu0 0.0
    %9642 = vmatprep.subr.mxu0 0.0
    %9643 = vmatpush2.msra.mxu0 0.0
    %9644 = vmatprep.subr.mxu0 0.0
    %9645 = vmatpush2.msra.mxu0 0.0
    %9646 = vmatprep.subr.mxu0 0.0
    %9647 = vmatpush2.msra.mxu0 0.0
    %9648 = vmatprep.subr.mxu0 0.0
    %9649 = vmatpush2.msra.mxu0 0.0
    %9650 = vmatprep.subr.mxu0 0.0
    %9651 = vmatpush2.msra.mxu0 0.0
    %9652 = vmatprep.subr.mxu0 0.0
    %9653 = vmatpush2.msra.mxu0 0.0
    %9654 = vmatprep.subr.mxu0 0.0
    %9655 = vmatpush2.msra.mxu0 0.0
    %9656 = vmatprep.subr.mxu0 0.0
    %9657 = vmatpush2.msra.mxu0 0.0
    %9658 = vmatprep.mubr.f32.mxu0 0.0
    %9659 = vmatmul.mubr.f32.gmra.mxu0 %v9435
    %v9660 = vpop.f32.mrf.mxu0
    %v9661 = vadd.f32 %v9427, %v9660
    %v9662 = vpop.f32.mrf.mxu0
    %v9663 = vadd.f32 %v9427, %v9662
    %9664 = vmatprep.mubr.f32.mxu0 0.0
    %9665 = vmatmul.mubr.f32.gmra.mxu0 %v9438
    %v9666 = vpop.f32.mrf.mxu0
    %v9667 = vadd.f32 %v9432, %v9666
    %v9668 = vpop.f32.mrf.mxu0
    %v9669 = vadd.f32 %v9432, %v9668
    %9670 = vdwg.mxu0
    %9671 = vmatprep.subr.mxu0 0.0
    %9672 = vmatpush1.msra.mxu0 0.0
    %9673 = vmatprep.subr.mxu0 0.0
    %9674 = vmatpush1.msra.mxu0 0.0
    %9675 = vmatprep.subr.mxu0 0.0
    %9676 = vmatpush1.msra.mxu0 0.0
    %9677 = vmatprep.subr.mxu0 0.0
    %9678 = vmatpush1.msra.mxu0 0.0
    %9679 = vmatprep.subr.mxu0 0.0
    %9680 = vmatpush1.msra.mxu0 0.0
    %9681 = vmatprep.subr.mxu0 0.0
    %9682 = vmatpush1.msra.mxu0 0.0
    %9683 = vmatprep.subr.mxu0 0.0
    %9684 = vmatpush1.msra.mxu0 0.0
    %9685 = vmatprep.subr.mxu0 0.0
    %9686 = vmatpush1.msra.mxu0 0.0
    %9687 = vmatprep.subr.mxu0 0.0
    %9688 = vmatpush1.msra.mxu0 0.0
    %9689 = vmatprep.subr.mxu0 0.0
    %9690 = vmatpush1.msra.mxu0 0.0
    %9691 = vmatprep.subr.mxu0 0.0
    %9692 = vmatpush1.msra.mxu0 0.0
    %9693 = vmatprep.subr.mxu0 0.0
    %9694 = vmatpush1.msra.mxu0 0.0
    %9695 = vmatprep.subr.mxu0 %v9415
    %9696 = vmatpush1.msra.mxu0 %v9414
    %9697 = vmatprep.subr.mxu0 %v9403
    %9698 = vmatpush1.msra.mxu0 %v9402
    %9699 = vmatprep.subr.mxu0 %v9391
    %9700 = vmatpush1.msra.mxu0 %v9390
    %9701 = vmatprep.subr.mxu0 %v9379
    %9702 = vmatpush1.msra.mxu0 %v9378
    %9703 = vmatprep.subr.mxu0 0.0
    %9704 = vmatpush2.msra.mxu0 0.0
    %9705 = vmatprep.subr.mxu0 0.0
    %9706 = vmatpush2.msra.mxu0 0.0
    %9707 = vmatprep.subr.mxu0 0.0
    %9708 = vmatpush2.msra.mxu0 0.0
    %9709 = vmatprep.subr.mxu0 0.0
    %9710 = vmatpush2.msra.mxu0 0.0
    %9711 = vmatprep.subr.mxu0 0.0
    %9712 = vmatpush2.msra.mxu0 0.0
    %9713 = vmatprep.subr.mxu0 0.0
    %9714 = vmatpush2.msra.mxu0 0.0
    %9715 = vmatprep.subr.mxu0 0.0
    %9716 = vmatpush2.msra.mxu0 0.0
    %9717 = vmatprep.subr.mxu0 0.0
    %9718 = vmatpush2.msra.mxu0 0.0
    %9719 = vmatprep.subr.mxu0 0.0
    %9720 = vmatpush2.msra.mxu0 0.0
    %9721 = vmatprep.subr.mxu0 0.0
    %9722 = vmatpush2.msra.mxu0 0.0
    %9723 = vmatprep.subr.mxu0 0.0
    %9724 = vmatpush2.msra.mxu0 0.0
    %9725 = vmatprep.subr.mxu0 0.0
    %9726 = vmatpush2.msra.mxu0 0.0
    %9727 = vmatprep.subr.mxu0 0.0
    %9728 = vmatpush2.msra.mxu0 0.0
    %9729 = vmatprep.subr.mxu0 0.0
    %9730 = vmatpush2.msra.mxu0 0.0
    %9731 = vmatprep.subr.mxu0 0.0
    %9732 = vmatpush2.msra.mxu0 0.0
    %9733 = vmatprep.subr.mxu0 0.0
    %9734 = vmatpush2.msra.mxu0 0.0
    %9735 = vmatprep.mubr.f32.mxu0 0.0
    %9736 = vmatmul.mubr.f32.gmra.mxu0 %v9435
    %v9737 = vpop.f32.mrf.mxu0
    %v9738 = vadd.f32 %v9427, %v9737
    %v9739 = vpop.f32.mrf.mxu0
    %v9740 = vadd.f32 %v9427, %v9739
    %9741 = vmatprep.mubr.f32.mxu0 0.0
    %9742 = vmatmul.mubr.f32.gmra.mxu0 %v9438
    %v9743 = vpop.f32.mrf.mxu0
    %v9744 = vadd.f32 %v9432, %v9743
    %v9745 = vpop.f32.mrf.mxu0
    %v9746 = vadd.f32 %v9432, %v9745
    %9747 = vdwg.mxu0
    %9748 = vmatprep.subr.mxu0 0.0
    %9749 = vmatpush1.msra.mxu0 0.0
    %9750 = vmatprep.subr.mxu0 0.0
    %9751 = vmatpush1.msra.mxu0 0.0
    %9752 = vmatprep.subr.mxu0 0.0
    %9753 = vmatpush1.msra.mxu0 0.0
    %9754 = vmatprep.subr.mxu0 0.0
    %9755 = vmatpush1.msra.mxu0 0.0
    %9756 = vmatprep.subr.mxu0 0.0
    %9757 = vmatpush1.msra.mxu0 0.0
    %9758 = vmatprep.subr.mxu0 0.0
    %9759 = vmatpush1.msra.mxu0 0.0
    %9760 = vmatprep.subr.mxu0 0.0
    %9761 = vmatpush1.msra.mxu0 0.0
    %9762 = vmatprep.subr.mxu0 0.0
    %9763 = vmatpush1.msra.mxu0 0.0
    %9764 = vmatprep.subr.mxu0 0.0
    %9765 = vmatpush1.msra.mxu0 0.0
    %9766 = vmatprep.subr.mxu0 0.0
    %9767 = vmatpush1.msra.mxu0 0.0
    %9768 = vmatprep.subr.mxu0 0.0
    %9769 = vmatpush1.msra.mxu0 0.0
    %9770 = vmatprep.subr.mxu0 0.0
    %9771 = vmatpush1.msra.mxu0 0.0
    %9772 = vmatprep.subr.mxu0 %v9417
    %9773 = vmatpush1.msra.mxu0 %v9416
    %9774 = vmatprep.subr.mxu0 %v9405
    %9775 = vmatpush1.msra.mxu0 %v9404
    %9776 = vmatprep.subr.mxu0 %v9393
    %9777 = vmatpush1.msra.mxu0 %v9392
    %9778 = vmatprep.subr.mxu0 %v9381
    %9779 = vmatpush1.msra.mxu0 %v9380
    %9780 = vmatprep.subr.mxu0 0.0
    %9781 = vmatpush2.msra.mxu0 0.0
    %9782 = vmatprep.subr.mxu0 0.0
    %9783 = vmatpush2.msra.mxu0 0.0
    %9784 = vmatprep.subr.mxu0 0.0
    %9785 = vmatpush2.msra.mxu0 0.0
    %9786 = vmatprep.subr.mxu0 0.0
    %9787 = vmatpush2.msra.mxu0 0.0
    %9788 = vmatprep.subr.mxu0 0.0
    %9789 = vmatpush2.msra.mxu0 0.0
    %9790 = vmatprep.subr.mxu0 0.0
    %9791 = vmatpush2.msra.mxu0 0.0
    %9792 = vmatprep.subr.mxu0 0.0
    %9793 = vmatpush2.msra.mxu0 0.0
    %9794 = vmatprep.subr.mxu0 0.0
    %9795 = vmatpush2.msra.mxu0 0.0
    %9796 = vmatprep.subr.mxu0 0.0
    %9797 = vmatpush2.msra.mxu0 0.0
    %9798 = vmatprep.subr.mxu0 0.0
    %9799 = vmatpush2.msra.mxu0 0.0
    %9800 = vmatprep.subr.mxu0 0.0
    %9801 = vmatpush2.msra.mxu0 0.0
    %9802 = vmatprep.subr.mxu0 0.0
    %9803 = vmatpush2.msra.mxu0 0.0
    %9804 = vmatprep.subr.mxu0 0.0
    %9805 = vmatpush2.msra.mxu0 0.0
    %9806 = vmatprep.subr.mxu0 0.0
    %9807 = vmatpush2.msra.mxu0 0.0
    %9808 = vmatprep.subr.mxu0 0.0
    %9809 = vmatpush2.msra.mxu0 0.0
    %9810 = vmatprep.subr.mxu0 0.0
    %9811 = vmatpush2.msra.mxu0 0.0
    %9812 = vmatprep.mubr.f32.mxu0 0.0
    %9813 = vmatmul.mubr.f32.gmra.mxu0 %v9435
    %v9814 = vpop.f32.mrf.mxu0
    %v9815 = vadd.f32 %v9427, %v9814
    %v9816 = vpop.f32.mrf.mxu0
    %v9817 = vadd.f32 %v9427, %v9816
    %9818 = vmatprep.mubr.f32.mxu0 0.0
    %9819 = vmatmul.mubr.f32.gmra.mxu0 %v9438
    %v9820 = vpop.f32.mrf.mxu0
    %v9821 = vadd.f32 %v9432, %v9820
    %v9822 = vpop.f32.mrf.mxu0
    %v9823 = vadd.f32 %v9432, %v9822
    %9824 = vdwg.mxu0
    %9825 = vmatprep.subr.mxu0 0.0
    %9826 = vmatpush1.msra.mxu0 0.0
    %9827 = vmatprep.subr.mxu0 0.0
    %9828 = vmatpush1.msra.mxu0 0.0
    %9829 = vmatprep.subr.mxu0 0.0
    %9830 = vmatpush1.msra.mxu0 0.0
    %9831 = vmatprep.subr.mxu0 0.0
    %9832 = vmatpush1.msra.mxu0 0.0
    %9833 = vmatprep.subr.mxu0 0.0
    %9834 = vmatpush1.msra.mxu0 0.0
    %9835 = vmatprep.subr.mxu0 0.0
    %9836 = vmatpush1.msra.mxu0 0.0
    %9837 = vmatprep.subr.mxu0 0.0
    %9838 = vmatpush1.msra.mxu0 0.0
    %9839 = vmatprep.subr.mxu0 0.0
    %9840 = vmatpush1.msra.mxu0 0.0
    %9841 = vmatprep.subr.mxu0 0.0
    %9842 = vmatpush1.msra.mxu0 0.0
    %9843 = vmatprep.subr.mxu0 0.0
    %9844 = vmatpush1.msra.mxu0 0.0
    %9845 = vmatprep.subr.mxu0 0.0
    %9846 = vmatpush1.msra.mxu0 0.0
    %9847 = vmatprep.subr.mxu0 0.0
    %9848 = vmatpush1.msra.mxu0 0.0
    %9849 = vmatprep.subr.mxu0 %v9419
    %9850 = vmatpush1.msra.mxu0 %v9418
    %9851 = vmatprep.subr.mxu0 %v9407
    %9852 = vmatpush1.msra.mxu0 %v9406
    %9853 = vmatprep.subr.mxu0 %v9395
    %9854 = vmatpush1.msra.mxu0 %v9394
    %9855 = vmatprep.subr.mxu0 %v9383
    %9856 = vmatpush1.msra.mxu0 %v9382
    %9857 = vmatprep.subr.mxu0 0.0
    %9858 = vmatpush2.msra.mxu0 0.0
    %9859 = vmatprep.subr.mxu0 0.0
    %9860 = vmatpush2.msra.mxu0 0.0
    %9861 = vmatprep.subr.mxu0 0.0
    %9862 = vmatpush2.msra.mxu0 0.0
    %9863 = vmatprep.subr.mxu0 0.0
    %9864 = vmatpush2.msra.mxu0 0.0
    %9865 = vmatprep.subr.mxu0 0.0
    %9866 = vmatpush2.msra.mxu0 0.0
    %9867 = vmatprep.subr.mxu0 0.0
    %9868 = vmatpush2.msra.mxu0 0.0
    %9869 = vmatprep.subr.mxu0 0.0
    %9870 = vmatpush2.msra.mxu0 0.0
    %9871 = vmatprep.subr.mxu0 0.0
    %9872 = vmatpush2.msra.mxu0 0.0
    %9873 = vmatprep.subr.mxu0 0.0
    %9874 = vmatpush2.msra.mxu0 0.0
    %9875 = vmatprep.subr.mxu0 0.0
    %9876 = vmatpush2.msra.mxu0 0.0
    %9877 = vmatprep.subr.mxu0 0.0
    %9878 = vmatpush2.msra.mxu0 0.0
    %9879 = vmatprep.subr.mxu0 0.0
    %9880 = vmatpush2.msra.mxu0 0.0
    %9881 = vmatprep.subr.mxu0 0.0
    %9882 = vmatpush2.msra.mxu0 0.0
    %9883 = vmatprep.subr.mxu0 0.0
    %9884 = vmatpush2.msra.mxu0 0.0
    %9885 = vmatprep.subr.mxu0 0.0
    %9886 = vmatpush2.msra.mxu0 0.0
    %9887 = vmatprep.subr.mxu0 0.0
    %9888 = vmatpush2.msra.mxu0 0.0
    %9889 = vmatprep.mubr.f32.mxu0 0.0
    %9890 = vmatmul.mubr.f32.gmra.mxu0 %v9435
    %v9891 = vpop.f32.mrf.mxu0
    %v9892 = vadd.f32 %v9427, %v9891
    %v9893 = vpop.f32.mrf.mxu0
    %v9894 = vadd.f32 %v9427, %v9893
    %9895 = vmatprep.mubr.f32.mxu0 0.0
    %9896 = vmatmul.mubr.f32.gmra.mxu0 %v9438
    %v9897 = vpop.f32.mrf.mxu0
    %v9898 = vadd.f32 %v9432, %v9897
    %v9899 = vpop.f32.mrf.mxu0
    %v9900 = vadd.f32 %v9432, %v9899
    %9901 = vdwg.mxu0
    %9902 = vst [vmem:[#allocation5] sm:$0xff] %v9507
    %9903 = vst [vmem:[#allocation5 + $0x8] sm:$0xff] %v9509
    %9904 = vst [vmem:[#allocation5 + $0x10] sm:$0xff] %v9584
    %9905 = vst [vmem:[#allocation5 + $0x18] sm:$0xff] %v9586
    %9906 = vst [vmem:[#allocation5 + $0x20] sm:$0xff] %v9661
    %9907 = vst [vmem:[#allocation5 + $0x28] sm:$0xff] %v9663
    %9908 = vst [vmem:[#allocation5 + $0x30] sm:$0xff] %v9738
    %9909 = vst [vmem:[#allocation5 + $0x38] sm:$0xff] %v9740
    %9910 = vst [vmem:[#allocation5 + $0x40] sm:$0xff] %v9815
    %9911 = vst [vmem:[#allocation5 + $0x48] sm:$0xff] %v9817
    %9912 = vst [vmem:[#allocation5 + $0x50] sm:$0xff] %v9892
    %9913 = vst [vmem:[#allocation5 + $0x58] sm:$0xff] %v9894
    %9914 = vst [vmem:[#allocation5 + $0x60] sm:$0x1] %v9513
    %9915 = vst [vmem:[#allocation5 + $0x68] sm:$0x1] %v9515
    %9916 = vst [vmem:[#allocation5 + $0x70] sm:$0x1] %v9590
    %9917 = vst [vmem:[#allocation5 + $0x78] sm:$0x1] %v9592
    %9918 = vst [vmem:[#allocation5 + $0x80] sm:$0x1] %v9667
    %9919 = vst [vmem:[#allocation5 + $0x88] sm:$0x1] %v9669
    %9920 = vst [vmem:[#allocation5 + $0x90] sm:$0x1] %v9744
    %9921 = vst [vmem:[#allocation5 + $0x98] sm:$0x1] %v9746
    %9922 = vst [vmem:[#allocation5 + $0xa0] sm:$0x1] %v9821
    %9923 = vst [vmem:[#allocation5 + $0xa8] sm:$0x1] %v9823
    %9924 = vst [vmem:[#allocation5 + $0xb0] sm:$0x1] %v9898
    %9925 = vst [vmem:[#allocation5 + $0xb8] sm:$0x1] %v9900
    // Predicated region
    $region46: #{tpu_custom_call.1} parent=1 // pred_check
      _
    $region47: #{tpu_custom_call.1} parent=1 // pred_check_branch
      %9927 = sbr.rel (0) target = $region49
    $region48: #{tpu_custom_call.1} parent=1 // pred_region
      %s9929 = ssub.s32 3072, 3072
      %9930 = vsyncadd [#allocation4], %s9929
      %s9931 = sshll.u32 [#allocation5], 4
      %s9932 = int_to_ptr.vmem [resolvable:$true] %s9931
      %9937 = dma.vmem_to_hbm [thread:$0]  %s9932, 3072, %s10, [#allocation4], 1536, 1536, 96
    $region49: #{tpu_custom_call.1} parent=1 // pred_fallthru
      _
    // Predicated region
    $region50: #{tpu_custom_call.1} parent=1 // pred_check
      _
    $region51: #{tpu_custom_call.1} parent=1 // pred_check_branch
      %9939 = sbr.rel (0) target = $region53
    $region52: #{tpu_custom_call.1} parent=1 // pred_region
      %9940 = dma.done [#allocation4], 3072
    $region53: #{tpu_custom_call.1} parent=1 // pred_fallthru
      _
    %9941 = vsyncpa [#allocation3], 1
    %9942 = vsyncpa [#allocation4], 1

</llo_original>
